<compile_context>
chip_gen: v7x
topology: tpu7x:2x2x1
jax: 0.10.0
libtpu: 0.0.40
codegen_flags: <defaults>
</compile_context>

<pallas_src>
import functools
import math

import jax
import jax.numpy as jnp
from jax.experimental import pallas as pl
from jax.experimental.pallas import tpu as pltpu

LN_EPS = 1e-5


def _layernorm(x, gamma, beta):
    mu = jnp.mean(x, axis=-1, keepdims=True)
    var = jnp.mean(jnp.square(x - mu), axis=-1, keepdims=True)
    return (x - mu) * jax.lax.rsqrt(var + LN_EPS) * gamma + beta


def _erf(x):
    # Abramowitz & Stegun 7.1.26 rational approximation, max abs error ~1.5e-7.
    # Uses only exp / mul / add / where -> guaranteed VPU+EUP lowering.
    a1, a2, a3, a4, a5 = (0.254829592, -0.284496736, 1.421413741,
                          -1.453152027, 1.061405429)
    p = 0.3275911
    ax = jnp.abs(x)
    t = 1.0 / (1.0 + p * ax)
    poly = ((((a5 * t + a4) * t + a3) * t + a2) * t + a1) * t
    y = 1.0 - poly * jnp.exp(-ax * ax)
    return jnp.where(x >= 0, y, -y)


def _gelu_exact(x):
    # Matches nn.GELU() (exact erf form) to ~1e-7.
    return 0.5 * x * (1.0 + _erf(x * 0.7071067811865476))


def encoder_kernel(
    x_ref,                      # (S, Bb, D)  float32 activation block
    g1_ref, b1_ref,             # (1, D)              layernorm1
    win_ref, bin_ref,           # (D, 3D) bf16, (1, 3D) f32   in-proj (pre-transposed)
    wo_ref, bo_ref,             # (D, D)  bf16, (1, D)  f32   out-proj (pre-transposed)
    g2_ref, b2_ref,             # (1, D)              layernorm2
    w1_ref, bf1_ref,            # (D, H)  bf16, (1, H)  f32   fc1 (pre-transposed)
    w2_ref, bf2_ref,            # (H, D)  bf16, (1, D)  f32   fc2 (pre-transposed)
    o_ref,                      # (S, Bb, D)
    *, num_heads,
):
    S, Bb, D = x_ref.shape
    hd = D // num_heads
    scale = 1.0 / math.sqrt(hd)
    R = Bb * S

    # ---- batch-major relayout, done once in VMEM: Bb lane-dense (S, D) slab
    # copies (replaces the two wrapper-side HBM transposes of the old version).
    xv = x_ref[...].astype(jnp.float32)                                   # (S, Bb, D)
    x = jnp.stack([xv[:, b, :] for b in range(Bb)], axis=0).reshape(R, D)  # b-major rows

    # ---- LayerNorm 1 (f32) ----
    xn = _layernorm(x, g1_ref[...], b1_ref[...])

    # ---- fused QKV projection: bf16 operands, f32 accumulation on the MXU ----
    qkv = jnp.dot(xn.astype(jnp.bfloat16), win_ref[...],
                  preferred_element_type=jnp.float32) + bin_ref[...]      # (R, 3D)
    qkv3 = qkv.astype(jnp.bfloat16).reshape(Bb, S, 3 * D)

    def heads(off):
        # num_heads bulk (Bb, S, hd) lane-slices stacked into the batched-matmul
        # batch dim -> (Bb*H, S, hd).  One pass over the data, no per-(b,h) staging.
        parts = [qkv3[:, :, off + h * hd: off + (h + 1) * hd]
                 for h in range(num_heads)]
        return jnp.stack(parts, axis=1).reshape(Bb * num_heads, S, hd)

    q = heads(0)
    k = heads(D)
    v = heads(2 * D)

    # ---- attention: single batched einsum over all (batch, head) pairs ----
    s = jnp.einsum("nqd,nkd->nqk", q, k,
                   preferred_element_type=jnp.float32) * scale
    s = s - jnp.max(s, axis=-1, keepdims=True)
    p = jnp.exp(s)
    p = p * pl.reciprocal(jnp.sum(p, axis=-1, keepdims=True), approx=True)
    ctx = jnp.einsum("nqk,nkd->nqd", p.astype(jnp.bfloat16), v,
                     preferred_element_type=jnp.float32)                  # (Bb*H, S, hd)
    # TODO(synk): KV-tiled flash-style online softmax for S >= 512 (scores grow
    # quadratically and will not fit VMEM on any generation).

    # merge heads: num_heads bulk lane-concats back to (R, D) b-major rows
    ctx4 = ctx.reshape(Bb, num_heads, S, hd)
    merged = jnp.concatenate([ctx4[:, h] for h in range(num_heads)],
                             axis=-1).reshape(R, D)

    attn = jnp.dot(merged.astype(jnp.bfloat16), wo_ref[...],
                   preferred_element_type=jnp.float32) + bo_ref[...]
    x1 = x + attn

    # ---- LayerNorm 2 + MLP (exact-erf GELU) ----
    yn = _layernorm(x1, g2_ref[...], b2_ref[...])
    h1 = jnp.dot(yn.astype(jnp.bfloat16), w1_ref[...],
                 preferred_element_type=jnp.float32) + bf1_ref[...]
    h1 = _gelu_exact(h1)
    # TODO(synk): tile fc1/fc2 over the hidden dim at production R*hidden sizes.
    h2 = jnp.dot(h1.astype(jnp.bfloat16), w2_ref[...],
                 preferred_element_type=jnp.float32) + bf2_ref[...]

    # ---- back to (S, Bb, D) layout and store (single bulk store) ----
    y = (x1 + h2).reshape(Bb, S, D)
    o_ref[...] = jnp.stack([y[b] for b in range(Bb)], axis=1).astype(o_ref.dtype)


def _vmem_limit_bytes():
    # v5e/v6e: 128 MiB physical VMEM, v7x: 64 MiB per TensorCore.  The default
    # scoped limit (32 MiB) throttles block sizes at production shapes.
    try:
        cap = int(pltpu.get_tpu_info().vmem_capacity_bytes)
    except Exception:
        cap = 64 * 1024 * 1024
    return max(32 * 1024 * 1024, min(100 * 1024 * 1024, (cap * 3) // 4))


def _pick_batch_block(S, B, D, hidden, num_heads):
    # x is laid out (S, B, D); the batch-block dim is the second-to-last dim of
    # the BlockSpec block, so it must be a multiple of 8 (or the full extent).
    if B % 8 != 0:
        return B
    # rough f32 bytes of live per-batch intermediates (x, qkv, ctx, h1, scores)
    per_batch = 4 * (S * (8 * D + hidden) + 2 * num_heads * S * S)
    budget = 24 * 1024 * 1024
    bb = max(8, min(B, (budget // max(per_batch, 1)) // 8 * 8))
    # keep >= 2 grid steps so input/output DMA pipelines and both v7x TensorCores
    # get work
    if B >= 16:
        bb = min(bb, max(8, (B // 2) // 8 * 8))
    while B % bb:
        bb -= 8
    return int(max(bb, 8))


def transformer_encoder(x_sbd, params, num_heads, *, batch_block=None):
    """x_sbd: (S, B, D) -- PyTorch nn.MultiheadAttention layout (batch_first=False).

    `params` must already hold bf16 matmul weights (see prepare_params); the cast
    is done once at init, not per call.
    """
    S, B, D = x_sbd.shape
    assert D % num_heads == 0
    hidden = params["w1"].shape[1]

    if batch_block is None:
        batch_block = _pick_batch_block(S, B, D, hidden, num_heads)
    assert B % batch_block == 0

    kern = functools.partial(encoder_kernel, num_heads=num_heads)

    def const_spec(shape):
        zeros = tuple(0 for _ in shape)
        return pl.BlockSpec(shape, lambda b: zeros)
        # TODO(synk): pipeline_mode=pl.Buffered(1) here on v7x to single-buffer
        # the constant-index (resident) weights.

    out = pl.pallas_call(
        kern,
        out_shape=jax.ShapeDtypeStruct((S, B, D), x_sbd.dtype),
        grid=(B // batch_block,),
        in_specs=[
            pl.BlockSpec((S, batch_block, D), lambda b: (0, b, 0)),   # x
            const_spec((1, D)), const_spec((1, D)),                   # norm1
            const_spec((D, 3 * D)), const_spec((1, 3 * D)),           # in-proj
            const_spec((D, D)), const_spec((1, D)),                   # out-proj
            const_spec((1, D)), const_spec((1, D)),                   # norm2
            const_spec((D, hidden)), const_spec((1, hidden)),         # fc1
            const_spec((hidden, D)), const_spec((1, D)),              # fc2
        ],
        out_specs=pl.BlockSpec((S, batch_block, D), lambda b: (0, b, 0)),
        compiler_params=pltpu.CompilerParams(
            dimension_semantics=("parallel",),
            vmem_limit_bytes=_vmem_limit_bytes()),
    )(x_sbd,
      params["g1"], params["b1"],
      params["win"], params["bin"],
      params["wo"], params["bo"],
      params["g2"], params["b2"],
      params["w1"], params["bf1"],
      params["w2"], params["bf2"])
    return out


def prepare_params(params):
    """One-time bf16 cast of the MXU weight operands (do NOT re-cast per call)."""
    out = dict(params)
    for name in ("win", "wo", "w1", "w2"):
        out[name] = params[name].astype(jnp.bfloat16)
    return out


def reference_encoder(x_sbd, params, num_heads):
    """Pure-JAX f32 reference of the PyTorch forward pass (correctness check)."""
    x = jnp.transpose(x_sbd, (1, 0, 2)).astype(jnp.float32)   # (B, S, D)
    D = x.shape[-1]
    hd = D // num_heads

    def ln(v, g, b):
        mu = jnp.mean(v, axis=-1, keepdims=True)
        var = jnp.mean((v - mu) ** 2, axis=-1, keepdims=True)
        return (v - mu) / jnp.sqrt(var + LN_EPS) * g + b

    xn = ln(x, params["g1"], params["b1"])
    qkv = xn @ params["win"] + params["bin"]
    q, k, v = qkv[..., :D], qkv[..., D:2 * D], qkv[..., 2 * D:]

    def split(t):  # (B, S, D) -> (B, H, S, hd)
        B, S, _ = t.shape
        return jnp.transpose(t.reshape(B, S, num_heads, hd), (0, 2, 1, 3))

    qh, kh, vh = split(q) / math.sqrt(hd), split(k), split(v)
    s = jnp.einsum("bhqd,bhkd->bhqk", qh, kh)
    p = jax.nn.softmax(s, axis=-1)
    a = jnp.einsum("bhqk,bhkd->bhqd", p, vh)
    a = jnp.transpose(a, (0, 2, 1, 3)).reshape(x.shape)
    a = a @ params["wo"] + params["bo"]
    x1 = x + a
    yn = ln(x1, params["g2"], params["b2"])
    h1 = jax.nn.gelu(yn @ params["w1"] + params["bf1"], approximate=False)
    out = x1 + (h1 @ params["w2"] + params["bf2"])
    return jnp.transpose(out, (1, 0, 2))


def make_params(key, dim, num_heads, mlp_ratio):
    hidden = dim * mlp_ratio
    ks = jax.random.split(key, 8)
    s = 0.05
    return {
        "g1": jnp.ones((1, dim), jnp.float32),
        "b1": jnp.zeros((1, dim), jnp.float32),
        # stored pre-transposed: (in, out)
        "win": s * jax.random.normal(ks[0], (dim, 3 * dim), jnp.float32),
        "bin": s * jax.random.normal(ks[1], (1, 3 * dim), jnp.float32),
        "wo": s * jax.random.normal(ks[2], (dim, dim), jnp.float32),
        "bo": s * jax.random.normal(ks[3], (1, dim), jnp.float32),
        "g2": jnp.ones((1, dim), jnp.float32),
        "b2": jnp.zeros((1, dim), jnp.float32),
        "w1": s * jax.random.normal(ks[4], (dim, hidden), jnp.float32),
        "bf1": s * jax.random.normal(ks[5], (1, hidden), jnp.float32),
        "w2": s * jax.random.normal(ks[6], (hidden, dim), jnp.float32),
        "bf2": s * jax.random.normal(ks[7], (1, dim), jnp.float32),
    }


if __name__ == "__main__":
    S, B, D = 8, 16, 32            # (seq, batch, dim) -- PyTorch MHA layout
    num_heads, mlp_ratio = 4, 2

    key = jax.random.PRNGKey(0)
    kx, kp = jax.random.split(key)
    x = jax.random.normal(kx, (S, B, D), jnp.float32)
    params_f32 = make_params(kp, D, num_heads, mlp_ratio)
    params = prepare_params(params_f32)          # one-time bf16 weight cast

    ref = reference_encoder(x, params_f32, num_heads)

    enc = jax.jit(transformer_encoder, static_argnames=("num_heads", "batch_block"))

    # Default path: grid over batch (batch_block=8 -> 2 grid steps), "parallel" axis.
    out = jax.block_until_ready(enc(x, params, num_heads=num_heads))
    assert out.shape == (S, B, D)
    # Tolerance 2e-2: bf16 matmul operands (f32 accumulation), approx reciprocal in
    # softmax, polynomial erf -- vs. the pure-f32 reference (~1e-3 observed error).
    assert jnp.allclose(out, ref, atol=2e-2, rtol=2e-2), "gridded kernel mismatch"

    # Single-block path (grid of 1) -- the fallback used when B is not a multiple of 8.
    out2 = jax.block_until_ready(enc(x, params, num_heads=num_heads, batch_block=B))
    assert jnp.allclose(out2, ref, atol=2e-2, rtol=2e-2), "single-block kernel mismatch"

    print("KERNEL_OK")
</pallas_src>

<mosaic_0001>
module attributes {stable_mosaic.version = 11 : i64} {
  func.func @encoder_kernel(%arg0: i32, %arg1: memref<8x8x32xf32, #tpu.memory_space<vmem>>, %arg2: memref<1x32xf32, #tpu.memory_space<vmem>>, %arg3: memref<1x32xf32, #tpu.memory_space<vmem>>, %arg4: memref<32x96xbf16, #tpu.memory_space<vmem>>, %arg5: memref<1x96xf32, #tpu.memory_space<vmem>>, %arg6: memref<32x32xbf16, #tpu.memory_space<vmem>>, %arg7: memref<1x32xf32, #tpu.memory_space<vmem>>, %arg8: memref<1x32xf32, #tpu.memory_space<vmem>>, %arg9: memref<1x32xf32, #tpu.memory_space<vmem>>, %arg10: memref<32x64xbf16, #tpu.memory_space<vmem>>, %arg11: memref<1x64xf32, #tpu.memory_space<vmem>>, %arg12: memref<64x32xbf16, #tpu.memory_space<vmem>>, %arg13: memref<1x32xf32, #tpu.memory_space<vmem>>, %arg14: memref<8x8x32xf32, #tpu.memory_space<vmem>>) attributes {dimension_semantics = [#tpu.dimension_semantics<parallel>], iteration_bounds = array<i64: 2>, scalar_prefetch = 0 : i64, scratch_operands = 0 : i64, tpu.core_type = #tpu.core_type<tc>, window_params = [{transform_indices = @transform_0, window_bounds = array<i64: 8, 8, 32>}, {pipeline_mode = #tpu.pipeline_mode<synchronous>, transform_indices = @transform_1, window_bounds = array<i64: 1, 32>}, {pipeline_mode = #tpu.pipeline_mode<synchronous>, transform_indices = @transform_2, window_bounds = array<i64: 1, 32>}, {pipeline_mode = #tpu.pipeline_mode<synchronous>, transform_indices = @transform_3, window_bounds = array<i64: 32, 96>}, {pipeline_mode = #tpu.pipeline_mode<synchronous>, transform_indices = @transform_4, window_bounds = array<i64: 1, 96>}, {pipeline_mode = #tpu.pipeline_mode<synchronous>, transform_indices = @transform_5, window_bounds = array<i64: 32, 32>}, {pipeline_mode = #tpu.pipeline_mode<synchronous>, transform_indices = @transform_6, window_bounds = array<i64: 1, 32>}, {pipeline_mode = #tpu.pipeline_mode<synchronous>, transform_indices = @transform_7, window_bounds = array<i64: 1, 32>}, {pipeline_mode = #tpu.pipeline_mode<synchronous>, transform_indices = @transform_8, window_bounds = array<i64: 1, 32>}, {pipeline_mode = #tpu.pipeline_mode<synchronous>, transform_indices = @transform_9, window_bounds = array<i64: 32, 64>}, {pipeline_mode = #tpu.pipeline_mode<synchronous>, transform_indices = @transform_10, window_bounds = array<i64: 1, 64>}, {pipeline_mode = #tpu.pipeline_mode<synchronous>, transform_indices = @transform_11, window_bounds = array<i64: 64, 32>}, {pipeline_mode = #tpu.pipeline_mode<synchronous>, transform_indices = @transform_12, window_bounds = array<i64: 1, 32>}, {transform_indices = @transform_13, window_bounds = array<i64: 8, 8, 32>}]} {
    %c0 = arith.constant 0 : index
    %c0_0 = arith.constant 0 : index
    %c0_1 = arith.constant 0 : index
    %0 = vector.load %arg1[%c0, %c0_0, %c0_1] : memref<8x8x32xf32, #tpu.memory_space<vmem>>, vector<8x8x32xf32>
    %1 = vector.extract_strided_slice %0 {offsets = [0, 0, 0], sizes = [8, 1, 32], strides = [1, 1, 1]} : vector<8x8x32xf32> to vector<8x1x32xf32>
    %2 = vector.shape_cast %1 : vector<8x1x32xf32> to vector<8x32xf32>
    %3 = vector.extract_strided_slice %0 {offsets = [0, 1, 0], sizes = [8, 1, 32], strides = [1, 1, 1]} : vector<8x8x32xf32> to vector<8x1x32xf32>
    %4 = vector.shape_cast %3 : vector<8x1x32xf32> to vector<8x32xf32>
    %5 = vector.extract_strided_slice %0 {offsets = [0, 2, 0], sizes = [8, 1, 32], strides = [1, 1, 1]} : vector<8x8x32xf32> to vector<8x1x32xf32>
    %6 = vector.shape_cast %5 : vector<8x1x32xf32> to vector<8x32xf32>
    %7 = vector.extract_strided_slice %0 {offsets = [0, 3, 0], sizes = [8, 1, 32], strides = [1, 1, 1]} : vector<8x8x32xf32> to vector<8x1x32xf32>
    %8 = vector.shape_cast %7 : vector<8x1x32xf32> to vector<8x32xf32>
    %9 = vector.extract_strided_slice %0 {offsets = [0, 4, 0], sizes = [8, 1, 32], strides = [1, 1, 1]} : vector<8x8x32xf32> to vector<8x1x32xf32>
    %10 = vector.shape_cast %9 : vector<8x1x32xf32> to vector<8x32xf32>
    %11 = vector.extract_strided_slice %0 {offsets = [0, 5, 0], sizes = [8, 1, 32], strides = [1, 1, 1]} : vector<8x8x32xf32> to vector<8x1x32xf32>
    %12 = vector.shape_cast %11 : vector<8x1x32xf32> to vector<8x32xf32>
    %13 = vector.extract_strided_slice %0 {offsets = [0, 6, 0], sizes = [8, 1, 32], strides = [1, 1, 1]} : vector<8x8x32xf32> to vector<8x1x32xf32>
    %14 = vector.shape_cast %13 : vector<8x1x32xf32> to vector<8x32xf32>
    %15 = vector.extract_strided_slice %0 {offsets = [0, 7, 0], sizes = [8, 1, 32], strides = [1, 1, 1]} : vector<8x8x32xf32> to vector<8x1x32xf32>
    %16 = vector.shape_cast %15 : vector<8x1x32xf32> to vector<8x32xf32>
    %17 = vector.shape_cast %2 : vector<8x32xf32> to vector<1x8x32xf32>
    %18 = vector.shape_cast %4 : vector<8x32xf32> to vector<1x8x32xf32>
    %19 = vector.shape_cast %6 : vector<8x32xf32> to vector<1x8x32xf32>
    %20 = vector.shape_cast %8 : vector<8x32xf32> to vector<1x8x32xf32>
    %21 = vector.shape_cast %10 : vector<8x32xf32> to vector<1x8x32xf32>
    %22 = vector.shape_cast %12 : vector<8x32xf32> to vector<1x8x32xf32>
    %23 = vector.shape_cast %14 : vector<8x32xf32> to vector<1x8x32xf32>
    %24 = vector.shape_cast %16 : vector<8x32xf32> to vector<1x8x32xf32>
    %25 = tpu.concatenate %17, %18, %19, %20, %21, %22, %23, %24 in 0 : vector<1x8x32xf32>, vector<1x8x32xf32>, vector<1x8x32xf32>, vector<1x8x32xf32>, vector<1x8x32xf32>, vector<1x8x32xf32>, vector<1x8x32xf32>, vector<1x8x32xf32> -> vector<8x8x32xf32>
    %26 = vector.shape_cast %25 : vector<8x8x32xf32> to vector<64x32xf32>
    %c0_2 = arith.constant 0 : index
    %c0_3 = arith.constant 0 : index
    %27 = vector.load %arg2[%c0_2, %c0_3] : memref<1x32xf32, #tpu.memory_space<vmem>>, vector<1x32xf32>
    %c0_4 = arith.constant 0 : index
    %c0_5 = arith.constant 0 : index
    %28 = vector.load %arg3[%c0_4, %c0_5] : memref<1x32xf32, #tpu.memory_space<vmem>>, vector<1x32xf32>
    %cst = arith.constant dense<0.000000e+00> : vector<64xf32>
    %29 = vector.multi_reduction <add>, %26, %cst [1] : vector<64x32xf32> to vector<64xf32>
    %30 = vector.shape_cast %29 : vector<64xf32> to vector<64x1xf32>
    %cst_6 = arith.constant 3.200000e+01 : f32
    %31 = vector.broadcast %cst_6 : f32 to vector<64x1xf32>
    %32 = arith.divf %30, %31 : vector<64x1xf32>
    %33 = vector.broadcast %32 : vector<64x1xf32> to vector<64x32xf32>
    %34 = arith.subf %26, %33 : vector<64x32xf32>
    %35 = arith.mulf %34, %34 : vector<64x32xf32>
    %cst_7 = arith.constant dense<0.000000e+00> : vector<64xf32>
    %36 = vector.multi_reduction <add>, %35, %cst_7 [1] : vector<64x32xf32> to vector<64xf32>
    %37 = vector.shape_cast %36 : vector<64xf32> to vector<64x1xf32>
    %cst_8 = arith.constant 3.200000e+01 : f32
    %38 = vector.broadcast %cst_8 : f32 to vector<64x1xf32>
    %39 = arith.divf %37, %38 : vector<64x1xf32>
    %40 = vector.broadcast %32 : vector<64x1xf32> to vector<64x32xf32>
    %41 = arith.subf %26, %40 : vector<64x32xf32>
    %cst_9 = arith.constant 9.99999974E-6 : f32
    %42 = vector.broadcast %cst_9 : f32 to vector<64x1xf32>
    %43 = arith.addf %39, %42 : vector<64x1xf32>
    %44 = math.rsqrt %43 : vector<64x1xf32>
    %45 = vector.broadcast %44 : vector<64x1xf32> to vector<64x32xf32>
    %46 = arith.mulf %41, %45 : vector<64x32xf32>
    %47 = vector.broadcast %27 : vector<1x32xf32> to vector<64x32xf32>
    %48 = arith.mulf %46, %47 : vector<64x32xf32>
    %49 = vector.broadcast %28 : vector<1x32xf32> to vector<64x32xf32>
    %50 = arith.addf %48, %49 : vector<64x32xf32>
    %51 = arith.truncf %50 : vector<64x32xf32> to vector<64x32xbf16>
    %c0_10 = arith.constant 0 : index
    %c0_11 = arith.constant 0 : index
    %52 = vector.load %arg4[%c0_10, %c0_11] : memref<32x96xbf16, #tpu.memory_space<vmem>>, vector<32x96xbf16>
    %cst_12 = arith.constant dense<0.000000e+00> : vector<64x96xf32>
    %53 = tpu.matmul %51, %52, %cst_12 {dimension_numbers = #tpu.dot_dimension_numbers<[1], [0], [0], [1], [0, 0, 1, 1], [], []>} : vector<64x32xbf16>, vector<32x96xbf16>, vector<64x96xf32> -> vector<64x96xf32>
    %c0_13 = arith.constant 0 : index
    %c0_14 = arith.constant 0 : index
    %54 = vector.load %arg5[%c0_13, %c0_14] : memref<1x96xf32, #tpu.memory_space<vmem>>, vector<1x96xf32>
    %55 = vector.broadcast %54 : vector<1x96xf32> to vector<64x96xf32>
    %56 = arith.addf %53, %55 : vector<64x96xf32>
    %57 = arith.truncf %56 : vector<64x96xf32> to vector<64x96xbf16>
    %58 = vector.shape_cast %57 : vector<64x96xbf16> to vector<8x8x96xbf16>
    %59 = vector.extract_strided_slice %58 {offsets = [0, 0, 0], sizes = [8, 8, 8], strides = [1, 1, 1]} : vector<8x8x96xbf16> to vector<8x8x8xbf16>
    %60 = vector.extract_strided_slice %58 {offsets = [0, 0, 8], sizes = [8, 8, 8], strides = [1, 1, 1]} : vector<8x8x96xbf16> to vector<8x8x8xbf16>
    %61 = vector.extract_strided_slice %58 {offsets = [0, 0, 16], sizes = [8, 8, 8], strides = [1, 1, 1]} : vector<8x8x96xbf16> to vector<8x8x8xbf16>
    %62 = vector.extract_strided_slice %58 {offsets = [0, 0, 24], sizes = [8, 8, 8], strides = [1, 1, 1]} : vector<8x8x96xbf16> to vector<8x8x8xbf16>
    %63 = vector.shape_cast %59 : vector<8x8x8xbf16> to vector<8x1x8x8xbf16>
    %64 = vector.shape_cast %60 : vector<8x8x8xbf16> to vector<8x1x8x8xbf16>
    %65 = vector.shape_cast %61 : vector<8x8x8xbf16> to vector<8x1x8x8xbf16>
    %66 = vector.shape_cast %62 : vector<8x8x8xbf16> to vector<8x1x8x8xbf16>
    %67 = tpu.concatenate %63, %64, %65, %66 in 1 : vector<8x1x8x8xbf16>, vector<8x1x8x8xbf16>, vector<8x1x8x8xbf16>, vector<8x1x8x8xbf16> -> vector<8x4x8x8xbf16>
    %68 = vector.shape_cast %67 : vector<8x4x8x8xbf16> to vector<32x8x8xbf16>
    %69 = vector.extract_strided_slice %58 {offsets = [0, 0, 32], sizes = [8, 8, 8], strides = [1, 1, 1]} : vector<8x8x96xbf16> to vector<8x8x8xbf16>
    %70 = vector.extract_strided_slice %58 {offsets = [0, 0, 40], sizes = [8, 8, 8], strides = [1, 1, 1]} : vector<8x8x96xbf16> to vector<8x8x8xbf16>
    %71 = vector.extract_strided_slice %58 {offsets = [0, 0, 48], sizes = [8, 8, 8], strides = [1, 1, 1]} : vector<8x8x96xbf16> to vector<8x8x8xbf16>
    %72 = vector.extract_strided_slice %58 {offsets = [0, 0, 56], sizes = [8, 8, 8], strides = [1, 1, 1]} : vector<8x8x96xbf16> to vector<8x8x8xbf16>
    %73 = vector.shape_cast %69 : vector<8x8x8xbf16> to vector<8x1x8x8xbf16>
    %74 = vector.shape_cast %70 : vector<8x8x8xbf16> to vector<8x1x8x8xbf16>
    %75 = vector.shape_cast %71 : vector<8x8x8xbf16> to vector<8x1x8x8xbf16>
    %76 = vector.shape_cast %72 : vector<8x8x8xbf16> to vector<8x1x8x8xbf16>
    %77 = tpu.concatenate %73, %74, %75, %76 in 1 : vector<8x1x8x8xbf16>, vector<8x1x8x8xbf16>, vector<8x1x8x8xbf16>, vector<8x1x8x8xbf16> -> vector<8x4x8x8xbf16>
    %78 = vector.shape_cast %77 : vector<8x4x8x8xbf16> to vector<32x8x8xbf16>
    %79 = vector.extract_strided_slice %58 {offsets = [0, 0, 64], sizes = [8, 8, 8], strides = [1, 1, 1]} : vector<8x8x96xbf16> to vector<8x8x8xbf16>
    %80 = vector.extract_strided_slice %58 {offsets = [0, 0, 72], sizes = [8, 8, 8], strides = [1, 1, 1]} : vector<8x8x96xbf16> to vector<8x8x8xbf16>
    %81 = vector.extract_strided_slice %58 {offsets = [0, 0, 80], sizes = [8, 8, 8], strides = [1, 1, 1]} : vector<8x8x96xbf16> to vector<8x8x8xbf16>
    %82 = vector.extract_strided_slice %58 {offsets = [0, 0, 88], sizes = [8, 8, 8], strides = [1, 1, 1]} : vector<8x8x96xbf16> to vector<8x8x8xbf16>
    %83 = vector.shape_cast %79 : vector<8x8x8xbf16> to vector<8x1x8x8xbf16>
    %84 = vector.shape_cast %80 : vector<8x8x8xbf16> to vector<8x1x8x8xbf16>
    %85 = vector.shape_cast %81 : vector<8x8x8xbf16> to vector<8x1x8x8xbf16>
    %86 = vector.shape_cast %82 : vector<8x8x8xbf16> to vector<8x1x8x8xbf16>
    %87 = tpu.concatenate %83, %84, %85, %86 in 1 : vector<8x1x8x8xbf16>, vector<8x1x8x8xbf16>, vector<8x1x8x8xbf16>, vector<8x1x8x8xbf16> -> vector<8x4x8x8xbf16>
    %88 = vector.shape_cast %87 : vector<8x4x8x8xbf16> to vector<32x8x8xbf16>
    "tpu.trace_start"() <{level = 10 : i32, message = "nqd,nkd->nqk"}> : () -> ()
    %cst_15 = arith.constant dense<0.000000e+00> : vector<32x8x8xf32>
    %89 = tpu.matmul %68, %78, %cst_15 {dimension_numbers = #tpu.dot_dimension_numbers<[2], [2], [1], [1], [0, 0, 0, 1, 1, 1], [0], [0]>} : vector<32x8x8xbf16>, vector<32x8x8xbf16>, vector<32x8x8xf32> -> vector<32x8x8xf32>
    "tpu.trace_stop"() : () -> ()
    %cst_16 = arith.constant 0.353553385 : f32
    %90 = vector.broadcast %cst_16 : f32 to vector<32x8x8xf32>
    %91 = arith.mulf %89, %90 : vector<32x8x8xf32>
    %cst_17 = arith.constant dense<0xFF800000> : vector<32x8xf32>
    %92 = vector.multi_reduction <maximumf>, %91, %cst_17 [2] : vector<32x8x8xf32> to vector<32x8xf32>
    %93 = vector.shape_cast %92 : vector<32x8xf32> to vector<32x8x1xf32>
    %94 = vector.broadcast %93 : vector<32x8x1xf32> to vector<32x8x8xf32>
    %95 = arith.subf %91, %94 : vector<32x8x8xf32>
    %96 = math.exp %95 : vector<32x8x8xf32>
    %cst_18 = arith.constant dense<0.000000e+00> : vector<32x8xf32>
    %97 = vector.multi_reduction <add>, %96, %cst_18 [2] : vector<32x8x8xf32> to vector<32x8xf32>
    %98 = vector.shape_cast %97 : vector<32x8xf32> to vector<32x8x1xf32>
    %99 = tpu.reciprocal %98 {approx = true} : vector<32x8x1xf32> -> vector<32x8x1xf32>
    %100 = vector.broadcast %99 : vector<32x8x1xf32> to vector<32x8x8xf32>
    %101 = arith.mulf %96, %100 : vector<32x8x8xf32>
    %102 = arith.truncf %101 : vector<32x8x8xf32> to vector<32x8x8xbf16>
    "tpu.trace_start"() <{level = 10 : i32, message = "nqk,nkd->nqd"}> : () -> ()
    %cst_19 = arith.constant dense<0.000000e+00> : vector<32x8x8xf32>
    %103 = tpu.matmul %102, %88, %cst_19 {dimension_numbers = #tpu.dot_dimension_numbers<[2], [1], [1], [2], [0, 0, 0, 1, 1, 2], [0], [0]>} : vector<32x8x8xbf16>, vector<32x8x8xbf16>, vector<32x8x8xf32> -> vector<32x8x8xf32>
    "tpu.trace_stop"() : () -> ()
    %104 = vector.shape_cast %103 : vector<32x8x8xf32> to vector<8x4x8x8xf32>
    %105 = vector.extract_strided_slice %104 {offsets = [0, 0, 0, 0], sizes = [8, 1, 8, 8], strides = [1, 1, 1, 1]} : vector<8x4x8x8xf32> to vector<8x1x8x8xf32>
    %106 = vector.shape_cast %105 : vector<8x1x8x8xf32> to vector<8x8x8xf32>
    %107 = vector.extract_strided_slice %104 {offsets = [0, 1, 0, 0], sizes = [8, 1, 8, 8], strides = [1, 1, 1, 1]} : vector<8x4x8x8xf32> to vector<8x1x8x8xf32>
    %108 = vector.shape_cast %107 : vector<8x1x8x8xf32> to vector<8x8x8xf32>
    %109 = vector.extract_strided_slice %104 {offsets = [0, 2, 0, 0], sizes = [8, 1, 8, 8], strides = [1, 1, 1, 1]} : vector<8x4x8x8xf32> to vector<8x1x8x8xf32>
    %110 = vector.shape_cast %109 : vector<8x1x8x8xf32> to vector<8x8x8xf32>
    %111 = vector.extract_strided_slice %104 {offsets = [0, 3, 0, 0], sizes = [8, 1, 8, 8], strides = [1, 1, 1, 1]} : vector<8x4x8x8xf32> to vector<8x1x8x8xf32>
    %112 = vector.shape_cast %111 : vector<8x1x8x8xf32> to vector<8x8x8xf32>
    %113 = tpu.concatenate %106, %108, %110, %112 in 2 : vector<8x8x8xf32>, vector<8x8x8xf32>, vector<8x8x8xf32>, vector<8x8x8xf32> -> vector<8x8x32xf32>
    %114 = vector.shape_cast %113 : vector<8x8x32xf32> to vector<64x32xf32>
    %115 = arith.truncf %114 : vector<64x32xf32> to vector<64x32xbf16>
    %c0_20 = arith.constant 0 : index
    %c0_21 = arith.constant 0 : index
    %116 = vector.load %arg6[%c0_20, %c0_21] : memref<32x32xbf16, #tpu.memory_space<vmem>>, vector<32x32xbf16>
    %cst_22 = arith.constant dense<0.000000e+00> : vector<64x32xf32>
    %117 = tpu.matmul %115, %116, %cst_22 {dimension_numbers = #tpu.dot_dimension_numbers<[1], [0], [0], [1], [0, 0, 1, 1], [], []>} : vector<64x32xbf16>, vector<32x32xbf16>, vector<64x32xf32> -> vector<64x32xf32>
    %c0_23 = arith.constant 0 : index
    %c0_24 = arith.constant 0 : index
    %118 = vector.load %arg7[%c0_23, %c0_24] : memref<1x32xf32, #tpu.memory_space<vmem>>, vector<1x32xf32>
    %119 = vector.broadcast %118 : vector<1x32xf32> to vector<64x32xf32>
    %120 = arith.addf %117, %119 : vector<64x32xf32>
    %121 = arith.addf %26, %120 : vector<64x32xf32>
    %c0_25 = arith.constant 0 : index
    %c0_26 = arith.constant 0 : index
    %122 = vector.load %arg8[%c0_25, %c0_26] : memref<1x32xf32, #tpu.memory_space<vmem>>, vector<1x32xf32>
    %c0_27 = arith.constant 0 : index
    %c0_28 = arith.constant 0 : index
    %123 = vector.load %arg9[%c0_27, %c0_28] : memref<1x32xf32, #tpu.memory_space<vmem>>, vector<1x32xf32>
    %cst_29 = arith.constant dense<0.000000e+00> : vector<64xf32>
    %124 = vector.multi_reduction <add>, %121, %cst_29 [1] : vector<64x32xf32> to vector<64xf32>
    %125 = vector.shape_cast %124 : vector<64xf32> to vector<64x1xf32>
    %cst_30 = arith.constant 3.200000e+01 : f32
    %126 = vector.broadcast %cst_30 : f32 to vector<64x1xf32>
    %127 = arith.divf %125, %126 : vector<64x1xf32>
    %128 = vector.broadcast %127 : vector<64x1xf32> to vector<64x32xf32>
    %129 = arith.subf %121, %128 : vector<64x32xf32>
    %130 = arith.mulf %129, %129 : vector<64x32xf32>
    %cst_31 = arith.constant dense<0.000000e+00> : vector<64xf32>
    %131 = vector.multi_reduction <add>, %130, %cst_31 [1] : vector<64x32xf32> to vector<64xf32>
    %132 = vector.shape_cast %131 : vector<64xf32> to vector<64x1xf32>
    %cst_32 = arith.constant 3.200000e+01 : f32
    %133 = vector.broadcast %cst_32 : f32 to vector<64x1xf32>
    %134 = arith.divf %132, %133 : vector<64x1xf32>
    %135 = vector.broadcast %127 : vector<64x1xf32> to vector<64x32xf32>
    %136 = arith.subf %121, %135 : vector<64x32xf32>
    %cst_33 = arith.constant 9.99999974E-6 : f32
    %137 = vector.broadcast %cst_33 : f32 to vector<64x1xf32>
    %138 = arith.addf %134, %137 : vector<64x1xf32>
    %139 = math.rsqrt %138 : vector<64x1xf32>
    %140 = vector.broadcast %139 : vector<64x1xf32> to vector<64x32xf32>
    %141 = arith.mulf %136, %140 : vector<64x32xf32>
    %142 = vector.broadcast %122 : vector<1x32xf32> to vector<64x32xf32>
    %143 = arith.mulf %141, %142 : vector<64x32xf32>
    %144 = vector.broadcast %123 : vector<1x32xf32> to vector<64x32xf32>
    %145 = arith.addf %143, %144 : vector<64x32xf32>
    %146 = arith.truncf %145 : vector<64x32xf32> to vector<64x32xbf16>
    %c0_34 = arith.constant 0 : index
    %c0_35 = arith.constant 0 : index
    %147 = vector.load %arg10[%c0_34, %c0_35] : memref<32x64xbf16, #tpu.memory_space<vmem>>, vector<32x64xbf16>
    %cst_36 = arith.constant dense<0.000000e+00> : vector<64x64xf32>
    %148 = tpu.matmul %146, %147, %cst_36 {dimension_numbers = #tpu.dot_dimension_numbers<[1], [0], [0], [1], [0, 0, 1, 1], [], []>} : vector<64x32xbf16>, vector<32x64xbf16>, vector<64x64xf32> -> vector<64x64xf32>
    %c0_37 = arith.constant 0 : index
    %c0_38 = arith.constant 0 : index
    %149 = vector.load %arg11[%c0_37, %c0_38] : memref<1x64xf32, #tpu.memory_space<vmem>>, vector<1x64xf32>
    %150 = vector.broadcast %149 : vector<1x64xf32> to vector<64x64xf32>
    %151 = arith.addf %148, %150 : vector<64x64xf32>
    %cst_39 = arith.constant 5.000000e-01 : f32
    %152 = vector.broadcast %cst_39 : f32 to vector<64x64xf32>
    %153 = arith.mulf %152, %151 : vector<64x64xf32>
    %cst_40 = arith.constant 0.707106769 : f32
    %154 = vector.broadcast %cst_40 : f32 to vector<64x64xf32>
    %155 = arith.mulf %151, %154 : vector<64x64xf32>
    %156 = math.absf %155 : vector<64x64xf32>
    %cst_41 = arith.constant 0.327591091 : f32
    %157 = vector.broadcast %cst_41 : f32 to vector<64x64xf32>
    %158 = arith.mulf %157, %156 : vector<64x64xf32>
    %cst_42 = arith.constant 1.000000e+00 : f32
    %159 = vector.broadcast %cst_42 : f32 to vector<64x64xf32>
    %160 = arith.addf %159, %158 : vector<64x64xf32>
    %cst_43 = arith.constant 1.000000e+00 : f32
    %161 = vector.broadcast %cst_43 : f32 to vector<64x64xf32>
    %162 = arith.divf %161, %160 : vector<64x64xf32>
    %cst_44 = arith.constant 1.06140542 : f32
    %163 = vector.broadcast %cst_44 : f32 to vector<64x64xf32>
    %164 = arith.mulf %163, %162 : vector<64x64xf32>
    %cst_45 = arith.constant -1.45315206 : f32
    %165 = vector.broadcast %cst_45 : f32 to vector<64x64xf32>
    %166 = arith.addf %164, %165 : vector<64x64xf32>
    %167 = arith.mulf %166, %162 : vector<64x64xf32>
    %cst_46 = arith.constant 1.42141378 : f32
    %168 = vector.broadcast %cst_46 : f32 to vector<64x64xf32>
    %169 = arith.addf %167, %168 : vector<64x64xf32>
    %170 = arith.mulf %169, %162 : vector<64x64xf32>
    %cst_47 = arith.constant -0.284496725 : f32
    %171 = vector.broadcast %cst_47 : f32 to vector<64x64xf32>
    %172 = arith.addf %170, %171 : vector<64x64xf32>
    %173 = arith.mulf %172, %162 : vector<64x64xf32>
    %cst_48 = arith.constant 0.254829586 : f32
    %174 = vector.broadcast %cst_48 : f32 to vector<64x64xf32>
    %175 = arith.addf %173, %174 : vector<64x64xf32>
    %176 = arith.mulf %175, %162 : vector<64x64xf32>
    %cst_49 = arith.constant 0.000000e+00 : f32
    %177 = vector.broadcast %cst_49 : f32 to vector<64x64xf32>
    %178 = arith.subf %177, %156 : vector<64x64xf32>
    %179 = arith.mulf %178, %156 : vector<64x64xf32>
    %180 = math.exp %179 : vector<64x64xf32>
    %181 = arith.mulf %176, %180 : vector<64x64xf32>
    %cst_50 = arith.constant 1.000000e+00 : f32
    %182 = vector.broadcast %cst_50 : f32 to vector<64x64xf32>
    %183 = arith.subf %182, %181 : vector<64x64xf32>
    %cst_51 = arith.constant 0.000000e+00 : f32
    %184 = vector.broadcast %cst_51 : f32 to vector<64x64xf32>
    %185 = arith.cmpf oge, %155, %184 : vector<64x64xf32>
    %cst_52 = arith.constant 0.000000e+00 : f32
    %186 = vector.broadcast %cst_52 : f32 to vector<64x64xf32>
    %187 = arith.subf %186, %183 : vector<64x64xf32>
    %188 = arith.select %185, %183, %187 : vector<64x64xi1>, vector<64x64xf32>
    %cst_53 = arith.constant 1.000000e+00 : f32
    %189 = vector.broadcast %cst_53 : f32 to vector<64x64xf32>
    %190 = arith.addf %189, %188 : vector<64x64xf32>
    %191 = arith.mulf %153, %190 : vector<64x64xf32>
    %192 = arith.truncf %191 : vector<64x64xf32> to vector<64x64xbf16>
    %c0_54 = arith.constant 0 : index
    %c0_55 = arith.constant 0 : index
    %193 = vector.load %arg12[%c0_54, %c0_55] : memref<64x32xbf16, #tpu.memory_space<vmem>>, vector<64x32xbf16>
    %cst_56 = arith.constant dense<0.000000e+00> : vector<64x32xf32>
    %194 = tpu.matmul %192, %193, %cst_56 {dimension_numbers = #tpu.dot_dimension_numbers<[1], [0], [0], [1], [0, 0, 1, 1], [], []>} : vector<64x64xbf16>, vector<64x32xbf16>, vector<64x32xf32> -> vector<64x32xf32>
    %c0_57 = arith.constant 0 : index
    %c0_58 = arith.constant 0 : index
    %195 = vector.load %arg13[%c0_57, %c0_58] : memref<1x32xf32, #tpu.memory_space<vmem>>, vector<1x32xf32>
    %196 = vector.broadcast %195 : vector<1x32xf32> to vector<64x32xf32>
    %197 = arith.addf %194, %196 : vector<64x32xf32>
    %198 = arith.addf %121, %197 : vector<64x32xf32>
    %199 = vector.shape_cast %198 : vector<64x32xf32> to vector<8x8x32xf32>
    %200 = vector.extract_strided_slice %199 {offsets = [0, 0, 0], sizes = [1, 8, 32], strides = [1, 1, 1]} : vector<8x8x32xf32> to vector<1x8x32xf32>
    %201 = vector.shape_cast %200 : vector<1x8x32xf32> to vector<8x32xf32>
    %202 = vector.extract_strided_slice %199 {offsets = [1, 0, 0], sizes = [1, 8, 32], strides = [1, 1, 1]} : vector<8x8x32xf32> to vector<1x8x32xf32>
    %203 = vector.shape_cast %202 : vector<1x8x32xf32> to vector<8x32xf32>
    %204 = vector.extract_strided_slice %199 {offsets = [2, 0, 0], sizes = [1, 8, 32], strides = [1, 1, 1]} : vector<8x8x32xf32> to vector<1x8x32xf32>
    %205 = vector.shape_cast %204 : vector<1x8x32xf32> to vector<8x32xf32>
    %206 = vector.extract_strided_slice %199 {offsets = [3, 0, 0], sizes = [1, 8, 32], strides = [1, 1, 1]} : vector<8x8x32xf32> to vector<1x8x32xf32>
    %207 = vector.shape_cast %206 : vector<1x8x32xf32> to vector<8x32xf32>
    %208 = vector.extract_strided_slice %199 {offsets = [4, 0, 0], sizes = [1, 8, 32], strides = [1, 1, 1]} : vector<8x8x32xf32> to vector<1x8x32xf32>
    %209 = vector.shape_cast %208 : vector<1x8x32xf32> to vector<8x32xf32>
    %210 = vector.extract_strided_slice %199 {offsets = [5, 0, 0], sizes = [1, 8, 32], strides = [1, 1, 1]} : vector<8x8x32xf32> to vector<1x8x32xf32>
    %211 = vector.shape_cast %210 : vector<1x8x32xf32> to vector<8x32xf32>
    %212 = vector.extract_strided_slice %199 {offsets = [6, 0, 0], sizes = [1, 8, 32], strides = [1, 1, 1]} : vector<8x8x32xf32> to vector<1x8x32xf32>
    %213 = vector.shape_cast %212 : vector<1x8x32xf32> to vector<8x32xf32>
    %214 = vector.extract_strided_slice %199 {offsets = [7, 0, 0], sizes = [1, 8, 32], strides = [1, 1, 1]} : vector<8x8x32xf32> to vector<1x8x32xf32>
    %215 = vector.shape_cast %214 : vector<1x8x32xf32> to vector<8x32xf32>
    %216 = vector.shape_cast %201 : vector<8x32xf32> to vector<8x1x32xf32>
    %217 = vector.shape_cast %203 : vector<8x32xf32> to vector<8x1x32xf32>
    %218 = vector.shape_cast %205 : vector<8x32xf32> to vector<8x1x32xf32>
    %219 = vector.shape_cast %207 : vector<8x32xf32> to vector<8x1x32xf32>
    %220 = vector.shape_cast %209 : vector<8x32xf32> to vector<8x1x32xf32>
    %221 = vector.shape_cast %211 : vector<8x32xf32> to vector<8x1x32xf32>
    %222 = vector.shape_cast %213 : vector<8x32xf32> to vector<8x1x32xf32>
    %223 = vector.shape_cast %215 : vector<8x32xf32> to vector<8x1x32xf32>
    %224 = tpu.concatenate %216, %217, %218, %219, %220, %221, %222, %223 in 1 : vector<8x1x32xf32>, vector<8x1x32xf32>, vector<8x1x32xf32>, vector<8x1x32xf32>, vector<8x1x32xf32>, vector<8x1x32xf32>, vector<8x1x32xf32>, vector<8x1x32xf32> -> vector<8x8x32xf32>
    %c0_59 = arith.constant 0 : index
    %c0_60 = arith.constant 0 : index
    %c0_61 = arith.constant 0 : index
    %225 = vector.load %arg14[%c0_59, %c0_60, %c0_61] : memref<8x8x32xf32, #tpu.memory_space<vmem>>, vector<8x8x32xf32>
    tpu.vector_store %arg14[%c0_59, %c0_60, %c0_61], %224 {strides = array<i32>} : memref<8x8x32xf32, #tpu.memory_space<vmem>>, vector<8x8x32xf32>,
    return
  }
  func.func @transform_0(%arg0: i32) -> (i32, i32, i32) {
    %c0_i32 = arith.constant 0 : i32
    %c0_i32_0 = arith.constant 0 : i32
    %c0_i32_1 = arith.constant 0 : i32
    return %c0_i32, %arg0, %c0_i32_0 : i32, i32, i32
  }
  func.func @transform_1(%arg0: i32) -> (i32, i32) {
    %c0_i32 = arith.constant 0 : i32
    %c0_i32_0 = arith.constant 0 : i32
    %c0_i32_1 = arith.constant 0 : i32
    return %c0_i32, %c0_i32_0 : i32, i32
  }
  func.func @transform_2(%arg0: i32) -> (i32, i32) {
    %c0_i32 = arith.constant 0 : i32
    %c0_i32_0 = arith.constant 0 : i32
    %c0_i32_1 = arith.constant 0 : i32
    return %c0_i32, %c0_i32_0 : i32, i32
  }
  func.func @transform_3(%arg0: i32) -> (i32, i32) {
    %c0_i32 = arith.constant 0 : i32
    %c0_i32_0 = arith.constant 0 : i32
    %c0_i32_1 = arith.constant 0 : i32
    return %c0_i32, %c0_i32_0 : i32, i32
  }
  func.func @transform_4(%arg0: i32) -> (i32, i32) {
    %c0_i32 = arith.constant 0 : i32
    %c0_i32_0 = arith.constant 0 : i32
    %c0_i32_1 = arith.constant 0 : i32
    return %c0_i32, %c0_i32_0 : i32, i32
  }
  func.func @transform_5(%arg0: i32) -> (i32, i32) {
    %c0_i32 = arith.constant 0 : i32
    %c0_i32_0 = arith.constant 0 : i32
    %c0_i32_1 = arith.constant 0 : i32
    return %c0_i32, %c0_i32_0 : i32, i32
  }
  func.func @transform_6(%arg0: i32) -> (i32, i32) {
    %c0_i32 = arith.constant 0 : i32
    %c0_i32_0 = arith.constant 0 : i32
    %c0_i32_1 = arith.constant 0 : i32
    return %c0_i32, %c0_i32_0 : i32, i32
  }
  func.func @transform_7(%arg0: i32) -> (i32, i32) {
    %c0_i32 = arith.constant 0 : i32
    %c0_i32_0 = arith.constant 0 : i32
    %c0_i32_1 = arith.constant 0 : i32
    return %c0_i32, %c0_i32_0 : i32, i32
  }
  func.func @transform_8(%arg0: i32) -> (i32, i32) {
    %c0_i32 = arith.constant 0 : i32
    %c0_i32_0 = arith.constant 0 : i32
    %c0_i32_1 = arith.constant 0 : i32
    return %c0_i32, %c0_i32_0 : i32, i32
  }
  func.func @transform_9(%arg0: i32) -> (i32, i32) {
    %c0_i32 = arith.constant 0 : i32
    %c0_i32_0 = arith.constant 0 : i32
    %c0_i32_1 = arith.constant 0 : i32
    return %c0_i32, %c0_i32_0 : i32, i32
  }
  func.func @transform_10(%arg0: i32) -> (i32, i32) {
    %c0_i32 = arith.constant 0 : i32
    %c0_i32_0 = arith.constant 0 : i32
    %c0_i32_1 = arith.constant 0 : i32
    return %c0_i32, %c0_i32_0 : i32, i32
  }
  func.func @transform_11(%arg0: i32) -> (i32, i32) {
    %c0_i32 = arith.constant 0 : i32
    %c0_i32_0 = arith.constant 0 : i32
    %c0_i32_1 = arith.constant 0 : i32
    return %c0_i32, %c0_i32_0 : i32, i32
  }
  func.func @transform_12(%arg0: i32) -> (i32, i32) {
    %c0_i32 = arith.constant 0 : i32
    %c0_i32_0 = arith.constant 0 : i32
    %c0_i32_1 = arith.constant 0 : i32
    return %c0_i32, %c0_i32_0 : i32, i32
  }
  func.func @transform_13(%arg0: i32) -> (i32, i32, i32) {
    %c0_i32 = arith.constant 0 : i32
    %c0_i32_0 = arith.constant 0 : i32
    %c0_i32_1 = arith.constant 0 : i32
    return %c0_i32, %arg0, %c0_i32_0 : i32, i32, i32
  }
}

</mosaic_0001>

<llo_original>
// kernel: transformer_encoder.1
$region0: #{transformer_encoder.1}
  #allocation0 [shape = 'u32[]', space=smem, size = 0x4, offset = 0x4, fixed_abs, tag = 'smem constant byte address 0x4 - core index']
  #allocation1 [shape = 'u32[144,128]{1,0:T(1,128)}', space=vmem, size = 0x12000, scoped, tag = 'internal scratch']
  %s0 = inlined_call_operand.hbm [shape: f32[8,16,32], index: 0, kind: input, shape index: {}]
  %s1 = inlined_call_operand.vmem [shape: f32[1,32], index: 1, kind: input, shape index: {}]
  %s2 = inlined_call_operand.vmem [shape: f32[1,32], index: 2, kind: input, shape index: {}]
  %s3 = inlined_call_operand.vmem [shape: bf16[32,96], index: 3, kind: input, shape index: {}]
  %s4 = inlined_call_operand.vmem [shape: f32[1,96], index: 4, kind: input, shape index: {}]
  %s5 = inlined_call_operand.vmem [shape: bf16[32,32], index: 5, kind: input, shape index: {}]
  %s6 = inlined_call_operand.vmem [shape: f32[1,32], index: 6, kind: input, shape index: {}]
  %s7 = inlined_call_operand.vmem [shape: f32[1,32], index: 7, kind: input, shape index: {}]
  %s8 = inlined_call_operand.vmem [shape: f32[1,32], index: 8, kind: input, shape index: {}]
  %s9 = inlined_call_operand.vmem [shape: bf16[32,64], index: 9, kind: input, shape index: {}]
  %s10 = inlined_call_operand.vmem [shape: f32[1,64], index: 10, kind: input, shape index: {}]
  %s11 = inlined_call_operand.vmem [shape: bf16[64,32], index: 11, kind: input, shape index: {}]
  %s12 = inlined_call_operand.vmem [shape: f32[1,32], index: 12, kind: input, shape index: {}]
  %s13 = inlined_call_operand.hbm [shape: f32[8,16,32], index: 13, kind: output, shape index: {}]
  %s14 = sld [smem:[#allocation0]]
  $region89: #{transformer_encoder.1} parent=0
    _
  %s16 = ssub.s32 1, %s14
  %s17 = scalar_select 0, %s16, %s14
  $region1: #{transformer_encoder.1} parent=0
    #allocation2 [shape = 'u8[65536]{0}', space=vmem, size = 0x10000, scoped, tag = 'input window, operand 0']
    #allocation3 [shape = 's32[2]{0}', space=sflag, size = 0x8, scoped, tag = 'scoped memory for transformer_encoder.1']
    #allocation4 [shape = 's32[2]{0}', space=sflag, size = 0x8, scoped, tag = 'scoped memory for transformer_encoder.1']
    #allocation5 [shape = 'u8[65536]{0}', space=vmem, size = 0x10000, scoped, tag = 'output window, operand 0']
    %18 = vsyncpa [#allocation3], 0
    %s19 = scalar_lea.sflag [#allocation3], 1
    %20 = vsyncpa %s19, 0
    %21 = vsyncpa [#allocation4], 0
    %s22 = scalar_lea.sflag [#allocation4], 1
    %23 = vsyncpa %s22, 0
    loop: start=0, step=1, limit=4
    $region2: #{transformer_encoder.1} parent=1 // loop_pre_header
      _
    $region3: #{transformer_encoder.1} parent=1 // loop_header
      %s25 = sphi 0, %s29
      %p26 = scmp.ge.s32.totalorder %s25, 4
      %s35 = sphi 0, %s37
      %s38 = sphi 0, %s35
      %s39 = sphi 0, %s38
      %s55 = sphi 0, %s39
      %s59 = sphi 0, %s59
      %s61 = sphi 0, %s59
      %s62 = sphi 0, %s61
      %s76 = sphi 0, %s62
      %s80 = sphi 0, %s80
      %s82 = sphi 0, %s80
      %s83 = sphi 0, %s82
      %s97 = sphi 0, %s83
      %s101 = sphi 0, %s101
      %s103 = sphi 0, %s101
      %s104 = sphi 0, %s103
      %s118 = sphi 0, %s104
      %s122 = sphi 0, %s122
      %s124 = sphi 0, %s122
      %s125 = sphi 0, %s124
      %s139 = sphi 0, %s125
      %s143 = sphi 0, %s143
      %s145 = sphi 0, %s143
      %s146 = sphi 0, %s145
      %s160 = sphi 0, %s146
      %s164 = sphi 0, %s164
      %s166 = sphi 0, %s164
      %s167 = sphi 0, %s166
      %s181 = sphi 0, %s167
      %s185 = sphi 0, %s185
      %s187 = sphi 0, %s185
      %s188 = sphi 0, %s187
      %s202 = sphi 0, %s188
      %s206 = sphi 0, %s206
      %s208 = sphi 0, %s206
      %s209 = sphi 0, %s208
      %s223 = sphi 0, %s209
      %s227 = sphi 0, %s227
      %s229 = sphi 0, %s227
      %s230 = sphi 0, %s229
      %s244 = sphi 0, %s230
      %s248 = sphi 0, %s248
      %s250 = sphi 0, %s248
      %s251 = sphi 0, %s250
      %s265 = sphi 0, %s251
      %s269 = sphi 0, %s269
      %s271 = sphi 0, %s269
      %s272 = sphi 0, %s271
      %s286 = sphi 0, %s272
      %s290 = sphi 0, %s290
      %s292 = sphi 0, %s290
      %s293 = sphi 0, %s292
      %s307 = sphi 0, %s293
      %s313 = sphi 0, %s315
      %s316 = sphi 0, %s313
      %s317 = sphi 0, %s316
      %s333 = sphi 0, %s317
    $region4: #{transformer_encoder.1} parent=1 // loop_header_branch
      %28 = sbr.rel (%p26) target = $region8
    $region5: #{transformer_encoder.1} parent=1 // loop_body
      %s30 = ssub.s32 %s25, 1
      %s31 = ssub.s32 %s25, 2
      %s32 = sadd.s32 %s25, 1
      %s33 = ssub.s32 %s25, %s32
      %p34 = scmp.eq.s32.totalorder %s33, 0
      %s36 = sadd.s32 %s35, 1
      %s37 = scalar_select %p34, %s35, %s36
      %p40 = pneg %p34
      %p41 = scmp.eq.s32.totalorder %s25, 1
      %p42 = por %p40, %p41
      %p43 = scmp.ne.s32.totalorder %s35, %s38
      %p44 = scmp.eq.s32.totalorder %s25, 0
      %p45 = por %p43, %p44
      %p46 = scmp.ne.s32.totalorder %s35, %s38
      %p47 = scmp.eq.s32.totalorder %s30, 1
      %p48 = por %p46, %p47
      %p49 = scmp.ne.s32.totalorder %s38, %s39
      %p50 = scmp.eq.s32.totalorder %s30, 0
      %p51 = por %p49, %p50
      %p52 = scmp.ne.s32.totalorder %s38, %s39
      %p53 = scmp.eq.s32.totalorder %s31, 1
      %p54 = por %p52, %p53
      %p56 = scmp.ne.s32.totalorder %s39, %s55
      %p57 = scmp.eq.s32.totalorder %s31, 0
      %p58 = por %p56, %p57
      %s60 = sadd.s32 %s59, 1
      %p63 = scmp.eq.s32.totalorder %s25, 1
      %p64 = scmp.ne.s32.totalorder %s59, %s61
      %p65 = scmp.eq.s32.totalorder %s25, 0
      %p66 = por %p64, %p65
      %p67 = scmp.ne.s32.totalorder %s59, %s61
      %p68 = scmp.eq.s32.totalorder %s30, 1
      %p69 = por %p67, %p68
      %p70 = scmp.ne.s32.totalorder %s61, %s62
      %p71 = scmp.eq.s32.totalorder %s30, 0
      %p72 = por %p70, %p71
      %p73 = scmp.ne.s32.totalorder %s61, %s62
      %p74 = scmp.eq.s32.totalorder %s31, 1
      %p75 = por %p73, %p74
      %p77 = scmp.ne.s32.totalorder %s62, %s76
      %p78 = scmp.eq.s32.totalorder %s31, 0
      %p79 = por %p77, %p78
      %s81 = sadd.s32 %s80, 1
      %p84 = scmp.eq.s32.totalorder %s25, 1
      %p85 = scmp.ne.s32.totalorder %s80, %s82
      %p86 = scmp.eq.s32.totalorder %s25, 0
      %p87 = por %p85, %p86
      %p88 = scmp.ne.s32.totalorder %s80, %s82
      %p89 = scmp.eq.s32.totalorder %s30, 1
      %p90 = por %p88, %p89
      %p91 = scmp.ne.s32.totalorder %s82, %s83
      %p92 = scmp.eq.s32.totalorder %s30, 0
      %p93 = por %p91, %p92
      %p94 = scmp.ne.s32.totalorder %s82, %s83
      %p95 = scmp.eq.s32.totalorder %s31, 1
      %p96 = por %p94, %p95
      %p98 = scmp.ne.s32.totalorder %s83, %s97
      %p99 = scmp.eq.s32.totalorder %s31, 0
      %p100 = por %p98, %p99
      %s102 = sadd.s32 %s101, 1
      %p105 = scmp.eq.s32.totalorder %s25, 1
      %p106 = scmp.ne.s32.totalorder %s101, %s103
      %p107 = scmp.eq.s32.totalorder %s25, 0
      %p108 = por %p106, %p107
      %p109 = scmp.ne.s32.totalorder %s101, %s103
      %p110 = scmp.eq.s32.totalorder %s30, 1
      %p111 = por %p109, %p110
      %p112 = scmp.ne.s32.totalorder %s103, %s104
      %p113 = scmp.eq.s32.totalorder %s30, 0
      %p114 = por %p112, %p113
      %p115 = scmp.ne.s32.totalorder %s103, %s104
      %p116 = scmp.eq.s32.totalorder %s31, 1
      %p117 = por %p115, %p116
      %p119 = scmp.ne.s32.totalorder %s104, %s118
      %p120 = scmp.eq.s32.totalorder %s31, 0
      %p121 = por %p119, %p120
      %s123 = sadd.s32 %s122, 1
      %p126 = scmp.eq.s32.totalorder %s25, 1
      %p127 = scmp.ne.s32.totalorder %s122, %s124
      %p128 = scmp.eq.s32.totalorder %s25, 0
      %p129 = por %p127, %p128
      %p130 = scmp.ne.s32.totalorder %s122, %s124
      %p131 = scmp.eq.s32.totalorder %s30, 1
      %p132 = por %p130, %p131
      %p133 = scmp.ne.s32.totalorder %s124, %s125
      %p134 = scmp.eq.s32.totalorder %s30, 0
      %p135 = por %p133, %p134
      %p136 = scmp.ne.s32.totalorder %s124, %s125
      %p137 = scmp.eq.s32.totalorder %s31, 1
      %p138 = por %p136, %p137
      %p140 = scmp.ne.s32.totalorder %s125, %s139
      %p141 = scmp.eq.s32.totalorder %s31, 0
      %p142 = por %p140, %p141
      %s144 = sadd.s32 %s143, 1
      %p147 = scmp.eq.s32.totalorder %s25, 1
      %p148 = scmp.ne.s32.totalorder %s143, %s145
      %p149 = scmp.eq.s32.totalorder %s25, 0
      %p150 = por %p148, %p149
      %p151 = scmp.ne.s32.totalorder %s143, %s145
      %p152 = scmp.eq.s32.totalorder %s30, 1
      %p153 = por %p151, %p152
      %p154 = scmp.ne.s32.totalorder %s145, %s146
      %p155 = scmp.eq.s32.totalorder %s30, 0
      %p156 = por %p154, %p155
      %p157 = scmp.ne.s32.totalorder %s145, %s146
      %p158 = scmp.eq.s32.totalorder %s31, 1
      %p159 = por %p157, %p158
      %p161 = scmp.ne.s32.totalorder %s146, %s160
      %p162 = scmp.eq.s32.totalorder %s31, 0
      %p163 = por %p161, %p162
      %s165 = sadd.s32 %s164, 1
      %p168 = scmp.eq.s32.totalorder %s25, 1
      %p169 = scmp.ne.s32.totalorder %s164, %s166
      %p170 = scmp.eq.s32.totalorder %s25, 0
      %p171 = por %p169, %p170
      %p172 = scmp.ne.s32.totalorder %s164, %s166
      %p173 = scmp.eq.s32.totalorder %s30, 1
      %p174 = por %p172, %p173
      %p175 = scmp.ne.s32.totalorder %s166, %s167
      %p176 = scmp.eq.s32.totalorder %s30, 0
      %p177 = por %p175, %p176
      %p178 = scmp.ne.s32.totalorder %s166, %s167
      %p179 = scmp.eq.s32.totalorder %s31, 1
      %p180 = por %p178, %p179
      %p182 = scmp.ne.s32.totalorder %s167, %s181
      %p183 = scmp.eq.s32.totalorder %s31, 0
      %p184 = por %p182, %p183
      %s186 = sadd.s32 %s185, 1
      %p189 = scmp.eq.s32.totalorder %s25, 1
      %p190 = scmp.ne.s32.totalorder %s185, %s187
      %p191 = scmp.eq.s32.totalorder %s25, 0
      %p192 = por %p190, %p191
      %p193 = scmp.ne.s32.totalorder %s185, %s187
      %p194 = scmp.eq.s32.totalorder %s30, 1
      %p195 = por %p193, %p194
      %p196 = scmp.ne.s32.totalorder %s187, %s188
      %p197 = scmp.eq.s32.totalorder %s30, 0
      %p198 = por %p196, %p197
      %p199 = scmp.ne.s32.totalorder %s187, %s188
      %p200 = scmp.eq.s32.totalorder %s31, 1
      %p201 = por %p199, %p200
      %p203 = scmp.ne.s32.totalorder %s188, %s202
      %p204 = scmp.eq.s32.totalorder %s31, 0
      %p205 = por %p203, %p204
      %s207 = sadd.s32 %s206, 1
      %p210 = scmp.eq.s32.totalorder %s25, 1
      %p211 = scmp.ne.s32.totalorder %s206, %s208
      %p212 = scmp.eq.s32.totalorder %s25, 0
      %p213 = por %p211, %p212
      %p214 = scmp.ne.s32.totalorder %s206, %s208
      %p215 = scmp.eq.s32.totalorder %s30, 1
      %p216 = por %p214, %p215
      %p217 = scmp.ne.s32.totalorder %s208, %s209
      %p218 = scmp.eq.s32.totalorder %s30, 0
      %p219 = por %p217, %p218
      %p220 = scmp.ne.s32.totalorder %s208, %s209
      %p221 = scmp.eq.s32.totalorder %s31, 1
      %p222 = por %p220, %p221
      %p224 = scmp.ne.s32.totalorder %s209, %s223
      %p225 = scmp.eq.s32.totalorder %s31, 0
      %p226 = por %p224, %p225
      %s228 = sadd.s32 %s227, 1
      %p231 = scmp.eq.s32.totalorder %s25, 1
      %p232 = scmp.ne.s32.totalorder %s227, %s229
      %p233 = scmp.eq.s32.totalorder %s25, 0
      %p234 = por %p232, %p233
      %p235 = scmp.ne.s32.totalorder %s227, %s229
      %p236 = scmp.eq.s32.totalorder %s30, 1
      %p237 = por %p235, %p236
      %p238 = scmp.ne.s32.totalorder %s229, %s230
      %p239 = scmp.eq.s32.totalorder %s30, 0
      %p240 = por %p238, %p239
      %p241 = scmp.ne.s32.totalorder %s229, %s230
      %p242 = scmp.eq.s32.totalorder %s31, 1
      %p243 = por %p241, %p242
      %p245 = scmp.ne.s32.totalorder %s230, %s244
      %p246 = scmp.eq.s32.totalorder %s31, 0
      %p247 = por %p245, %p246
      %s249 = sadd.s32 %s248, 1
      %p252 = scmp.eq.s32.totalorder %s25, 1
      %p253 = scmp.ne.s32.totalorder %s248, %s250
      %p254 = scmp.eq.s32.totalorder %s25, 0
      %p255 = por %p253, %p254
      %p256 = scmp.ne.s32.totalorder %s248, %s250
      %p257 = scmp.eq.s32.totalorder %s30, 1
      %p258 = por %p256, %p257
      %p259 = scmp.ne.s32.totalorder %s250, %s251
      %p260 = scmp.eq.s32.totalorder %s30, 0
      %p261 = por %p259, %p260
      %p262 = scmp.ne.s32.totalorder %s250, %s251
      %p263 = scmp.eq.s32.totalorder %s31, 1
      %p264 = por %p262, %p263
      %p266 = scmp.ne.s32.totalorder %s251, %s265
      %p267 = scmp.eq.s32.totalorder %s31, 0
      %p268 = por %p266, %p267
      %s270 = sadd.s32 %s269, 1
      %p273 = scmp.eq.s32.totalorder %s25, 1
      %p274 = scmp.ne.s32.totalorder %s269, %s271
      %p275 = scmp.eq.s32.totalorder %s25, 0
      %p276 = por %p274, %p275
      %p277 = scmp.ne.s32.totalorder %s269, %s271
      %p278 = scmp.eq.s32.totalorder %s30, 1
      %p279 = por %p277, %p278
      %p280 = scmp.ne.s32.totalorder %s271, %s272
      %p281 = scmp.eq.s32.totalorder %s30, 0
      %p282 = por %p280, %p281
      %p283 = scmp.ne.s32.totalorder %s271, %s272
      %p284 = scmp.eq.s32.totalorder %s31, 1
      %p285 = por %p283, %p284
      %p287 = scmp.ne.s32.totalorder %s272, %s286
      %p288 = scmp.eq.s32.totalorder %s31, 0
      %p289 = por %p287, %p288
      %s291 = sadd.s32 %s290, 1
      %p294 = scmp.eq.s32.totalorder %s25, 1
      %p295 = scmp.ne.s32.totalorder %s290, %s292
      %p296 = scmp.eq.s32.totalorder %s25, 0
      %p297 = por %p295, %p296
      %p298 = scmp.ne.s32.totalorder %s290, %s292
      %p299 = scmp.eq.s32.totalorder %s30, 1
      %p300 = por %p298, %p299
      %p301 = scmp.ne.s32.totalorder %s292, %s293
      %p302 = scmp.eq.s32.totalorder %s30, 0
      %p303 = por %p301, %p302
      %p304 = scmp.ne.s32.totalorder %s292, %s293
      %p305 = scmp.eq.s32.totalorder %s31, 1
      %p306 = por %p304, %p305
      %p308 = scmp.ne.s32.totalorder %s293, %s307
      %p309 = scmp.eq.s32.totalorder %s31, 0
      %p310 = por %p308, %p309
      %s311 = ssub.s32 %s25, %s32
      %p312 = scmp.eq.s32.totalorder %s311, 0
      %s314 = sadd.s32 %s313, 1
      %s315 = scalar_select %p312, %s313, %s314
      %p318 = pneg %p312
      %p319 = scmp.eq.s32.totalorder %s25, 1
      %p320 = por %p318, %p319
      %p321 = scmp.ne.s32.totalorder %s313, %s316
      %p322 = scmp.eq.s32.totalorder %s25, 0
      %p323 = por %p321, %p322
      %p324 = scmp.ne.s32.totalorder %s313, %s316
      %p325 = scmp.eq.s32.totalorder %s30, 1
      %p326 = por %p324, %p325
      %p327 = scmp.ne.s32.totalorder %s316, %s317
      %p328 = scmp.eq.s32.totalorder %s30, 0
      %p329 = por %p327, %p328
      %p330 = scmp.ne.s32.totalorder %s316, %s317
      %p331 = scmp.eq.s32.totalorder %s31, 1
      %p332 = por %p330, %p331
      %p334 = scmp.ne.s32.totalorder %s317, %s333
      %p335 = scmp.eq.s32.totalorder %s31, 0
      %p336 = por %p334, %p335
      %p337 = scmp.le.s32.totalorder 1, %s25
      %p338 = scmp.lt.s32.totalorder %s25, 3
      %p339 = pnand %p337, %p338
      %p340 = pneg %p339
      // Predicated region
      $region9: #{transformer_encoder.1} parent=5 // pred_check
        _
      $region10: #{transformer_encoder.1} parent=5 // pred_check_branch
        %342 = sbr.rel (%p339) target = $region12
      $region11: #{transformer_encoder.1} parent=5 // pred_region
        %s343 = ssub.s32 %s25, 1
        // Predicated region
        $region13: #{transformer_encoder.1} parent=11 // pred_check
          %p344 = pneg %p72
        $region14: #{transformer_encoder.1} parent=11 // pred_check_branch
          %346 = sbr.rel (%p344) target = $region16
        $region15: #{transformer_encoder.1} parent=11 // pred_region
          _
        $region16: #{transformer_encoder.1} parent=11 // pred_fallthru
          _
        // Predicated region
        $region17: #{transformer_encoder.1} parent=11 // pred_check
          %p347 = pneg %p93
        $region18: #{transformer_encoder.1} parent=11 // pred_check_branch
          %349 = sbr.rel (%p347) target = $region20
        $region19: #{transformer_encoder.1} parent=11 // pred_region
          _
        $region20: #{transformer_encoder.1} parent=11 // pred_fallthru
          _
        // Predicated region
        $region21: #{transformer_encoder.1} parent=11 // pred_check
          %p350 = pneg %p114
        $region22: #{transformer_encoder.1} parent=11 // pred_check_branch
          %352 = sbr.rel (%p350) target = $region24
        $region23: #{transformer_encoder.1} parent=11 // pred_region
          _
        $region24: #{transformer_encoder.1} parent=11 // pred_fallthru
          _
        // Predicated region
        $region25: #{transformer_encoder.1} parent=11 // pred_check
          %p353 = pneg %p135
        $region26: #{transformer_encoder.1} parent=11 // pred_check_branch
          %355 = sbr.rel (%p353) target = $region28
        $region27: #{transformer_encoder.1} parent=11 // pred_region
          _
        $region28: #{transformer_encoder.1} parent=11 // pred_fallthru
          _
        // Predicated region
        $region29: #{transformer_encoder.1} parent=11 // pred_check
          %p356 = pneg %p156
        $region30: #{transformer_encoder.1} parent=11 // pred_check_branch
          %358 = sbr.rel (%p356) target = $region32
        $region31: #{transformer_encoder.1} parent=11 // pred_region
          _
        $region32: #{transformer_encoder.1} parent=11 // pred_fallthru
          _
        // Predicated region
        $region33: #{transformer_encoder.1} parent=11 // pred_check
          %p359 = pneg %p177
        $region34: #{transformer_encoder.1} parent=11 // pred_check_branch
          %361 = sbr.rel (%p359) target = $region36
        $region35: #{transformer_encoder.1} parent=11 // pred_region
          _
        $region36: #{transformer_encoder.1} parent=11 // pred_fallthru
          _
        // Predicated region
        $region37: #{transformer_encoder.1} parent=11 // pred_check
          %p362 = pneg %p198
        $region38: #{transformer_encoder.1} parent=11 // pred_check_branch
          %364 = sbr.rel (%p362) target = $region40
        $region39: #{transformer_encoder.1} parent=11 // pred_region
          _
        $region40: #{transformer_encoder.1} parent=11 // pred_fallthru
          _
        // Predicated region
        $region41: #{transformer_encoder.1} parent=11 // pred_check
          %p365 = pneg %p219
        $region42: #{transformer_encoder.1} parent=11 // pred_check_branch
          %367 = sbr.rel (%p365) target = $region44
        $region43: #{transformer_encoder.1} parent=11 // pred_region
          _
        $region44: #{transformer_encoder.1} parent=11 // pred_fallthru
          _
        // Predicated region
        $region45: #{transformer_encoder.1} parent=11 // pred_check
          %p368 = pneg %p240
        $region46: #{transformer_encoder.1} parent=11 // pred_check_branch
          %370 = sbr.rel (%p368) target = $region48
        $region47: #{transformer_encoder.1} parent=11 // pred_region
          _
        $region48: #{transformer_encoder.1} parent=11 // pred_fallthru
          _
        // Predicated region
        $region49: #{transformer_encoder.1} parent=11 // pred_check
          %p371 = pneg %p261
        $region50: #{transformer_encoder.1} parent=11 // pred_check_branch
          %373 = sbr.rel (%p371) target = $region52
        $region51: #{transformer_encoder.1} parent=11 // pred_region
          _
        $region52: #{transformer_encoder.1} parent=11 // pred_fallthru
          _
        // Predicated region
        $region53: #{transformer_encoder.1} parent=11 // pred_check
          %p374 = pneg %p282
        $region54: #{transformer_encoder.1} parent=11 // pred_check_branch
          %376 = sbr.rel (%p374) target = $region56
        $region55: #{transformer_encoder.1} parent=11 // pred_region
          _
        $region56: #{transformer_encoder.1} parent=11 // pred_fallthru
          _
        // Predicated region
        $region57: #{transformer_encoder.1} parent=11 // pred_check
          %p377 = pneg %p303
        $region58: #{transformer_encoder.1} parent=11 // pred_check_branch
          %379 = sbr.rel (%p377) target = $region60
        $region59: #{transformer_encoder.1} parent=11 // pred_region
          _
        $region60: #{transformer_encoder.1} parent=11 // pred_fallthru
          _
      $region12: #{transformer_encoder.1} parent=5 // pred_fallthru
        _
      %p380 = scmp.lt.s32.totalorder %s25, 2
      // Predicated region
      $region61: #{transformer_encoder.1} parent=5 // pred_check
        %p381 = pneg %p380
      $region62: #{transformer_encoder.1} parent=5 // pred_check_branch
        %383 = sbr.rel (%p381) target = $region64
      $region63: #{transformer_encoder.1} parent=5 // pred_region
        // Predicated region
        $region65: #{transformer_encoder.1} parent=63 // pred_check
          %p384 = pneg %p45
        $region66: #{transformer_encoder.1} parent=63 // pred_check_branch
          %386 = sbr.rel (%p384) target = $region68
        $region67: #{transformer_encoder.1} parent=63 // pred_region
          %s387 = sand.u32 %s35, 1
          %s388 = scalar_lea.sflag [#allocation3], %s387
          %s389 = sand.u32 %s35, 1
          %s390 = smul.addr %s389, 64
          %s391 = scalar_lea.vmem [#allocation2], %s390
          %s393 = ssub.s32 1024, 1024
          %394 = vsyncadd %s388, %s393
          %s395 = smul.addr %s25, 128
          %s396 = scalar_lea.hbm %s0, %s395
          %s397 = sshll.u32 %s391, 4
          %s398 = int_to_ptr.vmem [resolvable:$true] %s397
          %403 = dma.hbm_to_vmem [thread:$0]  %s396, 1024, %s398, %s388, 256, 128, 8
        $region68: #{transformer_encoder.1} parent=63 // pred_fallthru
          _
      $region64: #{transformer_encoder.1} parent=5 // pred_fallthru
        _
      %p404 = scmp.le.s32.totalorder 1, %s25
      %p405 = scmp.lt.s32.totalorder %s25, 3
      %p406 = pnand %p404, %p405
      %p407 = pneg %p406
      // Predicated region
      $region69: #{transformer_encoder.1} parent=5 // pred_check
        _
      $region70: #{transformer_encoder.1} parent=5 // pred_check_branch
        %409 = sbr.rel (%p406) target = $region72
      $region71: #{transformer_encoder.1} parent=5 // pred_region
        %s410 = ssub.s32 %s25, 1
        %s411 = sand.u32 %s38, 1
        %s412 = scalar_lea.sflag [#allocation3], %s411
        %s413 = sand.u32 %s38, 1
        %s414 = smul.addr %s413, 64
        %s415 = scalar_lea.vmem [#allocation2], %s414
        // Predicated region
        $region73: #{transformer_encoder.1} parent=71 // pred_check
          %p416 = pneg %p51
        $region74: #{transformer_encoder.1} parent=71 // pred_check_branch
          %418 = sbr.rel (%p416) target = $region76
        $region75: #{transformer_encoder.1} parent=71 // pred_region
          %419 = dma.done %s412, 1024
        $region76: #{transformer_encoder.1} parent=71 // pred_fallthru
          _
        %s420 = sand.u32 %s38, 1
        %s421 = scalar_lea.sflag [#allocation3], %s420
        %s422 = sand.u32 %s38, 1
        %s423 = smul.addr %s422, 64
        %s424 = scalar_lea.vmem [#allocation2], %s423
        %p425 = pneg %p51
        %p426 = pneg %p48
        %p427 = pneg %p72
        %p428 = pneg %p69
        %p429 = pneg %p93
        %p430 = pneg %p90
        %p431 = pneg %p114
        %p432 = pneg %p111
        %p433 = pneg %p135
        %p434 = pneg %p132
        %p435 = pneg %p156
        %p436 = pneg %p153
        %p437 = pneg %p177
        %p438 = pneg %p174
        %p439 = pneg %p198
        %p440 = pneg %p195
        %p441 = pneg %p219
        %p442 = pneg %p216
        %p443 = pneg %p240
        %p444 = pneg %p237
        %p445 = pneg %p261
        %p446 = pneg %p258
        %p447 = pneg %p282
        %p448 = pneg %p279
        %p449 = pneg %p303
        %p450 = pneg %p300
        %p451 = pneg %p329
        %p452 = pneg %p326
        %s453 = sand.u32 %s316, 1
        %s454 = scalar_lea.sflag [#allocation4], %s453
        %s455 = sand.u32 %s316, 1
        %s456 = smul.addr %s455, 64
        %s457 = scalar_lea.vmem [#allocation5], %s456
        %v459 = vld [vmem:[%s415] sm:$0xff]
        %v460 = vld [vmem:[%s415 + $0x8] sm:$0xff]
        %v461 = vld [vmem:[%s415 + $0x10] sm:$0xff]
        %v462 = vld [vmem:[%s415 + $0x18] sm:$0xff]
        %v463 = vld [vmem:[%s415 + $0x20] sm:$0xff]
        %v464 = vld [vmem:[%s415 + $0x28] sm:$0xff]
        %v465 = vld [vmem:[%s415 + $0x30] sm:$0xff]
        %v466 = vld [vmem:[%s415 + $0x38] sm:$0xff]
        %v475 = vrot.slane %v459, 1
        %v476 = vrot.slane %v460, 1
        %v477 = vrot.slane %v461, 1
        %v478 = vrot.slane %v462, 1
        %v479 = vrot.slane %v463, 1
        %v480 = vrot.slane %v464, 1
        %v481 = vrot.slane %v465, 1
        %v482 = vrot.slane %v466, 1
        %v491 = vrot.slane %v459, 2
        %v492 = vrot.slane %v460, 2
        %v493 = vrot.slane %v461, 2
        %v494 = vrot.slane %v462, 2
        %v495 = vrot.slane %v463, 2
        %v496 = vrot.slane %v464, 2
        %v497 = vrot.slane %v465, 2
        %v498 = vrot.slane %v466, 2
        %v507 = vrot.slane %v459, 3
        %v508 = vrot.slane %v460, 3
        %v509 = vrot.slane %v461, 3
        %v510 = vrot.slane %v462, 3
        %v511 = vrot.slane %v463, 3
        %v512 = vrot.slane %v464, 3
        %v513 = vrot.slane %v465, 3
        %v514 = vrot.slane %v466, 3
        %v523 = vrot.slane %v459, 4
        %v524 = vrot.slane %v460, 4
        %v525 = vrot.slane %v461, 4
        %v526 = vrot.slane %v462, 4
        %v527 = vrot.slane %v463, 4
        %v528 = vrot.slane %v464, 4
        %v529 = vrot.slane %v465, 4
        %v530 = vrot.slane %v466, 4
        %v539 = vrot.slane %v459, 5
        %v540 = vrot.slane %v460, 5
        %v541 = vrot.slane %v461, 5
        %v542 = vrot.slane %v462, 5
        %v543 = vrot.slane %v463, 5
        %v544 = vrot.slane %v464, 5
        %v545 = vrot.slane %v465, 5
        %v546 = vrot.slane %v466, 5
        %v555 = vrot.slane %v459, 6
        %v556 = vrot.slane %v460, 6
        %v557 = vrot.slane %v461, 6
        %v558 = vrot.slane %v462, 6
        %v559 = vrot.slane %v463, 6
        %v560 = vrot.slane %v464, 6
        %v561 = vrot.slane %v465, 6
        %v562 = vrot.slane %v466, 6
        %v571 = vrot.slane %v459, 7
        %v572 = vrot.slane %v460, 7
        %v573 = vrot.slane %v461, 7
        %v574 = vrot.slane %v462, 7
        %v575 = vrot.slane %v463, 7
        %v576 = vrot.slane %v464, 7
        %v577 = vrot.slane %v465, 7
        %v578 = vrot.slane %v466, 7
        %v587 = vld [vmem:[%s1] sm:$0x1]
        %v588 = vld [vmem:[%s2] sm:$0x1]
        %vm589 = vcmask 1041409
        %v590 = vsel %vm589, %v572, %v459
        %vm591 = vcmask 1042434
        %v592 = vsel %vm591, %v557, %v590
        %vm593 = vcmask 1043459
        %v594 = vsel %vm593, %v542, %v592
        %vm595 = vcmask 1044484
        %v596 = vsel %vm595, %v527, %v594
        %vm597 = vcmask 1045509
        %v598 = vsel %vm597, %v512, %v596
        %vm599 = vcmask 1046534
        %v600 = vsel %vm599, %v497, %v598
        %vm601 = vcmask 1047559
        %v602 = vsel %vm601, %v482, %v600
        %v603 = vrot.slane %v476, 7
        %v604 = vsel %vm589, %v603, %v475
        %v605 = vrot.slane %v477, 6
        %v606 = vsel %vm591, %v605, %v604
        %v607 = vrot.slane %v478, 5
        %v608 = vsel %vm593, %v607, %v606
        %v609 = vrot.slane %v479, 4
        %v610 = vsel %vm595, %v609, %v608
        %v611 = vrot.slane %v480, 3
        %v612 = vsel %vm597, %v611, %v610
        %v613 = vrot.slane %v481, 2
        %v614 = vsel %vm599, %v613, %v612
        %v615 = vrot.slane %v482, 1
        %v616 = vsel %vm601, %v615, %v614
        %v617 = vrot.slane %v492, 7
        %v618 = vsel %vm589, %v617, %v491
        %v619 = vrot.slane %v493, 6
        %v620 = vsel %vm591, %v619, %v618
        %v621 = vrot.slane %v494, 5
        %v622 = vsel %vm593, %v621, %v620
        %v623 = vrot.slane %v495, 4
        %v624 = vsel %vm595, %v623, %v622
        %v625 = vrot.slane %v496, 3
        %v626 = vsel %vm597, %v625, %v624
        %v627 = vrot.slane %v497, 2
        %v628 = vsel %vm599, %v627, %v626
        %v629 = vrot.slane %v498, 1
        %v630 = vsel %vm601, %v629, %v628
        %v631 = vrot.slane %v508, 7
        %v632 = vsel %vm589, %v631, %v507
        %v633 = vrot.slane %v509, 6
        %v634 = vsel %vm591, %v633, %v632
        %v635 = vrot.slane %v510, 5
        %v636 = vsel %vm593, %v635, %v634
        %v637 = vrot.slane %v511, 4
        %v638 = vsel %vm595, %v637, %v636
        %v639 = vrot.slane %v512, 3
        %v640 = vsel %vm597, %v639, %v638
        %v641 = vrot.slane %v513, 2
        %v642 = vsel %vm599, %v641, %v640
        %v643 = vrot.slane %v514, 1
        %v644 = vsel %vm601, %v643, %v642
        %v645 = vrot.slane %v524, 7
        %v646 = vsel %vm589, %v645, %v523
        %v647 = vrot.slane %v525, 6
        %v648 = vsel %vm591, %v647, %v646
        %v649 = vrot.slane %v526, 5
        %v650 = vsel %vm593, %v649, %v648
        %v651 = vrot.slane %v527, 4
        %v652 = vsel %vm595, %v651, %v650
        %v653 = vrot.slane %v528, 3
        %v654 = vsel %vm597, %v653, %v652
        %v655 = vrot.slane %v529, 2
        %v656 = vsel %vm599, %v655, %v654
        %v657 = vrot.slane %v530, 1
        %v658 = vsel %vm601, %v657, %v656
        %v659 = vrot.slane %v540, 7
        %v660 = vsel %vm589, %v659, %v539
        %v661 = vrot.slane %v541, 6
        %v662 = vsel %vm591, %v661, %v660
        %v663 = vrot.slane %v542, 5
        %v664 = vsel %vm593, %v663, %v662
        %v665 = vrot.slane %v543, 4
        %v666 = vsel %vm595, %v665, %v664
        %v667 = vrot.slane %v544, 3
        %v668 = vsel %vm597, %v667, %v666
        %v669 = vrot.slane %v545, 2
        %v670 = vsel %vm599, %v669, %v668
        %v671 = vrot.slane %v546, 1
        %v672 = vsel %vm601, %v671, %v670
        %v673 = vrot.slane %v556, 7
        %v674 = vsel %vm589, %v673, %v555
        %v675 = vrot.slane %v557, 6
        %v676 = vsel %vm591, %v675, %v674
        %v677 = vrot.slane %v558, 5
        %v678 = vsel %vm593, %v677, %v676
        %v679 = vrot.slane %v559, 4
        %v680 = vsel %vm595, %v679, %v678
        %v681 = vrot.slane %v560, 3
        %v682 = vsel %vm597, %v681, %v680
        %v683 = vrot.slane %v561, 2
        %v684 = vsel %vm599, %v683, %v682
        %v685 = vrot.slane %v562, 1
        %v686 = vsel %vm601, %v685, %v684
        %v687 = vrot.slane %v572, 7
        %v688 = vsel %vm589, %v687, %v571
        %v689 = vrot.slane %v573, 6
        %v690 = vsel %vm591, %v689, %v688
        %v691 = vrot.slane %v574, 5
        %v692 = vsel %vm593, %v691, %v690
        %v693 = vrot.slane %v575, 4
        %v694 = vsel %vm595, %v693, %v692
        %v695 = vrot.slane %v576, 3
        %v696 = vsel %vm597, %v695, %v694
        %v697 = vrot.slane %v577, 2
        %v698 = vsel %vm599, %v697, %v696
        %v699 = vrot.slane %v578, 1
        %v700 = vsel %vm601, %v699, %v698
        %vm709 = vcmask 261120
        %v710 = vsel %vm709, %v602, 0.0
        %711 = vadd.xlane.f32.xlu0 %v710
        %v712 = vpop.xlane.xlu0 %711
        %v713 = vsel %vm709, %v616, 0.0
        %714 = vadd.xlane.f32.xlu0 %v713
        %v715 = vpop.xlane.xlu0 %714
        %v716 = vsel %vm709, %v630, 0.0
        %717 = vadd.xlane.f32.xlu0 %v716
        %v718 = vpop.xlane.xlu0 %717
        %v719 = vsel %vm709, %v644, 0.0
        %720 = vadd.xlane.f32.xlu0 %v719
        %v721 = vpop.xlane.xlu0 %720
        %v722 = vsel %vm709, %v658, 0.0
        %723 = vadd.xlane.f32.xlu0 %v722
        %v724 = vpop.xlane.xlu0 %723
        %v725 = vsel %vm709, %v672, 0.0
        %726 = vadd.xlane.f32.xlu0 %v725
        %v727 = vpop.xlane.xlu0 %726
        %v728 = vsel %vm709, %v686, 0.0
        %729 = vadd.xlane.f32.xlu0 %v728
        %v730 = vpop.xlane.xlu0 %729
        %v731 = vsel %vm709, %v700, 0.0
        %732 = vadd.xlane.f32.xlu0 %v731
        %v733 = vpop.xlane.xlu0 %732
        %v734 = vrcp.pop 32.0
        %v735 = vmul.f32 %v712, %v734
        %v736 = vmul.f32 %v715, %v734
        %v737 = vmul.f32 %v718, %v734
        %v738 = vmul.f32 %v721, %v734
        %v739 = vmul.f32 %v724, %v734
        %v740 = vmul.f32 %v727, %v734
        %v741 = vmul.f32 %v730, %v734
        %v742 = vmul.f32 %v733, %v734
        %v751 = vrot.slane %v735, 1
        %v752 = vrot.slane %v735, 2
        %v753 = vrot.slane %v735, 3
        %v754 = vrot.slane %v735, 4
        %v755 = vrot.slane %v735, 5
        %v756 = vrot.slane %v735, 6
        %v757 = vrot.slane %v735, 7
        %v758 = vrot.slane %v736, 1
        %v759 = vrot.slane %v736, 2
        %v760 = vrot.slane %v736, 3
        %v761 = vrot.slane %v736, 4
        %v762 = vrot.slane %v736, 5
        %v763 = vrot.slane %v736, 6
        %v764 = vrot.slane %v736, 7
        %v765 = vrot.slane %v737, 1
        %v766 = vrot.slane %v737, 2
        %v767 = vrot.slane %v737, 3
        %v768 = vrot.slane %v737, 4
        %v769 = vrot.slane %v737, 5
        %v770 = vrot.slane %v737, 6
        %v771 = vrot.slane %v737, 7
        %v772 = vrot.slane %v738, 1
        %v773 = vrot.slane %v738, 2
        %v774 = vrot.slane %v738, 3
        %v775 = vrot.slane %v738, 4
        %v776 = vrot.slane %v738, 5
        %v777 = vrot.slane %v738, 6
        %v778 = vrot.slane %v738, 7
        %v779 = vrot.slane %v739, 1
        %v780 = vrot.slane %v739, 2
        %v781 = vrot.slane %v739, 3
        %v782 = vrot.slane %v739, 4
        %v783 = vrot.slane %v739, 5
        %v784 = vrot.slane %v739, 6
        %v785 = vrot.slane %v739, 7
        %v786 = vrot.slane %v740, 1
        %v787 = vrot.slane %v740, 2
        %v788 = vrot.slane %v740, 3
        %v789 = vrot.slane %v740, 4
        %v790 = vrot.slane %v740, 5
        %v791 = vrot.slane %v740, 6
        %v792 = vrot.slane %v740, 7
        %v793 = vrot.slane %v741, 1
        %v794 = vrot.slane %v741, 2
        %v795 = vrot.slane %v741, 3
        %v796 = vrot.slane %v741, 4
        %v797 = vrot.slane %v741, 5
        %v798 = vrot.slane %v741, 6
        %v799 = vrot.slane %v741, 7
        %v800 = vrot.slane %v742, 1
        %v801 = vrot.slane %v742, 2
        %v802 = vrot.slane %v742, 3
        %v803 = vrot.slane %v742, 4
        %v804 = vrot.slane %v742, 5
        %v805 = vrot.slane %v742, 6
        %v806 = vrot.slane %v742, 7
        %v871 = vsub.f32 %v459, %v735
        %v872 = vsub.f32 %v460, %v751
        %v873 = vsub.f32 %v461, %v752
        %v874 = vsub.f32 %v462, %v753
        %v875 = vsub.f32 %v463, %v754
        %v876 = vsub.f32 %v464, %v755
        %v877 = vsub.f32 %v465, %v756
        %v878 = vsub.f32 %v466, %v757
        %v879 = vsub.f32 %v475, %v736
        %v880 = vsub.f32 %v476, %v758
        %v881 = vsub.f32 %v477, %v759
        %v882 = vsub.f32 %v478, %v760
        %v883 = vsub.f32 %v479, %v761
        %v884 = vsub.f32 %v480, %v762
        %v885 = vsub.f32 %v481, %v763
        %v886 = vsub.f32 %v482, %v764
        %v887 = vsub.f32 %v491, %v737
        %v888 = vsub.f32 %v492, %v765
        %v889 = vsub.f32 %v493, %v766
        %v890 = vsub.f32 %v494, %v767
        %v891 = vsub.f32 %v495, %v768
        %v892 = vsub.f32 %v496, %v769
        %v893 = vsub.f32 %v497, %v770
        %v894 = vsub.f32 %v498, %v771
        %v895 = vsub.f32 %v507, %v738
        %v896 = vsub.f32 %v508, %v772
        %v897 = vsub.f32 %v509, %v773
        %v898 = vsub.f32 %v510, %v774
        %v899 = vsub.f32 %v511, %v775
        %v900 = vsub.f32 %v512, %v776
        %v901 = vsub.f32 %v513, %v777
        %v902 = vsub.f32 %v514, %v778
        %v903 = vsub.f32 %v523, %v739
        %v904 = vsub.f32 %v524, %v779
        %v905 = vsub.f32 %v525, %v780
        %v906 = vsub.f32 %v526, %v781
        %v907 = vsub.f32 %v527, %v782
        %v908 = vsub.f32 %v528, %v783
        %v909 = vsub.f32 %v529, %v784
        %v910 = vsub.f32 %v530, %v785
        %v911 = vsub.f32 %v539, %v740
        %v912 = vsub.f32 %v540, %v786
        %v913 = vsub.f32 %v541, %v787
        %v914 = vsub.f32 %v542, %v788
        %v915 = vsub.f32 %v543, %v789
        %v916 = vsub.f32 %v544, %v790
        %v917 = vsub.f32 %v545, %v791
        %v918 = vsub.f32 %v546, %v792
        %v919 = vsub.f32 %v555, %v741
        %v920 = vsub.f32 %v556, %v793
        %v921 = vsub.f32 %v557, %v794
        %v922 = vsub.f32 %v558, %v795
        %v923 = vsub.f32 %v559, %v796
        %v924 = vsub.f32 %v560, %v797
        %v925 = vsub.f32 %v561, %v798
        %v926 = vsub.f32 %v562, %v799
        %v927 = vsub.f32 %v571, %v742
        %v928 = vsub.f32 %v572, %v800
        %v929 = vsub.f32 %v573, %v801
        %v930 = vsub.f32 %v574, %v802
        %v931 = vsub.f32 %v575, %v803
        %v932 = vsub.f32 %v576, %v804
        %v933 = vsub.f32 %v577, %v805
        %v934 = vsub.f32 %v578, %v806
        %v935 = vmul.f32 %v871, %v871
        %v936 = vmul.f32 %v872, %v872
        %v937 = vmul.f32 %v873, %v873
        %v938 = vmul.f32 %v874, %v874
        %v939 = vmul.f32 %v875, %v875
        %v940 = vmul.f32 %v876, %v876
        %v941 = vmul.f32 %v877, %v877
        %v942 = vmul.f32 %v878, %v878
        %v943 = vmul.f32 %v879, %v879
        %v944 = vmul.f32 %v880, %v880
        %v945 = vmul.f32 %v881, %v881
        %v946 = vmul.f32 %v882, %v882
        %v947 = vmul.f32 %v883, %v883
        %v948 = vmul.f32 %v884, %v884
        %v949 = vmul.f32 %v885, %v885
        %v950 = vmul.f32 %v886, %v886
        %v951 = vmul.f32 %v887, %v887
        %v952 = vmul.f32 %v888, %v888
        %v953 = vmul.f32 %v889, %v889
        %v954 = vmul.f32 %v890, %v890
        %v955 = vmul.f32 %v891, %v891
        %v956 = vmul.f32 %v892, %v892
        %v957 = vmul.f32 %v893, %v893
        %v958 = vmul.f32 %v894, %v894
        %v959 = vmul.f32 %v895, %v895
        %v960 = vmul.f32 %v896, %v896
        %v961 = vmul.f32 %v897, %v897
        %v962 = vmul.f32 %v898, %v898
        %v963 = vmul.f32 %v899, %v899
        %v964 = vmul.f32 %v900, %v900
        %v965 = vmul.f32 %v901, %v901
        %v966 = vmul.f32 %v902, %v902
        %v967 = vmul.f32 %v903, %v903
        %v968 = vmul.f32 %v904, %v904
        %v969 = vmul.f32 %v905, %v905
        %v970 = vmul.f32 %v906, %v906
        %v971 = vmul.f32 %v907, %v907
        %v972 = vmul.f32 %v908, %v908
        %v973 = vmul.f32 %v909, %v909
        %v974 = vmul.f32 %v910, %v910
        %v975 = vmul.f32 %v911, %v911
        %v976 = vmul.f32 %v912, %v912
        %v977 = vmul.f32 %v913, %v913
        %v978 = vmul.f32 %v914, %v914
        %v979 = vmul.f32 %v915, %v915
        %v980 = vmul.f32 %v916, %v916
        %v981 = vmul.f32 %v917, %v917
        %v982 = vmul.f32 %v918, %v918
        %v983 = vmul.f32 %v919, %v919
        %v984 = vmul.f32 %v920, %v920
        %v985 = vmul.f32 %v921, %v921
        %v986 = vmul.f32 %v922, %v922
        %v987 = vmul.f32 %v923, %v923
        %v988 = vmul.f32 %v924, %v924
        %v989 = vmul.f32 %v925, %v925
        %v990 = vmul.f32 %v926, %v926
        %v991 = vmul.f32 %v927, %v927
        %v992 = vmul.f32 %v928, %v928
        %v993 = vmul.f32 %v929, %v929
        %v994 = vmul.f32 %v930, %v930
        %v995 = vmul.f32 %v931, %v931
        %v996 = vmul.f32 %v932, %v932
        %v997 = vmul.f32 %v933, %v933
        %v998 = vmul.f32 %v934, %v934
        %v1063 = vrot.slane %v936, 7
        %v1064 = vsel %vm589, %v1063, %v935
        %v1065 = vrot.slane %v937, 6
        %v1066 = vsel %vm591, %v1065, %v1064
        %v1067 = vrot.slane %v938, 5
        %v1068 = vsel %vm593, %v1067, %v1066
        %v1069 = vrot.slane %v939, 4
        %v1070 = vsel %vm595, %v1069, %v1068
        %v1071 = vrot.slane %v940, 3
        %v1072 = vsel %vm597, %v1071, %v1070
        %v1073 = vrot.slane %v941, 2
        %v1074 = vsel %vm599, %v1073, %v1072
        %v1075 = vrot.slane %v942, 1
        %v1076 = vsel %vm601, %v1075, %v1074
        %v1077 = vrot.slane %v944, 7
        %v1078 = vsel %vm589, %v1077, %v943
        %v1079 = vrot.slane %v945, 6
        %v1080 = vsel %vm591, %v1079, %v1078
        %v1081 = vrot.slane %v946, 5
        %v1082 = vsel %vm593, %v1081, %v1080
        %v1083 = vrot.slane %v947, 4
        %v1084 = vsel %vm595, %v1083, %v1082
        %v1085 = vrot.slane %v948, 3
        %v1086 = vsel %vm597, %v1085, %v1084
        %v1087 = vrot.slane %v949, 2
        %v1088 = vsel %vm599, %v1087, %v1086
        %v1089 = vrot.slane %v950, 1
        %v1090 = vsel %vm601, %v1089, %v1088
        %v1091 = vrot.slane %v952, 7
        %v1092 = vsel %vm589, %v1091, %v951
        %v1093 = vrot.slane %v953, 6
        %v1094 = vsel %vm591, %v1093, %v1092
        %v1095 = vrot.slane %v954, 5
        %v1096 = vsel %vm593, %v1095, %v1094
        %v1097 = vrot.slane %v955, 4
        %v1098 = vsel %vm595, %v1097, %v1096
        %v1099 = vrot.slane %v956, 3
        %v1100 = vsel %vm597, %v1099, %v1098
        %v1101 = vrot.slane %v957, 2
        %v1102 = vsel %vm599, %v1101, %v1100
        %v1103 = vrot.slane %v958, 1
        %v1104 = vsel %vm601, %v1103, %v1102
        %v1105 = vrot.slane %v960, 7
        %v1106 = vsel %vm589, %v1105, %v959
        %v1107 = vrot.slane %v961, 6
        %v1108 = vsel %vm591, %v1107, %v1106
        %v1109 = vrot.slane %v962, 5
        %v1110 = vsel %vm593, %v1109, %v1108
        %v1111 = vrot.slane %v963, 4
        %v1112 = vsel %vm595, %v1111, %v1110
        %v1113 = vrot.slane %v964, 3
        %v1114 = vsel %vm597, %v1113, %v1112
        %v1115 = vrot.slane %v965, 2
        %v1116 = vsel %vm599, %v1115, %v1114
        %v1117 = vrot.slane %v966, 1
        %v1118 = vsel %vm601, %v1117, %v1116
        %v1119 = vrot.slane %v968, 7
        %v1120 = vsel %vm589, %v1119, %v967
        %v1121 = vrot.slane %v969, 6
        %v1122 = vsel %vm591, %v1121, %v1120
        %v1123 = vrot.slane %v970, 5
        %v1124 = vsel %vm593, %v1123, %v1122
        %v1125 = vrot.slane %v971, 4
        %v1126 = vsel %vm595, %v1125, %v1124
        %v1127 = vrot.slane %v972, 3
        %v1128 = vsel %vm597, %v1127, %v1126
        %v1129 = vrot.slane %v973, 2
        %v1130 = vsel %vm599, %v1129, %v1128
        %v1131 = vrot.slane %v974, 1
        %v1132 = vsel %vm601, %v1131, %v1130
        %v1133 = vrot.slane %v976, 7
        %v1134 = vsel %vm589, %v1133, %v975
        %v1135 = vrot.slane %v977, 6
        %v1136 = vsel %vm591, %v1135, %v1134
        %v1137 = vrot.slane %v978, 5
        %v1138 = vsel %vm593, %v1137, %v1136
        %v1139 = vrot.slane %v979, 4
        %v1140 = vsel %vm595, %v1139, %v1138
        %v1141 = vrot.slane %v980, 3
        %v1142 = vsel %vm597, %v1141, %v1140
        %v1143 = vrot.slane %v981, 2
        %v1144 = vsel %vm599, %v1143, %v1142
        %v1145 = vrot.slane %v982, 1
        %v1146 = vsel %vm601, %v1145, %v1144
        %v1147 = vrot.slane %v984, 7
        %v1148 = vsel %vm589, %v1147, %v983
        %v1149 = vrot.slane %v985, 6
        %v1150 = vsel %vm591, %v1149, %v1148
        %v1151 = vrot.slane %v986, 5
        %v1152 = vsel %vm593, %v1151, %v1150
        %v1153 = vrot.slane %v987, 4
        %v1154 = vsel %vm595, %v1153, %v1152
        %v1155 = vrot.slane %v988, 3
        %v1156 = vsel %vm597, %v1155, %v1154
        %v1157 = vrot.slane %v989, 2
        %v1158 = vsel %vm599, %v1157, %v1156
        %v1159 = vrot.slane %v990, 1
        %v1160 = vsel %vm601, %v1159, %v1158
        %v1161 = vrot.slane %v992, 7
        %v1162 = vsel %vm589, %v1161, %v991
        %v1163 = vrot.slane %v993, 6
        %v1164 = vsel %vm591, %v1163, %v1162
        %v1165 = vrot.slane %v994, 5
        %v1166 = vsel %vm593, %v1165, %v1164
        %v1167 = vrot.slane %v995, 4
        %v1168 = vsel %vm595, %v1167, %v1166
        %v1169 = vrot.slane %v996, 3
        %v1170 = vsel %vm597, %v1169, %v1168
        %v1171 = vrot.slane %v997, 2
        %v1172 = vsel %vm599, %v1171, %v1170
        %v1173 = vrot.slane %v998, 1
        %v1174 = vsel %vm601, %v1173, %v1172
        %v1183 = vsel %vm709, %v1076, 0.0
        %1184 = vadd.xlane.f32.xlu0 %v1183
        %v1185 = vpop.xlane.xlu0 %1184
        %v1186 = vsel %vm709, %v1090, 0.0
        %1187 = vadd.xlane.f32.xlu0 %v1186
        %v1188 = vpop.xlane.xlu0 %1187
        %v1189 = vsel %vm709, %v1104, 0.0
        %1190 = vadd.xlane.f32.xlu0 %v1189
        %v1191 = vpop.xlane.xlu0 %1190
        %v1192 = vsel %vm709, %v1118, 0.0
        %1193 = vadd.xlane.f32.xlu0 %v1192
        %v1194 = vpop.xlane.xlu0 %1193
        %v1195 = vsel %vm709, %v1132, 0.0
        %1196 = vadd.xlane.f32.xlu0 %v1195
        %v1197 = vpop.xlane.xlu0 %1196
        %v1198 = vsel %vm709, %v1146, 0.0
        %1199 = vadd.xlane.f32.xlu0 %v1198
        %v1200 = vpop.xlane.xlu0 %1199
        %v1201 = vsel %vm709, %v1160, 0.0
        %1202 = vadd.xlane.f32.xlu0 %v1201
        %v1203 = vpop.xlane.xlu0 %1202
        %v1204 = vsel %vm709, %v1174, 0.0
        %1205 = vadd.xlane.f32.xlu0 %v1204
        %v1206 = vpop.xlane.xlu0 %1205
        %v1207 = vmul.f32 %v1185, %v734
        %v1208 = vmul.f32 %v1188, %v734
        %v1209 = vmul.f32 %v1191, %v734
        %v1210 = vmul.f32 %v1194, %v734
        %v1211 = vmul.f32 %v1197, %v734
        %v1212 = vmul.f32 %v1200, %v734
        %v1213 = vmul.f32 %v1203, %v734
        %v1214 = vmul.f32 %v1206, %v734
        %v1215 = vadd.f32 %v1207, 1e-05
        %v1216 = vadd.f32 %v1208, 1e-05
        %v1217 = vadd.f32 %v1209, 1e-05
        %v1218 = vadd.f32 %v1210, 1e-05
        %v1219 = vadd.f32 %v1211, 1e-05
        %v1220 = vadd.f32 %v1212, 1e-05
        %v1221 = vadd.f32 %v1213, 1e-05
        %v1222 = vadd.f32 %v1214, 1e-05
        %v1223 = vrsqrt.pop %v1215
        %v1224 = vrsqrt.pop %v1216
        %v1225 = vrsqrt.pop %v1217
        %v1226 = vrsqrt.pop %v1218
        %v1227 = vrsqrt.pop %v1219
        %v1228 = vrsqrt.pop %v1220
        %v1229 = vrsqrt.pop %v1221
        %v1230 = vrsqrt.pop %v1222
        %v1239 = vrot.slane %v1223, 1
        %v1240 = vrot.slane %v1223, 2
        %v1241 = vrot.slane %v1223, 3
        %v1242 = vrot.slane %v1223, 4
        %v1243 = vrot.slane %v1223, 5
        %v1244 = vrot.slane %v1223, 6
        %v1245 = vrot.slane %v1223, 7
        %v1246 = vrot.slane %v1224, 1
        %v1247 = vrot.slane %v1224, 2
        %v1248 = vrot.slane %v1224, 3
        %v1249 = vrot.slane %v1224, 4
        %v1250 = vrot.slane %v1224, 5
        %v1251 = vrot.slane %v1224, 6
        %v1252 = vrot.slane %v1224, 7
        %v1253 = vrot.slane %v1225, 1
        %v1254 = vrot.slane %v1225, 2
        %v1255 = vrot.slane %v1225, 3
        %v1256 = vrot.slane %v1225, 4
        %v1257 = vrot.slane %v1225, 5
        %v1258 = vrot.slane %v1225, 6
        %v1259 = vrot.slane %v1225, 7
        %v1260 = vrot.slane %v1226, 1
        %v1261 = vrot.slane %v1226, 2
        %v1262 = vrot.slane %v1226, 3
        %v1263 = vrot.slane %v1226, 4
        %v1264 = vrot.slane %v1226, 5
        %v1265 = vrot.slane %v1226, 6
        %v1266 = vrot.slane %v1226, 7
        %v1267 = vrot.slane %v1227, 1
        %v1268 = vrot.slane %v1227, 2
        %v1269 = vrot.slane %v1227, 3
        %v1270 = vrot.slane %v1227, 4
        %v1271 = vrot.slane %v1227, 5
        %v1272 = vrot.slane %v1227, 6
        %v1273 = vrot.slane %v1227, 7
        %v1274 = vrot.slane %v1228, 1
        %v1275 = vrot.slane %v1228, 2
        %v1276 = vrot.slane %v1228, 3
        %v1277 = vrot.slane %v1228, 4
        %v1278 = vrot.slane %v1228, 5
        %v1279 = vrot.slane %v1228, 6
        %v1280 = vrot.slane %v1228, 7
        %v1281 = vrot.slane %v1229, 1
        %v1282 = vrot.slane %v1229, 2
        %v1283 = vrot.slane %v1229, 3
        %v1284 = vrot.slane %v1229, 4
        %v1285 = vrot.slane %v1229, 5
        %v1286 = vrot.slane %v1229, 6
        %v1287 = vrot.slane %v1229, 7
        %v1288 = vrot.slane %v1230, 1
        %v1289 = vrot.slane %v1230, 2
        %v1290 = vrot.slane %v1230, 3
        %v1291 = vrot.slane %v1230, 4
        %v1292 = vrot.slane %v1230, 5
        %v1293 = vrot.slane %v1230, 6
        %v1294 = vrot.slane %v1230, 7
        %v1359 = vmul.f32 %v871, %v1223
        %v1360 = vmul.f32 %v872, %v1239
        %v1361 = vmul.f32 %v873, %v1240
        %v1362 = vmul.f32 %v874, %v1241
        %v1363 = vmul.f32 %v875, %v1242
        %v1364 = vmul.f32 %v876, %v1243
        %v1365 = vmul.f32 %v877, %v1244
        %v1366 = vmul.f32 %v878, %v1245
        %v1367 = vmul.f32 %v879, %v1224
        %v1368 = vmul.f32 %v880, %v1246
        %v1369 = vmul.f32 %v881, %v1247
        %v1370 = vmul.f32 %v882, %v1248
        %v1371 = vmul.f32 %v883, %v1249
        %v1372 = vmul.f32 %v884, %v1250
        %v1373 = vmul.f32 %v885, %v1251
        %v1374 = vmul.f32 %v886, %v1252
        %v1375 = vmul.f32 %v887, %v1225
        %v1376 = vmul.f32 %v888, %v1253
        %v1377 = vmul.f32 %v889, %v1254
        %v1378 = vmul.f32 %v890, %v1255
        %v1379 = vmul.f32 %v891, %v1256
        %v1380 = vmul.f32 %v892, %v1257
        %v1381 = vmul.f32 %v893, %v1258
        %v1382 = vmul.f32 %v894, %v1259
        %v1383 = vmul.f32 %v895, %v1226
        %v1384 = vmul.f32 %v896, %v1260
        %v1385 = vmul.f32 %v897, %v1261
        %v1386 = vmul.f32 %v898, %v1262
        %v1387 = vmul.f32 %v899, %v1263
        %v1388 = vmul.f32 %v900, %v1264
        %v1389 = vmul.f32 %v901, %v1265
        %v1390 = vmul.f32 %v902, %v1266
        %v1391 = vmul.f32 %v903, %v1227
        %v1392 = vmul.f32 %v904, %v1267
        %v1393 = vmul.f32 %v905, %v1268
        %v1394 = vmul.f32 %v906, %v1269
        %v1395 = vmul.f32 %v907, %v1270
        %v1396 = vmul.f32 %v908, %v1271
        %v1397 = vmul.f32 %v909, %v1272
        %v1398 = vmul.f32 %v910, %v1273
        %v1399 = vmul.f32 %v911, %v1228
        %v1400 = vmul.f32 %v912, %v1274
        %v1401 = vmul.f32 %v913, %v1275
        %v1402 = vmul.f32 %v914, %v1276
        %v1403 = vmul.f32 %v915, %v1277
        %v1404 = vmul.f32 %v916, %v1278
        %v1405 = vmul.f32 %v917, %v1279
        %v1406 = vmul.f32 %v918, %v1280
        %v1407 = vmul.f32 %v919, %v1229
        %v1408 = vmul.f32 %v920, %v1281
        %v1409 = vmul.f32 %v921, %v1282
        %v1410 = vmul.f32 %v922, %v1283
        %v1411 = vmul.f32 %v923, %v1284
        %v1412 = vmul.f32 %v924, %v1285
        %v1413 = vmul.f32 %v925, %v1286
        %v1414 = vmul.f32 %v926, %v1287
        %v1415 = vmul.f32 %v927, %v1230
        %v1416 = vmul.f32 %v928, %v1288
        %v1417 = vmul.f32 %v929, %v1289
        %v1418 = vmul.f32 %v930, %v1290
        %v1419 = vmul.f32 %v931, %v1291
        %v1420 = vmul.f32 %v932, %v1292
        %v1421 = vmul.f32 %v933, %v1293
        %v1422 = vmul.f32 %v934, %v1294
        %v1424 = vlaneseq
        %v1425 = vshrl.u32 %v1424, 7
        %v1426 = vsub.s32 0, %v1425
        %v1427 = vrot.slane %v587, %v1426
        %v1429 = vmul.f32 %v1359, %v1427
        %v1430 = vmul.f32 %v1360, %v1427
        %v1431 = vmul.f32 %v1361, %v1427
        %v1432 = vmul.f32 %v1362, %v1427
        %v1433 = vmul.f32 %v1363, %v1427
        %v1434 = vmul.f32 %v1364, %v1427
        %v1435 = vmul.f32 %v1365, %v1427
        %v1436 = vmul.f32 %v1366, %v1427
        %v1437 = vmul.f32 %v1367, %v1427
        %v1438 = vmul.f32 %v1368, %v1427
        %v1439 = vmul.f32 %v1369, %v1427
        %v1440 = vmul.f32 %v1370, %v1427
        %v1441 = vmul.f32 %v1371, %v1427
        %v1442 = vmul.f32 %v1372, %v1427
        %v1443 = vmul.f32 %v1373, %v1427
        %v1444 = vmul.f32 %v1374, %v1427
        %v1445 = vmul.f32 %v1375, %v1427
        %v1446 = vmul.f32 %v1376, %v1427
        %v1447 = vmul.f32 %v1377, %v1427
        %v1448 = vmul.f32 %v1378, %v1427
        %v1449 = vmul.f32 %v1379, %v1427
        %v1450 = vmul.f32 %v1380, %v1427
        %v1451 = vmul.f32 %v1381, %v1427
        %v1452 = vmul.f32 %v1382, %v1427
        %v1453 = vmul.f32 %v1383, %v1427
        %v1454 = vmul.f32 %v1384, %v1427
        %v1455 = vmul.f32 %v1385, %v1427
        %v1456 = vmul.f32 %v1386, %v1427
        %v1457 = vmul.f32 %v1387, %v1427
        %v1458 = vmul.f32 %v1388, %v1427
        %v1459 = vmul.f32 %v1389, %v1427
        %v1460 = vmul.f32 %v1390, %v1427
        %v1461 = vmul.f32 %v1391, %v1427
        %v1462 = vmul.f32 %v1392, %v1427
        %v1463 = vmul.f32 %v1393, %v1427
        %v1464 = vmul.f32 %v1394, %v1427
        %v1465 = vmul.f32 %v1395, %v1427
        %v1466 = vmul.f32 %v1396, %v1427
        %v1467 = vmul.f32 %v1397, %v1427
        %v1468 = vmul.f32 %v1398, %v1427
        %v1469 = vmul.f32 %v1399, %v1427
        %v1470 = vmul.f32 %v1400, %v1427
        %v1471 = vmul.f32 %v1401, %v1427
        %v1472 = vmul.f32 %v1402, %v1427
        %v1473 = vmul.f32 %v1403, %v1427
        %v1474 = vmul.f32 %v1404, %v1427
        %v1475 = vmul.f32 %v1405, %v1427
        %v1476 = vmul.f32 %v1406, %v1427
        %v1477 = vmul.f32 %v1407, %v1427
        %v1478 = vmul.f32 %v1408, %v1427
        %v1479 = vmul.f32 %v1409, %v1427
        %v1480 = vmul.f32 %v1410, %v1427
        %v1481 = vmul.f32 %v1411, %v1427
        %v1482 = vmul.f32 %v1412, %v1427
        %v1483 = vmul.f32 %v1413, %v1427
        %v1484 = vmul.f32 %v1414, %v1427
        %v1485 = vmul.f32 %v1415, %v1427
        %v1486 = vmul.f32 %v1416, %v1427
        %v1487 = vmul.f32 %v1417, %v1427
        %v1488 = vmul.f32 %v1418, %v1427
        %v1489 = vmul.f32 %v1419, %v1427
        %v1490 = vmul.f32 %v1420, %v1427
        %v1491 = vmul.f32 %v1421, %v1427
        %v1492 = vmul.f32 %v1422, %v1427
        %v1494 = vlaneseq
        %v1495 = vshrl.u32 %v1494, 7
        %v1496 = vsub.s32 0, %v1495
        %v1497 = vrot.slane %v588, %v1496
        %v1499 = vadd.f32 %v1429, %v1497
        %v1500 = vadd.f32 %v1430, %v1497
        %v1501 = vadd.f32 %v1431, %v1497
        %v1502 = vadd.f32 %v1432, %v1497
        %v1503 = vadd.f32 %v1433, %v1497
        %v1504 = vadd.f32 %v1434, %v1497
        %v1505 = vadd.f32 %v1435, %v1497
        %v1506 = vadd.f32 %v1436, %v1497
        %v1507 = vadd.f32 %v1437, %v1497
        %v1508 = vadd.f32 %v1438, %v1497
        %v1509 = vadd.f32 %v1439, %v1497
        %v1510 = vadd.f32 %v1440, %v1497
        %v1511 = vadd.f32 %v1441, %v1497
        %v1512 = vadd.f32 %v1442, %v1497
        %v1513 = vadd.f32 %v1443, %v1497
        %v1514 = vadd.f32 %v1444, %v1497
        %v1515 = vadd.f32 %v1445, %v1497
        %v1516 = vadd.f32 %v1446, %v1497
        %v1517 = vadd.f32 %v1447, %v1497
        %v1518 = vadd.f32 %v1448, %v1497
        %v1519 = vadd.f32 %v1449, %v1497
        %v1520 = vadd.f32 %v1450, %v1497
        %v1521 = vadd.f32 %v1451, %v1497
        %v1522 = vadd.f32 %v1452, %v1497
        %v1523 = vadd.f32 %v1453, %v1497
        %v1524 = vadd.f32 %v1454, %v1497
        %v1525 = vadd.f32 %v1455, %v1497
        %v1526 = vadd.f32 %v1456, %v1497
        %v1527 = vadd.f32 %v1457, %v1497
        %v1528 = vadd.f32 %v1458, %v1497
        %v1529 = vadd.f32 %v1459, %v1497
        %v1530 = vadd.f32 %v1460, %v1497
        %v1531 = vadd.f32 %v1461, %v1497
        %v1532 = vadd.f32 %v1462, %v1497
        %v1533 = vadd.f32 %v1463, %v1497
        %v1534 = vadd.f32 %v1464, %v1497
        %v1535 = vadd.f32 %v1465, %v1497
        %v1536 = vadd.f32 %v1466, %v1497
        %v1537 = vadd.f32 %v1467, %v1497
        %v1538 = vadd.f32 %v1468, %v1497
        %v1539 = vadd.f32 %v1469, %v1497
        %v1540 = vadd.f32 %v1470, %v1497
        %v1541 = vadd.f32 %v1471, %v1497
        %v1542 = vadd.f32 %v1472, %v1497
        %v1543 = vadd.f32 %v1473, %v1497
        %v1544 = vadd.f32 %v1474, %v1497
        %v1545 = vadd.f32 %v1475, %v1497
        %v1546 = vadd.f32 %v1476, %v1497
        %v1547 = vadd.f32 %v1477, %v1497
        %v1548 = vadd.f32 %v1478, %v1497
        %v1549 = vadd.f32 %v1479, %v1497
        %v1550 = vadd.f32 %v1480, %v1497
        %v1551 = vadd.f32 %v1481, %v1497
        %v1552 = vadd.f32 %v1482, %v1497
        %v1553 = vadd.f32 %v1483, %v1497
        %v1554 = vadd.f32 %v1484, %v1497
        %v1555 = vadd.f32 %v1485, %v1497
        %v1556 = vadd.f32 %v1486, %v1497
        %v1557 = vadd.f32 %v1487, %v1497
        %v1558 = vadd.f32 %v1488, %v1497
        %v1559 = vadd.f32 %v1489, %v1497
        %v1560 = vadd.f32 %v1490, %v1497
        %v1561 = vadd.f32 %v1491, %v1497
        %v1562 = vadd.f32 %v1492, %v1497
        %v1563 = vpack.c.bf16 %v1499, %v1499
        %v1564 = vpack.c.bf16 %v1500, %v1500
        %v1565 = vpack.c.bf16 %v1501, %v1501
        %v1566 = vpack.c.bf16 %v1502, %v1502
        %v1567 = vpack.c.bf16 %v1503, %v1503
        %v1568 = vpack.c.bf16 %v1504, %v1504
        %v1569 = vpack.c.bf16 %v1505, %v1505
        %v1570 = vpack.c.bf16 %v1506, %v1506
        %v1571 = vpack.c.bf16 %v1507, %v1507
        %v1572 = vpack.c.bf16 %v1508, %v1508
        %v1573 = vpack.c.bf16 %v1509, %v1509
        %v1574 = vpack.c.bf16 %v1510, %v1510
        %v1575 = vpack.c.bf16 %v1511, %v1511
        %v1576 = vpack.c.bf16 %v1512, %v1512
        %v1577 = vpack.c.bf16 %v1513, %v1513
        %v1578 = vpack.c.bf16 %v1514, %v1514
        %v1579 = vpack.c.bf16 %v1515, %v1515
        %v1580 = vpack.c.bf16 %v1516, %v1516
        %v1581 = vpack.c.bf16 %v1517, %v1517
        %v1582 = vpack.c.bf16 %v1518, %v1518
        %v1583 = vpack.c.bf16 %v1519, %v1519
        %v1584 = vpack.c.bf16 %v1520, %v1520
        %v1585 = vpack.c.bf16 %v1521, %v1521
        %v1586 = vpack.c.bf16 %v1522, %v1522
        %v1587 = vpack.c.bf16 %v1523, %v1523
        %v1588 = vpack.c.bf16 %v1524, %v1524
        %v1589 = vpack.c.bf16 %v1525, %v1525
        %v1590 = vpack.c.bf16 %v1526, %v1526
        %v1591 = vpack.c.bf16 %v1527, %v1527
        %v1592 = vpack.c.bf16 %v1528, %v1528
        %v1593 = vpack.c.bf16 %v1529, %v1529
        %v1594 = vpack.c.bf16 %v1530, %v1530
        %v1595 = vpack.c.bf16 %v1531, %v1531
        %v1596 = vpack.c.bf16 %v1532, %v1532
        %v1597 = vpack.c.bf16 %v1533, %v1533
        %v1598 = vpack.c.bf16 %v1534, %v1534
        %v1599 = vpack.c.bf16 %v1535, %v1535
        %v1600 = vpack.c.bf16 %v1536, %v1536
        %v1601 = vpack.c.bf16 %v1537, %v1537
        %v1602 = vpack.c.bf16 %v1538, %v1538
        %v1603 = vpack.c.bf16 %v1539, %v1539
        %v1604 = vpack.c.bf16 %v1540, %v1540
        %v1605 = vpack.c.bf16 %v1541, %v1541
        %v1606 = vpack.c.bf16 %v1542, %v1542
        %v1607 = vpack.c.bf16 %v1543, %v1543
        %v1608 = vpack.c.bf16 %v1544, %v1544
        %v1609 = vpack.c.bf16 %v1545, %v1545
        %v1610 = vpack.c.bf16 %v1546, %v1546
        %v1611 = vpack.c.bf16 %v1547, %v1547
        %v1612 = vpack.c.bf16 %v1548, %v1548
        %v1613 = vpack.c.bf16 %v1549, %v1549
        %v1614 = vpack.c.bf16 %v1550, %v1550
        %v1615 = vpack.c.bf16 %v1551, %v1551
        %v1616 = vpack.c.bf16 %v1552, %v1552
        %v1617 = vpack.c.bf16 %v1553, %v1553
        %v1618 = vpack.c.bf16 %v1554, %v1554
        %v1619 = vpack.c.bf16 %v1555, %v1555
        %v1620 = vpack.c.bf16 %v1556, %v1556
        %v1621 = vpack.c.bf16 %v1557, %v1557
        %v1622 = vpack.c.bf16 %v1558, %v1558
        %v1623 = vpack.c.bf16 %v1559, %v1559
        %v1624 = vpack.c.bf16 %v1560, %v1560
        %v1625 = vpack.c.bf16 %v1561, %v1561
        %v1626 = vpack.c.bf16 %v1562, %v1562
        %v1627 = vld [vmem:[%s3] sm:$0xf]
        %v1628 = vld [vmem:[%s3 + $0x4] sm:$0xf]
        %v1629 = vld [vmem:[%s3 + $0x8] sm:$0xf]
        %v1630 = vld [vmem:[%s3 + $0xc] sm:$0xf]
        %v1631 = vld [vmem:[%s4] sm:$0x1]
        %v1633 = vlaneseq
        %v1634 = vshrl.u32 %v1633, 7
        %v1635 = vsub.s32 0, %v1634
        %v1636 = vrot.slane %v1631, %v1635
        %v1702 = vunpack.c.l.b16 %v1563
        %v1703 = vunpack.c.l.b16 %v1564
        %v1704 = vunpack.c.l.b16 %v1565
        %v1705 = vunpack.c.l.b16 %v1566
        %v1706 = vunpack.c.l.b16 %v1567
        %v1707 = vunpack.c.l.b16 %v1568
        %v1708 = vunpack.c.l.b16 %v1569
        %v1709 = vunpack.c.l.b16 %v1570
        %v1710 = vunpack.c.l.b16 %v1571
        %v1711 = vunpack.c.l.b16 %v1572
        %v1712 = vunpack.c.l.b16 %v1573
        %v1713 = vunpack.c.l.b16 %v1574
        %v1714 = vunpack.c.l.b16 %v1575
        %v1715 = vunpack.c.l.b16 %v1576
        %v1716 = vunpack.c.l.b16 %v1577
        %v1717 = vunpack.c.l.b16 %v1578
        %v1718 = vunpack.c.l.b16 %v1579
        %v1719 = vunpack.c.l.b16 %v1580
        %v1720 = vunpack.c.l.b16 %v1581
        %v1721 = vunpack.c.l.b16 %v1582
        %v1722 = vunpack.c.l.b16 %v1583
        %v1723 = vunpack.c.l.b16 %v1584
        %v1724 = vunpack.c.l.b16 %v1585
        %v1725 = vunpack.c.l.b16 %v1586
        %v1726 = vunpack.c.l.b16 %v1587
        %v1727 = vunpack.c.l.b16 %v1588
        %v1728 = vunpack.c.l.b16 %v1589
        %v1729 = vunpack.c.l.b16 %v1590
        %v1730 = vunpack.c.l.b16 %v1591
        %v1731 = vunpack.c.l.b16 %v1592
        %v1732 = vunpack.c.l.b16 %v1593
        %v1733 = vunpack.c.l.b16 %v1594
        %v1734 = vunpack.c.l.b16 %v1595
        %v1735 = vunpack.c.l.b16 %v1596
        %v1736 = vunpack.c.l.b16 %v1597
        %v1737 = vunpack.c.l.b16 %v1598
        %v1738 = vunpack.c.l.b16 %v1599
        %v1739 = vunpack.c.l.b16 %v1600
        %v1740 = vunpack.c.l.b16 %v1601
        %v1741 = vunpack.c.l.b16 %v1602
        %v1742 = vunpack.c.l.b16 %v1603
        %v1743 = vunpack.c.l.b16 %v1604
        %v1744 = vunpack.c.l.b16 %v1605
        %v1745 = vunpack.c.l.b16 %v1606
        %v1746 = vunpack.c.l.b16 %v1607
        %v1747 = vunpack.c.l.b16 %v1608
        %v1748 = vunpack.c.l.b16 %v1609
        %v1749 = vunpack.c.l.b16 %v1610
        %v1750 = vunpack.c.l.b16 %v1611
        %v1751 = vunpack.c.l.b16 %v1612
        %v1752 = vunpack.c.l.b16 %v1613
        %v1753 = vunpack.c.l.b16 %v1614
        %v1754 = vunpack.c.l.b16 %v1615
        %v1755 = vunpack.c.l.b16 %v1616
        %v1756 = vunpack.c.l.b16 %v1617
        %v1757 = vunpack.c.l.b16 %v1618
        %v1758 = vunpack.c.l.b16 %v1619
        %v1759 = vunpack.c.l.b16 %v1620
        %v1760 = vunpack.c.l.b16 %v1621
        %v1761 = vunpack.c.l.b16 %v1622
        %v1762 = vunpack.c.l.b16 %v1623
        %v1763 = vunpack.c.l.b16 %v1624
        %v1764 = vunpack.c.l.b16 %v1625
        %v1765 = vunpack.c.l.b16 %v1626
        %v1766 = vrot.slane %v1703, 7
        %v1767 = vsel %vm589, %v1766, %v1702
        %v1768 = vrot.slane %v1704, 6
        %v1769 = vsel %vm591, %v1768, %v1767
        %v1770 = vrot.slane %v1705, 5
        %v1771 = vsel %vm593, %v1770, %v1769
        %v1772 = vrot.slane %v1706, 4
        %v1773 = vsel %vm595, %v1772, %v1771
        %v1774 = vrot.slane %v1707, 3
        %v1775 = vsel %vm597, %v1774, %v1773
        %v1776 = vrot.slane %v1708, 2
        %v1777 = vsel %vm599, %v1776, %v1775
        %v1778 = vrot.slane %v1709, 1
        %v1779 = vsel %vm601, %v1778, %v1777
        %v1780 = vrot.slane %v1711, 7
        %v1781 = vsel %vm589, %v1780, %v1710
        %v1782 = vrot.slane %v1712, 6
        %v1783 = vsel %vm591, %v1782, %v1781
        %v1784 = vrot.slane %v1713, 5
        %v1785 = vsel %vm593, %v1784, %v1783
        %v1786 = vrot.slane %v1714, 4
        %v1787 = vsel %vm595, %v1786, %v1785
        %v1788 = vrot.slane %v1715, 3
        %v1789 = vsel %vm597, %v1788, %v1787
        %v1790 = vrot.slane %v1716, 2
        %v1791 = vsel %vm599, %v1790, %v1789
        %v1792 = vrot.slane %v1717, 1
        %v1793 = vsel %vm601, %v1792, %v1791
        %v1794 = vrot.slane %v1719, 7
        %v1795 = vsel %vm589, %v1794, %v1718
        %v1796 = vrot.slane %v1720, 6
        %v1797 = vsel %vm591, %v1796, %v1795
        %v1798 = vrot.slane %v1721, 5
        %v1799 = vsel %vm593, %v1798, %v1797
        %v1800 = vrot.slane %v1722, 4
        %v1801 = vsel %vm595, %v1800, %v1799
        %v1802 = vrot.slane %v1723, 3
        %v1803 = vsel %vm597, %v1802, %v1801
        %v1804 = vrot.slane %v1724, 2
        %v1805 = vsel %vm599, %v1804, %v1803
        %v1806 = vrot.slane %v1725, 1
        %v1807 = vsel %vm601, %v1806, %v1805
        %v1808 = vrot.slane %v1727, 7
        %v1809 = vsel %vm589, %v1808, %v1726
        %v1810 = vrot.slane %v1728, 6
        %v1811 = vsel %vm591, %v1810, %v1809
        %v1812 = vrot.slane %v1729, 5
        %v1813 = vsel %vm593, %v1812, %v1811
        %v1814 = vrot.slane %v1730, 4
        %v1815 = vsel %vm595, %v1814, %v1813
        %v1816 = vrot.slane %v1731, 3
        %v1817 = vsel %vm597, %v1816, %v1815
        %v1818 = vrot.slane %v1732, 2
        %v1819 = vsel %vm599, %v1818, %v1817
        %v1820 = vrot.slane %v1733, 1
        %v1821 = vsel %vm601, %v1820, %v1819
        %v1822 = vrot.slane %v1735, 7
        %v1823 = vsel %vm589, %v1822, %v1734
        %v1824 = vrot.slane %v1736, 6
        %v1825 = vsel %vm591, %v1824, %v1823
        %v1826 = vrot.slane %v1737, 5
        %v1827 = vsel %vm593, %v1826, %v1825
        %v1828 = vrot.slane %v1738, 4
        %v1829 = vsel %vm595, %v1828, %v1827
        %v1830 = vrot.slane %v1739, 3
        %v1831 = vsel %vm597, %v1830, %v1829
        %v1832 = vrot.slane %v1740, 2
        %v1833 = vsel %vm599, %v1832, %v1831
        %v1834 = vrot.slane %v1741, 1
        %v1835 = vsel %vm601, %v1834, %v1833
        %v1836 = vrot.slane %v1743, 7
        %v1837 = vsel %vm589, %v1836, %v1742
        %v1838 = vrot.slane %v1744, 6
        %v1839 = vsel %vm591, %v1838, %v1837
        %v1840 = vrot.slane %v1745, 5
        %v1841 = vsel %vm593, %v1840, %v1839
        %v1842 = vrot.slane %v1746, 4
        %v1843 = vsel %vm595, %v1842, %v1841
        %v1844 = vrot.slane %v1747, 3
        %v1845 = vsel %vm597, %v1844, %v1843
        %v1846 = vrot.slane %v1748, 2
        %v1847 = vsel %vm599, %v1846, %v1845
        %v1848 = vrot.slane %v1749, 1
        %v1849 = vsel %vm601, %v1848, %v1847
        %v1850 = vrot.slane %v1751, 7
        %v1851 = vsel %vm589, %v1850, %v1750
        %v1852 = vrot.slane %v1752, 6
        %v1853 = vsel %vm591, %v1852, %v1851
        %v1854 = vrot.slane %v1753, 5
        %v1855 = vsel %vm593, %v1854, %v1853
        %v1856 = vrot.slane %v1754, 4
        %v1857 = vsel %vm595, %v1856, %v1855
        %v1858 = vrot.slane %v1755, 3
        %v1859 = vsel %vm597, %v1858, %v1857
        %v1860 = vrot.slane %v1756, 2
        %v1861 = vsel %vm599, %v1860, %v1859
        %v1862 = vrot.slane %v1757, 1
        %v1863 = vsel %vm601, %v1862, %v1861
        %v1864 = vrot.slane %v1759, 7
        %v1865 = vsel %vm589, %v1864, %v1758
        %v1866 = vrot.slane %v1760, 6
        %v1867 = vsel %vm591, %v1866, %v1865
        %v1868 = vrot.slane %v1761, 5
        %v1869 = vsel %vm593, %v1868, %v1867
        %v1870 = vrot.slane %v1762, 4
        %v1871 = vsel %vm595, %v1870, %v1869
        %v1872 = vrot.slane %v1763, 3
        %v1873 = vsel %vm597, %v1872, %v1871
        %v1874 = vrot.slane %v1764, 2
        %v1875 = vsel %vm599, %v1874, %v1873
        %v1876 = vrot.slane %v1765, 1
        %v1877 = vsel %vm601, %v1876, %v1875
        %v1878 = vpack.c.b16 %v1793, %v1779
        %v1879 = vpack.c.b16 %v1821, %v1807
        %v1880 = vpack.c.b16 %v1849, %v1835
        %v1881 = vpack.c.b16 %v1877, %v1863
        %v1886 = vunpack.c.l.b16 %v1627
        %v1887 = vunpack.c.l.b16 %v1628
        %v1888 = vunpack.c.l.b16 %v1629
        %v1889 = vunpack.c.l.b16 %v1630
        %v1890 = vpack.c.b16 %v1887, %v1886
        %v1891 = vpack.c.b16 %v1889, %v1888
        %v1895 = vsel %vm709, %v1878, 0
        %v1898 = vsel %vm709, %v1879, 0
        %v1901 = vsel %vm709, %v1880, 0
        %v1904 = vsel %vm709, %v1881, 0
        %1906 = vmatprep.subr.bf16.mxu0 0
        %1907 = vmatpush1.bf16.msra.mxu0 %v1890
        %1908 = vmatprep.subr.bf16.mxu0 0
        %1909 = vmatpush1.bf16.msra.mxu0 %v1891
        %1910 = vmatprep.subr.bf16.mxu0 0
        %1911 = vmatpush1.bf16.msra.mxu0 0
        %1912 = vmatprep.subr.bf16.mxu0 0
        %1913 = vmatpush1.bf16.msra.mxu0 0
        %1914 = vmatprep.subr.bf16.mxu0 0
        %1915 = vmatpush1.bf16.msra.mxu0 0
        %1916 = vmatprep.subr.bf16.mxu0 0
        %1917 = vmatpush1.bf16.msra.mxu0 0
        %1918 = vmatprep.subr.bf16.mxu0 0
        %1919 = vmatpush1.bf16.msra.mxu0 0
        %1920 = vmatprep.subr.bf16.mxu0 0
        %1921 = vmatpush1.bf16.msra.mxu0 0
        %1922 = vmatprep.subr.bf16.mxu0 0
        %1923 = vmatpush1.bf16.msra.mxu0 0
        %1924 = vmatprep.subr.bf16.mxu0 0
        %1925 = vmatpush1.bf16.msra.mxu0 0
        %1926 = vmatprep.subr.bf16.mxu0 0
        %1927 = vmatpush1.bf16.msra.mxu0 0
        %1928 = vmatprep.subr.bf16.mxu0 0
        %1929 = vmatpush1.bf16.msra.mxu0 0
        %1930 = vmatprep.subr.bf16.mxu0 0
        %1931 = vmatpush1.bf16.msra.mxu0 0
        %1932 = vmatprep.subr.bf16.mxu0 0
        %1933 = vmatpush1.bf16.msra.mxu0 0
        %1934 = vmatprep.subr.bf16.mxu0 0
        %1935 = vmatpush1.bf16.msra.mxu0 0
        %1936 = vmatprep.subr.bf16.mxu0 0
        %1937 = vmatpush1.bf16.msra.mxu0 0
        %1938 = vmatprep.mubr.bf16.mxu0 0
        %1939 = vmatmul.mubr.bf16.gmra.mrb[0].mxu0 %v1895
        %v1940 = vpop.f32.mrb[0].mxu0
        %v1941 = vadd.f32 %v1636, %v1940
        %v1942 = vpop.f32.mrb[0].mxu0
        %v1943 = vpop.f32.mrb[0].mxu0
        %v1944 = vadd.f32 %v1636, %v1943
        %v1945 = vpop.f32.mrb[0].mxu0
        %1946 = vmatprep.mubr.bf16.mxu0 0
        %1947 = vmatmul.mubr.bf16.gmra.mrb[0].mxu0 %v1898
        %v1948 = vpop.f32.mrb[0].mxu0
        %v1949 = vadd.f32 %v1636, %v1948
        %v1950 = vpop.f32.mrb[0].mxu0
        %v1951 = vpop.f32.mrb[0].mxu0
        %v1952 = vadd.f32 %v1636, %v1951
        %v1953 = vpop.f32.mrb[0].mxu0
        %1954 = vmatprep.mubr.bf16.mxu0 0
        %1955 = vmatmul.mubr.bf16.gmra.mrb[0].mxu0 %v1901
        %v1956 = vpop.f32.mrb[0].mxu0
        %v1957 = vadd.f32 %v1636, %v1956
        %v1958 = vpop.f32.mrb[0].mxu0
        %v1959 = vpop.f32.mrb[0].mxu0
        %v1960 = vadd.f32 %v1636, %v1959
        %v1961 = vpop.f32.mrb[0].mxu0
        %1962 = vmatprep.mubr.bf16.mxu0 0
        %1963 = vmatmul.mubr.bf16.gmra.mrb[0].mxu0 %v1904
        %v1964 = vpop.f32.mrb[0].mxu0
        %v1965 = vadd.f32 %v1636, %v1964
        %v1966 = vpop.f32.mrb[0].mxu0
        %v1967 = vpop.f32.mrb[0].mxu0
        %v1968 = vadd.f32 %v1636, %v1967
        %v1969 = vpop.f32.mrb[0].mxu0
        %1970 = vdwg.mxu0
        %v1971 = vpack.c.bf16 %v1944, %v1941
        %v1972 = vpack.c.bf16 %v1952, %v1949
        %v1973 = vpack.c.bf16 %v1960, %v1957
        %v1974 = vpack.c.bf16 %v1968, %v1965
        %v1979 = vunpack.c.l.b16 %v1971
        %v1980 = vunpack.c.h.b16 %v1971
        %v1981 = vunpack.c.l.b16 %v1972
        %v1982 = vunpack.c.h.b16 %v1972
        %v1983 = vunpack.c.l.b16 %v1973
        %v1984 = vunpack.c.h.b16 %v1973
        %v1985 = vunpack.c.l.b16 %v1974
        %v1986 = vunpack.c.h.b16 %v1974
        %v1987 = vpack.c.b16 %v1979, %v1979
        %v1988 = vpack.c.b16 %v1980, %v1980
        %v1989 = vpack.c.b16 %v1981, %v1981
        %v1990 = vpack.c.b16 %v1982, %v1982
        %v1991 = vpack.c.b16 %v1983, %v1983
        %v1992 = vpack.c.b16 %v1984, %v1984
        %v1993 = vpack.c.b16 %v1985, %v1985
        %v1994 = vpack.c.b16 %v1986, %v1986
        %1995 = vrot.lane.b32.xlu0 %v1987, 120
        %v1996 = vpop.permute.xlu0 %1995
        %1997 = vrot.lane.b32.xlu0 %v1988, 120
        %v1998 = vpop.permute.xlu0 %1997
        %1999 = vrot.lane.b32.xlu0 %v1989, 120
        %v2000 = vpop.permute.xlu0 %1999
        %2001 = vrot.lane.b32.xlu0 %v1990, 120
        %v2002 = vpop.permute.xlu0 %2001
        %2003 = vrot.lane.b32.xlu0 %v1991, 120
        %v2004 = vpop.permute.xlu0 %2003
        %2005 = vrot.lane.b32.xlu0 %v1992, 120
        %v2006 = vpop.permute.xlu0 %2005
        %2007 = vrot.lane.b32.xlu0 %v1993, 120
        %v2008 = vpop.permute.xlu0 %2007
        %2009 = vrot.lane.b32.xlu0 %v1994, 120
        %v2010 = vpop.permute.xlu0 %2009
        %2011 = vrot.lane.b32.xlu0 %v1987, 112
        %v2012 = vpop.permute.xlu0 %2011
        %2013 = vrot.lane.b32.xlu0 %v1988, 112
        %v2014 = vpop.permute.xlu0 %2013
        %2015 = vrot.lane.b32.xlu0 %v1989, 112
        %v2016 = vpop.permute.xlu0 %2015
        %2017 = vrot.lane.b32.xlu0 %v1990, 112
        %v2018 = vpop.permute.xlu0 %2017
        %2019 = vrot.lane.b32.xlu0 %v1991, 112
        %v2020 = vpop.permute.xlu0 %2019
        %2021 = vrot.lane.b32.xlu0 %v1992, 112
        %v2022 = vpop.permute.xlu0 %2021
        %2023 = vrot.lane.b32.xlu0 %v1993, 112
        %v2024 = vpop.permute.xlu0 %2023
        %2025 = vrot.lane.b32.xlu0 %v1994, 112
        %v2026 = vpop.permute.xlu0 %2025
        %2027 = vrot.lane.b32.xlu0 %v1987, 104
        %v2028 = vpop.permute.xlu0 %2027
        %2029 = vrot.lane.b32.xlu0 %v1988, 104
        %v2030 = vpop.permute.xlu0 %2029
        %2031 = vrot.lane.b32.xlu0 %v1989, 104
        %v2032 = vpop.permute.xlu0 %2031
        %2033 = vrot.lane.b32.xlu0 %v1990, 104
        %v2034 = vpop.permute.xlu0 %2033
        %2035 = vrot.lane.b32.xlu0 %v1991, 104
        %v2036 = vpop.permute.xlu0 %2035
        %2037 = vrot.lane.b32.xlu0 %v1992, 104
        %v2038 = vpop.permute.xlu0 %2037
        %2039 = vrot.lane.b32.xlu0 %v1993, 104
        %v2040 = vpop.permute.xlu0 %2039
        %2041 = vrot.lane.b32.xlu0 %v1994, 104
        %v2042 = vpop.permute.xlu0 %2041
        %2043 = vrot.lane.b32.xlu0 %v1987, 96
        %v2044 = vpop.permute.xlu0 %2043
        %vm2045 = vcmask 64512
        %v2047 = vsel %vm2045, %v1987, 0
        %v2050 = vsel %vm2045, %v2044, 0
        %2052 = vmatprep.subr.bf16.mxu0 0
        %2053 = vmatpush1.bf16.xpose.msra.mxu0 %v2050
        %2054 = vmatprep.subr.bf16.mxu0 0
        %2055 = vmatpush1.bf16.xpose.msra.mxu0 0
        %2056 = vmatprep.subr.bf16.mxu0 0
        %2057 = vmatpush1.bf16.xpose.msra.mxu0 0
        %2058 = vmatprep.subr.bf16.mxu0 0
        %2059 = vmatpush1.bf16.xpose.msra.mxu0 0
        %2060 = vmatprep.subr.bf16.mxu0 0
        %2061 = vmatpush1.bf16.xpose.msra.mxu0 0
        %2062 = vmatprep.subr.bf16.mxu0 0
        %2063 = vmatpush1.bf16.xpose.msra.mxu0 0
        %2064 = vmatprep.subr.bf16.mxu0 0
        %2065 = vmatpush1.bf16.xpose.msra.mxu0 0
        %2066 = vmatprep.subr.bf16.mxu0 0
        %2067 = vmatpush1.bf16.xpose.msra.mxu0 0
        %2068 = vmatprep.subr.bf16.mxu0 0
        %2069 = vmatpush1.bf16.xpose.msra.mxu0 0
        %2070 = vmatprep.subr.bf16.mxu0 0
        %2071 = vmatpush1.bf16.xpose.msra.mxu0 0
        %2072 = vmatprep.subr.bf16.mxu0 0
        %2073 = vmatpush1.bf16.xpose.msra.mxu0 0
        %2074 = vmatprep.subr.bf16.mxu0 0
        %2075 = vmatpush1.bf16.xpose.msra.mxu0 0
        %2076 = vmatprep.subr.bf16.mxu0 0
        %2077 = vmatpush1.bf16.xpose.msra.mxu0 0
        %2078 = vmatprep.subr.bf16.mxu0 0
        %2079 = vmatpush1.bf16.xpose.msra.mxu0 0
        %2080 = vmatprep.subr.bf16.mxu0 0
        %2081 = vmatpush1.bf16.xpose.msra.mxu0 0
        %2082 = vmatprep.subr.bf16.mxu0 0
        %2083 = vmatpush1.bf16.xpose.msra.mxu0 0
        %2084 = vmatprep.mubr.bf16.mxu0 0
        %2085 = vmatmul.mubr.bf16.gmra.mrb[0].mxu0 %v2047
        %v2086 = vpop.f32.mrb[0].mxu0
        %v2087 = vadd.f32 0.0, %v2086
        %v2088 = vpop.f32.mrb[0].mxu0
        %v2089 = vpop.f32.mrb[0].mxu0
        %v2090 = vpop.f32.mrb[0].mxu0
        %2091 = vdwg.mxu0
        %v2092 = vunpack.c.l.b16 %v1996
        %v2093 = vpack.c.b16 %v2092, %v2092
        %2094 = vrot.lane.b32.xlu0 %v2093, 96
        %v2095 = vpop.permute.xlu0 %2094
        %v2097 = vsel %vm2045, %v1996, 0
        %v2100 = vsel %vm2045, %v2095, 0
        %2102 = vmatprep.subr.bf16.mxu0 0
        %2103 = vmatpush1.bf16.xpose.msra.mxu0 %v2100
        %2104 = vmatprep.subr.bf16.mxu0 0
        %2105 = vmatpush1.bf16.xpose.msra.mxu0 0
        %2106 = vmatprep.subr.bf16.mxu0 0
        %2107 = vmatpush1.bf16.xpose.msra.mxu0 0
        %2108 = vmatprep.subr.bf16.mxu0 0
        %2109 = vmatpush1.bf16.xpose.msra.mxu0 0
        %2110 = vmatprep.subr.bf16.mxu0 0
        %2111 = vmatpush1.bf16.xpose.msra.mxu0 0
        %2112 = vmatprep.subr.bf16.mxu0 0
        %2113 = vmatpush1.bf16.xpose.msra.mxu0 0
        %2114 = vmatprep.subr.bf16.mxu0 0
        %2115 = vmatpush1.bf16.xpose.msra.mxu0 0
        %2116 = vmatprep.subr.bf16.mxu0 0
        %2117 = vmatpush1.bf16.xpose.msra.mxu0 0
        %2118 = vmatprep.subr.bf16.mxu0 0
        %2119 = vmatpush1.bf16.xpose.msra.mxu0 0
        %2120 = vmatprep.subr.bf16.mxu0 0
        %2121 = vmatpush1.bf16.xpose.msra.mxu0 0
        %2122 = vmatprep.subr.bf16.mxu0 0
        %2123 = vmatpush1.bf16.xpose.msra.mxu0 0
        %2124 = vmatprep.subr.bf16.mxu0 0
        %2125 = vmatpush1.bf16.xpose.msra.mxu0 0
        %2126 = vmatprep.subr.bf16.mxu0 0
        %2127 = vmatpush1.bf16.xpose.msra.mxu0 0
        %2128 = vmatprep.subr.bf16.mxu0 0
        %2129 = vmatpush1.bf16.xpose.msra.mxu0 0
        %2130 = vmatprep.subr.bf16.mxu0 0
        %2131 = vmatpush1.bf16.xpose.msra.mxu0 0
        %2132 = vmatprep.subr.bf16.mxu0 0
        %2133 = vmatpush1.bf16.xpose.msra.mxu0 0
        %2134 = vmatprep.mubr.bf16.mxu0 0
        %2135 = vmatmul.mubr.bf16.gmra.mrb[0].mxu0 %v2097
        %v2136 = vpop.f32.mrb[0].mxu0
        %v2137 = vadd.f32 0.0, %v2136
        %v2138 = vpop.f32.mrb[0].mxu0
        %v2139 = vpop.f32.mrb[0].mxu0
        %v2140 = vpop.f32.mrb[0].mxu0
        %2141 = vdwg.mxu0
        %v2142 = vunpack.c.l.b16 %v2012
        %v2143 = vpack.c.b16 %v2142, %v2142
        %2144 = vrot.lane.b32.xlu0 %v2143, 96
        %v2145 = vpop.permute.xlu0 %2144
        %v2147 = vsel %vm2045, %v2012, 0
        %v2150 = vsel %vm2045, %v2145, 0
        %2152 = vmatprep.subr.bf16.mxu0 0
        %2153 = vmatpush1.bf16.xpose.msra.mxu0 %v2150
        %2154 = vmatprep.subr.bf16.mxu0 0
        %2155 = vmatpush1.bf16.xpose.msra.mxu0 0
        %2156 = vmatprep.subr.bf16.mxu0 0
        %2157 = vmatpush1.bf16.xpose.msra.mxu0 0
        %2158 = vmatprep.subr.bf16.mxu0 0
        %2159 = vmatpush1.bf16.xpose.msra.mxu0 0
        %2160 = vmatprep.subr.bf16.mxu0 0
        %2161 = vmatpush1.bf16.xpose.msra.mxu0 0
        %2162 = vmatprep.subr.bf16.mxu0 0
        %2163 = vmatpush1.bf16.xpose.msra.mxu0 0
        %2164 = vmatprep.subr.bf16.mxu0 0
        %2165 = vmatpush1.bf16.xpose.msra.mxu0 0
        %2166 = vmatprep.subr.bf16.mxu0 0
        %2167 = vmatpush1.bf16.xpose.msra.mxu0 0
        %2168 = vmatprep.subr.bf16.mxu0 0
        %2169 = vmatpush1.bf16.xpose.msra.mxu0 0
        %2170 = vmatprep.subr.bf16.mxu0 0
        %2171 = vmatpush1.bf16.xpose.msra.mxu0 0
        %2172 = vmatprep.subr.bf16.mxu0 0
        %2173 = vmatpush1.bf16.xpose.msra.mxu0 0
        %2174 = vmatprep.subr.bf16.mxu0 0
        %2175 = vmatpush1.bf16.xpose.msra.mxu0 0
        %2176 = vmatprep.subr.bf16.mxu0 0
        %2177 = vmatpush1.bf16.xpose.msra.mxu0 0
        %2178 = vmatprep.subr.bf16.mxu0 0
        %2179 = vmatpush1.bf16.xpose.msra.mxu0 0
        %2180 = vmatprep.subr.bf16.mxu0 0
        %2181 = vmatpush1.bf16.xpose.msra.mxu0 0
        %2182 = vmatprep.subr.bf16.mxu0 0
        %2183 = vmatpush1.bf16.xpose.msra.mxu0 0
        %2184 = vmatprep.mubr.bf16.mxu0 0
        %2185 = vmatmul.mubr.bf16.gmra.mrb[0].mxu0 %v2147
        %v2186 = vpop.f32.mrb[0].mxu0
        %v2187 = vadd.f32 0.0, %v2186
        %v2188 = vpop.f32.mrb[0].mxu0
        %v2189 = vpop.f32.mrb[0].mxu0
        %v2190 = vpop.f32.mrb[0].mxu0
        %2191 = vdwg.mxu0
        %v2192 = vunpack.c.l.b16 %v2028
        %v2193 = vpack.c.b16 %v2192, %v2192
        %2194 = vrot.lane.b32.xlu0 %v2193, 96
        %v2195 = vpop.permute.xlu0 %2194
        %v2197 = vsel %vm2045, %v2028, 0
        %v2200 = vsel %vm2045, %v2195, 0
        %2202 = vmatprep.subr.bf16.mxu0 0
        %2203 = vmatpush1.bf16.xpose.msra.mxu0 %v2200
        %2204 = vmatprep.subr.bf16.mxu0 0
        %2205 = vmatpush1.bf16.xpose.msra.mxu0 0
        %2206 = vmatprep.subr.bf16.mxu0 0
        %2207 = vmatpush1.bf16.xpose.msra.mxu0 0
        %2208 = vmatprep.subr.bf16.mxu0 0
        %2209 = vmatpush1.bf16.xpose.msra.mxu0 0
        %2210 = vmatprep.subr.bf16.mxu0 0
        %2211 = vmatpush1.bf16.xpose.msra.mxu0 0
        %2212 = vmatprep.subr.bf16.mxu0 0
        %2213 = vmatpush1.bf16.xpose.msra.mxu0 0
        %2214 = vmatprep.subr.bf16.mxu0 0
        %2215 = vmatpush1.bf16.xpose.msra.mxu0 0
        %2216 = vmatprep.subr.bf16.mxu0 0
        %2217 = vmatpush1.bf16.xpose.msra.mxu0 0
        %2218 = vmatprep.subr.bf16.mxu0 0
        %2219 = vmatpush1.bf16.xpose.msra.mxu0 0
        %2220 = vmatprep.subr.bf16.mxu0 0
        %2221 = vmatpush1.bf16.xpose.msra.mxu0 0
        %2222 = vmatprep.subr.bf16.mxu0 0
        %2223 = vmatpush1.bf16.xpose.msra.mxu0 0
        %2224 = vmatprep.subr.bf16.mxu0 0
        %2225 = vmatpush1.bf16.xpose.msra.mxu0 0
        %2226 = vmatprep.subr.bf16.mxu0 0
        %2227 = vmatpush1.bf16.xpose.msra.mxu0 0
        %2228 = vmatprep.subr.bf16.mxu0 0
        %2229 = vmatpush1.bf16.xpose.msra.mxu0 0
        %2230 = vmatprep.subr.bf16.mxu0 0
        %2231 = vmatpush1.bf16.xpose.msra.mxu0 0
        %2232 = vmatprep.subr.bf16.mxu0 0
        %2233 = vmatpush1.bf16.xpose.msra.mxu0 0
        %2234 = vmatprep.mubr.bf16.mxu0 0
        %2235 = vmatmul.mubr.bf16.gmra.mrb[0].mxu0 %v2197
        %v2236 = vpop.f32.mrb[0].mxu0
        %v2237 = vadd.f32 0.0, %v2236
        %v2238 = vpop.f32.mrb[0].mxu0
        %v2239 = vpop.f32.mrb[0].mxu0
        %v2240 = vpop.f32.mrb[0].mxu0
        %2241 = vdwg.mxu0
        %2242 = vrot.lane.b32.xlu0 %v1988, 96
        %v2243 = vpop.permute.xlu0 %2242
        %v2245 = vsel %vm2045, %v1988, 0
        %v2248 = vsel %vm2045, %v2243, 0
        %2250 = vmatprep.subr.bf16.mxu0 0
        %2251 = vmatpush1.bf16.xpose.msra.mxu0 %v2248
        %2252 = vmatprep.subr.bf16.mxu0 0
        %2253 = vmatpush1.bf16.xpose.msra.mxu0 0
        %2254 = vmatprep.subr.bf16.mxu0 0
        %2255 = vmatpush1.bf16.xpose.msra.mxu0 0
        %2256 = vmatprep.subr.bf16.mxu0 0
        %2257 = vmatpush1.bf16.xpose.msra.mxu0 0
        %2258 = vmatprep.subr.bf16.mxu0 0
        %2259 = vmatpush1.bf16.xpose.msra.mxu0 0
        %2260 = vmatprep.subr.bf16.mxu0 0
        %2261 = vmatpush1.bf16.xpose.msra.mxu0 0
        %2262 = vmatprep.subr.bf16.mxu0 0
        %2263 = vmatpush1.bf16.xpose.msra.mxu0 0
        %2264 = vmatprep.subr.bf16.mxu0 0
        %2265 = vmatpush1.bf16.xpose.msra.mxu0 0
        %2266 = vmatprep.subr.bf16.mxu0 0
        %2267 = vmatpush1.bf16.xpose.msra.mxu0 0
        %2268 = vmatprep.subr.bf16.mxu0 0
        %2269 = vmatpush1.bf16.xpose.msra.mxu0 0
        %2270 = vmatprep.subr.bf16.mxu0 0
        %2271 = vmatpush1.bf16.xpose.msra.mxu0 0
        %2272 = vmatprep.subr.bf16.mxu0 0
        %2273 = vmatpush1.bf16.xpose.msra.mxu0 0
        %2274 = vmatprep.subr.bf16.mxu0 0
        %2275 = vmatpush1.bf16.xpose.msra.mxu0 0
        %2276 = vmatprep.subr.bf16.mxu0 0
        %2277 = vmatpush1.bf16.xpose.msra.mxu0 0
        %2278 = vmatprep.subr.bf16.mxu0 0
        %2279 = vmatpush1.bf16.xpose.msra.mxu0 0
        %2280 = vmatprep.subr.bf16.mxu0 0
        %2281 = vmatpush1.bf16.xpose.msra.mxu0 0
        %2282 = vmatprep.mubr.bf16.mxu0 0
        %2283 = vmatmul.mubr.bf16.gmra.mrb[0].mxu0 %v2245
        %v2284 = vpop.f32.mrb[0].mxu0
        %v2285 = vadd.f32 0.0, %v2284
        %v2286 = vpop.f32.mrb[0].mxu0
        %v2287 = vpop.f32.mrb[0].mxu0
        %v2288 = vpop.f32.mrb[0].mxu0
        %2289 = vdwg.mxu0
        %v2290 = vunpack.c.l.b16 %v1998
        %v2291 = vpack.c.b16 %v2290, %v2290
        %2292 = vrot.lane.b32.xlu0 %v2291, 96
        %v2293 = vpop.permute.xlu0 %2292
        %v2295 = vsel %vm2045, %v1998, 0
        %v2298 = vsel %vm2045, %v2293, 0
        %2300 = vmatprep.subr.bf16.mxu0 0
        %2301 = vmatpush1.bf16.xpose.msra.mxu0 %v2298
        %2302 = vmatprep.subr.bf16.mxu0 0
        %2303 = vmatpush1.bf16.xpose.msra.mxu0 0
        %2304 = vmatprep.subr.bf16.mxu0 0
        %2305 = vmatpush1.bf16.xpose.msra.mxu0 0
        %2306 = vmatprep.subr.bf16.mxu0 0
        %2307 = vmatpush1.bf16.xpose.msra.mxu0 0
        %2308 = vmatprep.subr.bf16.mxu0 0
        %2309 = vmatpush1.bf16.xpose.msra.mxu0 0
        %2310 = vmatprep.subr.bf16.mxu0 0
        %2311 = vmatpush1.bf16.xpose.msra.mxu0 0
        %2312 = vmatprep.subr.bf16.mxu0 0
        %2313 = vmatpush1.bf16.xpose.msra.mxu0 0
        %2314 = vmatprep.subr.bf16.mxu0 0
        %2315 = vmatpush1.bf16.xpose.msra.mxu0 0
        %2316 = vmatprep.subr.bf16.mxu0 0
        %2317 = vmatpush1.bf16.xpose.msra.mxu0 0
        %2318 = vmatprep.subr.bf16.mxu0 0
        %2319 = vmatpush1.bf16.xpose.msra.mxu0 0
        %2320 = vmatprep.subr.bf16.mxu0 0
        %2321 = vmatpush1.bf16.xpose.msra.mxu0 0
        %2322 = vmatprep.subr.bf16.mxu0 0
        %2323 = vmatpush1.bf16.xpose.msra.mxu0 0
        %2324 = vmatprep.subr.bf16.mxu0 0
        %2325 = vmatpush1.bf16.xpose.msra.mxu0 0
        %2326 = vmatprep.subr.bf16.mxu0 0
        %2327 = vmatpush1.bf16.xpose.msra.mxu0 0
        %2328 = vmatprep.subr.bf16.mxu0 0
        %2329 = vmatpush1.bf16.xpose.msra.mxu0 0
        %2330 = vmatprep.subr.bf16.mxu0 0
        %2331 = vmatpush1.bf16.xpose.msra.mxu0 0
        %2332 = vmatprep.mubr.bf16.mxu0 0
        %2333 = vmatmul.mubr.bf16.gmra.mrb[0].mxu0 %v2295
        %v2334 = vpop.f32.mrb[0].mxu0
        %v2335 = vadd.f32 0.0, %v2334
        %v2336 = vpop.f32.mrb[0].mxu0
        %v2337 = vpop.f32.mrb[0].mxu0
        %v2338 = vpop.f32.mrb[0].mxu0
        %2339 = vdwg.mxu0
        %v2340 = vunpack.c.l.b16 %v2014
        %v2341 = vpack.c.b16 %v2340, %v2340
        %2342 = vrot.lane.b32.xlu0 %v2341, 96
        %v2343 = vpop.permute.xlu0 %2342
        %v2345 = vsel %vm2045, %v2014, 0
        %v2348 = vsel %vm2045, %v2343, 0
        %2350 = vmatprep.subr.bf16.mxu0 0
        %2351 = vmatpush1.bf16.xpose.msra.mxu0 %v2348
        %2352 = vmatprep.subr.bf16.mxu0 0
        %2353 = vmatpush1.bf16.xpose.msra.mxu0 0
        %2354 = vmatprep.subr.bf16.mxu0 0
        %2355 = vmatpush1.bf16.xpose.msra.mxu0 0
        %2356 = vmatprep.subr.bf16.mxu0 0
        %2357 = vmatpush1.bf16.xpose.msra.mxu0 0
        %2358 = vmatprep.subr.bf16.mxu0 0
        %2359 = vmatpush1.bf16.xpose.msra.mxu0 0
        %2360 = vmatprep.subr.bf16.mxu0 0
        %2361 = vmatpush1.bf16.xpose.msra.mxu0 0
        %2362 = vmatprep.subr.bf16.mxu0 0
        %2363 = vmatpush1.bf16.xpose.msra.mxu0 0
        %2364 = vmatprep.subr.bf16.mxu0 0
        %2365 = vmatpush1.bf16.xpose.msra.mxu0 0
        %2366 = vmatprep.subr.bf16.mxu0 0
        %2367 = vmatpush1.bf16.xpose.msra.mxu0 0
        %2368 = vmatprep.subr.bf16.mxu0 0
        %2369 = vmatpush1.bf16.xpose.msra.mxu0 0
        %2370 = vmatprep.subr.bf16.mxu0 0
        %2371 = vmatpush1.bf16.xpose.msra.mxu0 0
        %2372 = vmatprep.subr.bf16.mxu0 0
        %2373 = vmatpush1.bf16.xpose.msra.mxu0 0
        %2374 = vmatprep.subr.bf16.mxu0 0
        %2375 = vmatpush1.bf16.xpose.msra.mxu0 0
        %2376 = vmatprep.subr.bf16.mxu0 0
        %2377 = vmatpush1.bf16.xpose.msra.mxu0 0
        %2378 = vmatprep.subr.bf16.mxu0 0
        %2379 = vmatpush1.bf16.xpose.msra.mxu0 0
        %2380 = vmatprep.subr.bf16.mxu0 0
        %2381 = vmatpush1.bf16.xpose.msra.mxu0 0
        %2382 = vmatprep.mubr.bf16.mxu0 0
        %2383 = vmatmul.mubr.bf16.gmra.mrb[0].mxu0 %v2345
        %v2384 = vpop.f32.mrb[0].mxu0
        %v2385 = vadd.f32 0.0, %v2384
        %v2386 = vpop.f32.mrb[0].mxu0
        %v2387 = vpop.f32.mrb[0].mxu0
        %v2388 = vpop.f32.mrb[0].mxu0
        %2389 = vdwg.mxu0
        %v2390 = vunpack.c.l.b16 %v2030
        %v2391 = vpack.c.b16 %v2390, %v2390
        %2392 = vrot.lane.b32.xlu0 %v2391, 96
        %v2393 = vpop.permute.xlu0 %2392
        %v2395 = vsel %vm2045, %v2030, 0
        %v2398 = vsel %vm2045, %v2393, 0
        %2400 = vmatprep.subr.bf16.mxu0 0
        %2401 = vmatpush1.bf16.xpose.msra.mxu0 %v2398
        %2402 = vmatprep.subr.bf16.mxu0 0
        %2403 = vmatpush1.bf16.xpose.msra.mxu0 0
        %2404 = vmatprep.subr.bf16.mxu0 0
        %2405 = vmatpush1.bf16.xpose.msra.mxu0 0
        %2406 = vmatprep.subr.bf16.mxu0 0
        %2407 = vmatpush1.bf16.xpose.msra.mxu0 0
        %2408 = vmatprep.subr.bf16.mxu0 0
        %2409 = vmatpush1.bf16.xpose.msra.mxu0 0
        %2410 = vmatprep.subr.bf16.mxu0 0
        %2411 = vmatpush1.bf16.xpose.msra.mxu0 0
        %2412 = vmatprep.subr.bf16.mxu0 0
        %2413 = vmatpush1.bf16.xpose.msra.mxu0 0
        %2414 = vmatprep.subr.bf16.mxu0 0
        %2415 = vmatpush1.bf16.xpose.msra.mxu0 0
        %2416 = vmatprep.subr.bf16.mxu0 0
        %2417 = vmatpush1.bf16.xpose.msra.mxu0 0
        %2418 = vmatprep.subr.bf16.mxu0 0
        %2419 = vmatpush1.bf16.xpose.msra.mxu0 0
        %2420 = vmatprep.subr.bf16.mxu0 0
        %2421 = vmatpush1.bf16.xpose.msra.mxu0 0
        %2422 = vmatprep.subr.bf16.mxu0 0
        %2423 = vmatpush1.bf16.xpose.msra.mxu0 0
        %2424 = vmatprep.subr.bf16.mxu0 0
        %2425 = vmatpush1.bf16.xpose.msra.mxu0 0
        %2426 = vmatprep.subr.bf16.mxu0 0
        %2427 = vmatpush1.bf16.xpose.msra.mxu0 0
        %2428 = vmatprep.subr.bf16.mxu0 0
        %2429 = vmatpush1.bf16.xpose.msra.mxu0 0
        %2430 = vmatprep.subr.bf16.mxu0 0
        %2431 = vmatpush1.bf16.xpose.msra.mxu0 0
        %2432 = vmatprep.mubr.bf16.mxu0 0
        %2433 = vmatmul.mubr.bf16.gmra.mrb[0].mxu0 %v2395
        %v2434 = vpop.f32.mrb[0].mxu0
        %v2435 = vadd.f32 0.0, %v2434
        %v2436 = vpop.f32.mrb[0].mxu0
        %v2437 = vpop.f32.mrb[0].mxu0
        %v2438 = vpop.f32.mrb[0].mxu0
        %2439 = vdwg.mxu0
        %2440 = vrot.lane.b32.xlu0 %v1989, 96
        %v2441 = vpop.permute.xlu0 %2440
        %v2443 = vsel %vm2045, %v1989, 0
        %v2446 = vsel %vm2045, %v2441, 0
        %2448 = vmatprep.subr.bf16.mxu0 0
        %2449 = vmatpush1.bf16.xpose.msra.mxu0 %v2446
        %2450 = vmatprep.subr.bf16.mxu0 0
        %2451 = vmatpush1.bf16.xpose.msra.mxu0 0
        %2452 = vmatprep.subr.bf16.mxu0 0
        %2453 = vmatpush1.bf16.xpose.msra.mxu0 0
        %2454 = vmatprep.subr.bf16.mxu0 0
        %2455 = vmatpush1.bf16.xpose.msra.mxu0 0
        %2456 = vmatprep.subr.bf16.mxu0 0
        %2457 = vmatpush1.bf16.xpose.msra.mxu0 0
        %2458 = vmatprep.subr.bf16.mxu0 0
        %2459 = vmatpush1.bf16.xpose.msra.mxu0 0
        %2460 = vmatprep.subr.bf16.mxu0 0
        %2461 = vmatpush1.bf16.xpose.msra.mxu0 0
        %2462 = vmatprep.subr.bf16.mxu0 0
        %2463 = vmatpush1.bf16.xpose.msra.mxu0 0
        %2464 = vmatprep.subr.bf16.mxu0 0
        %2465 = vmatpush1.bf16.xpose.msra.mxu0 0
        %2466 = vmatprep.subr.bf16.mxu0 0
        %2467 = vmatpush1.bf16.xpose.msra.mxu0 0
        %2468 = vmatprep.subr.bf16.mxu0 0
        %2469 = vmatpush1.bf16.xpose.msra.mxu0 0
        %2470 = vmatprep.subr.bf16.mxu0 0
        %2471 = vmatpush1.bf16.xpose.msra.mxu0 0
        %2472 = vmatprep.subr.bf16.mxu0 0
        %2473 = vmatpush1.bf16.xpose.msra.mxu0 0
        %2474 = vmatprep.subr.bf16.mxu0 0
        %2475 = vmatpush1.bf16.xpose.msra.mxu0 0
        %2476 = vmatprep.subr.bf16.mxu0 0
        %2477 = vmatpush1.bf16.xpose.msra.mxu0 0
        %2478 = vmatprep.subr.bf16.mxu0 0
        %2479 = vmatpush1.bf16.xpose.msra.mxu0 0
        %2480 = vmatprep.mubr.bf16.mxu0 0
        %2481 = vmatmul.mubr.bf16.gmra.mrb[0].mxu0 %v2443
        %v2482 = vpop.f32.mrb[0].mxu0
        %v2483 = vadd.f32 0.0, %v2482
        %v2484 = vpop.f32.mrb[0].mxu0
        %v2485 = vpop.f32.mrb[0].mxu0
        %v2486 = vpop.f32.mrb[0].mxu0
        %2487 = vdwg.mxu0
        %v2488 = vunpack.c.l.b16 %v2000
        %v2489 = vpack.c.b16 %v2488, %v2488
        %2490 = vrot.lane.b32.xlu0 %v2489, 96
        %v2491 = vpop.permute.xlu0 %2490
        %v2493 = vsel %vm2045, %v2000, 0
        %v2496 = vsel %vm2045, %v2491, 0
        %2498 = vmatprep.subr.bf16.mxu0 0
        %2499 = vmatpush1.bf16.xpose.msra.mxu0 %v2496
        %2500 = vmatprep.subr.bf16.mxu0 0
        %2501 = vmatpush1.bf16.xpose.msra.mxu0 0
        %2502 = vmatprep.subr.bf16.mxu0 0
        %2503 = vmatpush1.bf16.xpose.msra.mxu0 0
        %2504 = vmatprep.subr.bf16.mxu0 0
        %2505 = vmatpush1.bf16.xpose.msra.mxu0 0
        %2506 = vmatprep.subr.bf16.mxu0 0
        %2507 = vmatpush1.bf16.xpose.msra.mxu0 0
        %2508 = vmatprep.subr.bf16.mxu0 0
        %2509 = vmatpush1.bf16.xpose.msra.mxu0 0
        %2510 = vmatprep.subr.bf16.mxu0 0
        %2511 = vmatpush1.bf16.xpose.msra.mxu0 0
        %2512 = vmatprep.subr.bf16.mxu0 0
        %2513 = vmatpush1.bf16.xpose.msra.mxu0 0
        %2514 = vmatprep.subr.bf16.mxu0 0
        %2515 = vmatpush1.bf16.xpose.msra.mxu0 0
        %2516 = vmatprep.subr.bf16.mxu0 0
        %2517 = vmatpush1.bf16.xpose.msra.mxu0 0
        %2518 = vmatprep.subr.bf16.mxu0 0
        %2519 = vmatpush1.bf16.xpose.msra.mxu0 0
        %2520 = vmatprep.subr.bf16.mxu0 0
        %2521 = vmatpush1.bf16.xpose.msra.mxu0 0
        %2522 = vmatprep.subr.bf16.mxu0 0
        %2523 = vmatpush1.bf16.xpose.msra.mxu0 0
        %2524 = vmatprep.subr.bf16.mxu0 0
        %2525 = vmatpush1.bf16.xpose.msra.mxu0 0
        %2526 = vmatprep.subr.bf16.mxu0 0
        %2527 = vmatpush1.bf16.xpose.msra.mxu0 0
        %2528 = vmatprep.subr.bf16.mxu0 0
        %2529 = vmatpush1.bf16.xpose.msra.mxu0 0
        %2530 = vmatprep.mubr.bf16.mxu0 0
        %2531 = vmatmul.mubr.bf16.gmra.mrb[0].mxu0 %v2493
        %v2532 = vpop.f32.mrb[0].mxu0
        %v2533 = vadd.f32 0.0, %v2532
        %v2534 = vpop.f32.mrb[0].mxu0
        %v2535 = vpop.f32.mrb[0].mxu0
        %v2536 = vpop.f32.mrb[0].mxu0
        %2537 = vdwg.mxu0
        %v2538 = vunpack.c.l.b16 %v2016
        %v2539 = vpack.c.b16 %v2538, %v2538
        %2540 = vrot.lane.b32.xlu0 %v2539, 96
        %v2541 = vpop.permute.xlu0 %2540
        %v2543 = vsel %vm2045, %v2016, 0
        %v2546 = vsel %vm2045, %v2541, 0
        %2548 = vmatprep.subr.bf16.mxu0 0
        %2549 = vmatpush1.bf16.xpose.msra.mxu0 %v2546
        %2550 = vmatprep.subr.bf16.mxu0 0
        %2551 = vmatpush1.bf16.xpose.msra.mxu0 0
        %2552 = vmatprep.subr.bf16.mxu0 0
        %2553 = vmatpush1.bf16.xpose.msra.mxu0 0
        %2554 = vmatprep.subr.bf16.mxu0 0
        %2555 = vmatpush1.bf16.xpose.msra.mxu0 0
        %2556 = vmatprep.subr.bf16.mxu0 0
        %2557 = vmatpush1.bf16.xpose.msra.mxu0 0
        %2558 = vmatprep.subr.bf16.mxu0 0
        %2559 = vmatpush1.bf16.xpose.msra.mxu0 0
        %2560 = vmatprep.subr.bf16.mxu0 0
        %2561 = vmatpush1.bf16.xpose.msra.mxu0 0
        %2562 = vmatprep.subr.bf16.mxu0 0
        %2563 = vmatpush1.bf16.xpose.msra.mxu0 0
        %2564 = vmatprep.subr.bf16.mxu0 0
        %2565 = vmatpush1.bf16.xpose.msra.mxu0 0
        %2566 = vmatprep.subr.bf16.mxu0 0
        %2567 = vmatpush1.bf16.xpose.msra.mxu0 0
        %2568 = vmatprep.subr.bf16.mxu0 0
        %2569 = vmatpush1.bf16.xpose.msra.mxu0 0
        %2570 = vmatprep.subr.bf16.mxu0 0
        %2571 = vmatpush1.bf16.xpose.msra.mxu0 0
        %2572 = vmatprep.subr.bf16.mxu0 0
        %2573 = vmatpush1.bf16.xpose.msra.mxu0 0
        %2574 = vmatprep.subr.bf16.mxu0 0
        %2575 = vmatpush1.bf16.xpose.msra.mxu0 0
        %2576 = vmatprep.subr.bf16.mxu0 0
        %2577 = vmatpush1.bf16.xpose.msra.mxu0 0
        %2578 = vmatprep.subr.bf16.mxu0 0
        %2579 = vmatpush1.bf16.xpose.msra.mxu0 0
        %2580 = vmatprep.mubr.bf16.mxu0 0
        %2581 = vmatmul.mubr.bf16.gmra.mrb[0].mxu0 %v2543
        %v2582 = vpop.f32.mrb[0].mxu0
        %v2583 = vadd.f32 0.0, %v2582
        %v2584 = vpop.f32.mrb[0].mxu0
        %v2585 = vpop.f32.mrb[0].mxu0
        %v2586 = vpop.f32.mrb[0].mxu0
        %2587 = vdwg.mxu0
        %v2588 = vunpack.c.l.b16 %v2032
        %v2589 = vpack.c.b16 %v2588, %v2588
        %2590 = vrot.lane.b32.xlu0 %v2589, 96
        %v2591 = vpop.permute.xlu0 %2590
        %v2593 = vsel %vm2045, %v2032, 0
        %v2596 = vsel %vm2045, %v2591, 0
        %2598 = vmatprep.subr.bf16.mxu0 0
        %2599 = vmatpush1.bf16.xpose.msra.mxu0 %v2596
        %2600 = vmatprep.subr.bf16.mxu0 0
        %2601 = vmatpush1.bf16.xpose.msra.mxu0 0
        %2602 = vmatprep.subr.bf16.mxu0 0
        %2603 = vmatpush1.bf16.xpose.msra.mxu0 0
        %2604 = vmatprep.subr.bf16.mxu0 0
        %2605 = vmatpush1.bf16.xpose.msra.mxu0 0
        %2606 = vmatprep.subr.bf16.mxu0 0
        %2607 = vmatpush1.bf16.xpose.msra.mxu0 0
        %2608 = vmatprep.subr.bf16.mxu0 0
        %2609 = vmatpush1.bf16.xpose.msra.mxu0 0
        %2610 = vmatprep.subr.bf16.mxu0 0
        %2611 = vmatpush1.bf16.xpose.msra.mxu0 0
        %2612 = vmatprep.subr.bf16.mxu0 0
        %2613 = vmatpush1.bf16.xpose.msra.mxu0 0
        %2614 = vmatprep.subr.bf16.mxu0 0
        %2615 = vmatpush1.bf16.xpose.msra.mxu0 0
        %2616 = vmatprep.subr.bf16.mxu0 0
        %2617 = vmatpush1.bf16.xpose.msra.mxu0 0
        %2618 = vmatprep.subr.bf16.mxu0 0
        %2619 = vmatpush1.bf16.xpose.msra.mxu0 0
        %2620 = vmatprep.subr.bf16.mxu0 0
        %2621 = vmatpush1.bf16.xpose.msra.mxu0 0
        %2622 = vmatprep.subr.bf16.mxu0 0
        %2623 = vmatpush1.bf16.xpose.msra.mxu0 0
        %2624 = vmatprep.subr.bf16.mxu0 0
        %2625 = vmatpush1.bf16.xpose.msra.mxu0 0
        %2626 = vmatprep.subr.bf16.mxu0 0
        %2627 = vmatpush1.bf16.xpose.msra.mxu0 0
        %2628 = vmatprep.subr.bf16.mxu0 0
        %2629 = vmatpush1.bf16.xpose.msra.mxu0 0
        %2630 = vmatprep.mubr.bf16.mxu0 0
        %2631 = vmatmul.mubr.bf16.gmra.mrb[0].mxu0 %v2593
        %v2632 = vpop.f32.mrb[0].mxu0
        %v2633 = vadd.f32 0.0, %v2632
        %v2634 = vpop.f32.mrb[0].mxu0
        %v2635 = vpop.f32.mrb[0].mxu0
        %v2636 = vpop.f32.mrb[0].mxu0
        %2637 = vdwg.mxu0
        %2638 = vrot.lane.b32.xlu0 %v1990, 96
        %v2639 = vpop.permute.xlu0 %2638
        %v2641 = vsel %vm2045, %v1990, 0
        %v2644 = vsel %vm2045, %v2639, 0
        %2646 = vmatprep.subr.bf16.mxu0 0
        %2647 = vmatpush1.bf16.xpose.msra.mxu0 %v2644
        %2648 = vmatprep.subr.bf16.mxu0 0
        %2649 = vmatpush1.bf16.xpose.msra.mxu0 0
        %2650 = vmatprep.subr.bf16.mxu0 0
        %2651 = vmatpush1.bf16.xpose.msra.mxu0 0
        %2652 = vmatprep.subr.bf16.mxu0 0
        %2653 = vmatpush1.bf16.xpose.msra.mxu0 0
        %2654 = vmatprep.subr.bf16.mxu0 0
        %2655 = vmatpush1.bf16.xpose.msra.mxu0 0
        %2656 = vmatprep.subr.bf16.mxu0 0
        %2657 = vmatpush1.bf16.xpose.msra.mxu0 0
        %2658 = vmatprep.subr.bf16.mxu0 0
        %2659 = vmatpush1.bf16.xpose.msra.mxu0 0
        %2660 = vmatprep.subr.bf16.mxu0 0
        %2661 = vmatpush1.bf16.xpose.msra.mxu0 0
        %2662 = vmatprep.subr.bf16.mxu0 0
        %2663 = vmatpush1.bf16.xpose.msra.mxu0 0
        %2664 = vmatprep.subr.bf16.mxu0 0
        %2665 = vmatpush1.bf16.xpose.msra.mxu0 0
        %2666 = vmatprep.subr.bf16.mxu0 0
        %2667 = vmatpush1.bf16.xpose.msra.mxu0 0
        %2668 = vmatprep.subr.bf16.mxu0 0
        %2669 = vmatpush1.bf16.xpose.msra.mxu0 0
        %2670 = vmatprep.subr.bf16.mxu0 0
        %2671 = vmatpush1.bf16.xpose.msra.mxu0 0
        %2672 = vmatprep.subr.bf16.mxu0 0
        %2673 = vmatpush1.bf16.xpose.msra.mxu0 0
        %2674 = vmatprep.subr.bf16.mxu0 0
        %2675 = vmatpush1.bf16.xpose.msra.mxu0 0
        %2676 = vmatprep.subr.bf16.mxu0 0
        %2677 = vmatpush1.bf16.xpose.msra.mxu0 0
        %2678 = vmatprep.mubr.bf16.mxu0 0
        %2679 = vmatmul.mubr.bf16.gmra.mrb[0].mxu0 %v2641
        %v2680 = vpop.f32.mrb[0].mxu0
        %v2681 = vadd.f32 0.0, %v2680
        %v2682 = vpop.f32.mrb[0].mxu0
        %v2683 = vpop.f32.mrb[0].mxu0
        %v2684 = vpop.f32.mrb[0].mxu0
        %2685 = vdwg.mxu0
        %v2686 = vunpack.c.l.b16 %v2002
        %v2687 = vpack.c.b16 %v2686, %v2686
        %2688 = vrot.lane.b32.xlu0 %v2687, 96
        %v2689 = vpop.permute.xlu0 %2688
        %v2691 = vsel %vm2045, %v2002, 0
        %v2694 = vsel %vm2045, %v2689, 0
        %2696 = vmatprep.subr.bf16.mxu0 0
        %2697 = vmatpush1.bf16.xpose.msra.mxu0 %v2694
        %2698 = vmatprep.subr.bf16.mxu0 0
        %2699 = vmatpush1.bf16.xpose.msra.mxu0 0
        %2700 = vmatprep.subr.bf16.mxu0 0
        %2701 = vmatpush1.bf16.xpose.msra.mxu0 0
        %2702 = vmatprep.subr.bf16.mxu0 0
        %2703 = vmatpush1.bf16.xpose.msra.mxu0 0
        %2704 = vmatprep.subr.bf16.mxu0 0
        %2705 = vmatpush1.bf16.xpose.msra.mxu0 0
        %2706 = vmatprep.subr.bf16.mxu0 0
        %2707 = vmatpush1.bf16.xpose.msra.mxu0 0
        %2708 = vmatprep.subr.bf16.mxu0 0
        %2709 = vmatpush1.bf16.xpose.msra.mxu0 0
        %2710 = vmatprep.subr.bf16.mxu0 0
        %2711 = vmatpush1.bf16.xpose.msra.mxu0 0
        %2712 = vmatprep.subr.bf16.mxu0 0
        %2713 = vmatpush1.bf16.xpose.msra.mxu0 0
        %2714 = vmatprep.subr.bf16.mxu0 0
        %2715 = vmatpush1.bf16.xpose.msra.mxu0 0
        %2716 = vmatprep.subr.bf16.mxu0 0
        %2717 = vmatpush1.bf16.xpose.msra.mxu0 0
        %2718 = vmatprep.subr.bf16.mxu0 0
        %2719 = vmatpush1.bf16.xpose.msra.mxu0 0
        %2720 = vmatprep.subr.bf16.mxu0 0
        %2721 = vmatpush1.bf16.xpose.msra.mxu0 0
        %2722 = vmatprep.subr.bf16.mxu0 0
        %2723 = vmatpush1.bf16.xpose.msra.mxu0 0
        %2724 = vmatprep.subr.bf16.mxu0 0
        %2725 = vmatpush1.bf16.xpose.msra.mxu0 0
        %2726 = vmatprep.subr.bf16.mxu0 0
        %2727 = vmatpush1.bf16.xpose.msra.mxu0 0
        %2728 = vmatprep.mubr.bf16.mxu0 0
        %2729 = vmatmul.mubr.bf16.gmra.mrb[0].mxu0 %v2691
        %v2730 = vpop.f32.mrb[0].mxu0
        %v2731 = vadd.f32 0.0, %v2730
        %v2732 = vpop.f32.mrb[0].mxu0
        %v2733 = vpop.f32.mrb[0].mxu0
        %v2734 = vpop.f32.mrb[0].mxu0
        %2735 = vdwg.mxu0
        %v2736 = vunpack.c.l.b16 %v2018
        %v2737 = vpack.c.b16 %v2736, %v2736
        %2738 = vrot.lane.b32.xlu0 %v2737, 96
        %v2739 = vpop.permute.xlu0 %2738
        %v2741 = vsel %vm2045, %v2018, 0
        %v2744 = vsel %vm2045, %v2739, 0
        %2746 = vmatprep.subr.bf16.mxu0 0
        %2747 = vmatpush1.bf16.xpose.msra.mxu0 %v2744
        %2748 = vmatprep.subr.bf16.mxu0 0
        %2749 = vmatpush1.bf16.xpose.msra.mxu0 0
        %2750 = vmatprep.subr.bf16.mxu0 0
        %2751 = vmatpush1.bf16.xpose.msra.mxu0 0
        %2752 = vmatprep.subr.bf16.mxu0 0
        %2753 = vmatpush1.bf16.xpose.msra.mxu0 0
        %2754 = vmatprep.subr.bf16.mxu0 0
        %2755 = vmatpush1.bf16.xpose.msra.mxu0 0
        %2756 = vmatprep.subr.bf16.mxu0 0
        %2757 = vmatpush1.bf16.xpose.msra.mxu0 0
        %2758 = vmatprep.subr.bf16.mxu0 0
        %2759 = vmatpush1.bf16.xpose.msra.mxu0 0
        %2760 = vmatprep.subr.bf16.mxu0 0
        %2761 = vmatpush1.bf16.xpose.msra.mxu0 0
        %2762 = vmatprep.subr.bf16.mxu0 0
        %2763 = vmatpush1.bf16.xpose.msra.mxu0 0
        %2764 = vmatprep.subr.bf16.mxu0 0
        %2765 = vmatpush1.bf16.xpose.msra.mxu0 0
        %2766 = vmatprep.subr.bf16.mxu0 0
        %2767 = vmatpush1.bf16.xpose.msra.mxu0 0
        %2768 = vmatprep.subr.bf16.mxu0 0
        %2769 = vmatpush1.bf16.xpose.msra.mxu0 0
        %2770 = vmatprep.subr.bf16.mxu0 0
        %2771 = vmatpush1.bf16.xpose.msra.mxu0 0
        %2772 = vmatprep.subr.bf16.mxu0 0
        %2773 = vmatpush1.bf16.xpose.msra.mxu0 0
        %2774 = vmatprep.subr.bf16.mxu0 0
        %2775 = vmatpush1.bf16.xpose.msra.mxu0 0
        %2776 = vmatprep.subr.bf16.mxu0 0
        %2777 = vmatpush1.bf16.xpose.msra.mxu0 0
        %2778 = vmatprep.mubr.bf16.mxu0 0
        %2779 = vmatmul.mubr.bf16.gmra.mrb[0].mxu0 %v2741
        %v2780 = vpop.f32.mrb[0].mxu0
        %v2781 = vadd.f32 0.0, %v2780
        %v2782 = vpop.f32.mrb[0].mxu0
        %v2783 = vpop.f32.mrb[0].mxu0
        %v2784 = vpop.f32.mrb[0].mxu0
        %2785 = vdwg.mxu0
        %v2786 = vunpack.c.l.b16 %v2034
        %v2787 = vpack.c.b16 %v2786, %v2786
        %2788 = vrot.lane.b32.xlu0 %v2787, 96
        %v2789 = vpop.permute.xlu0 %2788
        %v2791 = vsel %vm2045, %v2034, 0
        %v2794 = vsel %vm2045, %v2789, 0
        %2796 = vmatprep.subr.bf16.mxu0 0
        %2797 = vmatpush1.bf16.xpose.msra.mxu0 %v2794
        %2798 = vmatprep.subr.bf16.mxu0 0
        %2799 = vmatpush1.bf16.xpose.msra.mxu0 0
        %2800 = vmatprep.subr.bf16.mxu0 0
        %2801 = vmatpush1.bf16.xpose.msra.mxu0 0
        %2802 = vmatprep.subr.bf16.mxu0 0
        %2803 = vmatpush1.bf16.xpose.msra.mxu0 0
        %2804 = vmatprep.subr.bf16.mxu0 0
        %2805 = vmatpush1.bf16.xpose.msra.mxu0 0
        %2806 = vmatprep.subr.bf16.mxu0 0
        %2807 = vmatpush1.bf16.xpose.msra.mxu0 0
        %2808 = vmatprep.subr.bf16.mxu0 0
        %2809 = vmatpush1.bf16.xpose.msra.mxu0 0
        %2810 = vmatprep.subr.bf16.mxu0 0
        %2811 = vmatpush1.bf16.xpose.msra.mxu0 0
        %2812 = vmatprep.subr.bf16.mxu0 0
        %2813 = vmatpush1.bf16.xpose.msra.mxu0 0
        %2814 = vmatprep.subr.bf16.mxu0 0
        %2815 = vmatpush1.bf16.xpose.msra.mxu0 0
        %2816 = vmatprep.subr.bf16.mxu0 0
        %2817 = vmatpush1.bf16.xpose.msra.mxu0 0
        %2818 = vmatprep.subr.bf16.mxu0 0
        %2819 = vmatpush1.bf16.xpose.msra.mxu0 0
        %2820 = vmatprep.subr.bf16.mxu0 0
        %2821 = vmatpush1.bf16.xpose.msra.mxu0 0
        %2822 = vmatprep.subr.bf16.mxu0 0
        %2823 = vmatpush1.bf16.xpose.msra.mxu0 0
        %2824 = vmatprep.subr.bf16.mxu0 0
        %2825 = vmatpush1.bf16.xpose.msra.mxu0 0
        %2826 = vmatprep.subr.bf16.mxu0 0
        %2827 = vmatpush1.bf16.xpose.msra.mxu0 0
        %2828 = vmatprep.mubr.bf16.mxu0 0
        %2829 = vmatmul.mubr.bf16.gmra.mrb[0].mxu0 %v2791
        %v2830 = vpop.f32.mrb[0].mxu0
        %v2831 = vadd.f32 0.0, %v2830
        %v2832 = vpop.f32.mrb[0].mxu0
        %v2833 = vpop.f32.mrb[0].mxu0
        %v2834 = vpop.f32.mrb[0].mxu0
        %2835 = vdwg.mxu0
        %2836 = vrot.lane.b32.xlu0 %v1991, 96
        %v2837 = vpop.permute.xlu0 %2836
        %v2839 = vsel %vm2045, %v1991, 0
        %v2842 = vsel %vm2045, %v2837, 0
        %2844 = vmatprep.subr.bf16.mxu0 0
        %2845 = vmatpush1.bf16.xpose.msra.mxu0 %v2842
        %2846 = vmatprep.subr.bf16.mxu0 0
        %2847 = vmatpush1.bf16.xpose.msra.mxu0 0
        %2848 = vmatprep.subr.bf16.mxu0 0
        %2849 = vmatpush1.bf16.xpose.msra.mxu0 0
        %2850 = vmatprep.subr.bf16.mxu0 0
        %2851 = vmatpush1.bf16.xpose.msra.mxu0 0
        %2852 = vmatprep.subr.bf16.mxu0 0
        %2853 = vmatpush1.bf16.xpose.msra.mxu0 0
        %2854 = vmatprep.subr.bf16.mxu0 0
        %2855 = vmatpush1.bf16.xpose.msra.mxu0 0
        %2856 = vmatprep.subr.bf16.mxu0 0
        %2857 = vmatpush1.bf16.xpose.msra.mxu0 0
        %2858 = vmatprep.subr.bf16.mxu0 0
        %2859 = vmatpush1.bf16.xpose.msra.mxu0 0
        %2860 = vmatprep.subr.bf16.mxu0 0
        %2861 = vmatpush1.bf16.xpose.msra.mxu0 0
        %2862 = vmatprep.subr.bf16.mxu0 0
        %2863 = vmatpush1.bf16.xpose.msra.mxu0 0
        %2864 = vmatprep.subr.bf16.mxu0 0
        %2865 = vmatpush1.bf16.xpose.msra.mxu0 0
        %2866 = vmatprep.subr.bf16.mxu0 0
        %2867 = vmatpush1.bf16.xpose.msra.mxu0 0
        %2868 = vmatprep.subr.bf16.mxu0 0
        %2869 = vmatpush1.bf16.xpose.msra.mxu0 0
        %2870 = vmatprep.subr.bf16.mxu0 0
        %2871 = vmatpush1.bf16.xpose.msra.mxu0 0
        %2872 = vmatprep.subr.bf16.mxu0 0
        %2873 = vmatpush1.bf16.xpose.msra.mxu0 0
        %2874 = vmatprep.subr.bf16.mxu0 0
        %2875 = vmatpush1.bf16.xpose.msra.mxu0 0
        %2876 = vmatprep.mubr.bf16.mxu0 0
        %2877 = vmatmul.mubr.bf16.gmra.mrb[0].mxu0 %v2839
        %v2878 = vpop.f32.mrb[0].mxu0
        %v2879 = vadd.f32 0.0, %v2878
        %v2880 = vpop.f32.mrb[0].mxu0
        %v2881 = vpop.f32.mrb[0].mxu0
        %v2882 = vpop.f32.mrb[0].mxu0
        %2883 = vdwg.mxu0
        %v2884 = vunpack.c.l.b16 %v2004
        %v2885 = vpack.c.b16 %v2884, %v2884
        %2886 = vrot.lane.b32.xlu0 %v2885, 96
        %v2887 = vpop.permute.xlu0 %2886
        %v2889 = vsel %vm2045, %v2004, 0
        %v2892 = vsel %vm2045, %v2887, 0
        %2894 = vmatprep.subr.bf16.mxu0 0
        %2895 = vmatpush1.bf16.xpose.msra.mxu0 %v2892
        %2896 = vmatprep.subr.bf16.mxu0 0
        %2897 = vmatpush1.bf16.xpose.msra.mxu0 0
        %2898 = vmatprep.subr.bf16.mxu0 0
        %2899 = vmatpush1.bf16.xpose.msra.mxu0 0
        %2900 = vmatprep.subr.bf16.mxu0 0
        %2901 = vmatpush1.bf16.xpose.msra.mxu0 0
        %2902 = vmatprep.subr.bf16.mxu0 0
        %2903 = vmatpush1.bf16.xpose.msra.mxu0 0
        %2904 = vmatprep.subr.bf16.mxu0 0
        %2905 = vmatpush1.bf16.xpose.msra.mxu0 0
        %2906 = vmatprep.subr.bf16.mxu0 0
        %2907 = vmatpush1.bf16.xpose.msra.mxu0 0
        %2908 = vmatprep.subr.bf16.mxu0 0
        %2909 = vmatpush1.bf16.xpose.msra.mxu0 0
        %2910 = vmatprep.subr.bf16.mxu0 0
        %2911 = vmatpush1.bf16.xpose.msra.mxu0 0
        %2912 = vmatprep.subr.bf16.mxu0 0
        %2913 = vmatpush1.bf16.xpose.msra.mxu0 0
        %2914 = vmatprep.subr.bf16.mxu0 0
        %2915 = vmatpush1.bf16.xpose.msra.mxu0 0
        %2916 = vmatprep.subr.bf16.mxu0 0
        %2917 = vmatpush1.bf16.xpose.msra.mxu0 0
        %2918 = vmatprep.subr.bf16.mxu0 0
        %2919 = vmatpush1.bf16.xpose.msra.mxu0 0
        %2920 = vmatprep.subr.bf16.mxu0 0
        %2921 = vmatpush1.bf16.xpose.msra.mxu0 0
        %2922 = vmatprep.subr.bf16.mxu0 0
        %2923 = vmatpush1.bf16.xpose.msra.mxu0 0
        %2924 = vmatprep.subr.bf16.mxu0 0
        %2925 = vmatpush1.bf16.xpose.msra.mxu0 0
        %2926 = vmatprep.mubr.bf16.mxu0 0
        %2927 = vmatmul.mubr.bf16.gmra.mrb[0].mxu0 %v2889
        %v2928 = vpop.f32.mrb[0].mxu0
        %v2929 = vadd.f32 0.0, %v2928
        %v2930 = vpop.f32.mrb[0].mxu0
        %v2931 = vpop.f32.mrb[0].mxu0
        %v2932 = vpop.f32.mrb[0].mxu0
        %2933 = vdwg.mxu0
        %v2934 = vunpack.c.l.b16 %v2020
        %v2935 = vpack.c.b16 %v2934, %v2934
        %2936 = vrot.lane.b32.xlu0 %v2935, 96
        %v2937 = vpop.permute.xlu0 %2936
        %v2939 = vsel %vm2045, %v2020, 0
        %v2942 = vsel %vm2045, %v2937, 0
        %2944 = vmatprep.subr.bf16.mxu0 0
        %2945 = vmatpush1.bf16.xpose.msra.mxu0 %v2942
        %2946 = vmatprep.subr.bf16.mxu0 0
        %2947 = vmatpush1.bf16.xpose.msra.mxu0 0
        %2948 = vmatprep.subr.bf16.mxu0 0
        %2949 = vmatpush1.bf16.xpose.msra.mxu0 0
        %2950 = vmatprep.subr.bf16.mxu0 0
        %2951 = vmatpush1.bf16.xpose.msra.mxu0 0
        %2952 = vmatprep.subr.bf16.mxu0 0
        %2953 = vmatpush1.bf16.xpose.msra.mxu0 0
        %2954 = vmatprep.subr.bf16.mxu0 0
        %2955 = vmatpush1.bf16.xpose.msra.mxu0 0
        %2956 = vmatprep.subr.bf16.mxu0 0
        %2957 = vmatpush1.bf16.xpose.msra.mxu0 0
        %2958 = vmatprep.subr.bf16.mxu0 0
        %2959 = vmatpush1.bf16.xpose.msra.mxu0 0
        %2960 = vmatprep.subr.bf16.mxu0 0
        %2961 = vmatpush1.bf16.xpose.msra.mxu0 0
        %2962 = vmatprep.subr.bf16.mxu0 0
        %2963 = vmatpush1.bf16.xpose.msra.mxu0 0
        %2964 = vmatprep.subr.bf16.mxu0 0
        %2965 = vmatpush1.bf16.xpose.msra.mxu0 0
        %2966 = vmatprep.subr.bf16.mxu0 0
        %2967 = vmatpush1.bf16.xpose.msra.mxu0 0
        %2968 = vmatprep.subr.bf16.mxu0 0
        %2969 = vmatpush1.bf16.xpose.msra.mxu0 0
        %2970 = vmatprep.subr.bf16.mxu0 0
        %2971 = vmatpush1.bf16.xpose.msra.mxu0 0
        %2972 = vmatprep.subr.bf16.mxu0 0
        %2973 = vmatpush1.bf16.xpose.msra.mxu0 0
        %2974 = vmatprep.subr.bf16.mxu0 0
        %2975 = vmatpush1.bf16.xpose.msra.mxu0 0
        %2976 = vmatprep.mubr.bf16.mxu0 0
        %2977 = vmatmul.mubr.bf16.gmra.mrb[0].mxu0 %v2939
        %v2978 = vpop.f32.mrb[0].mxu0
        %v2979 = vadd.f32 0.0, %v2978
        %v2980 = vpop.f32.mrb[0].mxu0
        %v2981 = vpop.f32.mrb[0].mxu0
        %v2982 = vpop.f32.mrb[0].mxu0
        %2983 = vdwg.mxu0
        %v2984 = vunpack.c.l.b16 %v2036
        %v2985 = vpack.c.b16 %v2984, %v2984
        %2986 = vrot.lane.b32.xlu0 %v2985, 96
        %v2987 = vpop.permute.xlu0 %2986
        %v2989 = vsel %vm2045, %v2036, 0
        %v2992 = vsel %vm2045, %v2987, 0
        %2994 = vmatprep.subr.bf16.mxu0 0
        %2995 = vmatpush1.bf16.xpose.msra.mxu0 %v2992
        %2996 = vmatprep.subr.bf16.mxu0 0
        %2997 = vmatpush1.bf16.xpose.msra.mxu0 0
        %2998 = vmatprep.subr.bf16.mxu0 0
        %2999 = vmatpush1.bf16.xpose.msra.mxu0 0
        %3000 = vmatprep.subr.bf16.mxu0 0
        %3001 = vmatpush1.bf16.xpose.msra.mxu0 0
        %3002 = vmatprep.subr.bf16.mxu0 0
        %3003 = vmatpush1.bf16.xpose.msra.mxu0 0
        %3004 = vmatprep.subr.bf16.mxu0 0
        %3005 = vmatpush1.bf16.xpose.msra.mxu0 0
        %3006 = vmatprep.subr.bf16.mxu0 0
        %3007 = vmatpush1.bf16.xpose.msra.mxu0 0
        %3008 = vmatprep.subr.bf16.mxu0 0
        %3009 = vmatpush1.bf16.xpose.msra.mxu0 0
        %3010 = vmatprep.subr.bf16.mxu0 0
        %3011 = vmatpush1.bf16.xpose.msra.mxu0 0
        %3012 = vmatprep.subr.bf16.mxu0 0
        %3013 = vmatpush1.bf16.xpose.msra.mxu0 0
        %3014 = vmatprep.subr.bf16.mxu0 0
        %3015 = vmatpush1.bf16.xpose.msra.mxu0 0
        %3016 = vmatprep.subr.bf16.mxu0 0
        %3017 = vmatpush1.bf16.xpose.msra.mxu0 0
        %3018 = vmatprep.subr.bf16.mxu0 0
        %3019 = vmatpush1.bf16.xpose.msra.mxu0 0
        %3020 = vmatprep.subr.bf16.mxu0 0
        %3021 = vmatpush1.bf16.xpose.msra.mxu0 0
        %3022 = vmatprep.subr.bf16.mxu0 0
        %3023 = vmatpush1.bf16.xpose.msra.mxu0 0
        %3024 = vmatprep.subr.bf16.mxu0 0
        %3025 = vmatpush1.bf16.xpose.msra.mxu0 0
        %3026 = vmatprep.mubr.bf16.mxu0 0
        %3027 = vmatmul.mubr.bf16.gmra.mrb[0].mxu0 %v2989
        %v3028 = vpop.f32.mrb[0].mxu0
        %v3029 = vadd.f32 0.0, %v3028
        %v3030 = vpop.f32.mrb[0].mxu0
        %v3031 = vpop.f32.mrb[0].mxu0
        %v3032 = vpop.f32.mrb[0].mxu0
        %3033 = vdwg.mxu0
        %3034 = vrot.lane.b32.xlu0 %v1992, 96
        %v3035 = vpop.permute.xlu0 %3034
        %v3037 = vsel %vm2045, %v1992, 0
        %v3040 = vsel %vm2045, %v3035, 0
        %3042 = vmatprep.subr.bf16.mxu0 0
        %3043 = vmatpush1.bf16.xpose.msra.mxu0 %v3040
        %3044 = vmatprep.subr.bf16.mxu0 0
        %3045 = vmatpush1.bf16.xpose.msra.mxu0 0
        %3046 = vmatprep.subr.bf16.mxu0 0
        %3047 = vmatpush1.bf16.xpose.msra.mxu0 0
        %3048 = vmatprep.subr.bf16.mxu0 0
        %3049 = vmatpush1.bf16.xpose.msra.mxu0 0
        %3050 = vmatprep.subr.bf16.mxu0 0
        %3051 = vmatpush1.bf16.xpose.msra.mxu0 0
        %3052 = vmatprep.subr.bf16.mxu0 0
        %3053 = vmatpush1.bf16.xpose.msra.mxu0 0
        %3054 = vmatprep.subr.bf16.mxu0 0
        %3055 = vmatpush1.bf16.xpose.msra.mxu0 0
        %3056 = vmatprep.subr.bf16.mxu0 0
        %3057 = vmatpush1.bf16.xpose.msra.mxu0 0
        %3058 = vmatprep.subr.bf16.mxu0 0
        %3059 = vmatpush1.bf16.xpose.msra.mxu0 0
        %3060 = vmatprep.subr.bf16.mxu0 0
        %3061 = vmatpush1.bf16.xpose.msra.mxu0 0
        %3062 = vmatprep.subr.bf16.mxu0 0
        %3063 = vmatpush1.bf16.xpose.msra.mxu0 0
        %3064 = vmatprep.subr.bf16.mxu0 0
        %3065 = vmatpush1.bf16.xpose.msra.mxu0 0
        %3066 = vmatprep.subr.bf16.mxu0 0
        %3067 = vmatpush1.bf16.xpose.msra.mxu0 0
        %3068 = vmatprep.subr.bf16.mxu0 0
        %3069 = vmatpush1.bf16.xpose.msra.mxu0 0
        %3070 = vmatprep.subr.bf16.mxu0 0
        %3071 = vmatpush1.bf16.xpose.msra.mxu0 0
        %3072 = vmatprep.subr.bf16.mxu0 0
        %3073 = vmatpush1.bf16.xpose.msra.mxu0 0
        %3074 = vmatprep.mubr.bf16.mxu0 0
        %3075 = vmatmul.mubr.bf16.gmra.mrb[0].mxu0 %v3037
        %v3076 = vpop.f32.mrb[0].mxu0
        %v3077 = vadd.f32 0.0, %v3076
        %v3078 = vpop.f32.mrb[0].mxu0
        %v3079 = vpop.f32.mrb[0].mxu0
        %v3080 = vpop.f32.mrb[0].mxu0
        %3081 = vdwg.mxu0
        %v3082 = vunpack.c.l.b16 %v2006
        %v3083 = vpack.c.b16 %v3082, %v3082
        %3084 = vrot.lane.b32.xlu0 %v3083, 96
        %v3085 = vpop.permute.xlu0 %3084
        %v3087 = vsel %vm2045, %v2006, 0
        %v3090 = vsel %vm2045, %v3085, 0
        %3092 = vmatprep.subr.bf16.mxu0 0
        %3093 = vmatpush1.bf16.xpose.msra.mxu0 %v3090
        %3094 = vmatprep.subr.bf16.mxu0 0
        %3095 = vmatpush1.bf16.xpose.msra.mxu0 0
        %3096 = vmatprep.subr.bf16.mxu0 0
        %3097 = vmatpush1.bf16.xpose.msra.mxu0 0
        %3098 = vmatprep.subr.bf16.mxu0 0
        %3099 = vmatpush1.bf16.xpose.msra.mxu0 0
        %3100 = vmatprep.subr.bf16.mxu0 0
        %3101 = vmatpush1.bf16.xpose.msra.mxu0 0
        %3102 = vmatprep.subr.bf16.mxu0 0
        %3103 = vmatpush1.bf16.xpose.msra.mxu0 0
        %3104 = vmatprep.subr.bf16.mxu0 0
        %3105 = vmatpush1.bf16.xpose.msra.mxu0 0
        %3106 = vmatprep.subr.bf16.mxu0 0
        %3107 = vmatpush1.bf16.xpose.msra.mxu0 0
        %3108 = vmatprep.subr.bf16.mxu0 0
        %3109 = vmatpush1.bf16.xpose.msra.mxu0 0
        %3110 = vmatprep.subr.bf16.mxu0 0
        %3111 = vmatpush1.bf16.xpose.msra.mxu0 0
        %3112 = vmatprep.subr.bf16.mxu0 0
        %3113 = vmatpush1.bf16.xpose.msra.mxu0 0
        %3114 = vmatprep.subr.bf16.mxu0 0
        %3115 = vmatpush1.bf16.xpose.msra.mxu0 0
        %3116 = vmatprep.subr.bf16.mxu0 0
        %3117 = vmatpush1.bf16.xpose.msra.mxu0 0
        %3118 = vmatprep.subr.bf16.mxu0 0
        %3119 = vmatpush1.bf16.xpose.msra.mxu0 0
        %3120 = vmatprep.subr.bf16.mxu0 0
        %3121 = vmatpush1.bf16.xpose.msra.mxu0 0
        %3122 = vmatprep.subr.bf16.mxu0 0
        %3123 = vmatpush1.bf16.xpose.msra.mxu0 0
        %3124 = vmatprep.mubr.bf16.mxu0 0
        %3125 = vmatmul.mubr.bf16.gmra.mrb[0].mxu0 %v3087
        %v3126 = vpop.f32.mrb[0].mxu0
        %v3127 = vadd.f32 0.0, %v3126
        %v3128 = vpop.f32.mrb[0].mxu0
        %v3129 = vpop.f32.mrb[0].mxu0
        %v3130 = vpop.f32.mrb[0].mxu0
        %3131 = vdwg.mxu0
        %v3132 = vunpack.c.l.b16 %v2022
        %v3133 = vpack.c.b16 %v3132, %v3132
        %3134 = vrot.lane.b32.xlu0 %v3133, 96
        %v3135 = vpop.permute.xlu0 %3134
        %v3137 = vsel %vm2045, %v2022, 0
        %v3140 = vsel %vm2045, %v3135, 0
        %3142 = vmatprep.subr.bf16.mxu0 0
        %3143 = vmatpush1.bf16.xpose.msra.mxu0 %v3140
        %3144 = vmatprep.subr.bf16.mxu0 0
        %3145 = vmatpush1.bf16.xpose.msra.mxu0 0
        %3146 = vmatprep.subr.bf16.mxu0 0
        %3147 = vmatpush1.bf16.xpose.msra.mxu0 0
        %3148 = vmatprep.subr.bf16.mxu0 0
        %3149 = vmatpush1.bf16.xpose.msra.mxu0 0
        %3150 = vmatprep.subr.bf16.mxu0 0
        %3151 = vmatpush1.bf16.xpose.msra.mxu0 0
        %3152 = vmatprep.subr.bf16.mxu0 0
        %3153 = vmatpush1.bf16.xpose.msra.mxu0 0
        %3154 = vmatprep.subr.bf16.mxu0 0
        %3155 = vmatpush1.bf16.xpose.msra.mxu0 0
        %3156 = vmatprep.subr.bf16.mxu0 0
        %3157 = vmatpush1.bf16.xpose.msra.mxu0 0
        %3158 = vmatprep.subr.bf16.mxu0 0
        %3159 = vmatpush1.bf16.xpose.msra.mxu0 0
        %3160 = vmatprep.subr.bf16.mxu0 0
        %3161 = vmatpush1.bf16.xpose.msra.mxu0 0
        %3162 = vmatprep.subr.bf16.mxu0 0
        %3163 = vmatpush1.bf16.xpose.msra.mxu0 0
        %3164 = vmatprep.subr.bf16.mxu0 0
        %3165 = vmatpush1.bf16.xpose.msra.mxu0 0
        %3166 = vmatprep.subr.bf16.mxu0 0
        %3167 = vmatpush1.bf16.xpose.msra.mxu0 0
        %3168 = vmatprep.subr.bf16.mxu0 0
        %3169 = vmatpush1.bf16.xpose.msra.mxu0 0
        %3170 = vmatprep.subr.bf16.mxu0 0
        %3171 = vmatpush1.bf16.xpose.msra.mxu0 0
        %3172 = vmatprep.subr.bf16.mxu0 0
        %3173 = vmatpush1.bf16.xpose.msra.mxu0 0
        %3174 = vmatprep.mubr.bf16.mxu0 0
        %3175 = vmatmul.mubr.bf16.gmra.mrb[0].mxu0 %v3137
        %v3176 = vpop.f32.mrb[0].mxu0
        %v3177 = vadd.f32 0.0, %v3176
        %v3178 = vpop.f32.mrb[0].mxu0
        %v3179 = vpop.f32.mrb[0].mxu0
        %v3180 = vpop.f32.mrb[0].mxu0
        %3181 = vdwg.mxu0
        %v3182 = vunpack.c.l.b16 %v2038
        %v3183 = vpack.c.b16 %v3182, %v3182
        %3184 = vrot.lane.b32.xlu0 %v3183, 96
        %v3185 = vpop.permute.xlu0 %3184
        %v3187 = vsel %vm2045, %v2038, 0
        %v3190 = vsel %vm2045, %v3185, 0
        %3192 = vmatprep.subr.bf16.mxu0 0
        %3193 = vmatpush1.bf16.xpose.msra.mxu0 %v3190
        %3194 = vmatprep.subr.bf16.mxu0 0
        %3195 = vmatpush1.bf16.xpose.msra.mxu0 0
        %3196 = vmatprep.subr.bf16.mxu0 0
        %3197 = vmatpush1.bf16.xpose.msra.mxu0 0
        %3198 = vmatprep.subr.bf16.mxu0 0
        %3199 = vmatpush1.bf16.xpose.msra.mxu0 0
        %3200 = vmatprep.subr.bf16.mxu0 0
        %3201 = vmatpush1.bf16.xpose.msra.mxu0 0
        %3202 = vmatprep.subr.bf16.mxu0 0
        %3203 = vmatpush1.bf16.xpose.msra.mxu0 0
        %3204 = vmatprep.subr.bf16.mxu0 0
        %3205 = vmatpush1.bf16.xpose.msra.mxu0 0
        %3206 = vmatprep.subr.bf16.mxu0 0
        %3207 = vmatpush1.bf16.xpose.msra.mxu0 0
        %3208 = vmatprep.subr.bf16.mxu0 0
        %3209 = vmatpush1.bf16.xpose.msra.mxu0 0
        %3210 = vmatprep.subr.bf16.mxu0 0
        %3211 = vmatpush1.bf16.xpose.msra.mxu0 0
        %3212 = vmatprep.subr.bf16.mxu0 0
        %3213 = vmatpush1.bf16.xpose.msra.mxu0 0
        %3214 = vmatprep.subr.bf16.mxu0 0
        %3215 = vmatpush1.bf16.xpose.msra.mxu0 0
        %3216 = vmatprep.subr.bf16.mxu0 0
        %3217 = vmatpush1.bf16.xpose.msra.mxu0 0
        %3218 = vmatprep.subr.bf16.mxu0 0
        %3219 = vmatpush1.bf16.xpose.msra.mxu0 0
        %3220 = vmatprep.subr.bf16.mxu0 0
        %3221 = vmatpush1.bf16.xpose.msra.mxu0 0
        %3222 = vmatprep.subr.bf16.mxu0 0
        %3223 = vmatpush1.bf16.xpose.msra.mxu0 0
        %3224 = vmatprep.mubr.bf16.mxu0 0
        %3225 = vmatmul.mubr.bf16.gmra.mrb[0].mxu0 %v3187
        %v3226 = vpop.f32.mrb[0].mxu0
        %v3227 = vadd.f32 0.0, %v3226
        %v3228 = vpop.f32.mrb[0].mxu0
        %v3229 = vpop.f32.mrb[0].mxu0
        %v3230 = vpop.f32.mrb[0].mxu0
        %3231 = vdwg.mxu0
        %3232 = vrot.lane.b32.xlu0 %v1993, 96
        %v3233 = vpop.permute.xlu0 %3232
        %v3235 = vsel %vm2045, %v1993, 0
        %v3238 = vsel %vm2045, %v3233, 0
        %3240 = vmatprep.subr.bf16.mxu0 0
        %3241 = vmatpush1.bf16.xpose.msra.mxu0 %v3238
        %3242 = vmatprep.subr.bf16.mxu0 0
        %3243 = vmatpush1.bf16.xpose.msra.mxu0 0
        %3244 = vmatprep.subr.bf16.mxu0 0
        %3245 = vmatpush1.bf16.xpose.msra.mxu0 0
        %3246 = vmatprep.subr.bf16.mxu0 0
        %3247 = vmatpush1.bf16.xpose.msra.mxu0 0
        %3248 = vmatprep.subr.bf16.mxu0 0
        %3249 = vmatpush1.bf16.xpose.msra.mxu0 0
        %3250 = vmatprep.subr.bf16.mxu0 0
        %3251 = vmatpush1.bf16.xpose.msra.mxu0 0
        %3252 = vmatprep.subr.bf16.mxu0 0
        %3253 = vmatpush1.bf16.xpose.msra.mxu0 0
        %3254 = vmatprep.subr.bf16.mxu0 0
        %3255 = vmatpush1.bf16.xpose.msra.mxu0 0
        %3256 = vmatprep.subr.bf16.mxu0 0
        %3257 = vmatpush1.bf16.xpose.msra.mxu0 0
        %3258 = vmatprep.subr.bf16.mxu0 0
        %3259 = vmatpush1.bf16.xpose.msra.mxu0 0
        %3260 = vmatprep.subr.bf16.mxu0 0
        %3261 = vmatpush1.bf16.xpose.msra.mxu0 0
        %3262 = vmatprep.subr.bf16.mxu0 0
        %3263 = vmatpush1.bf16.xpose.msra.mxu0 0
        %3264 = vmatprep.subr.bf16.mxu0 0
        %3265 = vmatpush1.bf16.xpose.msra.mxu0 0
        %3266 = vmatprep.subr.bf16.mxu0 0
        %3267 = vmatpush1.bf16.xpose.msra.mxu0 0
        %3268 = vmatprep.subr.bf16.mxu0 0
        %3269 = vmatpush1.bf16.xpose.msra.mxu0 0
        %3270 = vmatprep.subr.bf16.mxu0 0
        %3271 = vmatpush1.bf16.xpose.msra.mxu0 0
        %3272 = vmatprep.mubr.bf16.mxu0 0
        %3273 = vmatmul.mubr.bf16.gmra.mrb[0].mxu0 %v3235
        %v3274 = vpop.f32.mrb[0].mxu0
        %v3275 = vadd.f32 0.0, %v3274
        %v3276 = vpop.f32.mrb[0].mxu0
        %v3277 = vpop.f32.mrb[0].mxu0
        %v3278 = vpop.f32.mrb[0].mxu0
        %3279 = vdwg.mxu0
        %v3280 = vunpack.c.l.b16 %v2008
        %v3281 = vpack.c.b16 %v3280, %v3280
        %3282 = vrot.lane.b32.xlu0 %v3281, 96
        %v3283 = vpop.permute.xlu0 %3282
        %v3285 = vsel %vm2045, %v2008, 0
        %v3288 = vsel %vm2045, %v3283, 0
        %3290 = vmatprep.subr.bf16.mxu0 0
        %3291 = vmatpush1.bf16.xpose.msra.mxu0 %v3288
        %3292 = vmatprep.subr.bf16.mxu0 0
        %3293 = vmatpush1.bf16.xpose.msra.mxu0 0
        %3294 = vmatprep.subr.bf16.mxu0 0
        %3295 = vmatpush1.bf16.xpose.msra.mxu0 0
        %3296 = vmatprep.subr.bf16.mxu0 0
        %3297 = vmatpush1.bf16.xpose.msra.mxu0 0
        %3298 = vmatprep.subr.bf16.mxu0 0
        %3299 = vmatpush1.bf16.xpose.msra.mxu0 0
        %3300 = vmatprep.subr.bf16.mxu0 0
        %3301 = vmatpush1.bf16.xpose.msra.mxu0 0
        %3302 = vmatprep.subr.bf16.mxu0 0
        %3303 = vmatpush1.bf16.xpose.msra.mxu0 0
        %3304 = vmatprep.subr.bf16.mxu0 0
        %3305 = vmatpush1.bf16.xpose.msra.mxu0 0
        %3306 = vmatprep.subr.bf16.mxu0 0
        %3307 = vmatpush1.bf16.xpose.msra.mxu0 0
        %3308 = vmatprep.subr.bf16.mxu0 0
        %3309 = vmatpush1.bf16.xpose.msra.mxu0 0
        %3310 = vmatprep.subr.bf16.mxu0 0
        %3311 = vmatpush1.bf16.xpose.msra.mxu0 0
        %3312 = vmatprep.subr.bf16.mxu0 0
        %3313 = vmatpush1.bf16.xpose.msra.mxu0 0
        %3314 = vmatprep.subr.bf16.mxu0 0
        %3315 = vmatpush1.bf16.xpose.msra.mxu0 0
        %3316 = vmatprep.subr.bf16.mxu0 0
        %3317 = vmatpush1.bf16.xpose.msra.mxu0 0
        %3318 = vmatprep.subr.bf16.mxu0 0
        %3319 = vmatpush1.bf16.xpose.msra.mxu0 0
        %3320 = vmatprep.subr.bf16.mxu0 0
        %3321 = vmatpush1.bf16.xpose.msra.mxu0 0
        %3322 = vmatprep.mubr.bf16.mxu0 0
        %3323 = vmatmul.mubr.bf16.gmra.mrb[0].mxu0 %v3285
        %v3324 = vpop.f32.mrb[0].mxu0
        %v3325 = vadd.f32 0.0, %v3324
        %v3326 = vpop.f32.mrb[0].mxu0
        %v3327 = vpop.f32.mrb[0].mxu0
        %v3328 = vpop.f32.mrb[0].mxu0
        %3329 = vdwg.mxu0
        %v3330 = vunpack.c.l.b16 %v2024
        %v3331 = vpack.c.b16 %v3330, %v3330
        %3332 = vrot.lane.b32.xlu0 %v3331, 96
        %v3333 = vpop.permute.xlu0 %3332
        %v3335 = vsel %vm2045, %v2024, 0
        %v3338 = vsel %vm2045, %v3333, 0
        %3340 = vmatprep.subr.bf16.mxu0 0
        %3341 = vmatpush1.bf16.xpose.msra.mxu0 %v3338
        %3342 = vmatprep.subr.bf16.mxu0 0
        %3343 = vmatpush1.bf16.xpose.msra.mxu0 0
        %3344 = vmatprep.subr.bf16.mxu0 0
        %3345 = vmatpush1.bf16.xpose.msra.mxu0 0
        %3346 = vmatprep.subr.bf16.mxu0 0
        %3347 = vmatpush1.bf16.xpose.msra.mxu0 0
        %3348 = vmatprep.subr.bf16.mxu0 0
        %3349 = vmatpush1.bf16.xpose.msra.mxu0 0
        %3350 = vmatprep.subr.bf16.mxu0 0
        %3351 = vmatpush1.bf16.xpose.msra.mxu0 0
        %3352 = vmatprep.subr.bf16.mxu0 0
        %3353 = vmatpush1.bf16.xpose.msra.mxu0 0
        %3354 = vmatprep.subr.bf16.mxu0 0
        %3355 = vmatpush1.bf16.xpose.msra.mxu0 0
        %3356 = vmatprep.subr.bf16.mxu0 0
        %3357 = vmatpush1.bf16.xpose.msra.mxu0 0
        %3358 = vmatprep.subr.bf16.mxu0 0
        %3359 = vmatpush1.bf16.xpose.msra.mxu0 0
        %3360 = vmatprep.subr.bf16.mxu0 0
        %3361 = vmatpush1.bf16.xpose.msra.mxu0 0
        %3362 = vmatprep.subr.bf16.mxu0 0
        %3363 = vmatpush1.bf16.xpose.msra.mxu0 0
        %3364 = vmatprep.subr.bf16.mxu0 0
        %3365 = vmatpush1.bf16.xpose.msra.mxu0 0
        %3366 = vmatprep.subr.bf16.mxu0 0
        %3367 = vmatpush1.bf16.xpose.msra.mxu0 0
        %3368 = vmatprep.subr.bf16.mxu0 0
        %3369 = vmatpush1.bf16.xpose.msra.mxu0 0
        %3370 = vmatprep.subr.bf16.mxu0 0
        %3371 = vmatpush1.bf16.xpose.msra.mxu0 0
        %3372 = vmatprep.mubr.bf16.mxu0 0
        %3373 = vmatmul.mubr.bf16.gmra.mrb[0].mxu0 %v3335
        %v3374 = vpop.f32.mrb[0].mxu0
        %v3375 = vadd.f32 0.0, %v3374
        %v3376 = vpop.f32.mrb[0].mxu0
        %v3377 = vpop.f32.mrb[0].mxu0
        %v3378 = vpop.f32.mrb[0].mxu0
        %3379 = vdwg.mxu0
        %v3380 = vunpack.c.l.b16 %v2040
        %v3381 = vpack.c.b16 %v3380, %v3380
        %3382 = vrot.lane.b32.xlu0 %v3381, 96
        %v3383 = vpop.permute.xlu0 %3382
        %v3385 = vsel %vm2045, %v2040, 0
        %v3388 = vsel %vm2045, %v3383, 0
        %3390 = vmatprep.subr.bf16.mxu0 0
        %3391 = vmatpush1.bf16.xpose.msra.mxu0 %v3388
        %3392 = vmatprep.subr.bf16.mxu0 0
        %3393 = vmatpush1.bf16.xpose.msra.mxu0 0
        %3394 = vmatprep.subr.bf16.mxu0 0
        %3395 = vmatpush1.bf16.xpose.msra.mxu0 0
        %3396 = vmatprep.subr.bf16.mxu0 0
        %3397 = vmatpush1.bf16.xpose.msra.mxu0 0
        %3398 = vmatprep.subr.bf16.mxu0 0
        %3399 = vmatpush1.bf16.xpose.msra.mxu0 0
        %3400 = vmatprep.subr.bf16.mxu0 0
        %3401 = vmatpush1.bf16.xpose.msra.mxu0 0
        %3402 = vmatprep.subr.bf16.mxu0 0
        %3403 = vmatpush1.bf16.xpose.msra.mxu0 0
        %3404 = vmatprep.subr.bf16.mxu0 0
        %3405 = vmatpush1.bf16.xpose.msra.mxu0 0
        %3406 = vmatprep.subr.bf16.mxu0 0
        %3407 = vmatpush1.bf16.xpose.msra.mxu0 0
        %3408 = vmatprep.subr.bf16.mxu0 0
        %3409 = vmatpush1.bf16.xpose.msra.mxu0 0
        %3410 = vmatprep.subr.bf16.mxu0 0
        %3411 = vmatpush1.bf16.xpose.msra.mxu0 0
        %3412 = vmatprep.subr.bf16.mxu0 0
        %3413 = vmatpush1.bf16.xpose.msra.mxu0 0
        %3414 = vmatprep.subr.bf16.mxu0 0
        %3415 = vmatpush1.bf16.xpose.msra.mxu0 0
        %3416 = vmatprep.subr.bf16.mxu0 0
        %3417 = vmatpush1.bf16.xpose.msra.mxu0 0
        %3418 = vmatprep.subr.bf16.mxu0 0
        %3419 = vmatpush1.bf16.xpose.msra.mxu0 0
        %3420 = vmatprep.subr.bf16.mxu0 0
        %3421 = vmatpush1.bf16.xpose.msra.mxu0 0
        %3422 = vmatprep.mubr.bf16.mxu0 0
        %3423 = vmatmul.mubr.bf16.gmra.mrb[0].mxu0 %v3385
        %v3424 = vpop.f32.mrb[0].mxu0
        %v3425 = vadd.f32 0.0, %v3424
        %v3426 = vpop.f32.mrb[0].mxu0
        %v3427 = vpop.f32.mrb[0].mxu0
        %v3428 = vpop.f32.mrb[0].mxu0
        %3429 = vdwg.mxu0
        %3430 = vrot.lane.b32.xlu0 %v1994, 96
        %v3431 = vpop.permute.xlu0 %3430
        %v3433 = vsel %vm2045, %v1994, 0
        %v3436 = vsel %vm2045, %v3431, 0
        %3438 = vmatprep.subr.bf16.mxu0 0
        %3439 = vmatpush1.bf16.xpose.msra.mxu0 %v3436
        %3440 = vmatprep.subr.bf16.mxu0 0
        %3441 = vmatpush1.bf16.xpose.msra.mxu0 0
        %3442 = vmatprep.subr.bf16.mxu0 0
        %3443 = vmatpush1.bf16.xpose.msra.mxu0 0
        %3444 = vmatprep.subr.bf16.mxu0 0
        %3445 = vmatpush1.bf16.xpose.msra.mxu0 0
        %3446 = vmatprep.subr.bf16.mxu0 0
        %3447 = vmatpush1.bf16.xpose.msra.mxu0 0
        %3448 = vmatprep.subr.bf16.mxu0 0
        %3449 = vmatpush1.bf16.xpose.msra.mxu0 0
        %3450 = vmatprep.subr.bf16.mxu0 0
        %3451 = vmatpush1.bf16.xpose.msra.mxu0 0
        %3452 = vmatprep.subr.bf16.mxu0 0
        %3453 = vmatpush1.bf16.xpose.msra.mxu0 0
        %3454 = vmatprep.subr.bf16.mxu0 0
        %3455 = vmatpush1.bf16.xpose.msra.mxu0 0
        %3456 = vmatprep.subr.bf16.mxu0 0
        %3457 = vmatpush1.bf16.xpose.msra.mxu0 0
        %3458 = vmatprep.subr.bf16.mxu0 0
        %3459 = vmatpush1.bf16.xpose.msra.mxu0 0
        %3460 = vmatprep.subr.bf16.mxu0 0
        %3461 = vmatpush1.bf16.xpose.msra.mxu0 0
        %3462 = vmatprep.subr.bf16.mxu0 0
        %3463 = vmatpush1.bf16.xpose.msra.mxu0 0
        %3464 = vmatprep.subr.bf16.mxu0 0
        %3465 = vmatpush1.bf16.xpose.msra.mxu0 0
        %3466 = vmatprep.subr.bf16.mxu0 0
        %3467 = vmatpush1.bf16.xpose.msra.mxu0 0
        %3468 = vmatprep.subr.bf16.mxu0 0
        %3469 = vmatpush1.bf16.xpose.msra.mxu0 0
        %3470 = vmatprep.mubr.bf16.mxu0 0
        %3471 = vmatmul.mubr.bf16.gmra.mrb[0].mxu0 %v3433
        %v3472 = vpop.f32.mrb[0].mxu0
        %v3473 = vadd.f32 0.0, %v3472
        %v3474 = vpop.f32.mrb[0].mxu0
        %v3475 = vpop.f32.mrb[0].mxu0
        %v3476 = vpop.f32.mrb[0].mxu0
        %3477 = vdwg.mxu0
        %v3478 = vunpack.c.l.b16 %v2010
        %v3479 = vpack.c.b16 %v3478, %v3478
        %3480 = vrot.lane.b32.xlu0 %v3479, 96
        %v3481 = vpop.permute.xlu0 %3480
        %v3483 = vsel %vm2045, %v2010, 0
        %v3486 = vsel %vm2045, %v3481, 0
        %3488 = vmatprep.subr.bf16.mxu0 0
        %3489 = vmatpush1.bf16.xpose.msra.mxu0 %v3486
        %3490 = vmatprep.subr.bf16.mxu0 0
        %3491 = vmatpush1.bf16.xpose.msra.mxu0 0
        %3492 = vmatprep.subr.bf16.mxu0 0
        %3493 = vmatpush1.bf16.xpose.msra.mxu0 0
        %3494 = vmatprep.subr.bf16.mxu0 0
        %3495 = vmatpush1.bf16.xpose.msra.mxu0 0
        %3496 = vmatprep.subr.bf16.mxu0 0
        %3497 = vmatpush1.bf16.xpose.msra.mxu0 0
        %3498 = vmatprep.subr.bf16.mxu0 0
        %3499 = vmatpush1.bf16.xpose.msra.mxu0 0
        %3500 = vmatprep.subr.bf16.mxu0 0
        %3501 = vmatpush1.bf16.xpose.msra.mxu0 0
        %3502 = vmatprep.subr.bf16.mxu0 0
        %3503 = vmatpush1.bf16.xpose.msra.mxu0 0
        %3504 = vmatprep.subr.bf16.mxu0 0
        %3505 = vmatpush1.bf16.xpose.msra.mxu0 0
        %3506 = vmatprep.subr.bf16.mxu0 0
        %3507 = vmatpush1.bf16.xpose.msra.mxu0 0
        %3508 = vmatprep.subr.bf16.mxu0 0
        %3509 = vmatpush1.bf16.xpose.msra.mxu0 0
        %3510 = vmatprep.subr.bf16.mxu0 0
        %3511 = vmatpush1.bf16.xpose.msra.mxu0 0
        %3512 = vmatprep.subr.bf16.mxu0 0
        %3513 = vmatpush1.bf16.xpose.msra.mxu0 0
        %3514 = vmatprep.subr.bf16.mxu0 0
        %3515 = vmatpush1.bf16.xpose.msra.mxu0 0
        %3516 = vmatprep.subr.bf16.mxu0 0
        %3517 = vmatpush1.bf16.xpose.msra.mxu0 0
        %3518 = vmatprep.subr.bf16.mxu0 0
        %3519 = vmatpush1.bf16.xpose.msra.mxu0 0
        %3520 = vmatprep.mubr.bf16.mxu0 0
        %3521 = vmatmul.mubr.bf16.gmra.mrb[0].mxu0 %v3483
        %v3522 = vpop.f32.mrb[0].mxu0
        %v3523 = vadd.f32 0.0, %v3522
        %v3524 = vpop.f32.mrb[0].mxu0
        %v3525 = vpop.f32.mrb[0].mxu0
        %v3526 = vpop.f32.mrb[0].mxu0
        %3527 = vdwg.mxu0
        %v3528 = vunpack.c.l.b16 %v2026
        %v3529 = vpack.c.b16 %v3528, %v3528
        %3530 = vrot.lane.b32.xlu0 %v3529, 96
        %v3531 = vpop.permute.xlu0 %3530
        %v3533 = vsel %vm2045, %v2026, 0
        %v3536 = vsel %vm2045, %v3531, 0
        %3538 = vmatprep.subr.bf16.mxu0 0
        %3539 = vmatpush1.bf16.xpose.msra.mxu0 %v3536
        %3540 = vmatprep.subr.bf16.mxu0 0
        %3541 = vmatpush1.bf16.xpose.msra.mxu0 0
        %3542 = vmatprep.subr.bf16.mxu0 0
        %3543 = vmatpush1.bf16.xpose.msra.mxu0 0
        %3544 = vmatprep.subr.bf16.mxu0 0
        %3545 = vmatpush1.bf16.xpose.msra.mxu0 0
        %3546 = vmatprep.subr.bf16.mxu0 0
        %3547 = vmatpush1.bf16.xpose.msra.mxu0 0
        %3548 = vmatprep.subr.bf16.mxu0 0
        %3549 = vmatpush1.bf16.xpose.msra.mxu0 0
        %3550 = vmatprep.subr.bf16.mxu0 0
        %3551 = vmatpush1.bf16.xpose.msra.mxu0 0
        %3552 = vmatprep.subr.bf16.mxu0 0
        %3553 = vmatpush1.bf16.xpose.msra.mxu0 0
        %3554 = vmatprep.subr.bf16.mxu0 0
        %3555 = vmatpush1.bf16.xpose.msra.mxu0 0
        %3556 = vmatprep.subr.bf16.mxu0 0
        %3557 = vmatpush1.bf16.xpose.msra.mxu0 0
        %3558 = vmatprep.subr.bf16.mxu0 0
        %3559 = vmatpush1.bf16.xpose.msra.mxu0 0
        %3560 = vmatprep.subr.bf16.mxu0 0
        %3561 = vmatpush1.bf16.xpose.msra.mxu0 0
        %3562 = vmatprep.subr.bf16.mxu0 0
        %3563 = vmatpush1.bf16.xpose.msra.mxu0 0
        %3564 = vmatprep.subr.bf16.mxu0 0
        %3565 = vmatpush1.bf16.xpose.msra.mxu0 0
        %3566 = vmatprep.subr.bf16.mxu0 0
        %3567 = vmatpush1.bf16.xpose.msra.mxu0 0
        %3568 = vmatprep.subr.bf16.mxu0 0
        %3569 = vmatpush1.bf16.xpose.msra.mxu0 0
        %3570 = vmatprep.mubr.bf16.mxu0 0
        %3571 = vmatmul.mubr.bf16.gmra.mrb[0].mxu0 %v3533
        %v3572 = vpop.f32.mrb[0].mxu0
        %v3573 = vadd.f32 0.0, %v3572
        %v3574 = vpop.f32.mrb[0].mxu0
        %v3575 = vpop.f32.mrb[0].mxu0
        %v3576 = vpop.f32.mrb[0].mxu0
        %3577 = vdwg.mxu0
        %v3578 = vunpack.c.l.b16 %v2042
        %v3579 = vpack.c.b16 %v3578, %v3578
        %3580 = vrot.lane.b32.xlu0 %v3579, 96
        %v3581 = vpop.permute.xlu0 %3580
        %v3583 = vsel %vm2045, %v2042, 0
        %v3586 = vsel %vm2045, %v3581, 0
        %3588 = vmatprep.subr.bf16.mxu0 0
        %3589 = vmatpush1.bf16.xpose.msra.mxu0 %v3586
        %3590 = vmatprep.subr.bf16.mxu0 0
        %3591 = vmatpush1.bf16.xpose.msra.mxu0 0
        %3592 = vmatprep.subr.bf16.mxu0 0
        %3593 = vmatpush1.bf16.xpose.msra.mxu0 0
        %3594 = vmatprep.subr.bf16.mxu0 0
        %3595 = vmatpush1.bf16.xpose.msra.mxu0 0
        %3596 = vmatprep.subr.bf16.mxu0 0
        %3597 = vmatpush1.bf16.xpose.msra.mxu0 0
        %3598 = vmatprep.subr.bf16.mxu0 0
        %3599 = vmatpush1.bf16.xpose.msra.mxu0 0
        %3600 = vmatprep.subr.bf16.mxu0 0
        %3601 = vmatpush1.bf16.xpose.msra.mxu0 0
        %3602 = vmatprep.subr.bf16.mxu0 0
        %3603 = vmatpush1.bf16.xpose.msra.mxu0 0
        %3604 = vmatprep.subr.bf16.mxu0 0
        %3605 = vmatpush1.bf16.xpose.msra.mxu0 0
        %3606 = vmatprep.subr.bf16.mxu0 0
        %3607 = vmatpush1.bf16.xpose.msra.mxu0 0
        %3608 = vmatprep.subr.bf16.mxu0 0
        %3609 = vmatpush1.bf16.xpose.msra.mxu0 0
        %3610 = vmatprep.subr.bf16.mxu0 0
        %3611 = vmatpush1.bf16.xpose.msra.mxu0 0
        %3612 = vmatprep.subr.bf16.mxu0 0
        %3613 = vmatpush1.bf16.xpose.msra.mxu0 0
        %3614 = vmatprep.subr.bf16.mxu0 0
        %3615 = vmatpush1.bf16.xpose.msra.mxu0 0
        %3616 = vmatprep.subr.bf16.mxu0 0
        %3617 = vmatpush1.bf16.xpose.msra.mxu0 0
        %3618 = vmatprep.subr.bf16.mxu0 0
        %3619 = vmatpush1.bf16.xpose.msra.mxu0 0
        %3620 = vmatprep.mubr.bf16.mxu0 0
        %3621 = vmatmul.mubr.bf16.gmra.mrb[0].mxu0 %v3583
        %v3622 = vpop.f32.mrb[0].mxu0
        %v3623 = vadd.f32 0.0, %v3622
        %v3624 = vpop.f32.mrb[0].mxu0
        %v3625 = vpop.f32.mrb[0].mxu0
        %v3626 = vpop.f32.mrb[0].mxu0
        %3627 = vdwg.mxu0
        %v3628 = vmul.f32 %v2087, 0.35355338
        %v3629 = vmul.f32 %v2137, 0.35355338
        %v3630 = vmul.f32 %v2187, 0.35355338
        %v3631 = vmul.f32 %v2237, 0.35355338
        %v3632 = vmul.f32 %v2285, 0.35355338
        %v3633 = vmul.f32 %v2335, 0.35355338
        %v3634 = vmul.f32 %v2385, 0.35355338
        %v3635 = vmul.f32 %v2435, 0.35355338
        %v3636 = vmul.f32 %v2483, 0.35355338
        %v3637 = vmul.f32 %v2533, 0.35355338
        %v3638 = vmul.f32 %v2583, 0.35355338
        %v3639 = vmul.f32 %v2633, 0.35355338
        %v3640 = vmul.f32 %v2681, 0.35355338
        %v3641 = vmul.f32 %v2731, 0.35355338
        %v3642 = vmul.f32 %v2781, 0.35355338
        %v3643 = vmul.f32 %v2831, 0.35355338
        %v3644 = vmul.f32 %v2879, 0.35355338
        %v3645 = vmul.f32 %v2929, 0.35355338
        %v3646 = vmul.f32 %v2979, 0.35355338
        %v3647 = vmul.f32 %v3029, 0.35355338
        %v3648 = vmul.f32 %v3077, 0.35355338
        %v3649 = vmul.f32 %v3127, 0.35355338
        %v3650 = vmul.f32 %v3177, 0.35355338
        %v3651 = vmul.f32 %v3227, 0.35355338
        %v3652 = vmul.f32 %v3275, 0.35355338
        %v3653 = vmul.f32 %v3325, 0.35355338
        %v3654 = vmul.f32 %v3375, 0.35355338
        %v3655 = vmul.f32 %v3425, 0.35355338
        %v3656 = vmul.f32 %v3473, 0.35355338
        %v3657 = vmul.f32 %v3523, 0.35355338
        %v3658 = vmul.f32 %v3573, 0.35355338
        %v3659 = vmul.f32 %v3623, 0.35355338
        %v3660 = vsel %vm2045, %v3628, -inf
        %3661 = vmax.xlane.f32.xlu0 %v3660
        %v3662 = vpop.xlane.xlu0 %3661
        %v3663 = vsel %vm2045, %v3629, -inf
        %3664 = vmax.xlane.f32.xlu0 %v3663
        %v3665 = vpop.xlane.xlu0 %3664
        %v3666 = vsel %vm2045, %v3630, -inf
        %3667 = vmax.xlane.f32.xlu0 %v3666
        %v3668 = vpop.xlane.xlu0 %3667
        %v3669 = vsel %vm2045, %v3631, -inf
        %3670 = vmax.xlane.f32.xlu0 %v3669
        %v3671 = vpop.xlane.xlu0 %3670
        %v3672 = vsel %vm2045, %v3632, -inf
        %3673 = vmax.xlane.f32.xlu0 %v3672
        %v3674 = vpop.xlane.xlu0 %3673
        %v3675 = vsel %vm2045, %v3633, -inf
        %3676 = vmax.xlane.f32.xlu0 %v3675
        %v3677 = vpop.xlane.xlu0 %3676
        %v3678 = vsel %vm2045, %v3634, -inf
        %3679 = vmax.xlane.f32.xlu0 %v3678
        %v3680 = vpop.xlane.xlu0 %3679
        %v3681 = vsel %vm2045, %v3635, -inf
        %3682 = vmax.xlane.f32.xlu0 %v3681
        %v3683 = vpop.xlane.xlu0 %3682
        %v3684 = vsel %vm2045, %v3636, -inf
        %3685 = vmax.xlane.f32.xlu0 %v3684
        %v3686 = vpop.xlane.xlu0 %3685
        %v3687 = vsel %vm2045, %v3637, -inf
        %3688 = vmax.xlane.f32.xlu0 %v3687
        %v3689 = vpop.xlane.xlu0 %3688
        %v3690 = vsel %vm2045, %v3638, -inf
        %3691 = vmax.xlane.f32.xlu0 %v3690
        %v3692 = vpop.xlane.xlu0 %3691
        %v3693 = vsel %vm2045, %v3639, -inf
        %3694 = vmax.xlane.f32.xlu0 %v3693
        %v3695 = vpop.xlane.xlu0 %3694
        %v3696 = vsel %vm2045, %v3640, -inf
        %3697 = vmax.xlane.f32.xlu0 %v3696
        %v3698 = vpop.xlane.xlu0 %3697
        %v3699 = vsel %vm2045, %v3641, -inf
        %3700 = vmax.xlane.f32.xlu0 %v3699
        %v3701 = vpop.xlane.xlu0 %3700
        %v3702 = vsel %vm2045, %v3642, -inf
        %3703 = vmax.xlane.f32.xlu0 %v3702
        %v3704 = vpop.xlane.xlu0 %3703
        %v3705 = vsel %vm2045, %v3643, -inf
        %3706 = vmax.xlane.f32.xlu0 %v3705
        %v3707 = vpop.xlane.xlu0 %3706
        %v3708 = vsel %vm2045, %v3644, -inf
        %3709 = vmax.xlane.f32.xlu0 %v3708
        %v3710 = vpop.xlane.xlu0 %3709
        %v3711 = vsel %vm2045, %v3645, -inf
        %3712 = vmax.xlane.f32.xlu0 %v3711
        %v3713 = vpop.xlane.xlu0 %3712
        %v3714 = vsel %vm2045, %v3646, -inf
        %3715 = vmax.xlane.f32.xlu0 %v3714
        %v3716 = vpop.xlane.xlu0 %3715
        %v3717 = vsel %vm2045, %v3647, -inf
        %3718 = vmax.xlane.f32.xlu0 %v3717
        %v3719 = vpop.xlane.xlu0 %3718
        %v3720 = vsel %vm2045, %v3648, -inf
        %3721 = vmax.xlane.f32.xlu0 %v3720
        %v3722 = vpop.xlane.xlu0 %3721
        %v3723 = vsel %vm2045, %v3649, -inf
        %3724 = vmax.xlane.f32.xlu0 %v3723
        %v3725 = vpop.xlane.xlu0 %3724
        %v3726 = vsel %vm2045, %v3650, -inf
        %3727 = vmax.xlane.f32.xlu0 %v3726
        %v3728 = vpop.xlane.xlu0 %3727
        %v3729 = vsel %vm2045, %v3651, -inf
        %3730 = vmax.xlane.f32.xlu0 %v3729
        %v3731 = vpop.xlane.xlu0 %3730
        %v3732 = vsel %vm2045, %v3652, -inf
        %3733 = vmax.xlane.f32.xlu0 %v3732
        %v3734 = vpop.xlane.xlu0 %3733
        %v3735 = vsel %vm2045, %v3653, -inf
        %3736 = vmax.xlane.f32.xlu0 %v3735
        %v3737 = vpop.xlane.xlu0 %3736
        %v3738 = vsel %vm2045, %v3654, -inf
        %3739 = vmax.xlane.f32.xlu0 %v3738
        %v3740 = vpop.xlane.xlu0 %3739
        %v3741 = vsel %vm2045, %v3655, -inf
        %3742 = vmax.xlane.f32.xlu0 %v3741
        %v3743 = vpop.xlane.xlu0 %3742
        %v3744 = vsel %vm2045, %v3656, -inf
        %3745 = vmax.xlane.f32.xlu0 %v3744
        %v3746 = vpop.xlane.xlu0 %3745
        %v3747 = vsel %vm2045, %v3657, -inf
        %3748 = vmax.xlane.f32.xlu0 %v3747
        %v3749 = vpop.xlane.xlu0 %3748
        %v3750 = vsel %vm2045, %v3658, -inf
        %3751 = vmax.xlane.f32.xlu0 %v3750
        %v3752 = vpop.xlane.xlu0 %3751
        %v3753 = vsel %vm2045, %v3659, -inf
        %3754 = vmax.xlane.f32.xlu0 %v3753
        %v3755 = vpop.xlane.xlu0 %3754
        %v3756 = vsub.f32 %v3628, %v3662
        %v3757 = vsub.f32 %v3629, %v3665
        %v3758 = vsub.f32 %v3630, %v3668
        %v3759 = vsub.f32 %v3631, %v3671
        %v3760 = vsub.f32 %v3632, %v3674
        %v3761 = vsub.f32 %v3633, %v3677
        %v3762 = vsub.f32 %v3634, %v3680
        %v3763 = vsub.f32 %v3635, %v3683
        %v3764 = vsub.f32 %v3636, %v3686
        %v3765 = vsub.f32 %v3637, %v3689
        %v3766 = vsub.f32 %v3638, %v3692
        %v3767 = vsub.f32 %v3639, %v3695
        %v3768 = vsub.f32 %v3640, %v3698
        %v3769 = vsub.f32 %v3641, %v3701
        %v3770 = vsub.f32 %v3642, %v3704
        %v3771 = vsub.f32 %v3643, %v3707
        %v3772 = vsub.f32 %v3644, %v3710
        %v3773 = vsub.f32 %v3645, %v3713
        %v3774 = vsub.f32 %v3646, %v3716
        %v3775 = vsub.f32 %v3647, %v3719
        %v3776 = vsub.f32 %v3648, %v3722
        %v3777 = vsub.f32 %v3649, %v3725
        %v3778 = vsub.f32 %v3650, %v3728
        %v3779 = vsub.f32 %v3651, %v3731
        %v3780 = vsub.f32 %v3652, %v3734
        %v3781 = vsub.f32 %v3653, %v3737
        %v3782 = vsub.f32 %v3654, %v3740
        %v3783 = vsub.f32 %v3655, %v3743
        %v3784 = vsub.f32 %v3656, %v3746
        %v3785 = vsub.f32 %v3657, %v3749
        %v3786 = vsub.f32 %v3658, %v3752
        %v3787 = vsub.f32 %v3659, %v3755
        %v3788 = vmul.f32 %v3756, 1.442695
        %v3789 = vpow.pop %v3788
        %v3790 = vmul.f32 %v3757, 1.442695
        %v3791 = vpow.pop %v3790
        %v3792 = vmul.f32 %v3758, 1.442695
        %v3793 = vpow.pop %v3792
        %v3794 = vmul.f32 %v3759, 1.442695
        %v3795 = vpow.pop %v3794
        %v3796 = vmul.f32 %v3760, 1.442695
        %v3797 = vpow.pop %v3796
        %v3798 = vmul.f32 %v3761, 1.442695
        %v3799 = vpow.pop %v3798
        %v3800 = vmul.f32 %v3762, 1.442695
        %v3801 = vpow.pop %v3800
        %v3802 = vmul.f32 %v3763, 1.442695
        %v3803 = vpow.pop %v3802
        %v3804 = vmul.f32 %v3764, 1.442695
        %v3805 = vpow.pop %v3804
        %v3806 = vmul.f32 %v3765, 1.442695
        %v3807 = vpow.pop %v3806
        %v3808 = vmul.f32 %v3766, 1.442695
        %v3809 = vpow.pop %v3808
        %v3810 = vmul.f32 %v3767, 1.442695
        %v3811 = vpow.pop %v3810
        %v3812 = vmul.f32 %v3768, 1.442695
        %v3813 = vpow.pop %v3812
        %v3814 = vmul.f32 %v3769, 1.442695
        %v3815 = vpow.pop %v3814
        %v3816 = vmul.f32 %v3770, 1.442695
        %v3817 = vpow.pop %v3816
        %v3818 = vmul.f32 %v3771, 1.442695
        %v3819 = vpow.pop %v3818
        %v3820 = vmul.f32 %v3772, 1.442695
        %v3821 = vpow.pop %v3820
        %v3822 = vmul.f32 %v3773, 1.442695
        %v3823 = vpow.pop %v3822
        %v3824 = vmul.f32 %v3774, 1.442695
        %v3825 = vpow.pop %v3824
        %v3826 = vmul.f32 %v3775, 1.442695
        %v3827 = vpow.pop %v3826
        %v3828 = vmul.f32 %v3776, 1.442695
        %v3829 = vpow.pop %v3828
        %v3830 = vmul.f32 %v3777, 1.442695
        %v3831 = vpow.pop %v3830
        %v3832 = vmul.f32 %v3778, 1.442695
        %v3833 = vpow.pop %v3832
        %v3834 = vmul.f32 %v3779, 1.442695
        %v3835 = vpow.pop %v3834
        %v3836 = vmul.f32 %v3780, 1.442695
        %v3837 = vpow.pop %v3836
        %v3838 = vmul.f32 %v3781, 1.442695
        %v3839 = vpow.pop %v3838
        %v3840 = vmul.f32 %v3782, 1.442695
        %v3841 = vpow.pop %v3840
        %v3842 = vmul.f32 %v3783, 1.442695
        %v3843 = vpow.pop %v3842
        %v3844 = vmul.f32 %v3784, 1.442695
        %v3845 = vpow.pop %v3844
        %v3846 = vmul.f32 %v3785, 1.442695
        %v3847 = vpow.pop %v3846
        %v3848 = vmul.f32 %v3786, 1.442695
        %v3849 = vpow.pop %v3848
        %v3850 = vmul.f32 %v3787, 1.442695
        %v3851 = vpow.pop %v3850
        %v3852 = vsel %vm2045, %v3789, 0.0
        %3853 = vadd.xlane.f32.xlu0 %v3852
        %v3854 = vpop.xlane.xlu0 %3853
        %v3855 = vsel %vm2045, %v3791, 0.0
        %3856 = vadd.xlane.f32.xlu0 %v3855
        %v3857 = vpop.xlane.xlu0 %3856
        %v3858 = vsel %vm2045, %v3793, 0.0
        %3859 = vadd.xlane.f32.xlu0 %v3858
        %v3860 = vpop.xlane.xlu0 %3859
        %v3861 = vsel %vm2045, %v3795, 0.0
        %3862 = vadd.xlane.f32.xlu0 %v3861
        %v3863 = vpop.xlane.xlu0 %3862
        %v3864 = vsel %vm2045, %v3797, 0.0
        %3865 = vadd.xlane.f32.xlu0 %v3864
        %v3866 = vpop.xlane.xlu0 %3865
        %v3867 = vsel %vm2045, %v3799, 0.0
        %3868 = vadd.xlane.f32.xlu0 %v3867
        %v3869 = vpop.xlane.xlu0 %3868
        %v3870 = vsel %vm2045, %v3801, 0.0
        %3871 = vadd.xlane.f32.xlu0 %v3870
        %v3872 = vpop.xlane.xlu0 %3871
        %v3873 = vsel %vm2045, %v3803, 0.0
        %3874 = vadd.xlane.f32.xlu0 %v3873
        %v3875 = vpop.xlane.xlu0 %3874
        %v3876 = vsel %vm2045, %v3805, 0.0
        %3877 = vadd.xlane.f32.xlu0 %v3876
        %v3878 = vpop.xlane.xlu0 %3877
        %v3879 = vsel %vm2045, %v3807, 0.0
        %3880 = vadd.xlane.f32.xlu0 %v3879
        %v3881 = vpop.xlane.xlu0 %3880
        %v3882 = vsel %vm2045, %v3809, 0.0
        %3883 = vadd.xlane.f32.xlu0 %v3882
        %v3884 = vpop.xlane.xlu0 %3883
        %v3885 = vsel %vm2045, %v3811, 0.0
        %3886 = vadd.xlane.f32.xlu0 %v3885
        %v3887 = vpop.xlane.xlu0 %3886
        %v3888 = vsel %vm2045, %v3813, 0.0
        %3889 = vadd.xlane.f32.xlu0 %v3888
        %v3890 = vpop.xlane.xlu0 %3889
        %v3891 = vsel %vm2045, %v3815, 0.0
        %3892 = vadd.xlane.f32.xlu0 %v3891
        %v3893 = vpop.xlane.xlu0 %3892
        %v3894 = vsel %vm2045, %v3817, 0.0
        %3895 = vadd.xlane.f32.xlu0 %v3894
        %v3896 = vpop.xlane.xlu0 %3895
        %v3897 = vsel %vm2045, %v3819, 0.0
        %3898 = vadd.xlane.f32.xlu0 %v3897
        %v3899 = vpop.xlane.xlu0 %3898
        %v3900 = vsel %vm2045, %v3821, 0.0
        %3901 = vadd.xlane.f32.xlu0 %v3900
        %v3902 = vpop.xlane.xlu0 %3901
        %v3903 = vsel %vm2045, %v3823, 0.0
        %3904 = vadd.xlane.f32.xlu0 %v3903
        %v3905 = vpop.xlane.xlu0 %3904
        %v3906 = vsel %vm2045, %v3825, 0.0
        %3907 = vadd.xlane.f32.xlu0 %v3906
        %v3908 = vpop.xlane.xlu0 %3907
        %v3909 = vsel %vm2045, %v3827, 0.0
        %3910 = vadd.xlane.f32.xlu0 %v3909
        %v3911 = vpop.xlane.xlu0 %3910
        %v3912 = vsel %vm2045, %v3829, 0.0
        %3913 = vadd.xlane.f32.xlu0 %v3912
        %v3914 = vpop.xlane.xlu0 %3913
        %v3915 = vsel %vm2045, %v3831, 0.0
        %3916 = vadd.xlane.f32.xlu0 %v3915
        %v3917 = vpop.xlane.xlu0 %3916
        %v3918 = vsel %vm2045, %v3833, 0.0
        %3919 = vadd.xlane.f32.xlu0 %v3918
        %v3920 = vpop.xlane.xlu0 %3919
        %v3921 = vsel %vm2045, %v3835, 0.0
        %3922 = vadd.xlane.f32.xlu0 %v3921
        %v3923 = vpop.xlane.xlu0 %3922
        %v3924 = vsel %vm2045, %v3837, 0.0
        %3925 = vadd.xlane.f32.xlu0 %v3924
        %v3926 = vpop.xlane.xlu0 %3925
        %v3927 = vsel %vm2045, %v3839, 0.0
        %3928 = vadd.xlane.f32.xlu0 %v3927
        %v3929 = vpop.xlane.xlu0 %3928
        %v3930 = vsel %vm2045, %v3841, 0.0
        %3931 = vadd.xlane.f32.xlu0 %v3930
        %v3932 = vpop.xlane.xlu0 %3931
        %v3933 = vsel %vm2045, %v3843, 0.0
        %3934 = vadd.xlane.f32.xlu0 %v3933
        %v3935 = vpop.xlane.xlu0 %3934
        %v3936 = vsel %vm2045, %v3845, 0.0
        %3937 = vadd.xlane.f32.xlu0 %v3936
        %v3938 = vpop.xlane.xlu0 %3937
        %v3939 = vsel %vm2045, %v3847, 0.0
        %3940 = vadd.xlane.f32.xlu0 %v3939
        %v3941 = vpop.xlane.xlu0 %3940
        %v3942 = vsel %vm2045, %v3849, 0.0
        %3943 = vadd.xlane.f32.xlu0 %v3942
        %v3944 = vpop.xlane.xlu0 %3943
        %v3945 = vsel %vm2045, %v3851, 0.0
        %3946 = vadd.xlane.f32.xlu0 %v3945
        %v3947 = vpop.xlane.xlu0 %3946
        %v3948 = vrcp.pop %v3854
        %v3949 = vrcp.pop %v3857
        %v3950 = vrcp.pop %v3860
        %v3951 = vrcp.pop %v3863
        %v3952 = vrcp.pop %v3866
        %v3953 = vrcp.pop %v3869
        %v3954 = vrcp.pop %v3872
        %v3955 = vrcp.pop %v3875
        %v3956 = vrcp.pop %v3878
        %v3957 = vrcp.pop %v3881
        %v3958 = vrcp.pop %v3884
        %v3959 = vrcp.pop %v3887
        %v3960 = vrcp.pop %v3890
        %v3961 = vrcp.pop %v3893
        %v3962 = vrcp.pop %v3896
        %v3963 = vrcp.pop %v3899
        %v3964 = vrcp.pop %v3902
        %v3965 = vrcp.pop %v3905
        %v3966 = vrcp.pop %v3908
        %v3967 = vrcp.pop %v3911
        %v3968 = vrcp.pop %v3914
        %v3969 = vrcp.pop %v3917
        %v3970 = vrcp.pop %v3920
        %v3971 = vrcp.pop %v3923
        %v3972 = vrcp.pop %v3926
        %v3973 = vrcp.pop %v3929
        %v3974 = vrcp.pop %v3932
        %v3975 = vrcp.pop %v3935
        %v3976 = vrcp.pop %v3938
        %v3977 = vrcp.pop %v3941
        %v3978 = vrcp.pop %v3944
        %v3979 = vrcp.pop %v3947
        %v3980 = vmul.f32 %v3789, %v3948
        %v3981 = vmul.f32 %v3791, %v3949
        %v3982 = vmul.f32 %v3793, %v3950
        %v3983 = vmul.f32 %v3795, %v3951
        %v3984 = vmul.f32 %v3797, %v3952
        %v3985 = vmul.f32 %v3799, %v3953
        %v3986 = vmul.f32 %v3801, %v3954
        %v3987 = vmul.f32 %v3803, %v3955
        %v3988 = vmul.f32 %v3805, %v3956
        %v3989 = vmul.f32 %v3807, %v3957
        %v3990 = vmul.f32 %v3809, %v3958
        %v3991 = vmul.f32 %v3811, %v3959
        %v3992 = vmul.f32 %v3813, %v3960
        %v3993 = vmul.f32 %v3815, %v3961
        %v3994 = vmul.f32 %v3817, %v3962
        %v3995 = vmul.f32 %v3819, %v3963
        %v3996 = vmul.f32 %v3821, %v3964
        %v3997 = vmul.f32 %v3823, %v3965
        %v3998 = vmul.f32 %v3825, %v3966
        %v3999 = vmul.f32 %v3827, %v3967
        %v4000 = vmul.f32 %v3829, %v3968
        %v4001 = vmul.f32 %v3831, %v3969
        %v4002 = vmul.f32 %v3833, %v3970
        %v4003 = vmul.f32 %v3835, %v3971
        %v4004 = vmul.f32 %v3837, %v3972
        %v4005 = vmul.f32 %v3839, %v3973
        %v4006 = vmul.f32 %v3841, %v3974
        %v4007 = vmul.f32 %v3843, %v3975
        %v4008 = vmul.f32 %v3845, %v3976
        %v4009 = vmul.f32 %v3847, %v3977
        %v4010 = vmul.f32 %v3849, %v3978
        %v4011 = vmul.f32 %v3851, %v3979
        %v4012 = vpack.c.bf16 %v3980, %v3980
        %v4013 = vpack.c.bf16 %v3981, %v3981
        %v4014 = vpack.c.bf16 %v3982, %v3982
        %v4015 = vpack.c.bf16 %v3983, %v3983
        %v4016 = vpack.c.bf16 %v3984, %v3984
        %v4017 = vpack.c.bf16 %v3985, %v3985
        %v4018 = vpack.c.bf16 %v3986, %v3986
        %v4019 = vpack.c.bf16 %v3987, %v3987
        %v4020 = vpack.c.bf16 %v3988, %v3988
        %v4021 = vpack.c.bf16 %v3989, %v3989
        %v4022 = vpack.c.bf16 %v3990, %v3990
        %v4023 = vpack.c.bf16 %v3991, %v3991
        %v4024 = vpack.c.bf16 %v3992, %v3992
        %v4025 = vpack.c.bf16 %v3993, %v3993
        %v4026 = vpack.c.bf16 %v3994, %v3994
        %v4027 = vpack.c.bf16 %v3995, %v3995
        %v4028 = vpack.c.bf16 %v3996, %v3996
        %v4029 = vpack.c.bf16 %v3997, %v3997
        %v4030 = vpack.c.bf16 %v3998, %v3998
        %v4031 = vpack.c.bf16 %v3999, %v3999
        %v4032 = vpack.c.bf16 %v4000, %v4000
        %v4033 = vpack.c.bf16 %v4001, %v4001
        %v4034 = vpack.c.bf16 %v4002, %v4002
        %v4035 = vpack.c.bf16 %v4003, %v4003
        %v4036 = vpack.c.bf16 %v4004, %v4004
        %v4037 = vpack.c.bf16 %v4005, %v4005
        %v4038 = vpack.c.bf16 %v4006, %v4006
        %v4039 = vpack.c.bf16 %v4007, %v4007
        %v4040 = vpack.c.bf16 %v4008, %v4008
        %v4041 = vpack.c.bf16 %v4009, %v4009
        %v4042 = vpack.c.bf16 %v4010, %v4010
        %v4043 = vpack.c.bf16 %v4011, %v4011
        %4044 = vrot.lane.b32.xlu0 %v1987, 64
        %v4045 = vpop.permute.xlu0 %4044
        %v4047 = vsel %vm2045, %v4012, 0
        %vm4049 = vcmask 1043456
        %v4051 = vsel %vm4049, %v4045, 0
        %4053 = vmatprep.subr.bf16.mxu0 0
        %4054 = vmatpush1.bf16.msra.mxu0 %v4051
        %4055 = vmatprep.subr.bf16.mxu0 0
        %4056 = vmatpush1.bf16.msra.mxu0 0
        %4057 = vmatprep.subr.bf16.mxu0 0
        %4058 = vmatpush1.bf16.msra.mxu0 0
        %4059 = vmatprep.subr.bf16.mxu0 0
        %4060 = vmatpush1.bf16.msra.mxu0 0
        %4061 = vmatprep.subr.bf16.mxu0 0
        %4062 = vmatpush1.bf16.msra.mxu0 0
        %4063 = vmatprep.subr.bf16.mxu0 0
        %4064 = vmatpush1.bf16.msra.mxu0 0
        %4065 = vmatprep.subr.bf16.mxu0 0
        %4066 = vmatpush1.bf16.msra.mxu0 0
        %4067 = vmatprep.subr.bf16.mxu0 0
        %4068 = vmatpush1.bf16.msra.mxu0 0
        %4069 = vmatprep.subr.bf16.mxu0 0
        %4070 = vmatpush1.bf16.msra.mxu0 0
        %4071 = vmatprep.subr.bf16.mxu0 0
        %4072 = vmatpush1.bf16.msra.mxu0 0
        %4073 = vmatprep.subr.bf16.mxu0 0
        %4074 = vmatpush1.bf16.msra.mxu0 0
        %4075 = vmatprep.subr.bf16.mxu0 0
        %4076 = vmatpush1.bf16.msra.mxu0 0
        %4077 = vmatprep.subr.bf16.mxu0 0
        %4078 = vmatpush1.bf16.msra.mxu0 0
        %4079 = vmatprep.subr.bf16.mxu0 0
        %4080 = vmatpush1.bf16.msra.mxu0 0
        %4081 = vmatprep.subr.bf16.mxu0 0
        %4082 = vmatpush1.bf16.msra.mxu0 0
        %4083 = vmatprep.subr.bf16.mxu0 0
        %4084 = vmatpush1.bf16.msra.mxu0 0
        %4085 = vmatprep.mubr.bf16.mxu0 0
        %4086 = vmatmul.mubr.bf16.gmra.mrb[0].mxu0 %v4047
        %v4087 = vpop.f32.mrb[0].mxu0
        %v4088 = vadd.f32 0.0, %v4087
        %v4089 = vpop.f32.mrb[0].mxu0
        %v4090 = vpop.f32.mrb[0].mxu0
        %v4091 = vpop.f32.mrb[0].mxu0
        %4092 = vdwg.mxu0
        %4093 = vrot.lane.b32.xlu0 %v2093, 64
        %v4094 = vpop.permute.xlu0 %4093
        %v4096 = vsel %vm2045, %v4013, 0
        %v4099 = vsel %vm4049, %v4094, 0
        %4101 = vmatprep.subr.bf16.mxu0 0
        %4102 = vmatpush1.bf16.msra.mxu0 %v4099
        %4103 = vmatprep.subr.bf16.mxu0 0
        %4104 = vmatpush1.bf16.msra.mxu0 0
        %4105 = vmatprep.subr.bf16.mxu0 0
        %4106 = vmatpush1.bf16.msra.mxu0 0
        %4107 = vmatprep.subr.bf16.mxu0 0
        %4108 = vmatpush1.bf16.msra.mxu0 0
        %4109 = vmatprep.subr.bf16.mxu0 0
        %4110 = vmatpush1.bf16.msra.mxu0 0
        %4111 = vmatprep.subr.bf16.mxu0 0
        %4112 = vmatpush1.bf16.msra.mxu0 0
        %4113 = vmatprep.subr.bf16.mxu0 0
        %4114 = vmatpush1.bf16.msra.mxu0 0
        %4115 = vmatprep.subr.bf16.mxu0 0
        %4116 = vmatpush1.bf16.msra.mxu0 0
        %4117 = vmatprep.subr.bf16.mxu0 0
        %4118 = vmatpush1.bf16.msra.mxu0 0
        %4119 = vmatprep.subr.bf16.mxu0 0
        %4120 = vmatpush1.bf16.msra.mxu0 0
        %4121 = vmatprep.subr.bf16.mxu0 0
        %4122 = vmatpush1.bf16.msra.mxu0 0
        %4123 = vmatprep.subr.bf16.mxu0 0
        %4124 = vmatpush1.bf16.msra.mxu0 0
        %4125 = vmatprep.subr.bf16.mxu0 0
        %4126 = vmatpush1.bf16.msra.mxu0 0
        %4127 = vmatprep.subr.bf16.mxu0 0
        %4128 = vmatpush1.bf16.msra.mxu0 0
        %4129 = vmatprep.subr.bf16.mxu0 0
        %4130 = vmatpush1.bf16.msra.mxu0 0
        %4131 = vmatprep.subr.bf16.mxu0 0
        %4132 = vmatpush1.bf16.msra.mxu0 0
        %4133 = vmatprep.mubr.bf16.mxu0 0
        %4134 = vmatmul.mubr.bf16.gmra.mrb[0].mxu0 %v4096
        %v4135 = vpop.f32.mrb[0].mxu0
        %v4136 = vadd.f32 0.0, %v4135
        %v4137 = vpop.f32.mrb[0].mxu0
        %v4138 = vpop.f32.mrb[0].mxu0
        %v4139 = vpop.f32.mrb[0].mxu0
        %4140 = vdwg.mxu0
        %4141 = vrot.lane.b32.xlu0 %v2143, 64
        %v4142 = vpop.permute.xlu0 %4141
        %v4144 = vsel %vm2045, %v4014, 0
        %v4147 = vsel %vm4049, %v4142, 0
        %4149 = vmatprep.subr.bf16.mxu0 0
        %4150 = vmatpush1.bf16.msra.mxu0 %v4147
        %4151 = vmatprep.subr.bf16.mxu0 0
        %4152 = vmatpush1.bf16.msra.mxu0 0
        %4153 = vmatprep.subr.bf16.mxu0 0
        %4154 = vmatpush1.bf16.msra.mxu0 0
        %4155 = vmatprep.subr.bf16.mxu0 0
        %4156 = vmatpush1.bf16.msra.mxu0 0
        %4157 = vmatprep.subr.bf16.mxu0 0
        %4158 = vmatpush1.bf16.msra.mxu0 0
        %4159 = vmatprep.subr.bf16.mxu0 0
        %4160 = vmatpush1.bf16.msra.mxu0 0
        %4161 = vmatprep.subr.bf16.mxu0 0
        %4162 = vmatpush1.bf16.msra.mxu0 0
        %4163 = vmatprep.subr.bf16.mxu0 0
        %4164 = vmatpush1.bf16.msra.mxu0 0
        %4165 = vmatprep.subr.bf16.mxu0 0
        %4166 = vmatpush1.bf16.msra.mxu0 0
        %4167 = vmatprep.subr.bf16.mxu0 0
        %4168 = vmatpush1.bf16.msra.mxu0 0
        %4169 = vmatprep.subr.bf16.mxu0 0
        %4170 = vmatpush1.bf16.msra.mxu0 0
        %4171 = vmatprep.subr.bf16.mxu0 0
        %4172 = vmatpush1.bf16.msra.mxu0 0
        %4173 = vmatprep.subr.bf16.mxu0 0
        %4174 = vmatpush1.bf16.msra.mxu0 0
        %4175 = vmatprep.subr.bf16.mxu0 0
        %4176 = vmatpush1.bf16.msra.mxu0 0
        %4177 = vmatprep.subr.bf16.mxu0 0
        %4178 = vmatpush1.bf16.msra.mxu0 0
        %4179 = vmatprep.subr.bf16.mxu0 0
        %4180 = vmatpush1.bf16.msra.mxu0 0
        %4181 = vmatprep.mubr.bf16.mxu0 0
        %4182 = vmatmul.mubr.bf16.gmra.mrb[0].mxu0 %v4144
        %v4183 = vpop.f32.mrb[0].mxu0
        %v4184 = vadd.f32 0.0, %v4183
        %v4185 = vpop.f32.mrb[0].mxu0
        %v4186 = vpop.f32.mrb[0].mxu0
        %v4187 = vpop.f32.mrb[0].mxu0
        %4188 = vdwg.mxu0
        %4189 = vrot.lane.b32.xlu0 %v2193, 64
        %v4190 = vpop.permute.xlu0 %4189
        %v4192 = vsel %vm2045, %v4015, 0
        %v4195 = vsel %vm4049, %v4190, 0
        %4197 = vmatprep.subr.bf16.mxu0 0
        %4198 = vmatpush1.bf16.msra.mxu0 %v4195
        %4199 = vmatprep.subr.bf16.mxu0 0
        %4200 = vmatpush1.bf16.msra.mxu0 0
        %4201 = vmatprep.subr.bf16.mxu0 0
        %4202 = vmatpush1.bf16.msra.mxu0 0
        %4203 = vmatprep.subr.bf16.mxu0 0
        %4204 = vmatpush1.bf16.msra.mxu0 0
        %4205 = vmatprep.subr.bf16.mxu0 0
        %4206 = vmatpush1.bf16.msra.mxu0 0
        %4207 = vmatprep.subr.bf16.mxu0 0
        %4208 = vmatpush1.bf16.msra.mxu0 0
        %4209 = vmatprep.subr.bf16.mxu0 0
        %4210 = vmatpush1.bf16.msra.mxu0 0
        %4211 = vmatprep.subr.bf16.mxu0 0
        %4212 = vmatpush1.bf16.msra.mxu0 0
        %4213 = vmatprep.subr.bf16.mxu0 0
        %4214 = vmatpush1.bf16.msra.mxu0 0
        %4215 = vmatprep.subr.bf16.mxu0 0
        %4216 = vmatpush1.bf16.msra.mxu0 0
        %4217 = vmatprep.subr.bf16.mxu0 0
        %4218 = vmatpush1.bf16.msra.mxu0 0
        %4219 = vmatprep.subr.bf16.mxu0 0
        %4220 = vmatpush1.bf16.msra.mxu0 0
        %4221 = vmatprep.subr.bf16.mxu0 0
        %4222 = vmatpush1.bf16.msra.mxu0 0
        %4223 = vmatprep.subr.bf16.mxu0 0
        %4224 = vmatpush1.bf16.msra.mxu0 0
        %4225 = vmatprep.subr.bf16.mxu0 0
        %4226 = vmatpush1.bf16.msra.mxu0 0
        %4227 = vmatprep.subr.bf16.mxu0 0
        %4228 = vmatpush1.bf16.msra.mxu0 0
        %4229 = vmatprep.mubr.bf16.mxu0 0
        %4230 = vmatmul.mubr.bf16.gmra.mrb[0].mxu0 %v4192
        %v4231 = vpop.f32.mrb[0].mxu0
        %v4232 = vadd.f32 0.0, %v4231
        %v4233 = vpop.f32.mrb[0].mxu0
        %v4234 = vpop.f32.mrb[0].mxu0
        %v4235 = vpop.f32.mrb[0].mxu0
        %4236 = vdwg.mxu0
        %4237 = vrot.lane.b32.xlu0 %v1988, 64
        %v4238 = vpop.permute.xlu0 %4237
        %v4240 = vsel %vm2045, %v4016, 0
        %v4243 = vsel %vm4049, %v4238, 0
        %4245 = vmatprep.subr.bf16.mxu0 0
        %4246 = vmatpush1.bf16.msra.mxu0 %v4243
        %4247 = vmatprep.subr.bf16.mxu0 0
        %4248 = vmatpush1.bf16.msra.mxu0 0
        %4249 = vmatprep.subr.bf16.mxu0 0
        %4250 = vmatpush1.bf16.msra.mxu0 0
        %4251 = vmatprep.subr.bf16.mxu0 0
        %4252 = vmatpush1.bf16.msra.mxu0 0
        %4253 = vmatprep.subr.bf16.mxu0 0
        %4254 = vmatpush1.bf16.msra.mxu0 0
        %4255 = vmatprep.subr.bf16.mxu0 0
        %4256 = vmatpush1.bf16.msra.mxu0 0
        %4257 = vmatprep.subr.bf16.mxu0 0
        %4258 = vmatpush1.bf16.msra.mxu0 0
        %4259 = vmatprep.subr.bf16.mxu0 0
        %4260 = vmatpush1.bf16.msra.mxu0 0
        %4261 = vmatprep.subr.bf16.mxu0 0
        %4262 = vmatpush1.bf16.msra.mxu0 0
        %4263 = vmatprep.subr.bf16.mxu0 0
        %4264 = vmatpush1.bf16.msra.mxu0 0
        %4265 = vmatprep.subr.bf16.mxu0 0
        %4266 = vmatpush1.bf16.msra.mxu0 0
        %4267 = vmatprep.subr.bf16.mxu0 0
        %4268 = vmatpush1.bf16.msra.mxu0 0
        %4269 = vmatprep.subr.bf16.mxu0 0
        %4270 = vmatpush1.bf16.msra.mxu0 0
        %4271 = vmatprep.subr.bf16.mxu0 0
        %4272 = vmatpush1.bf16.msra.mxu0 0
        %4273 = vmatprep.subr.bf16.mxu0 0
        %4274 = vmatpush1.bf16.msra.mxu0 0
        %4275 = vmatprep.subr.bf16.mxu0 0
        %4276 = vmatpush1.bf16.msra.mxu0 0
        %4277 = vmatprep.mubr.bf16.mxu0 0
        %4278 = vmatmul.mubr.bf16.gmra.mrb[0].mxu0 %v4240
        %v4279 = vpop.f32.mrb[0].mxu0
        %v4280 = vadd.f32 0.0, %v4279
        %v4281 = vpop.f32.mrb[0].mxu0
        %v4282 = vpop.f32.mrb[0].mxu0
        %v4283 = vpop.f32.mrb[0].mxu0
        %4284 = vdwg.mxu0
        %4285 = vrot.lane.b32.xlu0 %v2291, 64
        %v4286 = vpop.permute.xlu0 %4285
        %v4288 = vsel %vm2045, %v4017, 0
        %v4291 = vsel %vm4049, %v4286, 0
        %4293 = vmatprep.subr.bf16.mxu0 0
        %4294 = vmatpush1.bf16.msra.mxu0 %v4291
        %4295 = vmatprep.subr.bf16.mxu0 0
        %4296 = vmatpush1.bf16.msra.mxu0 0
        %4297 = vmatprep.subr.bf16.mxu0 0
        %4298 = vmatpush1.bf16.msra.mxu0 0
        %4299 = vmatprep.subr.bf16.mxu0 0
        %4300 = vmatpush1.bf16.msra.mxu0 0
        %4301 = vmatprep.subr.bf16.mxu0 0
        %4302 = vmatpush1.bf16.msra.mxu0 0
        %4303 = vmatprep.subr.bf16.mxu0 0
        %4304 = vmatpush1.bf16.msra.mxu0 0
        %4305 = vmatprep.subr.bf16.mxu0 0
        %4306 = vmatpush1.bf16.msra.mxu0 0
        %4307 = vmatprep.subr.bf16.mxu0 0
        %4308 = vmatpush1.bf16.msra.mxu0 0
        %4309 = vmatprep.subr.bf16.mxu0 0
        %4310 = vmatpush1.bf16.msra.mxu0 0
        %4311 = vmatprep.subr.bf16.mxu0 0
        %4312 = vmatpush1.bf16.msra.mxu0 0
        %4313 = vmatprep.subr.bf16.mxu0 0
        %4314 = vmatpush1.bf16.msra.mxu0 0
        %4315 = vmatprep.subr.bf16.mxu0 0
        %4316 = vmatpush1.bf16.msra.mxu0 0
        %4317 = vmatprep.subr.bf16.mxu0 0
        %4318 = vmatpush1.bf16.msra.mxu0 0
        %4319 = vmatprep.subr.bf16.mxu0 0
        %4320 = vmatpush1.bf16.msra.mxu0 0
        %4321 = vmatprep.subr.bf16.mxu0 0
        %4322 = vmatpush1.bf16.msra.mxu0 0
        %4323 = vmatprep.subr.bf16.mxu0 0
        %4324 = vmatpush1.bf16.msra.mxu0 0
        %4325 = vmatprep.mubr.bf16.mxu0 0
        %4326 = vmatmul.mubr.bf16.gmra.mrb[0].mxu0 %v4288
        %v4327 = vpop.f32.mrb[0].mxu0
        %v4328 = vadd.f32 0.0, %v4327
        %v4329 = vpop.f32.mrb[0].mxu0
        %v4330 = vpop.f32.mrb[0].mxu0
        %v4331 = vpop.f32.mrb[0].mxu0
        %4332 = vdwg.mxu0
        %4333 = vrot.lane.b32.xlu0 %v2341, 64
        %v4334 = vpop.permute.xlu0 %4333
        %v4336 = vsel %vm2045, %v4018, 0
        %v4339 = vsel %vm4049, %v4334, 0
        %4341 = vmatprep.subr.bf16.mxu0 0
        %4342 = vmatpush1.bf16.msra.mxu0 %v4339
        %4343 = vmatprep.subr.bf16.mxu0 0
        %4344 = vmatpush1.bf16.msra.mxu0 0
        %4345 = vmatprep.subr.bf16.mxu0 0
        %4346 = vmatpush1.bf16.msra.mxu0 0
        %4347 = vmatprep.subr.bf16.mxu0 0
        %4348 = vmatpush1.bf16.msra.mxu0 0
        %4349 = vmatprep.subr.bf16.mxu0 0
        %4350 = vmatpush1.bf16.msra.mxu0 0
        %4351 = vmatprep.subr.bf16.mxu0 0
        %4352 = vmatpush1.bf16.msra.mxu0 0
        %4353 = vmatprep.subr.bf16.mxu0 0
        %4354 = vmatpush1.bf16.msra.mxu0 0
        %4355 = vmatprep.subr.bf16.mxu0 0
        %4356 = vmatpush1.bf16.msra.mxu0 0
        %4357 = vmatprep.subr.bf16.mxu0 0
        %4358 = vmatpush1.bf16.msra.mxu0 0
        %4359 = vmatprep.subr.bf16.mxu0 0
        %4360 = vmatpush1.bf16.msra.mxu0 0
        %4361 = vmatprep.subr.bf16.mxu0 0
        %4362 = vmatpush1.bf16.msra.mxu0 0
        %4363 = vmatprep.subr.bf16.mxu0 0
        %4364 = vmatpush1.bf16.msra.mxu0 0
        %4365 = vmatprep.subr.bf16.mxu0 0
        %4366 = vmatpush1.bf16.msra.mxu0 0
        %4367 = vmatprep.subr.bf16.mxu0 0
        %4368 = vmatpush1.bf16.msra.mxu0 0
        %4369 = vmatprep.subr.bf16.mxu0 0
        %4370 = vmatpush1.bf16.msra.mxu0 0
        %4371 = vmatprep.subr.bf16.mxu0 0
        %4372 = vmatpush1.bf16.msra.mxu0 0
        %4373 = vmatprep.mubr.bf16.mxu0 0
        %4374 = vmatmul.mubr.bf16.gmra.mrb[0].mxu0 %v4336
        %v4375 = vpop.f32.mrb[0].mxu0
        %v4376 = vadd.f32 0.0, %v4375
        %v4377 = vpop.f32.mrb[0].mxu0
        %v4378 = vpop.f32.mrb[0].mxu0
        %v4379 = vpop.f32.mrb[0].mxu0
        %4380 = vdwg.mxu0
        %4381 = vrot.lane.b32.xlu0 %v2391, 64
        %v4382 = vpop.permute.xlu0 %4381
        %v4384 = vsel %vm2045, %v4019, 0
        %v4387 = vsel %vm4049, %v4382, 0
        %4389 = vmatprep.subr.bf16.mxu0 0
        %4390 = vmatpush1.bf16.msra.mxu0 %v4387
        %4391 = vmatprep.subr.bf16.mxu0 0
        %4392 = vmatpush1.bf16.msra.mxu0 0
        %4393 = vmatprep.subr.bf16.mxu0 0
        %4394 = vmatpush1.bf16.msra.mxu0 0
        %4395 = vmatprep.subr.bf16.mxu0 0
        %4396 = vmatpush1.bf16.msra.mxu0 0
        %4397 = vmatprep.subr.bf16.mxu0 0
        %4398 = vmatpush1.bf16.msra.mxu0 0
        %4399 = vmatprep.subr.bf16.mxu0 0
        %4400 = vmatpush1.bf16.msra.mxu0 0
        %4401 = vmatprep.subr.bf16.mxu0 0
        %4402 = vmatpush1.bf16.msra.mxu0 0
        %4403 = vmatprep.subr.bf16.mxu0 0
        %4404 = vmatpush1.bf16.msra.mxu0 0
        %4405 = vmatprep.subr.bf16.mxu0 0
        %4406 = vmatpush1.bf16.msra.mxu0 0
        %4407 = vmatprep.subr.bf16.mxu0 0
        %4408 = vmatpush1.bf16.msra.mxu0 0
        %4409 = vmatprep.subr.bf16.mxu0 0
        %4410 = vmatpush1.bf16.msra.mxu0 0
        %4411 = vmatprep.subr.bf16.mxu0 0
        %4412 = vmatpush1.bf16.msra.mxu0 0
        %4413 = vmatprep.subr.bf16.mxu0 0
        %4414 = vmatpush1.bf16.msra.mxu0 0
        %4415 = vmatprep.subr.bf16.mxu0 0
        %4416 = vmatpush1.bf16.msra.mxu0 0
        %4417 = vmatprep.subr.bf16.mxu0 0
        %4418 = vmatpush1.bf16.msra.mxu0 0
        %4419 = vmatprep.subr.bf16.mxu0 0
        %4420 = vmatpush1.bf16.msra.mxu0 0
        %4421 = vmatprep.mubr.bf16.mxu0 0
        %4422 = vmatmul.mubr.bf16.gmra.mrb[0].mxu0 %v4384
        %v4423 = vpop.f32.mrb[0].mxu0
        %v4424 = vadd.f32 0.0, %v4423
        %v4425 = vpop.f32.mrb[0].mxu0
        %v4426 = vpop.f32.mrb[0].mxu0
        %v4427 = vpop.f32.mrb[0].mxu0
        %4428 = vdwg.mxu0
        %4429 = vrot.lane.b32.xlu0 %v1989, 64
        %v4430 = vpop.permute.xlu0 %4429
        %v4432 = vsel %vm2045, %v4020, 0
        %v4435 = vsel %vm4049, %v4430, 0
        %4437 = vmatprep.subr.bf16.mxu0 0
        %4438 = vmatpush1.bf16.msra.mxu0 %v4435
        %4439 = vmatprep.subr.bf16.mxu0 0
        %4440 = vmatpush1.bf16.msra.mxu0 0
        %4441 = vmatprep.subr.bf16.mxu0 0
        %4442 = vmatpush1.bf16.msra.mxu0 0
        %4443 = vmatprep.subr.bf16.mxu0 0
        %4444 = vmatpush1.bf16.msra.mxu0 0
        %4445 = vmatprep.subr.bf16.mxu0 0
        %4446 = vmatpush1.bf16.msra.mxu0 0
        %4447 = vmatprep.subr.bf16.mxu0 0
        %4448 = vmatpush1.bf16.msra.mxu0 0
        %4449 = vmatprep.subr.bf16.mxu0 0
        %4450 = vmatpush1.bf16.msra.mxu0 0
        %4451 = vmatprep.subr.bf16.mxu0 0
        %4452 = vmatpush1.bf16.msra.mxu0 0
        %4453 = vmatprep.subr.bf16.mxu0 0
        %4454 = vmatpush1.bf16.msra.mxu0 0
        %4455 = vmatprep.subr.bf16.mxu0 0
        %4456 = vmatpush1.bf16.msra.mxu0 0
        %4457 = vmatprep.subr.bf16.mxu0 0
        %4458 = vmatpush1.bf16.msra.mxu0 0
        %4459 = vmatprep.subr.bf16.mxu0 0
        %4460 = vmatpush1.bf16.msra.mxu0 0
        %4461 = vmatprep.subr.bf16.mxu0 0
        %4462 = vmatpush1.bf16.msra.mxu0 0
        %4463 = vmatprep.subr.bf16.mxu0 0
        %4464 = vmatpush1.bf16.msra.mxu0 0
        %4465 = vmatprep.subr.bf16.mxu0 0
        %4466 = vmatpush1.bf16.msra.mxu0 0
        %4467 = vmatprep.subr.bf16.mxu0 0
        %4468 = vmatpush1.bf16.msra.mxu0 0
        %4469 = vmatprep.mubr.bf16.mxu0 0
        %4470 = vmatmul.mubr.bf16.gmra.mrb[0].mxu0 %v4432
        %v4471 = vpop.f32.mrb[0].mxu0
        %v4472 = vadd.f32 0.0, %v4471
        %v4473 = vpop.f32.mrb[0].mxu0
        %v4474 = vpop.f32.mrb[0].mxu0
        %v4475 = vpop.f32.mrb[0].mxu0
        %4476 = vdwg.mxu0
        %4477 = vrot.lane.b32.xlu0 %v2489, 64
        %v4478 = vpop.permute.xlu0 %4477
        %v4480 = vsel %vm2045, %v4021, 0
        %v4483 = vsel %vm4049, %v4478, 0
        %4485 = vmatprep.subr.bf16.mxu0 0
        %4486 = vmatpush1.bf16.msra.mxu0 %v4483
        %4487 = vmatprep.subr.bf16.mxu0 0
        %4488 = vmatpush1.bf16.msra.mxu0 0
        %4489 = vmatprep.subr.bf16.mxu0 0
        %4490 = vmatpush1.bf16.msra.mxu0 0
        %4491 = vmatprep.subr.bf16.mxu0 0
        %4492 = vmatpush1.bf16.msra.mxu0 0
        %4493 = vmatprep.subr.bf16.mxu0 0
        %4494 = vmatpush1.bf16.msra.mxu0 0
        %4495 = vmatprep.subr.bf16.mxu0 0
        %4496 = vmatpush1.bf16.msra.mxu0 0
        %4497 = vmatprep.subr.bf16.mxu0 0
        %4498 = vmatpush1.bf16.msra.mxu0 0
        %4499 = vmatprep.subr.bf16.mxu0 0
        %4500 = vmatpush1.bf16.msra.mxu0 0
        %4501 = vmatprep.subr.bf16.mxu0 0
        %4502 = vmatpush1.bf16.msra.mxu0 0
        %4503 = vmatprep.subr.bf16.mxu0 0
        %4504 = vmatpush1.bf16.msra.mxu0 0
        %4505 = vmatprep.subr.bf16.mxu0 0
        %4506 = vmatpush1.bf16.msra.mxu0 0
        %4507 = vmatprep.subr.bf16.mxu0 0
        %4508 = vmatpush1.bf16.msra.mxu0 0
        %4509 = vmatprep.subr.bf16.mxu0 0
        %4510 = vmatpush1.bf16.msra.mxu0 0
        %4511 = vmatprep.subr.bf16.mxu0 0
        %4512 = vmatpush1.bf16.msra.mxu0 0
        %4513 = vmatprep.subr.bf16.mxu0 0
        %4514 = vmatpush1.bf16.msra.mxu0 0
        %4515 = vmatprep.subr.bf16.mxu0 0
        %4516 = vmatpush1.bf16.msra.mxu0 0
        %4517 = vmatprep.mubr.bf16.mxu0 0
        %4518 = vmatmul.mubr.bf16.gmra.mrb[0].mxu0 %v4480
        %v4519 = vpop.f32.mrb[0].mxu0
        %v4520 = vadd.f32 0.0, %v4519
        %v4521 = vpop.f32.mrb[0].mxu0
        %v4522 = vpop.f32.mrb[0].mxu0
        %v4523 = vpop.f32.mrb[0].mxu0
        %4524 = vdwg.mxu0
        %4525 = vrot.lane.b32.xlu0 %v2539, 64
        %v4526 = vpop.permute.xlu0 %4525
        %v4528 = vsel %vm2045, %v4022, 0
        %v4531 = vsel %vm4049, %v4526, 0
        %4533 = vmatprep.subr.bf16.mxu0 0
        %4534 = vmatpush1.bf16.msra.mxu0 %v4531
        %4535 = vmatprep.subr.bf16.mxu0 0
        %4536 = vmatpush1.bf16.msra.mxu0 0
        %4537 = vmatprep.subr.bf16.mxu0 0
        %4538 = vmatpush1.bf16.msra.mxu0 0
        %4539 = vmatprep.subr.bf16.mxu0 0
        %4540 = vmatpush1.bf16.msra.mxu0 0
        %4541 = vmatprep.subr.bf16.mxu0 0
        %4542 = vmatpush1.bf16.msra.mxu0 0
        %4543 = vmatprep.subr.bf16.mxu0 0
        %4544 = vmatpush1.bf16.msra.mxu0 0
        %4545 = vmatprep.subr.bf16.mxu0 0
        %4546 = vmatpush1.bf16.msra.mxu0 0
        %4547 = vmatprep.subr.bf16.mxu0 0
        %4548 = vmatpush1.bf16.msra.mxu0 0
        %4549 = vmatprep.subr.bf16.mxu0 0
        %4550 = vmatpush1.bf16.msra.mxu0 0
        %4551 = vmatprep.subr.bf16.mxu0 0
        %4552 = vmatpush1.bf16.msra.mxu0 0
        %4553 = vmatprep.subr.bf16.mxu0 0
        %4554 = vmatpush1.bf16.msra.mxu0 0
        %4555 = vmatprep.subr.bf16.mxu0 0
        %4556 = vmatpush1.bf16.msra.mxu0 0
        %4557 = vmatprep.subr.bf16.mxu0 0
        %4558 = vmatpush1.bf16.msra.mxu0 0
        %4559 = vmatprep.subr.bf16.mxu0 0
        %4560 = vmatpush1.bf16.msra.mxu0 0
        %4561 = vmatprep.subr.bf16.mxu0 0
        %4562 = vmatpush1.bf16.msra.mxu0 0
        %4563 = vmatprep.subr.bf16.mxu0 0
        %4564 = vmatpush1.bf16.msra.mxu0 0
        %4565 = vmatprep.mubr.bf16.mxu0 0
        %4566 = vmatmul.mubr.bf16.gmra.mrb[0].mxu0 %v4528
        %v4567 = vpop.f32.mrb[0].mxu0
        %v4568 = vadd.f32 0.0, %v4567
        %v4569 = vpop.f32.mrb[0].mxu0
        %v4570 = vpop.f32.mrb[0].mxu0
        %v4571 = vpop.f32.mrb[0].mxu0
        %4572 = vdwg.mxu0
        %4573 = vrot.lane.b32.xlu0 %v2589, 64
        %v4574 = vpop.permute.xlu0 %4573
        %v4576 = vsel %vm2045, %v4023, 0
        %v4579 = vsel %vm4049, %v4574, 0
        %4581 = vmatprep.subr.bf16.mxu0 0
        %4582 = vmatpush1.bf16.msra.mxu0 %v4579
        %4583 = vmatprep.subr.bf16.mxu0 0
        %4584 = vmatpush1.bf16.msra.mxu0 0
        %4585 = vmatprep.subr.bf16.mxu0 0
        %4586 = vmatpush1.bf16.msra.mxu0 0
        %4587 = vmatprep.subr.bf16.mxu0 0
        %4588 = vmatpush1.bf16.msra.mxu0 0
        %4589 = vmatprep.subr.bf16.mxu0 0
        %4590 = vmatpush1.bf16.msra.mxu0 0
        %4591 = vmatprep.subr.bf16.mxu0 0
        %4592 = vmatpush1.bf16.msra.mxu0 0
        %4593 = vmatprep.subr.bf16.mxu0 0
        %4594 = vmatpush1.bf16.msra.mxu0 0
        %4595 = vmatprep.subr.bf16.mxu0 0
        %4596 = vmatpush1.bf16.msra.mxu0 0
        %4597 = vmatprep.subr.bf16.mxu0 0
        %4598 = vmatpush1.bf16.msra.mxu0 0
        %4599 = vmatprep.subr.bf16.mxu0 0
        %4600 = vmatpush1.bf16.msra.mxu0 0
        %4601 = vmatprep.subr.bf16.mxu0 0
        %4602 = vmatpush1.bf16.msra.mxu0 0
        %4603 = vmatprep.subr.bf16.mxu0 0
        %4604 = vmatpush1.bf16.msra.mxu0 0
        %4605 = vmatprep.subr.bf16.mxu0 0
        %4606 = vmatpush1.bf16.msra.mxu0 0
        %4607 = vmatprep.subr.bf16.mxu0 0
        %4608 = vmatpush1.bf16.msra.mxu0 0
        %4609 = vmatprep.subr.bf16.mxu0 0
        %4610 = vmatpush1.bf16.msra.mxu0 0
        %4611 = vmatprep.subr.bf16.mxu0 0
        %4612 = vmatpush1.bf16.msra.mxu0 0
        %4613 = vmatprep.mubr.bf16.mxu0 0
        %4614 = vmatmul.mubr.bf16.gmra.mrb[0].mxu0 %v4576
        %v4615 = vpop.f32.mrb[0].mxu0
        %v4616 = vadd.f32 0.0, %v4615
        %v4617 = vpop.f32.mrb[0].mxu0
        %v4618 = vpop.f32.mrb[0].mxu0
        %v4619 = vpop.f32.mrb[0].mxu0
        %4620 = vdwg.mxu0
        %4621 = vrot.lane.b32.xlu0 %v1990, 64
        %v4622 = vpop.permute.xlu0 %4621
        %v4624 = vsel %vm2045, %v4024, 0
        %v4627 = vsel %vm4049, %v4622, 0
        %4629 = vmatprep.subr.bf16.mxu0 0
        %4630 = vmatpush1.bf16.msra.mxu0 %v4627
        %4631 = vmatprep.subr.bf16.mxu0 0
        %4632 = vmatpush1.bf16.msra.mxu0 0
        %4633 = vmatprep.subr.bf16.mxu0 0
        %4634 = vmatpush1.bf16.msra.mxu0 0
        %4635 = vmatprep.subr.bf16.mxu0 0
        %4636 = vmatpush1.bf16.msra.mxu0 0
        %4637 = vmatprep.subr.bf16.mxu0 0
        %4638 = vmatpush1.bf16.msra.mxu0 0
        %4639 = vmatprep.subr.bf16.mxu0 0
        %4640 = vmatpush1.bf16.msra.mxu0 0
        %4641 = vmatprep.subr.bf16.mxu0 0
        %4642 = vmatpush1.bf16.msra.mxu0 0
        %4643 = vmatprep.subr.bf16.mxu0 0
        %4644 = vmatpush1.bf16.msra.mxu0 0
        %4645 = vmatprep.subr.bf16.mxu0 0
        %4646 = vmatpush1.bf16.msra.mxu0 0
        %4647 = vmatprep.subr.bf16.mxu0 0
        %4648 = vmatpush1.bf16.msra.mxu0 0
        %4649 = vmatprep.subr.bf16.mxu0 0
        %4650 = vmatpush1.bf16.msra.mxu0 0
        %4651 = vmatprep.subr.bf16.mxu0 0
        %4652 = vmatpush1.bf16.msra.mxu0 0
        %4653 = vmatprep.subr.bf16.mxu0 0
        %4654 = vmatpush1.bf16.msra.mxu0 0
        %4655 = vmatprep.subr.bf16.mxu0 0
        %4656 = vmatpush1.bf16.msra.mxu0 0
        %4657 = vmatprep.subr.bf16.mxu0 0
        %4658 = vmatpush1.bf16.msra.mxu0 0
        %4659 = vmatprep.subr.bf16.mxu0 0
        %4660 = vmatpush1.bf16.msra.mxu0 0
        %4661 = vmatprep.mubr.bf16.mxu0 0
        %4662 = vmatmul.mubr.bf16.gmra.mrb[0].mxu0 %v4624
        %v4663 = vpop.f32.mrb[0].mxu0
        %v4664 = vadd.f32 0.0, %v4663
        %v4665 = vpop.f32.mrb[0].mxu0
        %v4666 = vpop.f32.mrb[0].mxu0
        %v4667 = vpop.f32.mrb[0].mxu0
        %4668 = vdwg.mxu0
        %4669 = vrot.lane.b32.xlu0 %v2687, 64
        %v4670 = vpop.permute.xlu0 %4669
        %v4672 = vsel %vm2045, %v4025, 0
        %v4675 = vsel %vm4049, %v4670, 0
        %4677 = vmatprep.subr.bf16.mxu0 0
        %4678 = vmatpush1.bf16.msra.mxu0 %v4675
        %4679 = vmatprep.subr.bf16.mxu0 0
        %4680 = vmatpush1.bf16.msra.mxu0 0
        %4681 = vmatprep.subr.bf16.mxu0 0
        %4682 = vmatpush1.bf16.msra.mxu0 0
        %4683 = vmatprep.subr.bf16.mxu0 0
        %4684 = vmatpush1.bf16.msra.mxu0 0
        %4685 = vmatprep.subr.bf16.mxu0 0
        %4686 = vmatpush1.bf16.msra.mxu0 0
        %4687 = vmatprep.subr.bf16.mxu0 0
        %4688 = vmatpush1.bf16.msra.mxu0 0
        %4689 = vmatprep.subr.bf16.mxu0 0
        %4690 = vmatpush1.bf16.msra.mxu0 0
        %4691 = vmatprep.subr.bf16.mxu0 0
        %4692 = vmatpush1.bf16.msra.mxu0 0
        %4693 = vmatprep.subr.bf16.mxu0 0
        %4694 = vmatpush1.bf16.msra.mxu0 0
        %4695 = vmatprep.subr.bf16.mxu0 0
        %4696 = vmatpush1.bf16.msra.mxu0 0
        %4697 = vmatprep.subr.bf16.mxu0 0
        %4698 = vmatpush1.bf16.msra.mxu0 0
        %4699 = vmatprep.subr.bf16.mxu0 0
        %4700 = vmatpush1.bf16.msra.mxu0 0
        %4701 = vmatprep.subr.bf16.mxu0 0
        %4702 = vmatpush1.bf16.msra.mxu0 0
        %4703 = vmatprep.subr.bf16.mxu0 0
        %4704 = vmatpush1.bf16.msra.mxu0 0
        %4705 = vmatprep.subr.bf16.mxu0 0
        %4706 = vmatpush1.bf16.msra.mxu0 0
        %4707 = vmatprep.subr.bf16.mxu0 0
        %4708 = vmatpush1.bf16.msra.mxu0 0
        %4709 = vmatprep.mubr.bf16.mxu0 0
        %4710 = vmatmul.mubr.bf16.gmra.mrb[0].mxu0 %v4672
        %v4711 = vpop.f32.mrb[0].mxu0
        %v4712 = vadd.f32 0.0, %v4711
        %v4713 = vpop.f32.mrb[0].mxu0
        %v4714 = vpop.f32.mrb[0].mxu0
        %v4715 = vpop.f32.mrb[0].mxu0
        %4716 = vdwg.mxu0
        %4717 = vrot.lane.b32.xlu0 %v2737, 64
        %v4718 = vpop.permute.xlu0 %4717
        %v4720 = vsel %vm2045, %v4026, 0
        %v4723 = vsel %vm4049, %v4718, 0
        %4725 = vmatprep.subr.bf16.mxu0 0
        %4726 = vmatpush1.bf16.msra.mxu0 %v4723
        %4727 = vmatprep.subr.bf16.mxu0 0
        %4728 = vmatpush1.bf16.msra.mxu0 0
        %4729 = vmatprep.subr.bf16.mxu0 0
        %4730 = vmatpush1.bf16.msra.mxu0 0
        %4731 = vmatprep.subr.bf16.mxu0 0
        %4732 = vmatpush1.bf16.msra.mxu0 0
        %4733 = vmatprep.subr.bf16.mxu0 0
        %4734 = vmatpush1.bf16.msra.mxu0 0
        %4735 = vmatprep.subr.bf16.mxu0 0
        %4736 = vmatpush1.bf16.msra.mxu0 0
        %4737 = vmatprep.subr.bf16.mxu0 0
        %4738 = vmatpush1.bf16.msra.mxu0 0
        %4739 = vmatprep.subr.bf16.mxu0 0
        %4740 = vmatpush1.bf16.msra.mxu0 0
        %4741 = vmatprep.subr.bf16.mxu0 0
        %4742 = vmatpush1.bf16.msra.mxu0 0
        %4743 = vmatprep.subr.bf16.mxu0 0
        %4744 = vmatpush1.bf16.msra.mxu0 0
        %4745 = vmatprep.subr.bf16.mxu0 0
        %4746 = vmatpush1.bf16.msra.mxu0 0
        %4747 = vmatprep.subr.bf16.mxu0 0
        %4748 = vmatpush1.bf16.msra.mxu0 0
        %4749 = vmatprep.subr.bf16.mxu0 0
        %4750 = vmatpush1.bf16.msra.mxu0 0
        %4751 = vmatprep.subr.bf16.mxu0 0
        %4752 = vmatpush1.bf16.msra.mxu0 0
        %4753 = vmatprep.subr.bf16.mxu0 0
        %4754 = vmatpush1.bf16.msra.mxu0 0
        %4755 = vmatprep.subr.bf16.mxu0 0
        %4756 = vmatpush1.bf16.msra.mxu0 0
        %4757 = vmatprep.mubr.bf16.mxu0 0
        %4758 = vmatmul.mubr.bf16.gmra.mrb[0].mxu0 %v4720
        %v4759 = vpop.f32.mrb[0].mxu0
        %v4760 = vadd.f32 0.0, %v4759
        %v4761 = vpop.f32.mrb[0].mxu0
        %v4762 = vpop.f32.mrb[0].mxu0
        %v4763 = vpop.f32.mrb[0].mxu0
        %4764 = vdwg.mxu0
        %4765 = vrot.lane.b32.xlu0 %v2787, 64
        %v4766 = vpop.permute.xlu0 %4765
        %v4768 = vsel %vm2045, %v4027, 0
        %v4771 = vsel %vm4049, %v4766, 0
        %4773 = vmatprep.subr.bf16.mxu0 0
        %4774 = vmatpush1.bf16.msra.mxu0 %v4771
        %4775 = vmatprep.subr.bf16.mxu0 0
        %4776 = vmatpush1.bf16.msra.mxu0 0
        %4777 = vmatprep.subr.bf16.mxu0 0
        %4778 = vmatpush1.bf16.msra.mxu0 0
        %4779 = vmatprep.subr.bf16.mxu0 0
        %4780 = vmatpush1.bf16.msra.mxu0 0
        %4781 = vmatprep.subr.bf16.mxu0 0
        %4782 = vmatpush1.bf16.msra.mxu0 0
        %4783 = vmatprep.subr.bf16.mxu0 0
        %4784 = vmatpush1.bf16.msra.mxu0 0
        %4785 = vmatprep.subr.bf16.mxu0 0
        %4786 = vmatpush1.bf16.msra.mxu0 0
        %4787 = vmatprep.subr.bf16.mxu0 0
        %4788 = vmatpush1.bf16.msra.mxu0 0
        %4789 = vmatprep.subr.bf16.mxu0 0
        %4790 = vmatpush1.bf16.msra.mxu0 0
        %4791 = vmatprep.subr.bf16.mxu0 0
        %4792 = vmatpush1.bf16.msra.mxu0 0
        %4793 = vmatprep.subr.bf16.mxu0 0
        %4794 = vmatpush1.bf16.msra.mxu0 0
        %4795 = vmatprep.subr.bf16.mxu0 0
        %4796 = vmatpush1.bf16.msra.mxu0 0
        %4797 = vmatprep.subr.bf16.mxu0 0
        %4798 = vmatpush1.bf16.msra.mxu0 0
        %4799 = vmatprep.subr.bf16.mxu0 0
        %4800 = vmatpush1.bf16.msra.mxu0 0
        %4801 = vmatprep.subr.bf16.mxu0 0
        %4802 = vmatpush1.bf16.msra.mxu0 0
        %4803 = vmatprep.subr.bf16.mxu0 0
        %4804 = vmatpush1.bf16.msra.mxu0 0
        %4805 = vmatprep.mubr.bf16.mxu0 0
        %4806 = vmatmul.mubr.bf16.gmra.mrb[0].mxu0 %v4768
        %v4807 = vpop.f32.mrb[0].mxu0
        %v4808 = vadd.f32 0.0, %v4807
        %v4809 = vpop.f32.mrb[0].mxu0
        %v4810 = vpop.f32.mrb[0].mxu0
        %v4811 = vpop.f32.mrb[0].mxu0
        %4812 = vdwg.mxu0
        %4813 = vrot.lane.b32.xlu0 %v1991, 64
        %v4814 = vpop.permute.xlu0 %4813
        %v4816 = vsel %vm2045, %v4028, 0
        %v4819 = vsel %vm4049, %v4814, 0
        %4821 = vmatprep.subr.bf16.mxu0 0
        %4822 = vmatpush1.bf16.msra.mxu0 %v4819
        %4823 = vmatprep.subr.bf16.mxu0 0
        %4824 = vmatpush1.bf16.msra.mxu0 0
        %4825 = vmatprep.subr.bf16.mxu0 0
        %4826 = vmatpush1.bf16.msra.mxu0 0
        %4827 = vmatprep.subr.bf16.mxu0 0
        %4828 = vmatpush1.bf16.msra.mxu0 0
        %4829 = vmatprep.subr.bf16.mxu0 0
        %4830 = vmatpush1.bf16.msra.mxu0 0
        %4831 = vmatprep.subr.bf16.mxu0 0
        %4832 = vmatpush1.bf16.msra.mxu0 0
        %4833 = vmatprep.subr.bf16.mxu0 0
        %4834 = vmatpush1.bf16.msra.mxu0 0
        %4835 = vmatprep.subr.bf16.mxu0 0
        %4836 = vmatpush1.bf16.msra.mxu0 0
        %4837 = vmatprep.subr.bf16.mxu0 0
        %4838 = vmatpush1.bf16.msra.mxu0 0
        %4839 = vmatprep.subr.bf16.mxu0 0
        %4840 = vmatpush1.bf16.msra.mxu0 0
        %4841 = vmatprep.subr.bf16.mxu0 0
        %4842 = vmatpush1.bf16.msra.mxu0 0
        %4843 = vmatprep.subr.bf16.mxu0 0
        %4844 = vmatpush1.bf16.msra.mxu0 0
        %4845 = vmatprep.subr.bf16.mxu0 0
        %4846 = vmatpush1.bf16.msra.mxu0 0
        %4847 = vmatprep.subr.bf16.mxu0 0
        %4848 = vmatpush1.bf16.msra.mxu0 0
        %4849 = vmatprep.subr.bf16.mxu0 0
        %4850 = vmatpush1.bf16.msra.mxu0 0
        %4851 = vmatprep.subr.bf16.mxu0 0
        %4852 = vmatpush1.bf16.msra.mxu0 0
        %4853 = vmatprep.mubr.bf16.mxu0 0
        %4854 = vmatmul.mubr.bf16.gmra.mrb[0].mxu0 %v4816
        %v4855 = vpop.f32.mrb[0].mxu0
        %v4856 = vadd.f32 0.0, %v4855
        %v4857 = vpop.f32.mrb[0].mxu0
        %v4858 = vpop.f32.mrb[0].mxu0
        %v4859 = vpop.f32.mrb[0].mxu0
        %4860 = vdwg.mxu0
        %4861 = vrot.lane.b32.xlu0 %v2885, 64
        %v4862 = vpop.permute.xlu0 %4861
        %v4864 = vsel %vm2045, %v4029, 0
        %v4867 = vsel %vm4049, %v4862, 0
        %4869 = vmatprep.subr.bf16.mxu0 0
        %4870 = vmatpush1.bf16.msra.mxu0 %v4867
        %4871 = vmatprep.subr.bf16.mxu0 0
        %4872 = vmatpush1.bf16.msra.mxu0 0
        %4873 = vmatprep.subr.bf16.mxu0 0
        %4874 = vmatpush1.bf16.msra.mxu0 0
        %4875 = vmatprep.subr.bf16.mxu0 0
        %4876 = vmatpush1.bf16.msra.mxu0 0
        %4877 = vmatprep.subr.bf16.mxu0 0
        %4878 = vmatpush1.bf16.msra.mxu0 0
        %4879 = vmatprep.subr.bf16.mxu0 0
        %4880 = vmatpush1.bf16.msra.mxu0 0
        %4881 = vmatprep.subr.bf16.mxu0 0
        %4882 = vmatpush1.bf16.msra.mxu0 0
        %4883 = vmatprep.subr.bf16.mxu0 0
        %4884 = vmatpush1.bf16.msra.mxu0 0
        %4885 = vmatprep.subr.bf16.mxu0 0
        %4886 = vmatpush1.bf16.msra.mxu0 0
        %4887 = vmatprep.subr.bf16.mxu0 0
        %4888 = vmatpush1.bf16.msra.mxu0 0
        %4889 = vmatprep.subr.bf16.mxu0 0
        %4890 = vmatpush1.bf16.msra.mxu0 0
        %4891 = vmatprep.subr.bf16.mxu0 0
        %4892 = vmatpush1.bf16.msra.mxu0 0
        %4893 = vmatprep.subr.bf16.mxu0 0
        %4894 = vmatpush1.bf16.msra.mxu0 0
        %4895 = vmatprep.subr.bf16.mxu0 0
        %4896 = vmatpush1.bf16.msra.mxu0 0
        %4897 = vmatprep.subr.bf16.mxu0 0
        %4898 = vmatpush1.bf16.msra.mxu0 0
        %4899 = vmatprep.subr.bf16.mxu0 0
        %4900 = vmatpush1.bf16.msra.mxu0 0
        %4901 = vmatprep.mubr.bf16.mxu0 0
        %4902 = vmatmul.mubr.bf16.gmra.mrb[0].mxu0 %v4864
        %v4903 = vpop.f32.mrb[0].mxu0
        %v4904 = vadd.f32 0.0, %v4903
        %v4905 = vpop.f32.mrb[0].mxu0
        %v4906 = vpop.f32.mrb[0].mxu0
        %v4907 = vpop.f32.mrb[0].mxu0
        %4908 = vdwg.mxu0
        %4909 = vrot.lane.b32.xlu0 %v2935, 64
        %v4910 = vpop.permute.xlu0 %4909
        %v4912 = vsel %vm2045, %v4030, 0
        %v4915 = vsel %vm4049, %v4910, 0
        %4917 = vmatprep.subr.bf16.mxu0 0
        %4918 = vmatpush1.bf16.msra.mxu0 %v4915
        %4919 = vmatprep.subr.bf16.mxu0 0
        %4920 = vmatpush1.bf16.msra.mxu0 0
        %4921 = vmatprep.subr.bf16.mxu0 0
        %4922 = vmatpush1.bf16.msra.mxu0 0
        %4923 = vmatprep.subr.bf16.mxu0 0
        %4924 = vmatpush1.bf16.msra.mxu0 0
        %4925 = vmatprep.subr.bf16.mxu0 0
        %4926 = vmatpush1.bf16.msra.mxu0 0
        %4927 = vmatprep.subr.bf16.mxu0 0
        %4928 = vmatpush1.bf16.msra.mxu0 0
        %4929 = vmatprep.subr.bf16.mxu0 0
        %4930 = vmatpush1.bf16.msra.mxu0 0
        %4931 = vmatprep.subr.bf16.mxu0 0
        %4932 = vmatpush1.bf16.msra.mxu0 0
        %4933 = vmatprep.subr.bf16.mxu0 0
        %4934 = vmatpush1.bf16.msra.mxu0 0
        %4935 = vmatprep.subr.bf16.mxu0 0
        %4936 = vmatpush1.bf16.msra.mxu0 0
        %4937 = vmatprep.subr.bf16.mxu0 0
        %4938 = vmatpush1.bf16.msra.mxu0 0
        %4939 = vmatprep.subr.bf16.mxu0 0
        %4940 = vmatpush1.bf16.msra.mxu0 0
        %4941 = vmatprep.subr.bf16.mxu0 0
        %4942 = vmatpush1.bf16.msra.mxu0 0
        %4943 = vmatprep.subr.bf16.mxu0 0
        %4944 = vmatpush1.bf16.msra.mxu0 0
        %4945 = vmatprep.subr.bf16.mxu0 0
        %4946 = vmatpush1.bf16.msra.mxu0 0
        %4947 = vmatprep.subr.bf16.mxu0 0
        %4948 = vmatpush1.bf16.msra.mxu0 0
        %4949 = vmatprep.mubr.bf16.mxu0 0
        %4950 = vmatmul.mubr.bf16.gmra.mrb[0].mxu0 %v4912
        %v4951 = vpop.f32.mrb[0].mxu0
        %v4952 = vadd.f32 0.0, %v4951
        %v4953 = vpop.f32.mrb[0].mxu0
        %v4954 = vpop.f32.mrb[0].mxu0
        %v4955 = vpop.f32.mrb[0].mxu0
        %4956 = vdwg.mxu0
        %4957 = vrot.lane.b32.xlu0 %v2985, 64
        %v4958 = vpop.permute.xlu0 %4957
        %v4960 = vsel %vm2045, %v4031, 0
        %v4963 = vsel %vm4049, %v4958, 0
        %4965 = vmatprep.subr.bf16.mxu0 0
        %4966 = vmatpush1.bf16.msra.mxu0 %v4963
        %4967 = vmatprep.subr.bf16.mxu0 0
        %4968 = vmatpush1.bf16.msra.mxu0 0
        %4969 = vmatprep.subr.bf16.mxu0 0
        %4970 = vmatpush1.bf16.msra.mxu0 0
        %4971 = vmatprep.subr.bf16.mxu0 0
        %4972 = vmatpush1.bf16.msra.mxu0 0
        %4973 = vmatprep.subr.bf16.mxu0 0
        %4974 = vmatpush1.bf16.msra.mxu0 0
        %4975 = vmatprep.subr.bf16.mxu0 0
        %4976 = vmatpush1.bf16.msra.mxu0 0
        %4977 = vmatprep.subr.bf16.mxu0 0
        %4978 = vmatpush1.bf16.msra.mxu0 0
        %4979 = vmatprep.subr.bf16.mxu0 0
        %4980 = vmatpush1.bf16.msra.mxu0 0
        %4981 = vmatprep.subr.bf16.mxu0 0
        %4982 = vmatpush1.bf16.msra.mxu0 0
        %4983 = vmatprep.subr.bf16.mxu0 0
        %4984 = vmatpush1.bf16.msra.mxu0 0
        %4985 = vmatprep.subr.bf16.mxu0 0
        %4986 = vmatpush1.bf16.msra.mxu0 0
        %4987 = vmatprep.subr.bf16.mxu0 0
        %4988 = vmatpush1.bf16.msra.mxu0 0
        %4989 = vmatprep.subr.bf16.mxu0 0
        %4990 = vmatpush1.bf16.msra.mxu0 0
        %4991 = vmatprep.subr.bf16.mxu0 0
        %4992 = vmatpush1.bf16.msra.mxu0 0
        %4993 = vmatprep.subr.bf16.mxu0 0
        %4994 = vmatpush1.bf16.msra.mxu0 0
        %4995 = vmatprep.subr.bf16.mxu0 0
        %4996 = vmatpush1.bf16.msra.mxu0 0
        %4997 = vmatprep.mubr.bf16.mxu0 0
        %4998 = vmatmul.mubr.bf16.gmra.mrb[0].mxu0 %v4960
        %v4999 = vpop.f32.mrb[0].mxu0
        %v5000 = vadd.f32 0.0, %v4999
        %v5001 = vpop.f32.mrb[0].mxu0
        %v5002 = vpop.f32.mrb[0].mxu0
        %v5003 = vpop.f32.mrb[0].mxu0
        %5004 = vdwg.mxu0
        %5005 = vrot.lane.b32.xlu0 %v1992, 64
        %v5006 = vpop.permute.xlu0 %5005
        %v5008 = vsel %vm2045, %v4032, 0
        %v5011 = vsel %vm4049, %v5006, 0
        %5013 = vmatprep.subr.bf16.mxu0 0
        %5014 = vmatpush1.bf16.msra.mxu0 %v5011
        %5015 = vmatprep.subr.bf16.mxu0 0
        %5016 = vmatpush1.bf16.msra.mxu0 0
        %5017 = vmatprep.subr.bf16.mxu0 0
        %5018 = vmatpush1.bf16.msra.mxu0 0
        %5019 = vmatprep.subr.bf16.mxu0 0
        %5020 = vmatpush1.bf16.msra.mxu0 0
        %5021 = vmatprep.subr.bf16.mxu0 0
        %5022 = vmatpush1.bf16.msra.mxu0 0
        %5023 = vmatprep.subr.bf16.mxu0 0
        %5024 = vmatpush1.bf16.msra.mxu0 0
        %5025 = vmatprep.subr.bf16.mxu0 0
        %5026 = vmatpush1.bf16.msra.mxu0 0
        %5027 = vmatprep.subr.bf16.mxu0 0
        %5028 = vmatpush1.bf16.msra.mxu0 0
        %5029 = vmatprep.subr.bf16.mxu0 0
        %5030 = vmatpush1.bf16.msra.mxu0 0
        %5031 = vmatprep.subr.bf16.mxu0 0
        %5032 = vmatpush1.bf16.msra.mxu0 0
        %5033 = vmatprep.subr.bf16.mxu0 0
        %5034 = vmatpush1.bf16.msra.mxu0 0
        %5035 = vmatprep.subr.bf16.mxu0 0
        %5036 = vmatpush1.bf16.msra.mxu0 0
        %5037 = vmatprep.subr.bf16.mxu0 0
        %5038 = vmatpush1.bf16.msra.mxu0 0
        %5039 = vmatprep.subr.bf16.mxu0 0
        %5040 = vmatpush1.bf16.msra.mxu0 0
        %5041 = vmatprep.subr.bf16.mxu0 0
        %5042 = vmatpush1.bf16.msra.mxu0 0
        %5043 = vmatprep.subr.bf16.mxu0 0
        %5044 = vmatpush1.bf16.msra.mxu0 0
        %5045 = vmatprep.mubr.bf16.mxu0 0
        %5046 = vmatmul.mubr.bf16.gmra.mrb[0].mxu0 %v5008
        %v5047 = vpop.f32.mrb[0].mxu0
        %v5048 = vadd.f32 0.0, %v5047
        %v5049 = vpop.f32.mrb[0].mxu0
        %v5050 = vpop.f32.mrb[0].mxu0
        %v5051 = vpop.f32.mrb[0].mxu0
        %5052 = vdwg.mxu0
        %5053 = vrot.lane.b32.xlu0 %v3083, 64
        %v5054 = vpop.permute.xlu0 %5053
        %v5056 = vsel %vm2045, %v4033, 0
        %v5059 = vsel %vm4049, %v5054, 0
        %5061 = vmatprep.subr.bf16.mxu0 0
        %5062 = vmatpush1.bf16.msra.mxu0 %v5059
        %5063 = vmatprep.subr.bf16.mxu0 0
        %5064 = vmatpush1.bf16.msra.mxu0 0
        %5065 = vmatprep.subr.bf16.mxu0 0
        %5066 = vmatpush1.bf16.msra.mxu0 0
        %5067 = vmatprep.subr.bf16.mxu0 0
        %5068 = vmatpush1.bf16.msra.mxu0 0
        %5069 = vmatprep.subr.bf16.mxu0 0
        %5070 = vmatpush1.bf16.msra.mxu0 0
        %5071 = vmatprep.subr.bf16.mxu0 0
        %5072 = vmatpush1.bf16.msra.mxu0 0
        %5073 = vmatprep.subr.bf16.mxu0 0
        %5074 = vmatpush1.bf16.msra.mxu0 0
        %5075 = vmatprep.subr.bf16.mxu0 0
        %5076 = vmatpush1.bf16.msra.mxu0 0
        %5077 = vmatprep.subr.bf16.mxu0 0
        %5078 = vmatpush1.bf16.msra.mxu0 0
        %5079 = vmatprep.subr.bf16.mxu0 0
        %5080 = vmatpush1.bf16.msra.mxu0 0
        %5081 = vmatprep.subr.bf16.mxu0 0
        %5082 = vmatpush1.bf16.msra.mxu0 0
        %5083 = vmatprep.subr.bf16.mxu0 0
        %5084 = vmatpush1.bf16.msra.mxu0 0
        %5085 = vmatprep.subr.bf16.mxu0 0
        %5086 = vmatpush1.bf16.msra.mxu0 0
        %5087 = vmatprep.subr.bf16.mxu0 0
        %5088 = vmatpush1.bf16.msra.mxu0 0
        %5089 = vmatprep.subr.bf16.mxu0 0
        %5090 = vmatpush1.bf16.msra.mxu0 0
        %5091 = vmatprep.subr.bf16.mxu0 0
        %5092 = vmatpush1.bf16.msra.mxu0 0
        %5093 = vmatprep.mubr.bf16.mxu0 0
        %5094 = vmatmul.mubr.bf16.gmra.mrb[0].mxu0 %v5056
        %v5095 = vpop.f32.mrb[0].mxu0
        %v5096 = vadd.f32 0.0, %v5095
        %v5097 = vpop.f32.mrb[0].mxu0
        %v5098 = vpop.f32.mrb[0].mxu0
        %v5099 = vpop.f32.mrb[0].mxu0
        %5100 = vdwg.mxu0
        %5101 = vrot.lane.b32.xlu0 %v3133, 64
        %v5102 = vpop.permute.xlu0 %5101
        %v5104 = vsel %vm2045, %v4034, 0
        %v5107 = vsel %vm4049, %v5102, 0
        %5109 = vmatprep.subr.bf16.mxu0 0
        %5110 = vmatpush1.bf16.msra.mxu0 %v5107
        %5111 = vmatprep.subr.bf16.mxu0 0
        %5112 = vmatpush1.bf16.msra.mxu0 0
        %5113 = vmatprep.subr.bf16.mxu0 0
        %5114 = vmatpush1.bf16.msra.mxu0 0
        %5115 = vmatprep.subr.bf16.mxu0 0
        %5116 = vmatpush1.bf16.msra.mxu0 0
        %5117 = vmatprep.subr.bf16.mxu0 0
        %5118 = vmatpush1.bf16.msra.mxu0 0
        %5119 = vmatprep.subr.bf16.mxu0 0
        %5120 = vmatpush1.bf16.msra.mxu0 0
        %5121 = vmatprep.subr.bf16.mxu0 0
        %5122 = vmatpush1.bf16.msra.mxu0 0
        %5123 = vmatprep.subr.bf16.mxu0 0
        %5124 = vmatpush1.bf16.msra.mxu0 0
        %5125 = vmatprep.subr.bf16.mxu0 0
        %5126 = vmatpush1.bf16.msra.mxu0 0
        %5127 = vmatprep.subr.bf16.mxu0 0
        %5128 = vmatpush1.bf16.msra.mxu0 0
        %5129 = vmatprep.subr.bf16.mxu0 0
        %5130 = vmatpush1.bf16.msra.mxu0 0
        %5131 = vmatprep.subr.bf16.mxu0 0
        %5132 = vmatpush1.bf16.msra.mxu0 0
        %5133 = vmatprep.subr.bf16.mxu0 0
        %5134 = vmatpush1.bf16.msra.mxu0 0
        %5135 = vmatprep.subr.bf16.mxu0 0
        %5136 = vmatpush1.bf16.msra.mxu0 0
        %5137 = vmatprep.subr.bf16.mxu0 0
        %5138 = vmatpush1.bf16.msra.mxu0 0
        %5139 = vmatprep.subr.bf16.mxu0 0
        %5140 = vmatpush1.bf16.msra.mxu0 0
        %5141 = vmatprep.mubr.bf16.mxu0 0
        %5142 = vmatmul.mubr.bf16.gmra.mrb[0].mxu0 %v5104
        %v5143 = vpop.f32.mrb[0].mxu0
        %v5144 = vadd.f32 0.0, %v5143
        %v5145 = vpop.f32.mrb[0].mxu0
        %v5146 = vpop.f32.mrb[0].mxu0
        %v5147 = vpop.f32.mrb[0].mxu0
        %5148 = vdwg.mxu0
        %5149 = vrot.lane.b32.xlu0 %v3183, 64
        %v5150 = vpop.permute.xlu0 %5149
        %v5152 = vsel %vm2045, %v4035, 0
        %v5155 = vsel %vm4049, %v5150, 0
        %5157 = vmatprep.subr.bf16.mxu0 0
        %5158 = vmatpush1.bf16.msra.mxu0 %v5155
        %5159 = vmatprep.subr.bf16.mxu0 0
        %5160 = vmatpush1.bf16.msra.mxu0 0
        %5161 = vmatprep.subr.bf16.mxu0 0
        %5162 = vmatpush1.bf16.msra.mxu0 0
        %5163 = vmatprep.subr.bf16.mxu0 0
        %5164 = vmatpush1.bf16.msra.mxu0 0
        %5165 = vmatprep.subr.bf16.mxu0 0
        %5166 = vmatpush1.bf16.msra.mxu0 0
        %5167 = vmatprep.subr.bf16.mxu0 0
        %5168 = vmatpush1.bf16.msra.mxu0 0
        %5169 = vmatprep.subr.bf16.mxu0 0
        %5170 = vmatpush1.bf16.msra.mxu0 0
        %5171 = vmatprep.subr.bf16.mxu0 0
        %5172 = vmatpush1.bf16.msra.mxu0 0
        %5173 = vmatprep.subr.bf16.mxu0 0
        %5174 = vmatpush1.bf16.msra.mxu0 0
        %5175 = vmatprep.subr.bf16.mxu0 0
        %5176 = vmatpush1.bf16.msra.mxu0 0
        %5177 = vmatprep.subr.bf16.mxu0 0
        %5178 = vmatpush1.bf16.msra.mxu0 0
        %5179 = vmatprep.subr.bf16.mxu0 0
        %5180 = vmatpush1.bf16.msra.mxu0 0
        %5181 = vmatprep.subr.bf16.mxu0 0
        %5182 = vmatpush1.bf16.msra.mxu0 0
        %5183 = vmatprep.subr.bf16.mxu0 0
        %5184 = vmatpush1.bf16.msra.mxu0 0
        %5185 = vmatprep.subr.bf16.mxu0 0
        %5186 = vmatpush1.bf16.msra.mxu0 0
        %5187 = vmatprep.subr.bf16.mxu0 0
        %5188 = vmatpush1.bf16.msra.mxu0 0
        %5189 = vmatprep.mubr.bf16.mxu0 0
        %5190 = vmatmul.mubr.bf16.gmra.mrb[0].mxu0 %v5152
        %v5191 = vpop.f32.mrb[0].mxu0
        %v5192 = vadd.f32 0.0, %v5191
        %v5193 = vpop.f32.mrb[0].mxu0
        %v5194 = vpop.f32.mrb[0].mxu0
        %v5195 = vpop.f32.mrb[0].mxu0
        %5196 = vdwg.mxu0
        %5197 = vrot.lane.b32.xlu0 %v1993, 64
        %v5198 = vpop.permute.xlu0 %5197
        %v5200 = vsel %vm2045, %v4036, 0
        %v5203 = vsel %vm4049, %v5198, 0
        %5205 = vmatprep.subr.bf16.mxu0 0
        %5206 = vmatpush1.bf16.msra.mxu0 %v5203
        %5207 = vmatprep.subr.bf16.mxu0 0
        %5208 = vmatpush1.bf16.msra.mxu0 0
        %5209 = vmatprep.subr.bf16.mxu0 0
        %5210 = vmatpush1.bf16.msra.mxu0 0
        %5211 = vmatprep.subr.bf16.mxu0 0
        %5212 = vmatpush1.bf16.msra.mxu0 0
        %5213 = vmatprep.subr.bf16.mxu0 0
        %5214 = vmatpush1.bf16.msra.mxu0 0
        %5215 = vmatprep.subr.bf16.mxu0 0
        %5216 = vmatpush1.bf16.msra.mxu0 0
        %5217 = vmatprep.subr.bf16.mxu0 0
        %5218 = vmatpush1.bf16.msra.mxu0 0
        %5219 = vmatprep.subr.bf16.mxu0 0
        %5220 = vmatpush1.bf16.msra.mxu0 0
        %5221 = vmatprep.subr.bf16.mxu0 0
        %5222 = vmatpush1.bf16.msra.mxu0 0
        %5223 = vmatprep.subr.bf16.mxu0 0
        %5224 = vmatpush1.bf16.msra.mxu0 0
        %5225 = vmatprep.subr.bf16.mxu0 0
        %5226 = vmatpush1.bf16.msra.mxu0 0
        %5227 = vmatprep.subr.bf16.mxu0 0
        %5228 = vmatpush1.bf16.msra.mxu0 0
        %5229 = vmatprep.subr.bf16.mxu0 0
        %5230 = vmatpush1.bf16.msra.mxu0 0
        %5231 = vmatprep.subr.bf16.mxu0 0
        %5232 = vmatpush1.bf16.msra.mxu0 0
        %5233 = vmatprep.subr.bf16.mxu0 0
        %5234 = vmatpush1.bf16.msra.mxu0 0
        %5235 = vmatprep.subr.bf16.mxu0 0
        %5236 = vmatpush1.bf16.msra.mxu0 0
        %5237 = vmatprep.mubr.bf16.mxu0 0
        %5238 = vmatmul.mubr.bf16.gmra.mrb[0].mxu0 %v5200
        %v5239 = vpop.f32.mrb[0].mxu0
        %v5240 = vadd.f32 0.0, %v5239
        %v5241 = vpop.f32.mrb[0].mxu0
        %v5242 = vpop.f32.mrb[0].mxu0
        %v5243 = vpop.f32.mrb[0].mxu0
        %5244 = vdwg.mxu0
        %5245 = vrot.lane.b32.xlu0 %v3281, 64
        %v5246 = vpop.permute.xlu0 %5245
        %v5248 = vsel %vm2045, %v4037, 0
        %v5251 = vsel %vm4049, %v5246, 0
        %5253 = vmatprep.subr.bf16.mxu0 0
        %5254 = vmatpush1.bf16.msra.mxu0 %v5251
        %5255 = vmatprep.subr.bf16.mxu0 0
        %5256 = vmatpush1.bf16.msra.mxu0 0
        %5257 = vmatprep.subr.bf16.mxu0 0
        %5258 = vmatpush1.bf16.msra.mxu0 0
        %5259 = vmatprep.subr.bf16.mxu0 0
        %5260 = vmatpush1.bf16.msra.mxu0 0
        %5261 = vmatprep.subr.bf16.mxu0 0
        %5262 = vmatpush1.bf16.msra.mxu0 0
        %5263 = vmatprep.subr.bf16.mxu0 0
        %5264 = vmatpush1.bf16.msra.mxu0 0
        %5265 = vmatprep.subr.bf16.mxu0 0
        %5266 = vmatpush1.bf16.msra.mxu0 0
        %5267 = vmatprep.subr.bf16.mxu0 0
        %5268 = vmatpush1.bf16.msra.mxu0 0
        %5269 = vmatprep.subr.bf16.mxu0 0
        %5270 = vmatpush1.bf16.msra.mxu0 0
        %5271 = vmatprep.subr.bf16.mxu0 0
        %5272 = vmatpush1.bf16.msra.mxu0 0
        %5273 = vmatprep.subr.bf16.mxu0 0
        %5274 = vmatpush1.bf16.msra.mxu0 0
        %5275 = vmatprep.subr.bf16.mxu0 0
        %5276 = vmatpush1.bf16.msra.mxu0 0
        %5277 = vmatprep.subr.bf16.mxu0 0
        %5278 = vmatpush1.bf16.msra.mxu0 0
        %5279 = vmatprep.subr.bf16.mxu0 0
        %5280 = vmatpush1.bf16.msra.mxu0 0
        %5281 = vmatprep.subr.bf16.mxu0 0
        %5282 = vmatpush1.bf16.msra.mxu0 0
        %5283 = vmatprep.subr.bf16.mxu0 0
        %5284 = vmatpush1.bf16.msra.mxu0 0
        %5285 = vmatprep.mubr.bf16.mxu0 0
        %5286 = vmatmul.mubr.bf16.gmra.mrb[0].mxu0 %v5248
        %v5287 = vpop.f32.mrb[0].mxu0
        %v5288 = vadd.f32 0.0, %v5287
        %v5289 = vpop.f32.mrb[0].mxu0
        %v5290 = vpop.f32.mrb[0].mxu0
        %v5291 = vpop.f32.mrb[0].mxu0
        %5292 = vdwg.mxu0
        %5293 = vrot.lane.b32.xlu0 %v3331, 64
        %v5294 = vpop.permute.xlu0 %5293
        %v5296 = vsel %vm2045, %v4038, 0
        %v5299 = vsel %vm4049, %v5294, 0
        %5301 = vmatprep.subr.bf16.mxu0 0
        %5302 = vmatpush1.bf16.msra.mxu0 %v5299
        %5303 = vmatprep.subr.bf16.mxu0 0
        %5304 = vmatpush1.bf16.msra.mxu0 0
        %5305 = vmatprep.subr.bf16.mxu0 0
        %5306 = vmatpush1.bf16.msra.mxu0 0
        %5307 = vmatprep.subr.bf16.mxu0 0
        %5308 = vmatpush1.bf16.msra.mxu0 0
        %5309 = vmatprep.subr.bf16.mxu0 0
        %5310 = vmatpush1.bf16.msra.mxu0 0
        %5311 = vmatprep.subr.bf16.mxu0 0
        %5312 = vmatpush1.bf16.msra.mxu0 0
        %5313 = vmatprep.subr.bf16.mxu0 0
        %5314 = vmatpush1.bf16.msra.mxu0 0
        %5315 = vmatprep.subr.bf16.mxu0 0
        %5316 = vmatpush1.bf16.msra.mxu0 0
        %5317 = vmatprep.subr.bf16.mxu0 0
        %5318 = vmatpush1.bf16.msra.mxu0 0
        %5319 = vmatprep.subr.bf16.mxu0 0
        %5320 = vmatpush1.bf16.msra.mxu0 0
        %5321 = vmatprep.subr.bf16.mxu0 0
        %5322 = vmatpush1.bf16.msra.mxu0 0
        %5323 = vmatprep.subr.bf16.mxu0 0
        %5324 = vmatpush1.bf16.msra.mxu0 0
        %5325 = vmatprep.subr.bf16.mxu0 0
        %5326 = vmatpush1.bf16.msra.mxu0 0
        %5327 = vmatprep.subr.bf16.mxu0 0
        %5328 = vmatpush1.bf16.msra.mxu0 0
        %5329 = vmatprep.subr.bf16.mxu0 0
        %5330 = vmatpush1.bf16.msra.mxu0 0
        %5331 = vmatprep.subr.bf16.mxu0 0
        %5332 = vmatpush1.bf16.msra.mxu0 0
        %5333 = vmatprep.mubr.bf16.mxu0 0
        %5334 = vmatmul.mubr.bf16.gmra.mrb[0].mxu0 %v5296
        %v5335 = vpop.f32.mrb[0].mxu0
        %v5336 = vadd.f32 0.0, %v5335
        %v5337 = vpop.f32.mrb[0].mxu0
        %v5338 = vpop.f32.mrb[0].mxu0
        %v5339 = vpop.f32.mrb[0].mxu0
        %5340 = vdwg.mxu0
        %5341 = vrot.lane.b32.xlu0 %v3381, 64
        %v5342 = vpop.permute.xlu0 %5341
        %v5344 = vsel %vm2045, %v4039, 0
        %v5347 = vsel %vm4049, %v5342, 0
        %5349 = vmatprep.subr.bf16.mxu0 0
        %5350 = vmatpush1.bf16.msra.mxu0 %v5347
        %5351 = vmatprep.subr.bf16.mxu0 0
        %5352 = vmatpush1.bf16.msra.mxu0 0
        %5353 = vmatprep.subr.bf16.mxu0 0
        %5354 = vmatpush1.bf16.msra.mxu0 0
        %5355 = vmatprep.subr.bf16.mxu0 0
        %5356 = vmatpush1.bf16.msra.mxu0 0
        %5357 = vmatprep.subr.bf16.mxu0 0
        %5358 = vmatpush1.bf16.msra.mxu0 0
        %5359 = vmatprep.subr.bf16.mxu0 0
        %5360 = vmatpush1.bf16.msra.mxu0 0
        %5361 = vmatprep.subr.bf16.mxu0 0
        %5362 = vmatpush1.bf16.msra.mxu0 0
        %5363 = vmatprep.subr.bf16.mxu0 0
        %5364 = vmatpush1.bf16.msra.mxu0 0
        %5365 = vmatprep.subr.bf16.mxu0 0
        %5366 = vmatpush1.bf16.msra.mxu0 0
        %5367 = vmatprep.subr.bf16.mxu0 0
        %5368 = vmatpush1.bf16.msra.mxu0 0
        %5369 = vmatprep.subr.bf16.mxu0 0
        %5370 = vmatpush1.bf16.msra.mxu0 0
        %5371 = vmatprep.subr.bf16.mxu0 0
        %5372 = vmatpush1.bf16.msra.mxu0 0
        %5373 = vmatprep.subr.bf16.mxu0 0
        %5374 = vmatpush1.bf16.msra.mxu0 0
        %5375 = vmatprep.subr.bf16.mxu0 0
        %5376 = vmatpush1.bf16.msra.mxu0 0
        %5377 = vmatprep.subr.bf16.mxu0 0
        %5378 = vmatpush1.bf16.msra.mxu0 0
        %5379 = vmatprep.subr.bf16.mxu0 0
        %5380 = vmatpush1.bf16.msra.mxu0 0
        %5381 = vmatprep.mubr.bf16.mxu0 0
        %5382 = vmatmul.mubr.bf16.gmra.mrb[0].mxu0 %v5344
        %v5383 = vpop.f32.mrb[0].mxu0
        %v5384 = vadd.f32 0.0, %v5383
        %v5385 = vpop.f32.mrb[0].mxu0
        %v5386 = vpop.f32.mrb[0].mxu0
        %v5387 = vpop.f32.mrb[0].mxu0
        %5388 = vdwg.mxu0
        %5389 = vrot.lane.b32.xlu0 %v1994, 64
        %v5390 = vpop.permute.xlu0 %5389
        %v5392 = vsel %vm2045, %v4040, 0
        %v5395 = vsel %vm4049, %v5390, 0
        %5397 = vmatprep.subr.bf16.mxu0 0
        %5398 = vmatpush1.bf16.msra.mxu0 %v5395
        %5399 = vmatprep.subr.bf16.mxu0 0
        %5400 = vmatpush1.bf16.msra.mxu0 0
        %5401 = vmatprep.subr.bf16.mxu0 0
        %5402 = vmatpush1.bf16.msra.mxu0 0
        %5403 = vmatprep.subr.bf16.mxu0 0
        %5404 = vmatpush1.bf16.msra.mxu0 0
        %5405 = vmatprep.subr.bf16.mxu0 0
        %5406 = vmatpush1.bf16.msra.mxu0 0
        %5407 = vmatprep.subr.bf16.mxu0 0
        %5408 = vmatpush1.bf16.msra.mxu0 0
        %5409 = vmatprep.subr.bf16.mxu0 0
        %5410 = vmatpush1.bf16.msra.mxu0 0
        %5411 = vmatprep.subr.bf16.mxu0 0
        %5412 = vmatpush1.bf16.msra.mxu0 0
        %5413 = vmatprep.subr.bf16.mxu0 0
        %5414 = vmatpush1.bf16.msra.mxu0 0
        %5415 = vmatprep.subr.bf16.mxu0 0
        %5416 = vmatpush1.bf16.msra.mxu0 0
        %5417 = vmatprep.subr.bf16.mxu0 0
        %5418 = vmatpush1.bf16.msra.mxu0 0
        %5419 = vmatprep.subr.bf16.mxu0 0
        %5420 = vmatpush1.bf16.msra.mxu0 0
        %5421 = vmatprep.subr.bf16.mxu0 0
        %5422 = vmatpush1.bf16.msra.mxu0 0
        %5423 = vmatprep.subr.bf16.mxu0 0
        %5424 = vmatpush1.bf16.msra.mxu0 0
        %5425 = vmatprep.subr.bf16.mxu0 0
        %5426 = vmatpush1.bf16.msra.mxu0 0
        %5427 = vmatprep.subr.bf16.mxu0 0
        %5428 = vmatpush1.bf16.msra.mxu0 0
        %5429 = vmatprep.mubr.bf16.mxu0 0
        %5430 = vmatmul.mubr.bf16.gmra.mrb[0].mxu0 %v5392
        %v5431 = vpop.f32.mrb[0].mxu0
        %v5432 = vadd.f32 0.0, %v5431
        %v5433 = vpop.f32.mrb[0].mxu0
        %v5434 = vpop.f32.mrb[0].mxu0
        %v5435 = vpop.f32.mrb[0].mxu0
        %5436 = vdwg.mxu0
        %5437 = vrot.lane.b32.xlu0 %v3479, 64
        %v5438 = vpop.permute.xlu0 %5437
        %v5440 = vsel %vm2045, %v4041, 0
        %v5443 = vsel %vm4049, %v5438, 0
        %5445 = vmatprep.subr.bf16.mxu0 0
        %5446 = vmatpush1.bf16.msra.mxu0 %v5443
        %5447 = vmatprep.subr.bf16.mxu0 0
        %5448 = vmatpush1.bf16.msra.mxu0 0
        %5449 = vmatprep.subr.bf16.mxu0 0
        %5450 = vmatpush1.bf16.msra.mxu0 0
        %5451 = vmatprep.subr.bf16.mxu0 0
        %5452 = vmatpush1.bf16.msra.mxu0 0
        %5453 = vmatprep.subr.bf16.mxu0 0
        %5454 = vmatpush1.bf16.msra.mxu0 0
        %5455 = vmatprep.subr.bf16.mxu0 0
        %5456 = vmatpush1.bf16.msra.mxu0 0
        %5457 = vmatprep.subr.bf16.mxu0 0
        %5458 = vmatpush1.bf16.msra.mxu0 0
        %5459 = vmatprep.subr.bf16.mxu0 0
        %5460 = vmatpush1.bf16.msra.mxu0 0
        %5461 = vmatprep.subr.bf16.mxu0 0
        %5462 = vmatpush1.bf16.msra.mxu0 0
        %5463 = vmatprep.subr.bf16.mxu0 0
        %5464 = vmatpush1.bf16.msra.mxu0 0
        %5465 = vmatprep.subr.bf16.mxu0 0
        %5466 = vmatpush1.bf16.msra.mxu0 0
        %5467 = vmatprep.subr.bf16.mxu0 0
        %5468 = vmatpush1.bf16.msra.mxu0 0
        %5469 = vmatprep.subr.bf16.mxu0 0
        %5470 = vmatpush1.bf16.msra.mxu0 0
        %5471 = vmatprep.subr.bf16.mxu0 0
        %5472 = vmatpush1.bf16.msra.mxu0 0
        %5473 = vmatprep.subr.bf16.mxu0 0
        %5474 = vmatpush1.bf16.msra.mxu0 0
        %5475 = vmatprep.subr.bf16.mxu0 0
        %5476 = vmatpush1.bf16.msra.mxu0 0
        %5477 = vmatprep.mubr.bf16.mxu0 0
        %5478 = vmatmul.mubr.bf16.gmra.mrb[0].mxu0 %v5440
        %v5479 = vpop.f32.mrb[0].mxu0
        %v5480 = vadd.f32 0.0, %v5479
        %v5481 = vpop.f32.mrb[0].mxu0
        %v5482 = vpop.f32.mrb[0].mxu0
        %v5483 = vpop.f32.mrb[0].mxu0
        %5484 = vdwg.mxu0
        %5485 = vrot.lane.b32.xlu0 %v3529, 64
        %v5486 = vpop.permute.xlu0 %5485
        %v5488 = vsel %vm2045, %v4042, 0
        %v5491 = vsel %vm4049, %v5486, 0
        %5493 = vmatprep.subr.bf16.mxu0 0
        %5494 = vmatpush1.bf16.msra.mxu0 %v5491
        %5495 = vmatprep.subr.bf16.mxu0 0
        %5496 = vmatpush1.bf16.msra.mxu0 0
        %5497 = vmatprep.subr.bf16.mxu0 0
        %5498 = vmatpush1.bf16.msra.mxu0 0
        %5499 = vmatprep.subr.bf16.mxu0 0
        %5500 = vmatpush1.bf16.msra.mxu0 0
        %5501 = vmatprep.subr.bf16.mxu0 0
        %5502 = vmatpush1.bf16.msra.mxu0 0
        %5503 = vmatprep.subr.bf16.mxu0 0
        %5504 = vmatpush1.bf16.msra.mxu0 0
        %5505 = vmatprep.subr.bf16.mxu0 0
        %5506 = vmatpush1.bf16.msra.mxu0 0
        %5507 = vmatprep.subr.bf16.mxu0 0
        %5508 = vmatpush1.bf16.msra.mxu0 0
        %5509 = vmatprep.subr.bf16.mxu0 0
        %5510 = vmatpush1.bf16.msra.mxu0 0
        %5511 = vmatprep.subr.bf16.mxu0 0
        %5512 = vmatpush1.bf16.msra.mxu0 0
        %5513 = vmatprep.subr.bf16.mxu0 0
        %5514 = vmatpush1.bf16.msra.mxu0 0
        %5515 = vmatprep.subr.bf16.mxu0 0
        %5516 = vmatpush1.bf16.msra.mxu0 0
        %5517 = vmatprep.subr.bf16.mxu0 0
        %5518 = vmatpush1.bf16.msra.mxu0 0
        %5519 = vmatprep.subr.bf16.mxu0 0
        %5520 = vmatpush1.bf16.msra.mxu0 0
        %5521 = vmatprep.subr.bf16.mxu0 0
        %5522 = vmatpush1.bf16.msra.mxu0 0
        %5523 = vmatprep.subr.bf16.mxu0 0
        %5524 = vmatpush1.bf16.msra.mxu0 0
        %5525 = vmatprep.mubr.bf16.mxu0 0
        %5526 = vmatmul.mubr.bf16.gmra.mrb[0].mxu0 %v5488
        %v5527 = vpop.f32.mrb[0].mxu0
        %v5528 = vadd.f32 0.0, %v5527
        %v5529 = vpop.f32.mrb[0].mxu0
        %v5530 = vpop.f32.mrb[0].mxu0
        %v5531 = vpop.f32.mrb[0].mxu0
        %5532 = vdwg.mxu0
        %5533 = vrot.lane.b32.xlu0 %v3579, 64
        %v5534 = vpop.permute.xlu0 %5533
        %v5536 = vsel %vm2045, %v4043, 0
        %v5539 = vsel %vm4049, %v5534, 0
        %5541 = vmatprep.subr.bf16.mxu0 0
        %5542 = vmatpush1.bf16.msra.mxu0 %v5539
        %5543 = vmatprep.subr.bf16.mxu0 0
        %5544 = vmatpush1.bf16.msra.mxu0 0
        %5545 = vmatprep.subr.bf16.mxu0 0
        %5546 = vmatpush1.bf16.msra.mxu0 0
        %5547 = vmatprep.subr.bf16.mxu0 0
        %5548 = vmatpush1.bf16.msra.mxu0 0
        %5549 = vmatprep.subr.bf16.mxu0 0
        %5550 = vmatpush1.bf16.msra.mxu0 0
        %5551 = vmatprep.subr.bf16.mxu0 0
        %5552 = vmatpush1.bf16.msra.mxu0 0
        %5553 = vmatprep.subr.bf16.mxu0 0
        %5554 = vmatpush1.bf16.msra.mxu0 0
        %5555 = vmatprep.subr.bf16.mxu0 0
        %5556 = vmatpush1.bf16.msra.mxu0 0
        %5557 = vmatprep.subr.bf16.mxu0 0
        %5558 = vmatpush1.bf16.msra.mxu0 0
        %5559 = vmatprep.subr.bf16.mxu0 0
        %5560 = vmatpush1.bf16.msra.mxu0 0
        %5561 = vmatprep.subr.bf16.mxu0 0
        %5562 = vmatpush1.bf16.msra.mxu0 0
        %5563 = vmatprep.subr.bf16.mxu0 0
        %5564 = vmatpush1.bf16.msra.mxu0 0
        %5565 = vmatprep.subr.bf16.mxu0 0
        %5566 = vmatpush1.bf16.msra.mxu0 0
        %5567 = vmatprep.subr.bf16.mxu0 0
        %5568 = vmatpush1.bf16.msra.mxu0 0
        %5569 = vmatprep.subr.bf16.mxu0 0
        %5570 = vmatpush1.bf16.msra.mxu0 0
        %5571 = vmatprep.subr.bf16.mxu0 0
        %5572 = vmatpush1.bf16.msra.mxu0 0
        %5573 = vmatprep.mubr.bf16.mxu0 0
        %5574 = vmatmul.mubr.bf16.gmra.mrb[0].mxu0 %v5536
        %v5575 = vpop.f32.mrb[0].mxu0
        %v5576 = vadd.f32 0.0, %v5575
        %v5577 = vpop.f32.mrb[0].mxu0
        %v5578 = vpop.f32.mrb[0].mxu0
        %v5579 = vpop.f32.mrb[0].mxu0
        %5580 = vdwg.mxu0
        %5589 = vrot.lane.b32.xlu0 %v4136, 8
        %v5590 = vpop.permute.xlu0 %5589
        %5591 = vrot.lane.b32.xlu0 %v4328, 8
        %v5592 = vpop.permute.xlu0 %5591
        %5593 = vrot.lane.b32.xlu0 %v4520, 8
        %v5594 = vpop.permute.xlu0 %5593
        %5595 = vrot.lane.b32.xlu0 %v4712, 8
        %v5596 = vpop.permute.xlu0 %5595
        %5597 = vrot.lane.b32.xlu0 %v4904, 8
        %v5598 = vpop.permute.xlu0 %5597
        %5599 = vrot.lane.b32.xlu0 %v5096, 8
        %v5600 = vpop.permute.xlu0 %5599
        %5601 = vrot.lane.b32.xlu0 %v5288, 8
        %v5602 = vpop.permute.xlu0 %5601
        %5603 = vrot.lane.b32.xlu0 %v5480, 8
        %v5604 = vpop.permute.xlu0 %5603
        %5621 = vrot.lane.b32.xlu0 %v4184, 16
        %v5622 = vpop.permute.xlu0 %5621
        %5623 = vrot.lane.b32.xlu0 %v4376, 16
        %v5624 = vpop.permute.xlu0 %5623
        %5625 = vrot.lane.b32.xlu0 %v4568, 16
        %v5626 = vpop.permute.xlu0 %5625
        %5627 = vrot.lane.b32.xlu0 %v4760, 16
        %v5628 = vpop.permute.xlu0 %5627
        %5629 = vrot.lane.b32.xlu0 %v4952, 16
        %v5630 = vpop.permute.xlu0 %5629
        %5631 = vrot.lane.b32.xlu0 %v5144, 16
        %v5632 = vpop.permute.xlu0 %5631
        %5633 = vrot.lane.b32.xlu0 %v5336, 16
        %v5634 = vpop.permute.xlu0 %5633
        %5635 = vrot.lane.b32.xlu0 %v5528, 16
        %v5636 = vpop.permute.xlu0 %5635
        %5653 = vrot.lane.b32.xlu0 %v4232, 24
        %v5654 = vpop.permute.xlu0 %5653
        %5655 = vrot.lane.b32.xlu0 %v4424, 24
        %v5656 = vpop.permute.xlu0 %5655
        %5657 = vrot.lane.b32.xlu0 %v4616, 24
        %v5658 = vpop.permute.xlu0 %5657
        %5659 = vrot.lane.b32.xlu0 %v4808, 24
        %v5660 = vpop.permute.xlu0 %5659
        %5661 = vrot.lane.b32.xlu0 %v5000, 24
        %v5662 = vpop.permute.xlu0 %5661
        %5663 = vrot.lane.b32.xlu0 %v5192, 24
        %v5664 = vpop.permute.xlu0 %5663
        %5665 = vrot.lane.b32.xlu0 %v5384, 24
        %v5666 = vpop.permute.xlu0 %5665
        %5667 = vrot.lane.b32.xlu0 %v5576, 24
        %v5668 = vpop.permute.xlu0 %5667
        %v5677 = vsel %vm2045, %v4088, %v5590
        %v5678 = vsel %vm2045, %v4280, %v5592
        %v5679 = vsel %vm2045, %v4472, %v5594
        %v5680 = vsel %vm2045, %v4664, %v5596
        %v5681 = vsel %vm2045, %v4856, %v5598
        %v5682 = vsel %vm2045, %v5048, %v5600
        %v5683 = vsel %vm2045, %v5240, %v5602
        %v5684 = vsel %vm2045, %v5432, %v5604
        %vm5685 = vcmask 130048
        %v5686 = vsel %vm5685, %v5677, %v5622
        %v5687 = vsel %vm5685, %v5678, %v5624
        %v5688 = vsel %vm5685, %v5679, %v5626
        %v5689 = vsel %vm5685, %v5680, %v5628
        %v5690 = vsel %vm5685, %v5681, %v5630
        %v5691 = vsel %vm5685, %v5682, %v5632
        %v5692 = vsel %vm5685, %v5683, %v5634
        %v5693 = vsel %vm5685, %v5684, %v5636
        %vm5694 = vcmask 195584
        %v5695 = vsel %vm5694, %v5686, %v5654
        %v5696 = vsel %vm5694, %v5687, %v5656
        %v5697 = vsel %vm5694, %v5688, %v5658
        %v5698 = vsel %vm5694, %v5689, %v5660
        %v5699 = vsel %vm5694, %v5690, %v5662
        %v5700 = vsel %vm5694, %v5691, %v5664
        %v5701 = vsel %vm5694, %v5692, %v5666
        %v5702 = vsel %vm5694, %v5693, %v5668
        %v5703 = vpack.c.bf16 %v5696, %v5695
        %v5704 = vpack.c.bf16 %v5698, %v5697
        %v5705 = vpack.c.bf16 %v5700, %v5699
        %v5706 = vpack.c.bf16 %v5702, %v5701
        %v5707 = vld [vmem:[%s5] sm:$0xf]
        %v5708 = vld [vmem:[%s5 + $0x4] sm:$0xf]
        %v5709 = vld [vmem:[%s5 + $0x8] sm:$0xf]
        %v5710 = vld [vmem:[%s5 + $0xc] sm:$0xf]
        %v5711 = vld [vmem:[%s6] sm:$0x1]
        %v5713 = vlaneseq
        %v5714 = vshrl.u32 %v5713, 7
        %v5715 = vsub.s32 0, %v5714
        %v5716 = vrot.slane %v5711, %v5715
        %v5722 = vunpack.c.l.b16 %v5707
        %v5723 = vunpack.c.l.b16 %v5708
        %v5724 = vunpack.c.l.b16 %v5709
        %v5725 = vunpack.c.l.b16 %v5710
        %v5726 = vpack.c.b16 %v5723, %v5722
        %v5727 = vpack.c.b16 %v5725, %v5724
        %v5731 = vsel %vm709, %v5703, 0
        %v5734 = vsel %vm709, %v5704, 0
        %v5737 = vsel %vm709, %v5705, 0
        %v5740 = vsel %vm709, %v5706, 0
        %5742 = vmatprep.subr.bf16.mxu0 0
        %5743 = vmatpush1.bf16.msra.mxu0 %v5726
        %5744 = vmatprep.subr.bf16.mxu0 0
        %5745 = vmatpush1.bf16.msra.mxu0 %v5727
        %5746 = vmatprep.subr.bf16.mxu0 0
        %5747 = vmatpush1.bf16.msra.mxu0 0
        %5748 = vmatprep.subr.bf16.mxu0 0
        %5749 = vmatpush1.bf16.msra.mxu0 0
        %5750 = vmatprep.subr.bf16.mxu0 0
        %5751 = vmatpush1.bf16.msra.mxu0 0
        %5752 = vmatprep.subr.bf16.mxu0 0
        %5753 = vmatpush1.bf16.msra.mxu0 0
        %5754 = vmatprep.subr.bf16.mxu0 0
        %5755 = vmatpush1.bf16.msra.mxu0 0
        %5756 = vmatprep.subr.bf16.mxu0 0
        %5757 = vmatpush1.bf16.msra.mxu0 0
        %5758 = vmatprep.subr.bf16.mxu0 0
        %5759 = vmatpush1.bf16.msra.mxu0 0
        %5760 = vmatprep.subr.bf16.mxu0 0
        %5761 = vmatpush1.bf16.msra.mxu0 0
        %5762 = vmatprep.subr.bf16.mxu0 0
        %5763 = vmatpush1.bf16.msra.mxu0 0
        %5764 = vmatprep.subr.bf16.mxu0 0
        %5765 = vmatpush1.bf16.msra.mxu0 0
        %5766 = vmatprep.subr.bf16.mxu0 0
        %5767 = vmatpush1.bf16.msra.mxu0 0
        %5768 = vmatprep.subr.bf16.mxu0 0
        %5769 = vmatpush1.bf16.msra.mxu0 0
        %5770 = vmatprep.subr.bf16.mxu0 0
        %5771 = vmatpush1.bf16.msra.mxu0 0
        %5772 = vmatprep.subr.bf16.mxu0 0
        %5773 = vmatpush1.bf16.msra.mxu0 0
        %5774 = vmatprep.mubr.bf16.mxu0 0
        %5775 = vmatmul.mubr.bf16.gmra.mrb[0].mxu0 %v5731
        %v5776 = vpop.f32.mrb[0].mxu0
        %v5777 = vadd.f32 %v5716, %v5776
        %v5778 = vpop.f32.mrb[0].mxu0
        %v5779 = vpop.f32.mrb[0].mxu0
        %v5780 = vadd.f32 %v5716, %v5779
        %v5781 = vpop.f32.mrb[0].mxu0
        %5782 = vmatprep.mubr.bf16.mxu0 0
        %5783 = vmatmul.mubr.bf16.gmra.mrb[0].mxu0 %v5734
        %v5784 = vpop.f32.mrb[0].mxu0
        %v5785 = vadd.f32 %v5716, %v5784
        %v5786 = vpop.f32.mrb[0].mxu0
        %v5787 = vpop.f32.mrb[0].mxu0
        %v5788 = vadd.f32 %v5716, %v5787
        %v5789 = vpop.f32.mrb[0].mxu0
        %5790 = vmatprep.mubr.bf16.mxu0 0
        %5791 = vmatmul.mubr.bf16.gmra.mrb[0].mxu0 %v5737
        %v5792 = vpop.f32.mrb[0].mxu0
        %v5793 = vadd.f32 %v5716, %v5792
        %v5794 = vpop.f32.mrb[0].mxu0
        %v5795 = vpop.f32.mrb[0].mxu0
        %v5796 = vadd.f32 %v5716, %v5795
        %v5797 = vpop.f32.mrb[0].mxu0
        %5798 = vmatprep.mubr.bf16.mxu0 0
        %5799 = vmatmul.mubr.bf16.gmra.mrb[0].mxu0 %v5740
        %v5800 = vpop.f32.mrb[0].mxu0
        %v5801 = vadd.f32 %v5716, %v5800
        %v5802 = vpop.f32.mrb[0].mxu0
        %v5803 = vpop.f32.mrb[0].mxu0
        %v5804 = vadd.f32 %v5716, %v5803
        %v5805 = vpop.f32.mrb[0].mxu0
        %5806 = vdwg.mxu0
        %v5815 = vrot.slane %v5777, 1
        %v5816 = vrot.slane %v5777, 2
        %v5817 = vrot.slane %v5777, 3
        %v5818 = vrot.slane %v5777, 4
        %v5819 = vrot.slane %v5777, 5
        %v5820 = vrot.slane %v5777, 6
        %v5821 = vrot.slane %v5777, 7
        %v5822 = vrot.slane %v5780, 1
        %v5823 = vrot.slane %v5780, 2
        %v5824 = vrot.slane %v5780, 3
        %v5825 = vrot.slane %v5780, 4
        %v5826 = vrot.slane %v5780, 5
        %v5827 = vrot.slane %v5780, 6
        %v5828 = vrot.slane %v5780, 7
        %v5829 = vrot.slane %v5785, 1
        %v5830 = vrot.slane %v5785, 2
        %v5831 = vrot.slane %v5785, 3
        %v5832 = vrot.slane %v5785, 4
        %v5833 = vrot.slane %v5785, 5
        %v5834 = vrot.slane %v5785, 6
        %v5835 = vrot.slane %v5785, 7
        %v5836 = vrot.slane %v5788, 1
        %v5837 = vrot.slane %v5788, 2
        %v5838 = vrot.slane %v5788, 3
        %v5839 = vrot.slane %v5788, 4
        %v5840 = vrot.slane %v5788, 5
        %v5841 = vrot.slane %v5788, 6
        %v5842 = vrot.slane %v5788, 7
        %v5843 = vrot.slane %v5793, 1
        %v5844 = vrot.slane %v5793, 2
        %v5845 = vrot.slane %v5793, 3
        %v5846 = vrot.slane %v5793, 4
        %v5847 = vrot.slane %v5793, 5
        %v5848 = vrot.slane %v5793, 6
        %v5849 = vrot.slane %v5793, 7
        %v5850 = vrot.slane %v5796, 1
        %v5851 = vrot.slane %v5796, 2
        %v5852 = vrot.slane %v5796, 3
        %v5853 = vrot.slane %v5796, 4
        %v5854 = vrot.slane %v5796, 5
        %v5855 = vrot.slane %v5796, 6
        %v5856 = vrot.slane %v5796, 7
        %v5857 = vrot.slane %v5801, 1
        %v5858 = vrot.slane %v5801, 2
        %v5859 = vrot.slane %v5801, 3
        %v5860 = vrot.slane %v5801, 4
        %v5861 = vrot.slane %v5801, 5
        %v5862 = vrot.slane %v5801, 6
        %v5863 = vrot.slane %v5801, 7
        %v5864 = vrot.slane %v5804, 1
        %v5865 = vrot.slane %v5804, 2
        %v5866 = vrot.slane %v5804, 3
        %v5867 = vrot.slane %v5804, 4
        %v5868 = vrot.slane %v5804, 5
        %v5869 = vrot.slane %v5804, 6
        %v5870 = vrot.slane %v5804, 7
        %v5935 = vadd.f32 %v459, %v5777
        %v5936 = vadd.f32 %v460, %v5815
        %v5937 = vadd.f32 %v461, %v5816
        %v5938 = vadd.f32 %v462, %v5817
        %v5939 = vadd.f32 %v463, %v5818
        %v5940 = vadd.f32 %v464, %v5819
        %v5941 = vadd.f32 %v465, %v5820
        %v5942 = vadd.f32 %v466, %v5821
        %v5943 = vadd.f32 %v475, %v5780
        %v5944 = vadd.f32 %v476, %v5822
        %v5945 = vadd.f32 %v477, %v5823
        %v5946 = vadd.f32 %v478, %v5824
        %v5947 = vadd.f32 %v479, %v5825
        %v5948 = vadd.f32 %v480, %v5826
        %v5949 = vadd.f32 %v481, %v5827
        %v5950 = vadd.f32 %v482, %v5828
        %v5951 = vadd.f32 %v491, %v5785
        %v5952 = vadd.f32 %v492, %v5829
        %v5953 = vadd.f32 %v493, %v5830
        %v5954 = vadd.f32 %v494, %v5831
        %v5955 = vadd.f32 %v495, %v5832
        %v5956 = vadd.f32 %v496, %v5833
        %v5957 = vadd.f32 %v497, %v5834
        %v5958 = vadd.f32 %v498, %v5835
        %v5959 = vadd.f32 %v507, %v5788
        %v5960 = vadd.f32 %v508, %v5836
        %v5961 = vadd.f32 %v509, %v5837
        %v5962 = vadd.f32 %v510, %v5838
        %v5963 = vadd.f32 %v511, %v5839
        %v5964 = vadd.f32 %v512, %v5840
        %v5965 = vadd.f32 %v513, %v5841
        %v5966 = vadd.f32 %v514, %v5842
        %v5967 = vadd.f32 %v523, %v5793
        %v5968 = vadd.f32 %v524, %v5843
        %v5969 = vadd.f32 %v525, %v5844
        %v5970 = vadd.f32 %v526, %v5845
        %v5971 = vadd.f32 %v527, %v5846
        %v5972 = vadd.f32 %v528, %v5847
        %v5973 = vadd.f32 %v529, %v5848
        %v5974 = vadd.f32 %v530, %v5849
        %v5975 = vadd.f32 %v539, %v5796
        %v5976 = vadd.f32 %v540, %v5850
        %v5977 = vadd.f32 %v541, %v5851
        %v5978 = vadd.f32 %v542, %v5852
        %v5979 = vadd.f32 %v543, %v5853
        %v5980 = vadd.f32 %v544, %v5854
        %v5981 = vadd.f32 %v545, %v5855
        %v5982 = vadd.f32 %v546, %v5856
        %v5983 = vadd.f32 %v555, %v5801
        %v5984 = vadd.f32 %v556, %v5857
        %v5985 = vadd.f32 %v557, %v5858
        %v5986 = vadd.f32 %v558, %v5859
        %v5987 = vadd.f32 %v559, %v5860
        %v5988 = vadd.f32 %v560, %v5861
        %v5989 = vadd.f32 %v561, %v5862
        %v5990 = vadd.f32 %v562, %v5863
        %v5991 = vadd.f32 %v571, %v5804
        %v5992 = vadd.f32 %v572, %v5864
        %v5993 = vadd.f32 %v573, %v5865
        %v5994 = vadd.f32 %v574, %v5866
        %v5995 = vadd.f32 %v575, %v5867
        %v5996 = vadd.f32 %v576, %v5868
        %v5997 = vadd.f32 %v577, %v5869
        %v5998 = vadd.f32 %v578, %v5870
        %v5999 = vld [vmem:[%s7] sm:$0x1]
        %v6000 = vld [vmem:[%s8] sm:$0x1]
        %v6065 = vrot.slane %v5936, 7
        %v6066 = vsel %vm589, %v6065, %v5935
        %v6067 = vrot.slane %v5937, 6
        %v6068 = vsel %vm591, %v6067, %v6066
        %v6069 = vrot.slane %v5938, 5
        %v6070 = vsel %vm593, %v6069, %v6068
        %v6071 = vrot.slane %v5939, 4
        %v6072 = vsel %vm595, %v6071, %v6070
        %v6073 = vrot.slane %v5940, 3
        %v6074 = vsel %vm597, %v6073, %v6072
        %v6075 = vrot.slane %v5941, 2
        %v6076 = vsel %vm599, %v6075, %v6074
        %v6077 = vrot.slane %v5942, 1
        %v6078 = vsel %vm601, %v6077, %v6076
        %v6079 = vrot.slane %v5944, 7
        %v6080 = vsel %vm589, %v6079, %v5943
        %v6081 = vrot.slane %v5945, 6
        %v6082 = vsel %vm591, %v6081, %v6080
        %v6083 = vrot.slane %v5946, 5
        %v6084 = vsel %vm593, %v6083, %v6082
        %v6085 = vrot.slane %v5947, 4
        %v6086 = vsel %vm595, %v6085, %v6084
        %v6087 = vrot.slane %v5948, 3
        %v6088 = vsel %vm597, %v6087, %v6086
        %v6089 = vrot.slane %v5949, 2
        %v6090 = vsel %vm599, %v6089, %v6088
        %v6091 = vrot.slane %v5950, 1
        %v6092 = vsel %vm601, %v6091, %v6090
        %v6093 = vrot.slane %v5952, 7
        %v6094 = vsel %vm589, %v6093, %v5951
        %v6095 = vrot.slane %v5953, 6
        %v6096 = vsel %vm591, %v6095, %v6094
        %v6097 = vrot.slane %v5954, 5
        %v6098 = vsel %vm593, %v6097, %v6096
        %v6099 = vrot.slane %v5955, 4
        %v6100 = vsel %vm595, %v6099, %v6098
        %v6101 = vrot.slane %v5956, 3
        %v6102 = vsel %vm597, %v6101, %v6100
        %v6103 = vrot.slane %v5957, 2
        %v6104 = vsel %vm599, %v6103, %v6102
        %v6105 = vrot.slane %v5958, 1
        %v6106 = vsel %vm601, %v6105, %v6104
        %v6107 = vrot.slane %v5960, 7
        %v6108 = vsel %vm589, %v6107, %v5959
        %v6109 = vrot.slane %v5961, 6
        %v6110 = vsel %vm591, %v6109, %v6108
        %v6111 = vrot.slane %v5962, 5
        %v6112 = vsel %vm593, %v6111, %v6110
        %v6113 = vrot.slane %v5963, 4
        %v6114 = vsel %vm595, %v6113, %v6112
        %v6115 = vrot.slane %v5964, 3
        %v6116 = vsel %vm597, %v6115, %v6114
        %v6117 = vrot.slane %v5965, 2
        %v6118 = vsel %vm599, %v6117, %v6116
        %v6119 = vrot.slane %v5966, 1
        %v6120 = vsel %vm601, %v6119, %v6118
        %v6121 = vrot.slane %v5968, 7
        %v6122 = vsel %vm589, %v6121, %v5967
        %v6123 = vrot.slane %v5969, 6
        %v6124 = vsel %vm591, %v6123, %v6122
        %v6125 = vrot.slane %v5970, 5
        %v6126 = vsel %vm593, %v6125, %v6124
        %v6127 = vrot.slane %v5971, 4
        %v6128 = vsel %vm595, %v6127, %v6126
        %v6129 = vrot.slane %v5972, 3
        %v6130 = vsel %vm597, %v6129, %v6128
        %v6131 = vrot.slane %v5973, 2
        %v6132 = vsel %vm599, %v6131, %v6130
        %v6133 = vrot.slane %v5974, 1
        %v6134 = vsel %vm601, %v6133, %v6132
        %v6135 = vrot.slane %v5976, 7
        %v6136 = vsel %vm589, %v6135, %v5975
        %v6137 = vrot.slane %v5977, 6
        %v6138 = vsel %vm591, %v6137, %v6136
        %v6139 = vrot.slane %v5978, 5
        %v6140 = vsel %vm593, %v6139, %v6138
        %v6141 = vrot.slane %v5979, 4
        %v6142 = vsel %vm595, %v6141, %v6140
        %v6143 = vrot.slane %v5980, 3
        %v6144 = vsel %vm597, %v6143, %v6142
        %v6145 = vrot.slane %v5981, 2
        %v6146 = vsel %vm599, %v6145, %v6144
        %v6147 = vrot.slane %v5982, 1
        %v6148 = vsel %vm601, %v6147, %v6146
        %v6149 = vrot.slane %v5984, 7
        %v6150 = vsel %vm589, %v6149, %v5983
        %v6151 = vrot.slane %v5985, 6
        %v6152 = vsel %vm591, %v6151, %v6150
        %v6153 = vrot.slane %v5986, 5
        %v6154 = vsel %vm593, %v6153, %v6152
        %v6155 = vrot.slane %v5987, 4
        %v6156 = vsel %vm595, %v6155, %v6154
        %v6157 = vrot.slane %v5988, 3
        %v6158 = vsel %vm597, %v6157, %v6156
        %v6159 = vrot.slane %v5989, 2
        %v6160 = vsel %vm599, %v6159, %v6158
        %v6161 = vrot.slane %v5990, 1
        %v6162 = vsel %vm601, %v6161, %v6160
        %v6163 = vrot.slane %v5992, 7
        %v6164 = vsel %vm589, %v6163, %v5991
        %v6165 = vrot.slane %v5993, 6
        %v6166 = vsel %vm591, %v6165, %v6164
        %v6167 = vrot.slane %v5994, 5
        %v6168 = vsel %vm593, %v6167, %v6166
        %v6169 = vrot.slane %v5995, 4
        %v6170 = vsel %vm595, %v6169, %v6168
        %v6171 = vrot.slane %v5996, 3
        %v6172 = vsel %vm597, %v6171, %v6170
        %v6173 = vrot.slane %v5997, 2
        %v6174 = vsel %vm599, %v6173, %v6172
        %v6175 = vrot.slane %v5998, 1
        %v6176 = vsel %vm601, %v6175, %v6174
        %v6185 = vsel %vm709, %v6078, 0.0
        %6186 = vadd.xlane.f32.xlu0 %v6185
        %v6187 = vpop.xlane.xlu0 %6186
        %v6188 = vsel %vm709, %v6092, 0.0
        %6189 = vadd.xlane.f32.xlu0 %v6188
        %v6190 = vpop.xlane.xlu0 %6189
        %v6191 = vsel %vm709, %v6106, 0.0
        %6192 = vadd.xlane.f32.xlu0 %v6191
        %v6193 = vpop.xlane.xlu0 %6192
        %v6194 = vsel %vm709, %v6120, 0.0
        %6195 = vadd.xlane.f32.xlu0 %v6194
        %v6196 = vpop.xlane.xlu0 %6195
        %v6197 = vsel %vm709, %v6134, 0.0
        %6198 = vadd.xlane.f32.xlu0 %v6197
        %v6199 = vpop.xlane.xlu0 %6198
        %v6200 = vsel %vm709, %v6148, 0.0
        %6201 = vadd.xlane.f32.xlu0 %v6200
        %v6202 = vpop.xlane.xlu0 %6201
        %v6203 = vsel %vm709, %v6162, 0.0
        %6204 = vadd.xlane.f32.xlu0 %v6203
        %v6205 = vpop.xlane.xlu0 %6204
        %v6206 = vsel %vm709, %v6176, 0.0
        %6207 = vadd.xlane.f32.xlu0 %v6206
        %v6208 = vpop.xlane.xlu0 %6207
        %v6209 = vmul.f32 %v6187, %v734
        %v6210 = vmul.f32 %v6190, %v734
        %v6211 = vmul.f32 %v6193, %v734
        %v6212 = vmul.f32 %v6196, %v734
        %v6213 = vmul.f32 %v6199, %v734
        %v6214 = vmul.f32 %v6202, %v734
        %v6215 = vmul.f32 %v6205, %v734
        %v6216 = vmul.f32 %v6208, %v734
        %v6225 = vrot.slane %v6209, 1
        %v6226 = vrot.slane %v6209, 2
        %v6227 = vrot.slane %v6209, 3
        %v6228 = vrot.slane %v6209, 4
        %v6229 = vrot.slane %v6209, 5
        %v6230 = vrot.slane %v6209, 6
        %v6231 = vrot.slane %v6209, 7
        %v6232 = vrot.slane %v6210, 1
        %v6233 = vrot.slane %v6210, 2
        %v6234 = vrot.slane %v6210, 3
        %v6235 = vrot.slane %v6210, 4
        %v6236 = vrot.slane %v6210, 5
        %v6237 = vrot.slane %v6210, 6
        %v6238 = vrot.slane %v6210, 7
        %v6239 = vrot.slane %v6211, 1
        %v6240 = vrot.slane %v6211, 2
        %v6241 = vrot.slane %v6211, 3
        %v6242 = vrot.slane %v6211, 4
        %v6243 = vrot.slane %v6211, 5
        %v6244 = vrot.slane %v6211, 6
        %v6245 = vrot.slane %v6211, 7
        %v6246 = vrot.slane %v6212, 1
        %v6247 = vrot.slane %v6212, 2
        %v6248 = vrot.slane %v6212, 3
        %v6249 = vrot.slane %v6212, 4
        %v6250 = vrot.slane %v6212, 5
        %v6251 = vrot.slane %v6212, 6
        %v6252 = vrot.slane %v6212, 7
        %v6253 = vrot.slane %v6213, 1
        %v6254 = vrot.slane %v6213, 2
        %v6255 = vrot.slane %v6213, 3
        %v6256 = vrot.slane %v6213, 4
        %v6257 = vrot.slane %v6213, 5
        %v6258 = vrot.slane %v6213, 6
        %v6259 = vrot.slane %v6213, 7
        %v6260 = vrot.slane %v6214, 1
        %v6261 = vrot.slane %v6214, 2
        %v6262 = vrot.slane %v6214, 3
        %v6263 = vrot.slane %v6214, 4
        %v6264 = vrot.slane %v6214, 5
        %v6265 = vrot.slane %v6214, 6
        %v6266 = vrot.slane %v6214, 7
        %v6267 = vrot.slane %v6215, 1
        %v6268 = vrot.slane %v6215, 2
        %v6269 = vrot.slane %v6215, 3
        %v6270 = vrot.slane %v6215, 4
        %v6271 = vrot.slane %v6215, 5
        %v6272 = vrot.slane %v6215, 6
        %v6273 = vrot.slane %v6215, 7
        %v6274 = vrot.slane %v6216, 1
        %v6275 = vrot.slane %v6216, 2
        %v6276 = vrot.slane %v6216, 3
        %v6277 = vrot.slane %v6216, 4
        %v6278 = vrot.slane %v6216, 5
        %v6279 = vrot.slane %v6216, 6
        %v6280 = vrot.slane %v6216, 7
        %v6345 = vsub.f32 %v5935, %v6209
        %v6346 = vsub.f32 %v5936, %v6225
        %v6347 = vsub.f32 %v5937, %v6226
        %v6348 = vsub.f32 %v5938, %v6227
        %v6349 = vsub.f32 %v5939, %v6228
        %v6350 = vsub.f32 %v5940, %v6229
        %v6351 = vsub.f32 %v5941, %v6230
        %v6352 = vsub.f32 %v5942, %v6231
        %v6353 = vsub.f32 %v5943, %v6210
        %v6354 = vsub.f32 %v5944, %v6232
        %v6355 = vsub.f32 %v5945, %v6233
        %v6356 = vsub.f32 %v5946, %v6234
        %v6357 = vsub.f32 %v5947, %v6235
        %v6358 = vsub.f32 %v5948, %v6236
        %v6359 = vsub.f32 %v5949, %v6237
        %v6360 = vsub.f32 %v5950, %v6238
        %v6361 = vsub.f32 %v5951, %v6211
        %v6362 = vsub.f32 %v5952, %v6239
        %v6363 = vsub.f32 %v5953, %v6240
        %v6364 = vsub.f32 %v5954, %v6241
        %v6365 = vsub.f32 %v5955, %v6242
        %v6366 = vsub.f32 %v5956, %v6243
        %v6367 = vsub.f32 %v5957, %v6244
        %v6368 = vsub.f32 %v5958, %v6245
        %v6369 = vsub.f32 %v5959, %v6212
        %v6370 = vsub.f32 %v5960, %v6246
        %v6371 = vsub.f32 %v5961, %v6247
        %v6372 = vsub.f32 %v5962, %v6248
        %v6373 = vsub.f32 %v5963, %v6249
        %v6374 = vsub.f32 %v5964, %v6250
        %v6375 = vsub.f32 %v5965, %v6251
        %v6376 = vsub.f32 %v5966, %v6252
        %v6377 = vsub.f32 %v5967, %v6213
        %v6378 = vsub.f32 %v5968, %v6253
        %v6379 = vsub.f32 %v5969, %v6254
        %v6380 = vsub.f32 %v5970, %v6255
        %v6381 = vsub.f32 %v5971, %v6256
        %v6382 = vsub.f32 %v5972, %v6257
        %v6383 = vsub.f32 %v5973, %v6258
        %v6384 = vsub.f32 %v5974, %v6259
        %v6385 = vsub.f32 %v5975, %v6214
        %v6386 = vsub.f32 %v5976, %v6260
        %v6387 = vsub.f32 %v5977, %v6261
        %v6388 = vsub.f32 %v5978, %v6262
        %v6389 = vsub.f32 %v5979, %v6263
        %v6390 = vsub.f32 %v5980, %v6264
        %v6391 = vsub.f32 %v5981, %v6265
        %v6392 = vsub.f32 %v5982, %v6266
        %v6393 = vsub.f32 %v5983, %v6215
        %v6394 = vsub.f32 %v5984, %v6267
        %v6395 = vsub.f32 %v5985, %v6268
        %v6396 = vsub.f32 %v5986, %v6269
        %v6397 = vsub.f32 %v5987, %v6270
        %v6398 = vsub.f32 %v5988, %v6271
        %v6399 = vsub.f32 %v5989, %v6272
        %v6400 = vsub.f32 %v5990, %v6273
        %v6401 = vsub.f32 %v5991, %v6216
        %v6402 = vsub.f32 %v5992, %v6274
        %v6403 = vsub.f32 %v5993, %v6275
        %v6404 = vsub.f32 %v5994, %v6276
        %v6405 = vsub.f32 %v5995, %v6277
        %v6406 = vsub.f32 %v5996, %v6278
        %v6407 = vsub.f32 %v5997, %v6279
        %v6408 = vsub.f32 %v5998, %v6280
        %v6409 = vmul.f32 %v6345, %v6345
        %v6410 = vmul.f32 %v6346, %v6346
        %v6411 = vmul.f32 %v6347, %v6347
        %v6412 = vmul.f32 %v6348, %v6348
        %v6413 = vmul.f32 %v6349, %v6349
        %v6414 = vmul.f32 %v6350, %v6350
        %v6415 = vmul.f32 %v6351, %v6351
        %v6416 = vmul.f32 %v6352, %v6352
        %v6417 = vmul.f32 %v6353, %v6353
        %v6418 = vmul.f32 %v6354, %v6354
        %v6419 = vmul.f32 %v6355, %v6355
        %v6420 = vmul.f32 %v6356, %v6356
        %v6421 = vmul.f32 %v6357, %v6357
        %v6422 = vmul.f32 %v6358, %v6358
        %v6423 = vmul.f32 %v6359, %v6359
        %v6424 = vmul.f32 %v6360, %v6360
        %v6425 = vmul.f32 %v6361, %v6361
        %v6426 = vmul.f32 %v6362, %v6362
        %v6427 = vmul.f32 %v6363, %v6363
        %v6428 = vmul.f32 %v6364, %v6364
        %v6429 = vmul.f32 %v6365, %v6365
        %v6430 = vmul.f32 %v6366, %v6366
        %v6431 = vmul.f32 %v6367, %v6367
        %v6432 = vmul.f32 %v6368, %v6368
        %v6433 = vmul.f32 %v6369, %v6369
        %v6434 = vmul.f32 %v6370, %v6370
        %v6435 = vmul.f32 %v6371, %v6371
        %v6436 = vmul.f32 %v6372, %v6372
        %v6437 = vmul.f32 %v6373, %v6373
        %v6438 = vmul.f32 %v6374, %v6374
        %v6439 = vmul.f32 %v6375, %v6375
        %v6440 = vmul.f32 %v6376, %v6376
        %v6441 = vmul.f32 %v6377, %v6377
        %v6442 = vmul.f32 %v6378, %v6378
        %v6443 = vmul.f32 %v6379, %v6379
        %v6444 = vmul.f32 %v6380, %v6380
        %v6445 = vmul.f32 %v6381, %v6381
        %v6446 = vmul.f32 %v6382, %v6382
        %v6447 = vmul.f32 %v6383, %v6383
        %v6448 = vmul.f32 %v6384, %v6384
        %v6449 = vmul.f32 %v6385, %v6385
        %v6450 = vmul.f32 %v6386, %v6386
        %v6451 = vmul.f32 %v6387, %v6387
        %v6452 = vmul.f32 %v6388, %v6388
        %v6453 = vmul.f32 %v6389, %v6389
        %v6454 = vmul.f32 %v6390, %v6390
        %v6455 = vmul.f32 %v6391, %v6391
        %v6456 = vmul.f32 %v6392, %v6392
        %v6457 = vmul.f32 %v6393, %v6393
        %v6458 = vmul.f32 %v6394, %v6394
        %v6459 = vmul.f32 %v6395, %v6395
        %v6460 = vmul.f32 %v6396, %v6396
        %v6461 = vmul.f32 %v6397, %v6397
        %v6462 = vmul.f32 %v6398, %v6398
        %v6463 = vmul.f32 %v6399, %v6399
        %v6464 = vmul.f32 %v6400, %v6400
        %v6465 = vmul.f32 %v6401, %v6401
        %v6466 = vmul.f32 %v6402, %v6402
        %v6467 = vmul.f32 %v6403, %v6403
        %v6468 = vmul.f32 %v6404, %v6404
        %v6469 = vmul.f32 %v6405, %v6405
        %v6470 = vmul.f32 %v6406, %v6406
        %v6471 = vmul.f32 %v6407, %v6407
        %v6472 = vmul.f32 %v6408, %v6408
        %v6537 = vrot.slane %v6410, 7
        %v6538 = vsel %vm589, %v6537, %v6409
        %v6539 = vrot.slane %v6411, 6
        %v6540 = vsel %vm591, %v6539, %v6538
        %v6541 = vrot.slane %v6412, 5
        %v6542 = vsel %vm593, %v6541, %v6540
        %v6543 = vrot.slane %v6413, 4
        %v6544 = vsel %vm595, %v6543, %v6542
        %v6545 = vrot.slane %v6414, 3
        %v6546 = vsel %vm597, %v6545, %v6544
        %v6547 = vrot.slane %v6415, 2
        %v6548 = vsel %vm599, %v6547, %v6546
        %v6549 = vrot.slane %v6416, 1
        %v6550 = vsel %vm601, %v6549, %v6548
        %v6551 = vrot.slane %v6418, 7
        %v6552 = vsel %vm589, %v6551, %v6417
        %v6553 = vrot.slane %v6419, 6
        %v6554 = vsel %vm591, %v6553, %v6552
        %v6555 = vrot.slane %v6420, 5
        %v6556 = vsel %vm593, %v6555, %v6554
        %v6557 = vrot.slane %v6421, 4
        %v6558 = vsel %vm595, %v6557, %v6556
        %v6559 = vrot.slane %v6422, 3
        %v6560 = vsel %vm597, %v6559, %v6558
        %v6561 = vrot.slane %v6423, 2
        %v6562 = vsel %vm599, %v6561, %v6560
        %v6563 = vrot.slane %v6424, 1
        %v6564 = vsel %vm601, %v6563, %v6562
        %v6565 = vrot.slane %v6426, 7
        %v6566 = vsel %vm589, %v6565, %v6425
        %v6567 = vrot.slane %v6427, 6
        %v6568 = vsel %vm591, %v6567, %v6566
        %v6569 = vrot.slane %v6428, 5
        %v6570 = vsel %vm593, %v6569, %v6568
        %v6571 = vrot.slane %v6429, 4
        %v6572 = vsel %vm595, %v6571, %v6570
        %v6573 = vrot.slane %v6430, 3
        %v6574 = vsel %vm597, %v6573, %v6572
        %v6575 = vrot.slane %v6431, 2
        %v6576 = vsel %vm599, %v6575, %v6574
        %v6577 = vrot.slane %v6432, 1
        %v6578 = vsel %vm601, %v6577, %v6576
        %v6579 = vrot.slane %v6434, 7
        %v6580 = vsel %vm589, %v6579, %v6433
        %v6581 = vrot.slane %v6435, 6
        %v6582 = vsel %vm591, %v6581, %v6580
        %v6583 = vrot.slane %v6436, 5
        %v6584 = vsel %vm593, %v6583, %v6582
        %v6585 = vrot.slane %v6437, 4
        %v6586 = vsel %vm595, %v6585, %v6584
        %v6587 = vrot.slane %v6438, 3
        %v6588 = vsel %vm597, %v6587, %v6586
        %v6589 = vrot.slane %v6439, 2
        %v6590 = vsel %vm599, %v6589, %v6588
        %v6591 = vrot.slane %v6440, 1
        %v6592 = vsel %vm601, %v6591, %v6590
        %v6593 = vrot.slane %v6442, 7
        %v6594 = vsel %vm589, %v6593, %v6441
        %v6595 = vrot.slane %v6443, 6
        %v6596 = vsel %vm591, %v6595, %v6594
        %v6597 = vrot.slane %v6444, 5
        %v6598 = vsel %vm593, %v6597, %v6596
        %v6599 = vrot.slane %v6445, 4
        %v6600 = vsel %vm595, %v6599, %v6598
        %v6601 = vrot.slane %v6446, 3
        %v6602 = vsel %vm597, %v6601, %v6600
        %v6603 = vrot.slane %v6447, 2
        %v6604 = vsel %vm599, %v6603, %v6602
        %v6605 = vrot.slane %v6448, 1
        %v6606 = vsel %vm601, %v6605, %v6604
        %v6607 = vrot.slane %v6450, 7
        %v6608 = vsel %vm589, %v6607, %v6449
        %v6609 = vrot.slane %v6451, 6
        %v6610 = vsel %vm591, %v6609, %v6608
        %v6611 = vrot.slane %v6452, 5
        %v6612 = vsel %vm593, %v6611, %v6610
        %v6613 = vrot.slane %v6453, 4
        %v6614 = vsel %vm595, %v6613, %v6612
        %v6615 = vrot.slane %v6454, 3
        %v6616 = vsel %vm597, %v6615, %v6614
        %v6617 = vrot.slane %v6455, 2
        %v6618 = vsel %vm599, %v6617, %v6616
        %v6619 = vrot.slane %v6456, 1
        %v6620 = vsel %vm601, %v6619, %v6618
        %v6621 = vrot.slane %v6458, 7
        %v6622 = vsel %vm589, %v6621, %v6457
        %v6623 = vrot.slane %v6459, 6
        %v6624 = vsel %vm591, %v6623, %v6622
        %v6625 = vrot.slane %v6460, 5
        %v6626 = vsel %vm593, %v6625, %v6624
        %v6627 = vrot.slane %v6461, 4
        %v6628 = vsel %vm595, %v6627, %v6626
        %v6629 = vrot.slane %v6462, 3
        %v6630 = vsel %vm597, %v6629, %v6628
        %v6631 = vrot.slane %v6463, 2
        %v6632 = vsel %vm599, %v6631, %v6630
        %v6633 = vrot.slane %v6464, 1
        %v6634 = vsel %vm601, %v6633, %v6632
        %v6635 = vrot.slane %v6466, 7
        %v6636 = vsel %vm589, %v6635, %v6465
        %v6637 = vrot.slane %v6467, 6
        %v6638 = vsel %vm591, %v6637, %v6636
        %v6639 = vrot.slane %v6468, 5
        %v6640 = vsel %vm593, %v6639, %v6638
        %v6641 = vrot.slane %v6469, 4
        %v6642 = vsel %vm595, %v6641, %v6640
        %v6643 = vrot.slane %v6470, 3
        %v6644 = vsel %vm597, %v6643, %v6642
        %v6645 = vrot.slane %v6471, 2
        %v6646 = vsel %vm599, %v6645, %v6644
        %v6647 = vrot.slane %v6472, 1
        %v6648 = vsel %vm601, %v6647, %v6646
        %v6657 = vsel %vm709, %v6550, 0.0
        %6658 = vadd.xlane.f32.xlu0 %v6657
        %v6659 = vpop.xlane.xlu0 %6658
        %v6660 = vsel %vm709, %v6564, 0.0
        %6661 = vadd.xlane.f32.xlu0 %v6660
        %v6662 = vpop.xlane.xlu0 %6661
        %v6663 = vsel %vm709, %v6578, 0.0
        %6664 = vadd.xlane.f32.xlu0 %v6663
        %v6665 = vpop.xlane.xlu0 %6664
        %v6666 = vsel %vm709, %v6592, 0.0
        %6667 = vadd.xlane.f32.xlu0 %v6666
        %v6668 = vpop.xlane.xlu0 %6667
        %v6669 = vsel %vm709, %v6606, 0.0
        %6670 = vadd.xlane.f32.xlu0 %v6669
        %v6671 = vpop.xlane.xlu0 %6670
        %v6672 = vsel %vm709, %v6620, 0.0
        %6673 = vadd.xlane.f32.xlu0 %v6672
        %v6674 = vpop.xlane.xlu0 %6673
        %v6675 = vsel %vm709, %v6634, 0.0
        %6676 = vadd.xlane.f32.xlu0 %v6675
        %v6677 = vpop.xlane.xlu0 %6676
        %v6678 = vsel %vm709, %v6648, 0.0
        %6679 = vadd.xlane.f32.xlu0 %v6678
        %v6680 = vpop.xlane.xlu0 %6679
        %v6681 = vmul.f32 %v6659, %v734
        %v6682 = vmul.f32 %v6662, %v734
        %v6683 = vmul.f32 %v6665, %v734
        %v6684 = vmul.f32 %v6668, %v734
        %v6685 = vmul.f32 %v6671, %v734
        %v6686 = vmul.f32 %v6674, %v734
        %v6687 = vmul.f32 %v6677, %v734
        %v6688 = vmul.f32 %v6680, %v734
        %v6689 = vadd.f32 %v6681, 1e-05
        %v6690 = vadd.f32 %v6682, 1e-05
        %v6691 = vadd.f32 %v6683, 1e-05
        %v6692 = vadd.f32 %v6684, 1e-05
        %v6693 = vadd.f32 %v6685, 1e-05
        %v6694 = vadd.f32 %v6686, 1e-05
        %v6695 = vadd.f32 %v6687, 1e-05
        %v6696 = vadd.f32 %v6688, 1e-05
        %v6697 = vrsqrt.pop %v6689
        %v6698 = vrsqrt.pop %v6690
        %v6699 = vrsqrt.pop %v6691
        %v6700 = vrsqrt.pop %v6692
        %v6701 = vrsqrt.pop %v6693
        %v6702 = vrsqrt.pop %v6694
        %v6703 = vrsqrt.pop %v6695
        %v6704 = vrsqrt.pop %v6696
        %v6713 = vrot.slane %v6697, 1
        %v6714 = vrot.slane %v6697, 2
        %v6715 = vrot.slane %v6697, 3
        %v6716 = vrot.slane %v6697, 4
        %v6717 = vrot.slane %v6697, 5
        %v6718 = vrot.slane %v6697, 6
        %v6719 = vrot.slane %v6697, 7
        %v6720 = vrot.slane %v6698, 1
        %v6721 = vrot.slane %v6698, 2
        %v6722 = vrot.slane %v6698, 3
        %v6723 = vrot.slane %v6698, 4
        %v6724 = vrot.slane %v6698, 5
        %v6725 = vrot.slane %v6698, 6
        %v6726 = vrot.slane %v6698, 7
        %v6727 = vrot.slane %v6699, 1
        %v6728 = vrot.slane %v6699, 2
        %v6729 = vrot.slane %v6699, 3
        %v6730 = vrot.slane %v6699, 4
        %v6731 = vrot.slane %v6699, 5
        %v6732 = vrot.slane %v6699, 6
        %v6733 = vrot.slane %v6699, 7
        %v6734 = vrot.slane %v6700, 1
        %v6735 = vrot.slane %v6700, 2
        %v6736 = vrot.slane %v6700, 3
        %v6737 = vrot.slane %v6700, 4
        %v6738 = vrot.slane %v6700, 5
        %v6739 = vrot.slane %v6700, 6
        %v6740 = vrot.slane %v6700, 7
        %v6741 = vrot.slane %v6701, 1
        %v6742 = vrot.slane %v6701, 2
        %v6743 = vrot.slane %v6701, 3
        %v6744 = vrot.slane %v6701, 4
        %v6745 = vrot.slane %v6701, 5
        %v6746 = vrot.slane %v6701, 6
        %v6747 = vrot.slane %v6701, 7
        %v6748 = vrot.slane %v6702, 1
        %v6749 = vrot.slane %v6702, 2
        %v6750 = vrot.slane %v6702, 3
        %v6751 = vrot.slane %v6702, 4
        %v6752 = vrot.slane %v6702, 5
        %v6753 = vrot.slane %v6702, 6
        %v6754 = vrot.slane %v6702, 7
        %v6755 = vrot.slane %v6703, 1
        %v6756 = vrot.slane %v6703, 2
        %v6757 = vrot.slane %v6703, 3
        %v6758 = vrot.slane %v6703, 4
        %v6759 = vrot.slane %v6703, 5
        %v6760 = vrot.slane %v6703, 6
        %v6761 = vrot.slane %v6703, 7
        %v6762 = vrot.slane %v6704, 1
        %v6763 = vrot.slane %v6704, 2
        %v6764 = vrot.slane %v6704, 3
        %v6765 = vrot.slane %v6704, 4
        %v6766 = vrot.slane %v6704, 5
        %v6767 = vrot.slane %v6704, 6
        %v6768 = vrot.slane %v6704, 7
        %v6833 = vmul.f32 %v6345, %v6697
        %v6834 = vmul.f32 %v6346, %v6713
        %v6835 = vmul.f32 %v6347, %v6714
        %v6836 = vmul.f32 %v6348, %v6715
        %v6837 = vmul.f32 %v6349, %v6716
        %v6838 = vmul.f32 %v6350, %v6717
        %v6839 = vmul.f32 %v6351, %v6718
        %v6840 = vmul.f32 %v6352, %v6719
        %v6841 = vmul.f32 %v6353, %v6698
        %v6842 = vmul.f32 %v6354, %v6720
        %v6843 = vmul.f32 %v6355, %v6721
        %v6844 = vmul.f32 %v6356, %v6722
        %v6845 = vmul.f32 %v6357, %v6723
        %v6846 = vmul.f32 %v6358, %v6724
        %v6847 = vmul.f32 %v6359, %v6725
        %v6848 = vmul.f32 %v6360, %v6726
        %v6849 = vmul.f32 %v6361, %v6699
        %v6850 = vmul.f32 %v6362, %v6727
        %v6851 = vmul.f32 %v6363, %v6728
        %v6852 = vmul.f32 %v6364, %v6729
        %v6853 = vmul.f32 %v6365, %v6730
        %v6854 = vmul.f32 %v6366, %v6731
        %v6855 = vmul.f32 %v6367, %v6732
        %v6856 = vmul.f32 %v6368, %v6733
        %v6857 = vmul.f32 %v6369, %v6700
        %v6858 = vmul.f32 %v6370, %v6734
        %v6859 = vmul.f32 %v6371, %v6735
        %v6860 = vmul.f32 %v6372, %v6736
        %v6861 = vmul.f32 %v6373, %v6737
        %v6862 = vmul.f32 %v6374, %v6738
        %v6863 = vmul.f32 %v6375, %v6739
        %v6864 = vmul.f32 %v6376, %v6740
        %v6865 = vmul.f32 %v6377, %v6701
        %v6866 = vmul.f32 %v6378, %v6741
        %v6867 = vmul.f32 %v6379, %v6742
        %v6868 = vmul.f32 %v6380, %v6743
        %v6869 = vmul.f32 %v6381, %v6744
        %v6870 = vmul.f32 %v6382, %v6745
        %v6871 = vmul.f32 %v6383, %v6746
        %v6872 = vmul.f32 %v6384, %v6747
        %v6873 = vmul.f32 %v6385, %v6702
        %v6874 = vmul.f32 %v6386, %v6748
        %v6875 = vmul.f32 %v6387, %v6749
        %v6876 = vmul.f32 %v6388, %v6750
        %v6877 = vmul.f32 %v6389, %v6751
        %v6878 = vmul.f32 %v6390, %v6752
        %v6879 = vmul.f32 %v6391, %v6753
        %v6880 = vmul.f32 %v6392, %v6754
        %v6881 = vmul.f32 %v6393, %v6703
        %v6882 = vmul.f32 %v6394, %v6755
        %v6883 = vmul.f32 %v6395, %v6756
        %v6884 = vmul.f32 %v6396, %v6757
        %v6885 = vmul.f32 %v6397, %v6758
        %v6886 = vmul.f32 %v6398, %v6759
        %v6887 = vmul.f32 %v6399, %v6760
        %v6888 = vmul.f32 %v6400, %v6761
        %v6889 = vmul.f32 %v6401, %v6704
        %v6890 = vmul.f32 %v6402, %v6762
        %v6891 = vmul.f32 %v6403, %v6763
        %v6892 = vmul.f32 %v6404, %v6764
        %v6893 = vmul.f32 %v6405, %v6765
        %v6894 = vmul.f32 %v6406, %v6766
        %v6895 = vmul.f32 %v6407, %v6767
        %v6896 = vmul.f32 %v6408, %v6768
        %v6898 = vlaneseq
        %v6899 = vshrl.u32 %v6898, 7
        %v6900 = vsub.s32 0, %v6899
        %v6901 = vrot.slane %v5999, %v6900
        %v6903 = vmul.f32 %v6833, %v6901
        %v6904 = vmul.f32 %v6834, %v6901
        %v6905 = vmul.f32 %v6835, %v6901
        %v6906 = vmul.f32 %v6836, %v6901
        %v6907 = vmul.f32 %v6837, %v6901
        %v6908 = vmul.f32 %v6838, %v6901
        %v6909 = vmul.f32 %v6839, %v6901
        %v6910 = vmul.f32 %v6840, %v6901
        %v6911 = vmul.f32 %v6841, %v6901
        %v6912 = vmul.f32 %v6842, %v6901
        %v6913 = vmul.f32 %v6843, %v6901
        %v6914 = vmul.f32 %v6844, %v6901
        %v6915 = vmul.f32 %v6845, %v6901
        %v6916 = vmul.f32 %v6846, %v6901
        %v6917 = vmul.f32 %v6847, %v6901
        %v6918 = vmul.f32 %v6848, %v6901
        %v6919 = vmul.f32 %v6849, %v6901
        %v6920 = vmul.f32 %v6850, %v6901
        %v6921 = vmul.f32 %v6851, %v6901
        %v6922 = vmul.f32 %v6852, %v6901
        %v6923 = vmul.f32 %v6853, %v6901
        %v6924 = vmul.f32 %v6854, %v6901
        %v6925 = vmul.f32 %v6855, %v6901
        %v6926 = vmul.f32 %v6856, %v6901
        %v6927 = vmul.f32 %v6857, %v6901
        %v6928 = vmul.f32 %v6858, %v6901
        %v6929 = vmul.f32 %v6859, %v6901
        %v6930 = vmul.f32 %v6860, %v6901
        %v6931 = vmul.f32 %v6861, %v6901
        %v6932 = vmul.f32 %v6862, %v6901
        %v6933 = vmul.f32 %v6863, %v6901
        %v6934 = vmul.f32 %v6864, %v6901
        %v6935 = vmul.f32 %v6865, %v6901
        %v6936 = vmul.f32 %v6866, %v6901
        %v6937 = vmul.f32 %v6867, %v6901
        %v6938 = vmul.f32 %v6868, %v6901
        %v6939 = vmul.f32 %v6869, %v6901
        %v6940 = vmul.f32 %v6870, %v6901
        %v6941 = vmul.f32 %v6871, %v6901
        %v6942 = vmul.f32 %v6872, %v6901
        %v6943 = vmul.f32 %v6873, %v6901
        %v6944 = vmul.f32 %v6874, %v6901
        %v6945 = vmul.f32 %v6875, %v6901
        %v6946 = vmul.f32 %v6876, %v6901
        %v6947 = vmul.f32 %v6877, %v6901
        %v6948 = vmul.f32 %v6878, %v6901
        %v6949 = vmul.f32 %v6879, %v6901
        %v6950 = vmul.f32 %v6880, %v6901
        %v6951 = vmul.f32 %v6881, %v6901
        %v6952 = vmul.f32 %v6882, %v6901
        %v6953 = vmul.f32 %v6883, %v6901
        %v6954 = vmul.f32 %v6884, %v6901
        %v6955 = vmul.f32 %v6885, %v6901
        %v6956 = vmul.f32 %v6886, %v6901
        %v6957 = vmul.f32 %v6887, %v6901
        %v6958 = vmul.f32 %v6888, %v6901
        %v6959 = vmul.f32 %v6889, %v6901
        %v6960 = vmul.f32 %v6890, %v6901
        %v6961 = vmul.f32 %v6891, %v6901
        %v6962 = vmul.f32 %v6892, %v6901
        %v6963 = vmul.f32 %v6893, %v6901
        %v6964 = vmul.f32 %v6894, %v6901
        %v6965 = vmul.f32 %v6895, %v6901
        %v6966 = vmul.f32 %v6896, %v6901
        %v6968 = vlaneseq
        %v6969 = vshrl.u32 %v6968, 7
        %v6970 = vsub.s32 0, %v6969
        %v6971 = vrot.slane %v6000, %v6970
        %v6973 = vadd.f32 %v6903, %v6971
        %v6974 = vadd.f32 %v6904, %v6971
        %v6975 = vadd.f32 %v6905, %v6971
        %v6976 = vadd.f32 %v6906, %v6971
        %v6977 = vadd.f32 %v6907, %v6971
        %v6978 = vadd.f32 %v6908, %v6971
        %v6979 = vadd.f32 %v6909, %v6971
        %v6980 = vadd.f32 %v6910, %v6971
        %v6981 = vadd.f32 %v6911, %v6971
        %v6982 = vadd.f32 %v6912, %v6971
        %v6983 = vadd.f32 %v6913, %v6971
        %v6984 = vadd.f32 %v6914, %v6971
        %v6985 = vadd.f32 %v6915, %v6971
        %v6986 = vadd.f32 %v6916, %v6971
        %v6987 = vadd.f32 %v6917, %v6971
        %v6988 = vadd.f32 %v6918, %v6971
        %v6989 = vadd.f32 %v6919, %v6971
        %v6990 = vadd.f32 %v6920, %v6971
        %v6991 = vadd.f32 %v6921, %v6971
        %v6992 = vadd.f32 %v6922, %v6971
        %v6993 = vadd.f32 %v6923, %v6971
        %v6994 = vadd.f32 %v6924, %v6971
        %v6995 = vadd.f32 %v6925, %v6971
        %v6996 = vadd.f32 %v6926, %v6971
        %v6997 = vadd.f32 %v6927, %v6971
        %v6998 = vadd.f32 %v6928, %v6971
        %v6999 = vadd.f32 %v6929, %v6971
        %v7000 = vadd.f32 %v6930, %v6971
        %v7001 = vadd.f32 %v6931, %v6971
        %v7002 = vadd.f32 %v6932, %v6971
        %v7003 = vadd.f32 %v6933, %v6971
        %v7004 = vadd.f32 %v6934, %v6971
        %v7005 = vadd.f32 %v6935, %v6971
        %v7006 = vadd.f32 %v6936, %v6971
        %v7007 = vadd.f32 %v6937, %v6971
        %v7008 = vadd.f32 %v6938, %v6971
        %v7009 = vadd.f32 %v6939, %v6971
        %v7010 = vadd.f32 %v6940, %v6971
        %v7011 = vadd.f32 %v6941, %v6971
        %v7012 = vadd.f32 %v6942, %v6971
        %v7013 = vadd.f32 %v6943, %v6971
        %v7014 = vadd.f32 %v6944, %v6971
        %v7015 = vadd.f32 %v6945, %v6971
        %v7016 = vadd.f32 %v6946, %v6971
        %v7017 = vadd.f32 %v6947, %v6971
        %v7018 = vadd.f32 %v6948, %v6971
        %v7019 = vadd.f32 %v6949, %v6971
        %v7020 = vadd.f32 %v6950, %v6971
        %v7021 = vadd.f32 %v6951, %v6971
        %v7022 = vadd.f32 %v6952, %v6971
        %v7023 = vadd.f32 %v6953, %v6971
        %v7024 = vadd.f32 %v6954, %v6971
        %v7025 = vadd.f32 %v6955, %v6971
        %v7026 = vadd.f32 %v6956, %v6971
        %v7027 = vadd.f32 %v6957, %v6971
        %v7028 = vadd.f32 %v6958, %v6971
        %v7029 = vadd.f32 %v6959, %v6971
        %v7030 = vadd.f32 %v6960, %v6971
        %v7031 = vadd.f32 %v6961, %v6971
        %v7032 = vadd.f32 %v6962, %v6971
        %v7033 = vadd.f32 %v6963, %v6971
        %v7034 = vadd.f32 %v6964, %v6971
        %v7035 = vadd.f32 %v6965, %v6971
        %v7036 = vadd.f32 %v6966, %v6971
        %v7037 = vpack.c.bf16 %v6973, %v6973
        %v7038 = vpack.c.bf16 %v6974, %v6974
        %v7039 = vpack.c.bf16 %v6975, %v6975
        %v7040 = vpack.c.bf16 %v6976, %v6976
        %v7041 = vpack.c.bf16 %v6977, %v6977
        %v7042 = vpack.c.bf16 %v6978, %v6978
        %v7043 = vpack.c.bf16 %v6979, %v6979
        %v7044 = vpack.c.bf16 %v6980, %v6980
        %v7045 = vpack.c.bf16 %v6981, %v6981
        %v7046 = vpack.c.bf16 %v6982, %v6982
        %v7047 = vpack.c.bf16 %v6983, %v6983
        %v7048 = vpack.c.bf16 %v6984, %v6984
        %v7049 = vpack.c.bf16 %v6985, %v6985
        %v7050 = vpack.c.bf16 %v6986, %v6986
        %v7051 = vpack.c.bf16 %v6987, %v6987
        %v7052 = vpack.c.bf16 %v6988, %v6988
        %v7053 = vpack.c.bf16 %v6989, %v6989
        %v7054 = vpack.c.bf16 %v6990, %v6990
        %v7055 = vpack.c.bf16 %v6991, %v6991
        %v7056 = vpack.c.bf16 %v6992, %v6992
        %v7057 = vpack.c.bf16 %v6993, %v6993
        %v7058 = vpack.c.bf16 %v6994, %v6994
        %v7059 = vpack.c.bf16 %v6995, %v6995
        %v7060 = vpack.c.bf16 %v6996, %v6996
        %v7061 = vpack.c.bf16 %v6997, %v6997
        %v7062 = vpack.c.bf16 %v6998, %v6998
        %v7063 = vpack.c.bf16 %v6999, %v6999
        %v7064 = vpack.c.bf16 %v7000, %v7000
        %v7065 = vpack.c.bf16 %v7001, %v7001
        %v7066 = vpack.c.bf16 %v7002, %v7002
        %v7067 = vpack.c.bf16 %v7003, %v7003
        %v7068 = vpack.c.bf16 %v7004, %v7004
        %v7069 = vpack.c.bf16 %v7005, %v7005
        %v7070 = vpack.c.bf16 %v7006, %v7006
        %v7071 = vpack.c.bf16 %v7007, %v7007
        %v7072 = vpack.c.bf16 %v7008, %v7008
        %v7073 = vpack.c.bf16 %v7009, %v7009
        %v7074 = vpack.c.bf16 %v7010, %v7010
        %v7075 = vpack.c.bf16 %v7011, %v7011
        %v7076 = vpack.c.bf16 %v7012, %v7012
        %v7077 = vpack.c.bf16 %v7013, %v7013
        %v7078 = vpack.c.bf16 %v7014, %v7014
        %v7079 = vpack.c.bf16 %v7015, %v7015
        %v7080 = vpack.c.bf16 %v7016, %v7016
        %v7081 = vpack.c.bf16 %v7017, %v7017
        %v7082 = vpack.c.bf16 %v7018, %v7018
        %v7083 = vpack.c.bf16 %v7019, %v7019
        %v7084 = vpack.c.bf16 %v7020, %v7020
        %v7085 = vpack.c.bf16 %v7021, %v7021
        %v7086 = vpack.c.bf16 %v7022, %v7022
        %v7087 = vpack.c.bf16 %v7023, %v7023
        %v7088 = vpack.c.bf16 %v7024, %v7024
        %v7089 = vpack.c.bf16 %v7025, %v7025
        %v7090 = vpack.c.bf16 %v7026, %v7026
        %v7091 = vpack.c.bf16 %v7027, %v7027
        %v7092 = vpack.c.bf16 %v7028, %v7028
        %v7093 = vpack.c.bf16 %v7029, %v7029
        %v7094 = vpack.c.bf16 %v7030, %v7030
        %v7095 = vpack.c.bf16 %v7031, %v7031
        %v7096 = vpack.c.bf16 %v7032, %v7032
        %v7097 = vpack.c.bf16 %v7033, %v7033
        %v7098 = vpack.c.bf16 %v7034, %v7034
        %v7099 = vpack.c.bf16 %v7035, %v7035
        %v7100 = vpack.c.bf16 %v7036, %v7036
        %v7101 = vld [vmem:[%s9] sm:$0xf]
        %v7102 = vld [vmem:[%s9 + $0x4] sm:$0xf]
        %v7103 = vld [vmem:[%s9 + $0x8] sm:$0xf]
        %v7104 = vld [vmem:[%s9 + $0xc] sm:$0xf]
        %v7105 = vld [vmem:[%s10] sm:$0x1]
        %v7107 = vlaneseq
        %v7108 = vshrl.u32 %v7107, 7
        %v7109 = vsub.s32 0, %v7108
        %v7110 = vrot.slane %v7105, %v7109
        %v7176 = vunpack.c.l.b16 %v7037
        %v7177 = vunpack.c.l.b16 %v7038
        %v7178 = vunpack.c.l.b16 %v7039
        %v7179 = vunpack.c.l.b16 %v7040
        %v7180 = vunpack.c.l.b16 %v7041
        %v7181 = vunpack.c.l.b16 %v7042
        %v7182 = vunpack.c.l.b16 %v7043
        %v7183 = vunpack.c.l.b16 %v7044
        %v7184 = vunpack.c.l.b16 %v7045
        %v7185 = vunpack.c.l.b16 %v7046
        %v7186 = vunpack.c.l.b16 %v7047
        %v7187 = vunpack.c.l.b16 %v7048
        %v7188 = vunpack.c.l.b16 %v7049
        %v7189 = vunpack.c.l.b16 %v7050
        %v7190 = vunpack.c.l.b16 %v7051
        %v7191 = vunpack.c.l.b16 %v7052
        %v7192 = vunpack.c.l.b16 %v7053
        %v7193 = vunpack.c.l.b16 %v7054
        %v7194 = vunpack.c.l.b16 %v7055
        %v7195 = vunpack.c.l.b16 %v7056
        %v7196 = vunpack.c.l.b16 %v7057
        %v7197 = vunpack.c.l.b16 %v7058
        %v7198 = vunpack.c.l.b16 %v7059
        %v7199 = vunpack.c.l.b16 %v7060
        %v7200 = vunpack.c.l.b16 %v7061
        %v7201 = vunpack.c.l.b16 %v7062
        %v7202 = vunpack.c.l.b16 %v7063
        %v7203 = vunpack.c.l.b16 %v7064
        %v7204 = vunpack.c.l.b16 %v7065
        %v7205 = vunpack.c.l.b16 %v7066
        %v7206 = vunpack.c.l.b16 %v7067
        %v7207 = vunpack.c.l.b16 %v7068
        %v7208 = vunpack.c.l.b16 %v7069
        %v7209 = vunpack.c.l.b16 %v7070
        %v7210 = vunpack.c.l.b16 %v7071
        %v7211 = vunpack.c.l.b16 %v7072
        %v7212 = vunpack.c.l.b16 %v7073
        %v7213 = vunpack.c.l.b16 %v7074
        %v7214 = vunpack.c.l.b16 %v7075
        %v7215 = vunpack.c.l.b16 %v7076
        %v7216 = vunpack.c.l.b16 %v7077
        %v7217 = vunpack.c.l.b16 %v7078
        %v7218 = vunpack.c.l.b16 %v7079
        %v7219 = vunpack.c.l.b16 %v7080
        %v7220 = vunpack.c.l.b16 %v7081
        %v7221 = vunpack.c.l.b16 %v7082
        %v7222 = vunpack.c.l.b16 %v7083
        %v7223 = vunpack.c.l.b16 %v7084
        %v7224 = vunpack.c.l.b16 %v7085
        %v7225 = vunpack.c.l.b16 %v7086
        %v7226 = vunpack.c.l.b16 %v7087
        %v7227 = vunpack.c.l.b16 %v7088
        %v7228 = vunpack.c.l.b16 %v7089
        %v7229 = vunpack.c.l.b16 %v7090
        %v7230 = vunpack.c.l.b16 %v7091
        %v7231 = vunpack.c.l.b16 %v7092
        %v7232 = vunpack.c.l.b16 %v7093
        %v7233 = vunpack.c.l.b16 %v7094
        %v7234 = vunpack.c.l.b16 %v7095
        %v7235 = vunpack.c.l.b16 %v7096
        %v7236 = vunpack.c.l.b16 %v7097
        %v7237 = vunpack.c.l.b16 %v7098
        %v7238 = vunpack.c.l.b16 %v7099
        %v7239 = vunpack.c.l.b16 %v7100
        %v7240 = vrot.slane %v7177, 7
        %v7241 = vsel %vm589, %v7240, %v7176
        %v7242 = vrot.slane %v7178, 6
        %v7243 = vsel %vm591, %v7242, %v7241
        %v7244 = vrot.slane %v7179, 5
        %v7245 = vsel %vm593, %v7244, %v7243
        %v7246 = vrot.slane %v7180, 4
        %v7247 = vsel %vm595, %v7246, %v7245
        %v7248 = vrot.slane %v7181, 3
        %v7249 = vsel %vm597, %v7248, %v7247
        %v7250 = vrot.slane %v7182, 2
        %v7251 = vsel %vm599, %v7250, %v7249
        %v7252 = vrot.slane %v7183, 1
        %v7253 = vsel %vm601, %v7252, %v7251
        %v7254 = vrot.slane %v7185, 7
        %v7255 = vsel %vm589, %v7254, %v7184
        %v7256 = vrot.slane %v7186, 6
        %v7257 = vsel %vm591, %v7256, %v7255
        %v7258 = vrot.slane %v7187, 5
        %v7259 = vsel %vm593, %v7258, %v7257
        %v7260 = vrot.slane %v7188, 4
        %v7261 = vsel %vm595, %v7260, %v7259
        %v7262 = vrot.slane %v7189, 3
        %v7263 = vsel %vm597, %v7262, %v7261
        %v7264 = vrot.slane %v7190, 2
        %v7265 = vsel %vm599, %v7264, %v7263
        %v7266 = vrot.slane %v7191, 1
        %v7267 = vsel %vm601, %v7266, %v7265
        %v7268 = vrot.slane %v7193, 7
        %v7269 = vsel %vm589, %v7268, %v7192
        %v7270 = vrot.slane %v7194, 6
        %v7271 = vsel %vm591, %v7270, %v7269
        %v7272 = vrot.slane %v7195, 5
        %v7273 = vsel %vm593, %v7272, %v7271
        %v7274 = vrot.slane %v7196, 4
        %v7275 = vsel %vm595, %v7274, %v7273
        %v7276 = vrot.slane %v7197, 3
        %v7277 = vsel %vm597, %v7276, %v7275
        %v7278 = vrot.slane %v7198, 2
        %v7279 = vsel %vm599, %v7278, %v7277
        %v7280 = vrot.slane %v7199, 1
        %v7281 = vsel %vm601, %v7280, %v7279
        %v7282 = vrot.slane %v7201, 7
        %v7283 = vsel %vm589, %v7282, %v7200
        %v7284 = vrot.slane %v7202, 6
        %v7285 = vsel %vm591, %v7284, %v7283
        %v7286 = vrot.slane %v7203, 5
        %v7287 = vsel %vm593, %v7286, %v7285
        %v7288 = vrot.slane %v7204, 4
        %v7289 = vsel %vm595, %v7288, %v7287
        %v7290 = vrot.slane %v7205, 3
        %v7291 = vsel %vm597, %v7290, %v7289
        %v7292 = vrot.slane %v7206, 2
        %v7293 = vsel %vm599, %v7292, %v7291
        %v7294 = vrot.slane %v7207, 1
        %v7295 = vsel %vm601, %v7294, %v7293
        %v7296 = vrot.slane %v7209, 7
        %v7297 = vsel %vm589, %v7296, %v7208
        %v7298 = vrot.slane %v7210, 6
        %v7299 = vsel %vm591, %v7298, %v7297
        %v7300 = vrot.slane %v7211, 5
        %v7301 = vsel %vm593, %v7300, %v7299
        %v7302 = vrot.slane %v7212, 4
        %v7303 = vsel %vm595, %v7302, %v7301
        %v7304 = vrot.slane %v7213, 3
        %v7305 = vsel %vm597, %v7304, %v7303
        %v7306 = vrot.slane %v7214, 2
        %v7307 = vsel %vm599, %v7306, %v7305
        %v7308 = vrot.slane %v7215, 1
        %v7309 = vsel %vm601, %v7308, %v7307
        %v7310 = vrot.slane %v7217, 7
        %v7311 = vsel %vm589, %v7310, %v7216
        %v7312 = vrot.slane %v7218, 6
        %v7313 = vsel %vm591, %v7312, %v7311
        %v7314 = vrot.slane %v7219, 5
        %v7315 = vsel %vm593, %v7314, %v7313
        %v7316 = vrot.slane %v7220, 4
        %v7317 = vsel %vm595, %v7316, %v7315
        %v7318 = vrot.slane %v7221, 3
        %v7319 = vsel %vm597, %v7318, %v7317
        %v7320 = vrot.slane %v7222, 2
        %v7321 = vsel %vm599, %v7320, %v7319
        %v7322 = vrot.slane %v7223, 1
        %v7323 = vsel %vm601, %v7322, %v7321
        %v7324 = vrot.slane %v7225, 7
        %v7325 = vsel %vm589, %v7324, %v7224
        %v7326 = vrot.slane %v7226, 6
        %v7327 = vsel %vm591, %v7326, %v7325
        %v7328 = vrot.slane %v7227, 5
        %v7329 = vsel %vm593, %v7328, %v7327
        %v7330 = vrot.slane %v7228, 4
        %v7331 = vsel %vm595, %v7330, %v7329
        %v7332 = vrot.slane %v7229, 3
        %v7333 = vsel %vm597, %v7332, %v7331
        %v7334 = vrot.slane %v7230, 2
        %v7335 = vsel %vm599, %v7334, %v7333
        %v7336 = vrot.slane %v7231, 1
        %v7337 = vsel %vm601, %v7336, %v7335
        %v7338 = vrot.slane %v7233, 7
        %v7339 = vsel %vm589, %v7338, %v7232
        %v7340 = vrot.slane %v7234, 6
        %v7341 = vsel %vm591, %v7340, %v7339
        %v7342 = vrot.slane %v7235, 5
        %v7343 = vsel %vm593, %v7342, %v7341
        %v7344 = vrot.slane %v7236, 4
        %v7345 = vsel %vm595, %v7344, %v7343
        %v7346 = vrot.slane %v7237, 3
        %v7347 = vsel %vm597, %v7346, %v7345
        %v7348 = vrot.slane %v7238, 2
        %v7349 = vsel %vm599, %v7348, %v7347
        %v7350 = vrot.slane %v7239, 1
        %v7351 = vsel %vm601, %v7350, %v7349
        %v7352 = vpack.c.b16 %v7267, %v7253
        %v7353 = vpack.c.b16 %v7295, %v7281
        %v7354 = vpack.c.b16 %v7323, %v7309
        %v7355 = vpack.c.b16 %v7351, %v7337
        %v7360 = vunpack.c.l.b16 %v7101
        %v7361 = vunpack.c.l.b16 %v7102
        %v7362 = vunpack.c.l.b16 %v7103
        %v7363 = vunpack.c.l.b16 %v7104
        %v7364 = vpack.c.b16 %v7361, %v7360
        %v7365 = vpack.c.b16 %v7363, %v7362
        %v7369 = vsel %vm709, %v7352, 0
        %v7372 = vsel %vm709, %v7353, 0
        %v7375 = vsel %vm709, %v7354, 0
        %v7378 = vsel %vm709, %v7355, 0
        %7380 = vmatprep.subr.bf16.mxu0 0
        %7381 = vmatpush1.bf16.msra.mxu0 %v7364
        %7382 = vmatprep.subr.bf16.mxu0 0
        %7383 = vmatpush1.bf16.msra.mxu0 %v7365
        %7384 = vmatprep.subr.bf16.mxu0 0
        %7385 = vmatpush1.bf16.msra.mxu0 0
        %7386 = vmatprep.subr.bf16.mxu0 0
        %7387 = vmatpush1.bf16.msra.mxu0 0
        %7388 = vmatprep.subr.bf16.mxu0 0
        %7389 = vmatpush1.bf16.msra.mxu0 0
        %7390 = vmatprep.subr.bf16.mxu0 0
        %7391 = vmatpush1.bf16.msra.mxu0 0
        %7392 = vmatprep.subr.bf16.mxu0 0
        %7393 = vmatpush1.bf16.msra.mxu0 0
        %7394 = vmatprep.subr.bf16.mxu0 0
        %7395 = vmatpush1.bf16.msra.mxu0 0
        %7396 = vmatprep.subr.bf16.mxu0 0
        %7397 = vmatpush1.bf16.msra.mxu0 0
        %7398 = vmatprep.subr.bf16.mxu0 0
        %7399 = vmatpush1.bf16.msra.mxu0 0
        %7400 = vmatprep.subr.bf16.mxu0 0
        %7401 = vmatpush1.bf16.msra.mxu0 0
        %7402 = vmatprep.subr.bf16.mxu0 0
        %7403 = vmatpush1.bf16.msra.mxu0 0
        %7404 = vmatprep.subr.bf16.mxu0 0
        %7405 = vmatpush1.bf16.msra.mxu0 0
        %7406 = vmatprep.subr.bf16.mxu0 0
        %7407 = vmatpush1.bf16.msra.mxu0 0
        %7408 = vmatprep.subr.bf16.mxu0 0
        %7409 = vmatpush1.bf16.msra.mxu0 0
        %7410 = vmatprep.subr.bf16.mxu0 0
        %7411 = vmatpush1.bf16.msra.mxu0 0
        %7412 = vmatprep.mubr.bf16.mxu0 0
        %7413 = vmatmul.mubr.bf16.gmra.mrb[0].mxu0 %v7369
        %v7414 = vpop.f32.mrb[0].mxu0
        %v7415 = vadd.f32 %v7110, %v7414
        %v7416 = vpop.f32.mrb[0].mxu0
        %v7417 = vpop.f32.mrb[0].mxu0
        %v7418 = vadd.f32 %v7110, %v7417
        %v7419 = vpop.f32.mrb[0].mxu0
        %7420 = vmatprep.mubr.bf16.mxu0 0
        %7421 = vmatmul.mubr.bf16.gmra.mrb[0].mxu0 %v7372
        %v7422 = vpop.f32.mrb[0].mxu0
        %v7423 = vadd.f32 %v7110, %v7422
        %v7424 = vpop.f32.mrb[0].mxu0
        %v7425 = vpop.f32.mrb[0].mxu0
        %v7426 = vadd.f32 %v7110, %v7425
        %v7427 = vpop.f32.mrb[0].mxu0
        %7428 = vmatprep.mubr.bf16.mxu0 0
        %7429 = vmatmul.mubr.bf16.gmra.mrb[0].mxu0 %v7375
        %v7430 = vpop.f32.mrb[0].mxu0
        %v7431 = vadd.f32 %v7110, %v7430
        %v7432 = vpop.f32.mrb[0].mxu0
        %v7433 = vpop.f32.mrb[0].mxu0
        %v7434 = vadd.f32 %v7110, %v7433
        %v7435 = vpop.f32.mrb[0].mxu0
        %7436 = vmatprep.mubr.bf16.mxu0 0
        %7437 = vmatmul.mubr.bf16.gmra.mrb[0].mxu0 %v7378
        %v7438 = vpop.f32.mrb[0].mxu0
        %v7439 = vadd.f32 %v7110, %v7438
        %v7440 = vpop.f32.mrb[0].mxu0
        %v7441 = vpop.f32.mrb[0].mxu0
        %v7442 = vadd.f32 %v7110, %v7441
        %v7443 = vpop.f32.mrb[0].mxu0
        %7444 = vdwg.mxu0
        %v7445 = vmul.f32 %v7415, 0.5
        %v7446 = vmul.f32 %v7418, 0.5
        %v7447 = vmul.f32 %v7423, 0.5
        %v7448 = vmul.f32 %v7426, 0.5
        %v7449 = vmul.f32 %v7431, 0.5
        %v7450 = vmul.f32 %v7434, 0.5
        %v7451 = vmul.f32 %v7439, 0.5
        %v7452 = vmul.f32 %v7442, 0.5
        %v7453 = vmul.f32 %v7415, 0.70710677
        %v7454 = vmul.f32 %v7418, 0.70710677
        %v7455 = vmul.f32 %v7423, 0.70710677
        %v7456 = vmul.f32 %v7426, 0.70710677
        %v7457 = vmul.f32 %v7431, 0.70710677
        %v7458 = vmul.f32 %v7434, 0.70710677
        %v7459 = vmul.f32 %v7439, 0.70710677
        %v7460 = vmul.f32 %v7442, 0.70710677
        %v7461 = vand.u32 2147483647, %v7453
        %v7462 = vand.u32 2147483647, %v7454
        %v7463 = vand.u32 2147483647, %v7455
        %v7464 = vand.u32 2147483647, %v7456
        %v7465 = vand.u32 2147483647, %v7457
        %v7466 = vand.u32 2147483647, %v7458
        %v7467 = vand.u32 2147483647, %v7459
        %v7468 = vand.u32 2147483647, %v7460
        %v7469 = vmul.f32 %v7461, 0.3275911
        %v7470 = vmul.f32 %v7462, 0.3275911
        %v7471 = vmul.f32 %v7463, 0.3275911
        %v7472 = vmul.f32 %v7464, 0.3275911
        %v7473 = vmul.f32 %v7465, 0.3275911
        %v7474 = vmul.f32 %v7466, 0.3275911
        %v7475 = vmul.f32 %v7467, 0.3275911
        %v7476 = vmul.f32 %v7468, 0.3275911
        %v7477 = vadd.f32 %v7469, 1.0
        %v7478 = vadd.f32 %v7470, 1.0
        %v7479 = vadd.f32 %v7471, 1.0
        %v7480 = vadd.f32 %v7472, 1.0
        %v7481 = vadd.f32 %v7473, 1.0
        %v7482 = vadd.f32 %v7474, 1.0
        %v7483 = vadd.f32 %v7475, 1.0
        %v7484 = vadd.f32 %v7476, 1.0
        %v7485 = vrcp.pop %v7477
        %v7486 = vmul.f32 1.0, %v7485
        %v7487 = vrcp.pop %v7478
        %v7488 = vmul.f32 1.0, %v7487
        %v7489 = vrcp.pop %v7479
        %v7490 = vmul.f32 1.0, %v7489
        %v7491 = vrcp.pop %v7480
        %v7492 = vmul.f32 1.0, %v7491
        %v7493 = vrcp.pop %v7481
        %v7494 = vmul.f32 1.0, %v7493
        %v7495 = vrcp.pop %v7482
        %v7496 = vmul.f32 1.0, %v7495
        %v7497 = vrcp.pop %v7483
        %v7498 = vmul.f32 1.0, %v7497
        %v7499 = vrcp.pop %v7484
        %v7500 = vmul.f32 1.0, %v7499
        %v7501 = vmul.f32 %v7486, 1.0614054
        %v7502 = vmul.f32 %v7488, 1.0614054
        %v7503 = vmul.f32 %v7490, 1.0614054
        %v7504 = vmul.f32 %v7492, 1.0614054
        %v7505 = vmul.f32 %v7494, 1.0614054
        %v7506 = vmul.f32 %v7496, 1.0614054
        %v7507 = vmul.f32 %v7498, 1.0614054
        %v7508 = vmul.f32 %v7500, 1.0614054
        %v7509 = vadd.f32 %v7501, -1.4531521
        %v7510 = vadd.f32 %v7502, -1.4531521
        %v7511 = vadd.f32 %v7503, -1.4531521
        %v7512 = vadd.f32 %v7504, -1.4531521
        %v7513 = vadd.f32 %v7505, -1.4531521
        %v7514 = vadd.f32 %v7506, -1.4531521
        %v7515 = vadd.f32 %v7507, -1.4531521
        %v7516 = vadd.f32 %v7508, -1.4531521
        %v7517 = vmul.f32 %v7509, %v7486
        %v7518 = vmul.f32 %v7510, %v7488
        %v7519 = vmul.f32 %v7511, %v7490
        %v7520 = vmul.f32 %v7512, %v7492
        %v7521 = vmul.f32 %v7513, %v7494
        %v7522 = vmul.f32 %v7514, %v7496
        %v7523 = vmul.f32 %v7515, %v7498
        %v7524 = vmul.f32 %v7516, %v7500
        %v7525 = vadd.f32 %v7517, 1.4214138
        %v7526 = vadd.f32 %v7518, 1.4214138
        %v7527 = vadd.f32 %v7519, 1.4214138
        %v7528 = vadd.f32 %v7520, 1.4214138
        %v7529 = vadd.f32 %v7521, 1.4214138
        %v7530 = vadd.f32 %v7522, 1.4214138
        %v7531 = vadd.f32 %v7523, 1.4214138
        %v7532 = vadd.f32 %v7524, 1.4214138
        %v7533 = vmul.f32 %v7525, %v7486
        %v7534 = vmul.f32 %v7526, %v7488
        %v7535 = vmul.f32 %v7527, %v7490
        %v7536 = vmul.f32 %v7528, %v7492
        %v7537 = vmul.f32 %v7529, %v7494
        %v7538 = vmul.f32 %v7530, %v7496
        %v7539 = vmul.f32 %v7531, %v7498
        %v7540 = vmul.f32 %v7532, %v7500
        %v7541 = vadd.f32 %v7533, -0.28449672
        %v7542 = vadd.f32 %v7534, -0.28449672
        %v7543 = vadd.f32 %v7535, -0.28449672
        %v7544 = vadd.f32 %v7536, -0.28449672
        %v7545 = vadd.f32 %v7537, -0.28449672
        %v7546 = vadd.f32 %v7538, -0.28449672
        %v7547 = vadd.f32 %v7539, -0.28449672
        %v7548 = vadd.f32 %v7540, -0.28449672
        %v7549 = vmul.f32 %v7541, %v7486
        %v7550 = vmul.f32 %v7542, %v7488
        %v7551 = vmul.f32 %v7543, %v7490
        %v7552 = vmul.f32 %v7544, %v7492
        %v7553 = vmul.f32 %v7545, %v7494
        %v7554 = vmul.f32 %v7546, %v7496
        %v7555 = vmul.f32 %v7547, %v7498
        %v7556 = vmul.f32 %v7548, %v7500
        %v7557 = vadd.f32 %v7549, 0.2548296
        %v7558 = vadd.f32 %v7550, 0.2548296
        %v7559 = vadd.f32 %v7551, 0.2548296
        %v7560 = vadd.f32 %v7552, 0.2548296
        %v7561 = vadd.f32 %v7553, 0.2548296
        %v7562 = vadd.f32 %v7554, 0.2548296
        %v7563 = vadd.f32 %v7555, 0.2548296
        %v7564 = vadd.f32 %v7556, 0.2548296
        %v7565 = vmul.f32 %v7557, %v7486
        %v7566 = vmul.f32 %v7558, %v7488
        %v7567 = vmul.f32 %v7559, %v7490
        %v7568 = vmul.f32 %v7560, %v7492
        %v7569 = vmul.f32 %v7561, %v7494
        %v7570 = vmul.f32 %v7562, %v7496
        %v7571 = vmul.f32 %v7563, %v7498
        %v7572 = vmul.f32 %v7564, %v7500
        %v7573 = vsub.f32 0.0, %v7461
        %v7574 = vsub.f32 0.0, %v7462
        %v7575 = vsub.f32 0.0, %v7463
        %v7576 = vsub.f32 0.0, %v7464
        %v7577 = vsub.f32 0.0, %v7465
        %v7578 = vsub.f32 0.0, %v7466
        %v7579 = vsub.f32 0.0, %v7467
        %v7580 = vsub.f32 0.0, %v7468
        %v7581 = vmul.f32 %v7573, %v7461
        %v7582 = vmul.f32 %v7574, %v7462
        %v7583 = vmul.f32 %v7575, %v7463
        %v7584 = vmul.f32 %v7576, %v7464
        %v7585 = vmul.f32 %v7577, %v7465
        %v7586 = vmul.f32 %v7578, %v7466
        %v7587 = vmul.f32 %v7579, %v7467
        %v7588 = vmul.f32 %v7580, %v7468
        %v7589 = vmul.f32 %v7581, 1.442695
        %v7590 = vpow.pop %v7589
        %v7591 = vmul.f32 %v7582, 1.442695
        %v7592 = vpow.pop %v7591
        %v7593 = vmul.f32 %v7583, 1.442695
        %v7594 = vpow.pop %v7593
        %v7595 = vmul.f32 %v7584, 1.442695
        %v7596 = vpow.pop %v7595
        %v7597 = vmul.f32 %v7585, 1.442695
        %v7598 = vpow.pop %v7597
        %v7599 = vmul.f32 %v7586, 1.442695
        %v7600 = vpow.pop %v7599
        %v7601 = vmul.f32 %v7587, 1.442695
        %v7602 = vpow.pop %v7601
        %v7603 = vmul.f32 %v7588, 1.442695
        %v7604 = vpow.pop %v7603
        %v7605 = vmul.f32 %v7565, %v7590
        %v7606 = vmul.f32 %v7566, %v7592
        %v7607 = vmul.f32 %v7567, %v7594
        %v7608 = vmul.f32 %v7568, %v7596
        %v7609 = vmul.f32 %v7569, %v7598
        %v7610 = vmul.f32 %v7570, %v7600
        %v7611 = vmul.f32 %v7571, %v7602
        %v7612 = vmul.f32 %v7572, %v7604
        %v7613 = vsub.f32 1.0, %v7605
        %v7614 = vsub.f32 1.0, %v7606
        %v7615 = vsub.f32 1.0, %v7607
        %v7616 = vsub.f32 1.0, %v7608
        %v7617 = vsub.f32 1.0, %v7609
        %v7618 = vsub.f32 1.0, %v7610
        %v7619 = vsub.f32 1.0, %v7611
        %v7620 = vsub.f32 1.0, %v7612
        %vm7621 = vcmp.ge.f32.partialorder %v7453, 0.0
        %vm7622 = vcmp.ge.f32.partialorder %v7454, 0.0
        %vm7623 = vcmp.ge.f32.partialorder %v7455, 0.0
        %vm7624 = vcmp.ge.f32.partialorder %v7456, 0.0
        %vm7625 = vcmp.ge.f32.partialorder %v7457, 0.0
        %vm7626 = vcmp.ge.f32.partialorder %v7458, 0.0
        %vm7627 = vcmp.ge.f32.partialorder %v7459, 0.0
        %vm7628 = vcmp.ge.f32.partialorder %v7460, 0.0
        %v7629 = vsub.f32 0.0, %v7613
        %v7630 = vsub.f32 0.0, %v7614
        %v7631 = vsub.f32 0.0, %v7615
        %v7632 = vsub.f32 0.0, %v7616
        %v7633 = vsub.f32 0.0, %v7617
        %v7634 = vsub.f32 0.0, %v7618
        %v7635 = vsub.f32 0.0, %v7619
        %v7636 = vsub.f32 0.0, %v7620
        %v7637 = vsel %vm7621, %v7613, %v7629
        %v7638 = vsel %vm7622, %v7614, %v7630
        %v7639 = vsel %vm7623, %v7615, %v7631
        %v7640 = vsel %vm7624, %v7616, %v7632
        %v7641 = vsel %vm7625, %v7617, %v7633
        %v7642 = vsel %vm7626, %v7618, %v7634
        %v7643 = vsel %vm7627, %v7619, %v7635
        %v7644 = vsel %vm7628, %v7620, %v7636
        %v7645 = vadd.f32 %v7637, 1.0
        %v7646 = vadd.f32 %v7638, 1.0
        %v7647 = vadd.f32 %v7639, 1.0
        %v7648 = vadd.f32 %v7640, 1.0
        %v7649 = vadd.f32 %v7641, 1.0
        %v7650 = vadd.f32 %v7642, 1.0
        %v7651 = vadd.f32 %v7643, 1.0
        %v7652 = vadd.f32 %v7644, 1.0
        %v7653 = vmul.f32 %v7445, %v7645
        %v7654 = vmul.f32 %v7446, %v7646
        %v7655 = vmul.f32 %v7447, %v7647
        %v7656 = vmul.f32 %v7448, %v7648
        %v7657 = vmul.f32 %v7449, %v7649
        %v7658 = vmul.f32 %v7450, %v7650
        %v7659 = vmul.f32 %v7451, %v7651
        %v7660 = vmul.f32 %v7452, %v7652
        %v7661 = vpack.c.bf16 %v7654, %v7653
        %v7662 = vpack.c.bf16 %v7656, %v7655
        %v7663 = vpack.c.bf16 %v7658, %v7657
        %v7664 = vpack.c.bf16 %v7660, %v7659
        %v7665 = vld [vmem:[%s11] sm:$0xf]
        %v7666 = vld [vmem:[%s11 + $0x4] sm:$0xf]
        %v7667 = vld [vmem:[%s11 + $0x8] sm:$0xf]
        %v7668 = vld [vmem:[%s11 + $0xc] sm:$0xf]
        %v7669 = vld [vmem:[%s11 + $0x10] sm:$0xf]
        %v7670 = vld [vmem:[%s11 + $0x14] sm:$0xf]
        %v7671 = vld [vmem:[%s11 + $0x18] sm:$0xf]
        %v7672 = vld [vmem:[%s11 + $0x1c] sm:$0xf]
        %v7673 = vld [vmem:[%s12] sm:$0x1]
        %v7675 = vlaneseq
        %v7676 = vshrl.u32 %v7675, 7
        %v7677 = vsub.s32 0, %v7676
        %v7678 = vrot.slane %v7673, %v7677
        %v7688 = vunpack.c.l.b16 %v7665
        %v7689 = vunpack.c.l.b16 %v7666
        %v7690 = vunpack.c.l.b16 %v7667
        %v7691 = vunpack.c.l.b16 %v7668
        %v7692 = vunpack.c.l.b16 %v7669
        %v7693 = vunpack.c.l.b16 %v7670
        %v7694 = vunpack.c.l.b16 %v7671
        %v7695 = vunpack.c.l.b16 %v7672
        %v7696 = vpack.c.b16 %v7689, %v7688
        %v7697 = vpack.c.b16 %v7691, %v7690
        %v7698 = vpack.c.b16 %v7693, %v7692
        %v7699 = vpack.c.b16 %v7695, %v7694
        %vm7704 = vcmask 523264
        %v7706 = vsel %vm7704, %v7661, 0
        %v7709 = vsel %vm7704, %v7662, 0
        %v7712 = vsel %vm7704, %v7663, 0
        %v7715 = vsel %vm7704, %v7664, 0
        %7717 = vmatprep.subr.bf16.mxu0 0
        %7718 = vmatpush1.bf16.msra.mxu0 %v7696
        %7719 = vmatprep.subr.bf16.mxu0 0
        %7720 = vmatpush1.bf16.msra.mxu0 %v7697
        %7721 = vmatprep.subr.bf16.mxu0 0
        %7722 = vmatpush1.bf16.msra.mxu0 %v7698
        %7723 = vmatprep.subr.bf16.mxu0 0
        %7724 = vmatpush1.bf16.msra.mxu0 %v7699
        %7725 = vmatprep.subr.bf16.mxu0 0
        %7726 = vmatpush1.bf16.msra.mxu0 0
        %7727 = vmatprep.subr.bf16.mxu0 0
        %7728 = vmatpush1.bf16.msra.mxu0 0
        %7729 = vmatprep.subr.bf16.mxu0 0
        %7730 = vmatpush1.bf16.msra.mxu0 0
        %7731 = vmatprep.subr.bf16.mxu0 0
        %7732 = vmatpush1.bf16.msra.mxu0 0
        %7733 = vmatprep.subr.bf16.mxu0 0
        %7734 = vmatpush1.bf16.msra.mxu0 0
        %7735 = vmatprep.subr.bf16.mxu0 0
        %7736 = vmatpush1.bf16.msra.mxu0 0
        %7737 = vmatprep.subr.bf16.mxu0 0
        %7738 = vmatpush1.bf16.msra.mxu0 0
        %7739 = vmatprep.subr.bf16.mxu0 0
        %7740 = vmatpush1.bf16.msra.mxu0 0
        %7741 = vmatprep.subr.bf16.mxu0 0
        %7742 = vmatpush1.bf16.msra.mxu0 0
        %7743 = vmatprep.subr.bf16.mxu0 0
        %7744 = vmatpush1.bf16.msra.mxu0 0
        %7745 = vmatprep.subr.bf16.mxu0 0
        %7746 = vmatpush1.bf16.msra.mxu0 0
        %7747 = vmatprep.subr.bf16.mxu0 0
        %7748 = vmatpush1.bf16.msra.mxu0 0
        %7749 = vmatprep.mubr.bf16.mxu0 0
        %7750 = vmatmul.mubr.bf16.gmra.mrb[0].mxu0 %v7706
        %v7751 = vpop.f32.mrb[0].mxu0
        %v7752 = vadd.f32 %v7678, %v7751
        %v7753 = vpop.f32.mrb[0].mxu0
        %v7754 = vpop.f32.mrb[0].mxu0
        %v7755 = vadd.f32 %v7678, %v7754
        %v7756 = vpop.f32.mrb[0].mxu0
        %7757 = vmatprep.mubr.bf16.mxu0 0
        %7758 = vmatmul.mubr.bf16.gmra.mrb[0].mxu0 %v7709
        %v7759 = vpop.f32.mrb[0].mxu0
        %v7760 = vadd.f32 %v7678, %v7759
        %v7761 = vpop.f32.mrb[0].mxu0
        %v7762 = vpop.f32.mrb[0].mxu0
        %v7763 = vadd.f32 %v7678, %v7762
        %v7764 = vpop.f32.mrb[0].mxu0
        %7765 = vmatprep.mubr.bf16.mxu0 0
        %7766 = vmatmul.mubr.bf16.gmra.mrb[0].mxu0 %v7712
        %v7767 = vpop.f32.mrb[0].mxu0
        %v7768 = vadd.f32 %v7678, %v7767
        %v7769 = vpop.f32.mrb[0].mxu0
        %v7770 = vpop.f32.mrb[0].mxu0
        %v7771 = vadd.f32 %v7678, %v7770
        %v7772 = vpop.f32.mrb[0].mxu0
        %7773 = vmatprep.mubr.bf16.mxu0 0
        %7774 = vmatmul.mubr.bf16.gmra.mrb[0].mxu0 %v7715
        %v7775 = vpop.f32.mrb[0].mxu0
        %v7776 = vadd.f32 %v7678, %v7775
        %v7777 = vpop.f32.mrb[0].mxu0
        %v7778 = vpop.f32.mrb[0].mxu0
        %v7779 = vadd.f32 %v7678, %v7778
        %v7780 = vpop.f32.mrb[0].mxu0
        %7781 = vdwg.mxu0
        %v7790 = vrot.slane %v7752, 1
        %v7791 = vrot.slane %v7752, 2
        %v7792 = vrot.slane %v7752, 3
        %v7793 = vrot.slane %v7752, 4
        %v7794 = vrot.slane %v7752, 5
        %v7795 = vrot.slane %v7752, 6
        %v7796 = vrot.slane %v7752, 7
        %v7797 = vrot.slane %v7755, 1
        %v7798 = vrot.slane %v7755, 2
        %v7799 = vrot.slane %v7755, 3
        %v7800 = vrot.slane %v7755, 4
        %v7801 = vrot.slane %v7755, 5
        %v7802 = vrot.slane %v7755, 6
        %v7803 = vrot.slane %v7755, 7
        %v7804 = vrot.slane %v7760, 1
        %v7805 = vrot.slane %v7760, 2
        %v7806 = vrot.slane %v7760, 3
        %v7807 = vrot.slane %v7760, 4
        %v7808 = vrot.slane %v7760, 5
        %v7809 = vrot.slane %v7760, 6
        %v7810 = vrot.slane %v7760, 7
        %v7811 = vrot.slane %v7763, 1
        %v7812 = vrot.slane %v7763, 2
        %v7813 = vrot.slane %v7763, 3
        %v7814 = vrot.slane %v7763, 4
        %v7815 = vrot.slane %v7763, 5
        %v7816 = vrot.slane %v7763, 6
        %v7817 = vrot.slane %v7763, 7
        %v7818 = vrot.slane %v7768, 1
        %v7819 = vrot.slane %v7768, 2
        %v7820 = vrot.slane %v7768, 3
        %v7821 = vrot.slane %v7768, 4
        %v7822 = vrot.slane %v7768, 5
        %v7823 = vrot.slane %v7768, 6
        %v7824 = vrot.slane %v7768, 7
        %v7825 = vrot.slane %v7771, 1
        %v7826 = vrot.slane %v7771, 2
        %v7827 = vrot.slane %v7771, 3
        %v7828 = vrot.slane %v7771, 4
        %v7829 = vrot.slane %v7771, 5
        %v7830 = vrot.slane %v7771, 6
        %v7831 = vrot.slane %v7771, 7
        %v7832 = vrot.slane %v7776, 1
        %v7833 = vrot.slane %v7776, 2
        %v7834 = vrot.slane %v7776, 3
        %v7835 = vrot.slane %v7776, 4
        %v7836 = vrot.slane %v7776, 5
        %v7837 = vrot.slane %v7776, 6
        %v7838 = vrot.slane %v7776, 7
        %v7839 = vrot.slane %v7779, 1
        %v7840 = vrot.slane %v7779, 2
        %v7841 = vrot.slane %v7779, 3
        %v7842 = vrot.slane %v7779, 4
        %v7843 = vrot.slane %v7779, 5
        %v7844 = vrot.slane %v7779, 6
        %v7845 = vrot.slane %v7779, 7
        %v7910 = vadd.f32 %v5935, %v7752
        %v7911 = vadd.f32 %v5936, %v7790
        %v7912 = vadd.f32 %v5937, %v7791
        %v7913 = vadd.f32 %v5938, %v7792
        %v7914 = vadd.f32 %v5939, %v7793
        %v7915 = vadd.f32 %v5940, %v7794
        %v7916 = vadd.f32 %v5941, %v7795
        %v7917 = vadd.f32 %v5942, %v7796
        %v7918 = vadd.f32 %v5943, %v7755
        %v7919 = vadd.f32 %v5944, %v7797
        %v7920 = vadd.f32 %v5945, %v7798
        %v7921 = vadd.f32 %v5946, %v7799
        %v7922 = vadd.f32 %v5947, %v7800
        %v7923 = vadd.f32 %v5948, %v7801
        %v7924 = vadd.f32 %v5949, %v7802
        %v7925 = vadd.f32 %v5950, %v7803
        %v7926 = vadd.f32 %v5951, %v7760
        %v7927 = vadd.f32 %v5952, %v7804
        %v7928 = vadd.f32 %v5953, %v7805
        %v7929 = vadd.f32 %v5954, %v7806
        %v7930 = vadd.f32 %v5955, %v7807
        %v7931 = vadd.f32 %v5956, %v7808
        %v7932 = vadd.f32 %v5957, %v7809
        %v7933 = vadd.f32 %v5958, %v7810
        %v7934 = vadd.f32 %v5959, %v7763
        %v7935 = vadd.f32 %v5960, %v7811
        %v7936 = vadd.f32 %v5961, %v7812
        %v7937 = vadd.f32 %v5962, %v7813
        %v7938 = vadd.f32 %v5963, %v7814
        %v7939 = vadd.f32 %v5964, %v7815
        %v7940 = vadd.f32 %v5965, %v7816
        %v7941 = vadd.f32 %v5966, %v7817
        %v7942 = vadd.f32 %v5967, %v7768
        %v7943 = vadd.f32 %v5968, %v7818
        %v7944 = vadd.f32 %v5969, %v7819
        %v7945 = vadd.f32 %v5970, %v7820
        %v7946 = vadd.f32 %v5971, %v7821
        %v7947 = vadd.f32 %v5972, %v7822
        %v7948 = vadd.f32 %v5973, %v7823
        %v7949 = vadd.f32 %v5974, %v7824
        %v7950 = vadd.f32 %v5975, %v7771
        %v7951 = vadd.f32 %v5976, %v7825
        %v7952 = vadd.f32 %v5977, %v7826
        %v7953 = vadd.f32 %v5978, %v7827
        %v7954 = vadd.f32 %v5979, %v7828
        %v7955 = vadd.f32 %v5980, %v7829
        %v7956 = vadd.f32 %v5981, %v7830
        %v7957 = vadd.f32 %v5982, %v7831
        %v7958 = vadd.f32 %v5983, %v7776
        %v7959 = vadd.f32 %v5984, %v7832
        %v7960 = vadd.f32 %v5985, %v7833
        %v7961 = vadd.f32 %v5986, %v7834
        %v7962 = vadd.f32 %v5987, %v7835
        %v7963 = vadd.f32 %v5988, %v7836
        %v7964 = vadd.f32 %v5989, %v7837
        %v7965 = vadd.f32 %v5990, %v7838
        %v7966 = vadd.f32 %v5991, %v7779
        %v7967 = vadd.f32 %v5992, %v7839
        %v7968 = vadd.f32 %v5993, %v7840
        %v7969 = vadd.f32 %v5994, %v7841
        %v7970 = vadd.f32 %v5995, %v7842
        %v7971 = vadd.f32 %v5996, %v7843
        %v7972 = vadd.f32 %v5997, %v7844
        %v7973 = vadd.f32 %v5998, %v7845
        %v7982 = vrot.slane %v7918, 7
        %v7983 = vrot.slane %v7919, 7
        %v7984 = vrot.slane %v7920, 7
        %v7985 = vrot.slane %v7921, 7
        %v7986 = vrot.slane %v7922, 7
        %v7987 = vrot.slane %v7923, 7
        %v7988 = vrot.slane %v7924, 7
        %v7989 = vrot.slane %v7925, 7
        %v8006 = vrot.slane %v7926, 6
        %v8007 = vrot.slane %v7927, 6
        %v8008 = vrot.slane %v7928, 6
        %v8009 = vrot.slane %v7929, 6
        %v8010 = vrot.slane %v7930, 6
        %v8011 = vrot.slane %v7931, 6
        %v8012 = vrot.slane %v7932, 6
        %v8013 = vrot.slane %v7933, 6
        %v8030 = vrot.slane %v7934, 5
        %v8031 = vrot.slane %v7935, 5
        %v8032 = vrot.slane %v7936, 5
        %v8033 = vrot.slane %v7937, 5
        %v8034 = vrot.slane %v7938, 5
        %v8035 = vrot.slane %v7939, 5
        %v8036 = vrot.slane %v7940, 5
        %v8037 = vrot.slane %v7941, 5
        %v8054 = vrot.slane %v7942, 4
        %v8055 = vrot.slane %v7943, 4
        %v8056 = vrot.slane %v7944, 4
        %v8057 = vrot.slane %v7945, 4
        %v8058 = vrot.slane %v7946, 4
        %v8059 = vrot.slane %v7947, 4
        %v8060 = vrot.slane %v7948, 4
        %v8061 = vrot.slane %v7949, 4
        %v8078 = vrot.slane %v7950, 3
        %v8079 = vrot.slane %v7951, 3
        %v8080 = vrot.slane %v7952, 3
        %v8081 = vrot.slane %v7953, 3
        %v8082 = vrot.slane %v7954, 3
        %v8083 = vrot.slane %v7955, 3
        %v8084 = vrot.slane %v7956, 3
        %v8085 = vrot.slane %v7957, 3
        %v8102 = vrot.slane %v7958, 2
        %v8103 = vrot.slane %v7959, 2
        %v8104 = vrot.slane %v7960, 2
        %v8105 = vrot.slane %v7961, 2
        %v8106 = vrot.slane %v7962, 2
        %v8107 = vrot.slane %v7963, 2
        %v8108 = vrot.slane %v7964, 2
        %v8109 = vrot.slane %v7965, 2
        %v8126 = vrot.slane %v7966, 1
        %v8127 = vrot.slane %v7967, 1
        %v8128 = vrot.slane %v7968, 1
        %v8129 = vrot.slane %v7969, 1
        %v8130 = vrot.slane %v7970, 1
        %v8131 = vrot.slane %v7971, 1
        %v8132 = vrot.slane %v7972, 1
        %v8133 = vrot.slane %v7973, 1
        %vm8142 = vcmask 1040384
        %v8143 = vsel %vm8142, %v7910, %v7982
        %v8144 = vsel %vm8142, %v7911, %v7983
        %v8145 = vsel %vm8142, %v7912, %v7984
        %v8146 = vsel %vm8142, %v7913, %v7985
        %v8147 = vsel %vm8142, %v7914, %v7986
        %v8148 = vsel %vm8142, %v7915, %v7987
        %v8149 = vsel %vm8142, %v7916, %v7988
        %v8150 = vsel %vm8142, %v7917, %v7989
        %vm8151 = vcmask 1041408
        %v8152 = vsel %vm8151, %v8143, %v8006
        %v8153 = vsel %vm8151, %v8144, %v8007
        %v8154 = vsel %vm8151, %v8145, %v8008
        %v8155 = vsel %vm8151, %v8146, %v8009
        %v8156 = vsel %vm8151, %v8147, %v8010
        %v8157 = vsel %vm8151, %v8148, %v8011
        %v8158 = vsel %vm8151, %v8149, %v8012
        %v8159 = vsel %vm8151, %v8150, %v8013
        %vm8160 = vcmask 1042432
        %v8161 = vsel %vm8160, %v8152, %v8030
        %v8162 = vsel %vm8160, %v8153, %v8031
        %v8163 = vsel %vm8160, %v8154, %v8032
        %v8164 = vsel %vm8160, %v8155, %v8033
        %v8165 = vsel %vm8160, %v8156, %v8034
        %v8166 = vsel %vm8160, %v8157, %v8035
        %v8167 = vsel %vm8160, %v8158, %v8036
        %v8168 = vsel %vm8160, %v8159, %v8037
        %v8169 = vsel %vm4049, %v8161, %v8054
        %v8170 = vsel %vm4049, %v8162, %v8055
        %v8171 = vsel %vm4049, %v8163, %v8056
        %v8172 = vsel %vm4049, %v8164, %v8057
        %v8173 = vsel %vm4049, %v8165, %v8058
        %v8174 = vsel %vm4049, %v8166, %v8059
        %v8175 = vsel %vm4049, %v8167, %v8060
        %v8176 = vsel %vm4049, %v8168, %v8061
        %vm8177 = vcmask 1044480
        %v8178 = vsel %vm8177, %v8169, %v8078
        %v8179 = vsel %vm8177, %v8170, %v8079
        %v8180 = vsel %vm8177, %v8171, %v8080
        %v8181 = vsel %vm8177, %v8172, %v8081
        %v8182 = vsel %vm8177, %v8173, %v8082
        %v8183 = vsel %vm8177, %v8174, %v8083
        %v8184 = vsel %vm8177, %v8175, %v8084
        %v8185 = vsel %vm8177, %v8176, %v8085
        %vm8186 = vcmask 1045504
        %v8187 = vsel %vm8186, %v8178, %v8102
        %v8188 = vsel %vm8186, %v8179, %v8103
        %v8189 = vsel %vm8186, %v8180, %v8104
        %v8190 = vsel %vm8186, %v8181, %v8105
        %v8191 = vsel %vm8186, %v8182, %v8106
        %v8192 = vsel %vm8186, %v8183, %v8107
        %v8193 = vsel %vm8186, %v8184, %v8108
        %v8194 = vsel %vm8186, %v8185, %v8109
        %vm8195 = vcmask 1046528
        %v8196 = vsel %vm8195, %v8187, %v8126
        %v8197 = vsel %vm8195, %v8188, %v8127
        %v8198 = vsel %vm8195, %v8189, %v8128
        %v8199 = vsel %vm8195, %v8190, %v8129
        %v8200 = vsel %vm8195, %v8191, %v8130
        %v8201 = vsel %vm8195, %v8192, %v8131
        %v8202 = vsel %vm8195, %v8193, %v8132
        %v8203 = vsel %vm8195, %v8194, %v8133
        %8204 = vst.msk [vmem:[%s457] sm:$0xff] %vm709, %v8196
        %8205 = vst.msk [vmem:[%s457 + $0x8] sm:$0xff] %vm709, %v8197
        %8206 = vst.msk [vmem:[%s457 + $0x10] sm:$0xff] %vm709, %v8198
        %8207 = vst.msk [vmem:[%s457 + $0x18] sm:$0xff] %vm709, %v8199
        %8208 = vst.msk [vmem:[%s457 + $0x20] sm:$0xff] %vm709, %v8200
        %8209 = vst.msk [vmem:[%s457 + $0x28] sm:$0xff] %vm709, %v8201
        %8210 = vst.msk [vmem:[%s457 + $0x30] sm:$0xff] %vm709, %v8202
        %8211 = vst.msk [vmem:[%s457 + $0x38] sm:$0xff] %vm709, %v8203
        %s8212 = sand.u32 %s316, 1
        %s8213 = scalar_lea.sflag [#allocation4], %s8212
        %s8214 = sand.u32 %s316, 1
        %s8215 = smul.addr %s8214, 64
        %s8216 = scalar_lea.vmem [#allocation5], %s8215
        // Predicated region
        $region77: #{transformer_encoder.1} parent=71 // pred_check
          %p8217 = pneg %p326
        $region78: #{transformer_encoder.1} parent=71 // pred_check_branch
          %8219 = sbr.rel (%p8217) target = $region80
        $region79: #{transformer_encoder.1} parent=71 // pred_region
          %s8221 = ssub.s32 1024, 1024
          %8222 = vsyncadd %s8213, %s8221
          %s8223 = smul.addr %s30, 128
          %s8224 = scalar_lea.hbm %s13, %s8223
          %s8225 = sshll.u32 %s8216, 4
          %s8226 = int_to_ptr.vmem [resolvable:$true] %s8225
          %8231 = dma.vmem_to_hbm [thread:$0]  %s8226, 1024, %s8224, %s8213, 128, 256, 8
        $region80: #{transformer_encoder.1} parent=71 // pred_fallthru
          _
      $region72: #{transformer_encoder.1} parent=5 // pred_fallthru
        _
      %p8232 = scmp.le.s32.totalorder 2, %s25
      // Predicated region
      $region81: #{transformer_encoder.1} parent=5 // pred_check
        %p8233 = pneg %p8232
      $region82: #{transformer_encoder.1} parent=5 // pred_check_branch
        %8235 = sbr.rel (%p8233) target = $region84
      $region83: #{transformer_encoder.1} parent=5 // pred_region
        %s8236 = ssub.s32 %s25, 2
        // Predicated region
        $region85: #{transformer_encoder.1} parent=83 // pred_check
          %p8237 = pneg %p332
        $region86: #{transformer_encoder.1} parent=83 // pred_check_branch
          %8239 = sbr.rel (%p8237) target = $region88
        $region87: #{transformer_encoder.1} parent=83 // pred_region
          %s8240 = sand.u32 %s317, 1
          %s8241 = scalar_lea.sflag [#allocation4], %s8240
          %s8242 = sand.u32 %s317, 1
          %s8243 = smul.addr %s8242, 64
          %s8244 = scalar_lea.vmem [#allocation5], %s8243
          %8245 = dma.done %s8241, 1024
        $region88: #{transformer_encoder.1} parent=83 // pred_fallthru
          _
      $region84: #{transformer_encoder.1} parent=5 // pred_fallthru
        _
    $region6: #{transformer_encoder.1} parent=1 // loop_footer
      %s29 = sadd.s32 1, %s25
    $region7: #{transformer_encoder.1} parent=1 // loop_footer_branch
      %24 = sbr.rel target = $region3
    $region8: #{transformer_encoder.1} parent=1 // loop_exit
      _
    %8246 = vsyncpa [#allocation3], 1
    %s8247 = scalar_lea.sflag [#allocation3], 1
    %8248 = vsyncpa %s8247, 1
    %8249 = vsyncpa [#allocation4], 1
    %s8250 = scalar_lea.sflag [#allocation4], 1
    %8251 = vsyncpa %s8250, 1

</llo_original>
